<compile_context>
chip_gen: v5e
topology: v5e:2x2
jax: 0.10.0
libtpu: 0.0.40
codegen_flags: <defaults>
</compile_context>

<pallas_src>
import functools

import jax
import jax.numpy as jnp
from jax.experimental import pallas as pl
from jax.experimental.pallas import tpu as pltpu


_PAD_COL = 8   # sublane-aligned column offset of x inside the halo scratch


@functools.lru_cache(maxsize=None)
def _compute_dtype():
    """bf16 taps/im2col on chips with a bf16 VALU (v6e/v7x); f32 elsewhere (v5e)."""
    try:
        kind = jax.devices()[0].device_kind.lower()
    except Exception:
        return jnp.float32
    if ("v6" in kind) or ("v7" in kind) or ("tpu7" in kind):
        return jnp.bfloat16
    return jnp.float32


@functools.lru_cache(maxsize=None)
def _vmem_limit_bytes():
    """Generation-aware scoped-VMEM limit: ~70% of physical, capped at 100 MiB."""
    cap = 128 * 1024 * 1024
    try:
        cap = int(pltpu.get_tpu_info().vmem_capacity_bytes)
    except Exception:
        pass
    return min(100 * 1024 * 1024, int(cap * 0.7))


def _pad_scratch_shape(h, w, c):
    # rows: 1 zero row + h + 1 zero row; cols: x lives at [_PAD_COL, _PAD_COL+w),
    # zero halo columns at _PAD_COL-1 and _PAD_COL+w.
    return (h + 2, w + _PAD_COL + 1, c)


def _zero_halo_border(pad_ref, h, w, c):
    """Zero only the 1-pixel halo border the 3x3 taps read; the interior
    [1:h+1, _PAD_COL:_PAD_COL+w) is fully overwritten by every _make_taps."""
    dt = pad_ref.dtype
    lo, hi = _PAD_COL - 1, _PAD_COL + w + 1
    pad_ref[0:1, lo:hi, :] = jnp.zeros((1, hi - lo, c), dt)          # top row
    pad_ref[h + 1:h + 2, lo:hi, :] = jnp.zeros((1, hi - lo, c), dt)  # bottom row
    pad_ref[1:h + 1, lo:lo + 1, :] = jnp.zeros((h, 1, c), dt)        # left halo col
    pad_ref[1:h + 1, hi - 1:hi, :] = jnp.zeros((h, 1, c), dt)        # right halo col


def _make_taps(val_hwc, pad_ref):
    """Write val (H, W, C) into the zero-bordered halo scratch (aligned store)
    and return the nine 3x3-shifted (H*W, C) patches (in pad_ref.dtype)."""
    h, w, c = val_hwc.shape
    pad_ref[1:h + 1, _PAD_COL:_PAD_COL + w, :] = val_hwc.astype(pad_ref.dtype)
    return [
        pad_ref[kh:kh + h, _PAD_COL - 1 + kw:_PAD_COL - 1 + kw + w, :].reshape(h * w, c)
        for kh in range(3) for kw in range(3)
    ]


# ----------------------------------------------------------------------------
# Pallas kernels
# ----------------------------------------------------------------------------
def conv3x3_kernel(*refs, add_res, has_sub, out_nchw):
    """3x3 conv as a single im2col matmul.

    x_ref: (1, H, W, Cin)   w_ref: (9*Cin, Cout) bf16   b_ref: (1, Cout) f32
    [sub_ref: (1, Cin) f32]   [res_ref: (1, H, W, Cout)]
    o_ref: (1, H, W, Cout)  or  (1, Cout, H*W) when out_nchw (lane-dense store)
    pad_ref: VMEM halo scratch (H+2, W+_PAD_COL+1, Cin)
    """
    pos = 0
    x_ref = refs[pos]; pos += 1
    w_ref = refs[pos]; pos += 1
    b_ref = refs[pos]; pos += 1
    sub_ref = None
    if has_sub:
        sub_ref = refs[pos]; pos += 1
    res_ref = None
    if add_res:
        res_ref = refs[pos]; pos += 1
    o_ref, pad_ref = refs[pos], refs[pos + 1]

    _, h, w, cin = x_ref.shape
    cout = b_ref.shape[-1]

    _zero_halo_border(pad_ref, h, w, cin)
    x = x_ref[0]
    if has_sub:
        x = x - sub_ref[...]                              # fused sub_mean (exact)
    taps = _make_taps(x, pad_ref)
    # im2col patch materialized once in bf16 (MXU operand dtype anyway)
    patch = jnp.concatenate([t.astype(jnp.bfloat16) for t in taps], axis=-1)
    out = jnp.dot(patch, w_ref[...], preferred_element_type=jnp.float32)
    out = out + b_ref[...]
    if add_res:                                           # fused skip-add epilogue
        out = out + res_ref[0].astype(jnp.float32).reshape(h * w, cout)
    if out_nchw:
        # lane-dense store: (H*W, Cout) -> (Cout, H*W); wrapper reshape to NCHW is free
        o_ref[0] = out.T.astype(o_ref.dtype)
    else:
        o_ref[0] = out.reshape(h, w, cout).astype(o_ref.dtype)


def resgroup_kernel(x_ref, dw_ref, dwb_ref, pw_ref, pwb_ref, gw_ref, gb_ref,
                    o_ref, pad_ref, *, n_blocks):
    """Fused ResidualGroup: n_blocks MEuler blocks + 3x3 conv + residual add.

    x_ref  : (1, H, W, C) f32
    dw_ref : (4*n_blocks, 9, C) f32    depthwise 3x3 weights (tap-major)
    dwb_ref: (4*n_blocks, 1, C) f32
    pw_ref : (4*n_blocks, C, C) bf16   pointwise 1x1 weights
    pwb_ref: (4*n_blocks, 1, C) f32
    gw_ref : (9*C, C) bf16             group-end 3x3 conv (im2col layout)
    gb_ref : (1, C) f32
    pad_ref: VMEM halo scratch, reused for every conv (dtype = compute dtype)
    """
    _, h, w, c = x_ref.shape
    cdt = pad_ref.dtype
    _zero_halo_border(pad_ref, h, w, c)                   # border stays zero throughout

    def sepconv(val, idx, relu):
        taps = _make_taps(val, pad_ref)
        dw = dw_ref[idx].astype(cdt)                      # (9, C) hoisted weight load
        dwb = dwb_ref[idx].astype(cdt)                    # (1, C)
        # depthwise 3x3: nine VPU multiply-accumulates (bf16 on v6e/v7x, f32 on v5e)
        acc = taps[0] * dw[0:1, :]
        for t in range(1, 9):
            acc = acc + taps[t] * dw[t:t + 1, :]
        acc = acc + dwb
        # pointwise 1x1: MXU, bf16 operands, f32 accumulation
        out = jnp.dot(acc.astype(jnp.bfloat16), pw_ref[idx],
                      preferred_element_type=jnp.float32)
        out = out + pwb_ref[idx]
        if relu:
            out = jnp.maximum(out, 0.0)
        return out.reshape(h, w, c)

    x = x_ref[0].astype(jnp.float32)
    y = x
    for blk in range(n_blocks):                           # MEuler blocks, VMEM-resident
        i = 4 * blk
        r1 = sepconv(y, i + 0, relu=True)
        r1 = sepconv(r1, i + 1, relu=False)
        out = y + r1
        r2 = sepconv(out, i + 2, relu=True)
        r2 = sepconv(r2, i + 3, relu=False)
        y = out + 0.5 * (r1 + r2)

    # group-end 3x3 conv (im2col single matmul) + fused group residual add
    taps = _make_taps(y, pad_ref)
    patch = jnp.concatenate([t.astype(jnp.bfloat16) for t in taps], axis=-1)
    g = jnp.dot(patch, gw_ref[...], preferred_element_type=jnp.float32)
    g = g + gb_ref[...]
    o_ref[0] = (g.reshape(h, w, c) + x).astype(o_ref.dtype)


# ----------------------------------------------------------------------------
# pallas_call wrappers (grid over batch; whole-image blocks at these sizes)
# ----------------------------------------------------------------------------
def conv3x3(x, w, b, *, residual=None, sub=None, out_nchw=False):
    n, h, wd, cin = x.shape
    cout = w.shape[-1]
    # W multiple of 8 keeps the in-kernel (h,w,c)->(h*w,c) reshape a free sublane merge
    assert wd % 8 == 0, "width tile must be a multiple of 8"
    add_res = residual is not None
    has_sub = sub is not None

    in_specs = [
        pl.BlockSpec((1, h, wd, cin), lambda i: (i, 0, 0, 0)),
        pl.BlockSpec((9 * cin, cout), lambda i: (0, 0)),
        pl.BlockSpec((1, cout), lambda i: (0, 0)),
    ]
    args = [x, w, b]
    if has_sub:
        in_specs.append(pl.BlockSpec((1, cin), lambda i: (0, 0)))
        args.append(sub)
    if add_res:
        in_specs.append(pl.BlockSpec((1, h, wd, cout), lambda i: (i, 0, 0, 0)))
        args.append(residual)

    if out_nchw:
        out_shape = jax.ShapeDtypeStruct((n, cout, h * wd), x.dtype)
        out_spec = pl.BlockSpec((1, cout, h * wd), lambda i: (i, 0, 0))
    else:
        out_shape = jax.ShapeDtypeStruct((n, h, wd, cout), x.dtype)
        out_spec = pl.BlockSpec((1, h, wd, cout), lambda i: (i, 0, 0, 0))

    y = pl.pallas_call(
        functools.partial(conv3x3_kernel, add_res=add_res, has_sub=has_sub,
                          out_nchw=out_nchw),
        out_shape=out_shape,
        grid=(n,),
        in_specs=in_specs,
        out_specs=out_spec,
        scratch_shapes=[pltpu.VMEM(_pad_scratch_shape(h, wd, cin), _compute_dtype())],
        compiler_params=pltpu.CompilerParams(
            dimension_semantics=("parallel",),
            vmem_limit_bytes=_vmem_limit_bytes()),
    )(*args)
    if out_nchw:
        y = y.reshape(n, cout, h, wd)   # free view -> NCHW
    return y


def residual_group(x, gp):
    n, h, wd, c = x.shape
    nb4 = gp["dw"].shape[0]
    n_blocks = nb4 // 4
    flops = n * (n_blocks * 4 * (18 * h * wd * c + 2 * h * wd * c * c)
                 + 18 * h * wd * c * c)
    weights = (gp["dw"], gp["dwb"], gp["pw"], gp["pwb"], gp["gw"], gp["gb"])
    bytes_accessed = 2 * x.size * x.dtype.itemsize + sum(
        int(a.size) * a.dtype.itemsize for a in weights)

    return pl.pallas_call(
        functools.partial(resgroup_kernel, n_blocks=n_blocks),
        out_shape=jax.ShapeDtypeStruct((n, h, wd, c), x.dtype),
        grid=(n,),
        in_specs=[
            pl.BlockSpec((1, h, wd, c), lambda i: (i, 0, 0, 0)),
            pl.BlockSpec((nb4, 9, c), lambda i: (0, 0, 0)),
            pl.BlockSpec((nb4, 1, c), lambda i: (0, 0, 0)),
            pl.BlockSpec((nb4, c, c), lambda i: (0, 0, 0)),
            pl.BlockSpec((nb4, 1, c), lambda i: (0, 0, 0)),
            pl.BlockSpec((9 * c, c), lambda i: (0, 0)),
            pl.BlockSpec((1, c), lambda i: (0, 0)),
        ],
        out_specs=pl.BlockSpec((1, h, wd, c), lambda i: (i, 0, 0, 0)),
        scratch_shapes=[pltpu.VMEM(_pad_scratch_shape(h, wd, c), _compute_dtype())],
        compiler_params=pltpu.CompilerParams(
            dimension_semantics=("parallel",),
            vmem_limit_bytes=_vmem_limit_bytes()),
        cost_estimate=pl.CostEstimate(flops=flops, transcendentals=0,
                                      bytes_accessed=bytes_accessed),
    )(x, gp["dw"], gp["dwb"], gp["pw"], gp["pwb"], gp["gw"], gp["gb"])


# ----------------------------------------------------------------------------
# Model glue (layout ops only) in plain JAX
# ----------------------------------------------------------------------------
def pixel_shuffle_nhwc(x, r):
    # out[n, h*r+i, w*r+j, c] = x[n, h, w, c*r*r + i*r + j]  (PyTorch order)
    n, h, w, cr2 = x.shape
    c = cr2 // (r * r)
    x = x.reshape(n, h, w, c, r, r)
    x = x.transpose(0, 1, 4, 2, 5, 3)
    return x.reshape(n, h * r, w * r, c)


def xyj_forward(x_nchw, params, rgb_range=1.0):
    mean = (jnp.asarray([0.4488, 0.4371, 0.404], jnp.float32) * rgb_range)[None, :]
    x = jnp.transpose(x_nchw, (0, 2, 3, 1))              # NCHW -> NHWC
    x = conv3x3(x, *params["head"], sub=mean)            # head conv, sub_mean fused
    skip = x
    y = x
    for gp in params["groups"]:                          # body: one fused kernel/group
        y = residual_group(y, gp)
    y = conv3x3(y, *params["body_conv"], residual=skip)  # body conv + skip (fused add)
    y = conv3x3(y, *params["up_conv"])                   # tail: upsampler conv (4*feats)
    y = pixel_shuffle_nhwc(y, 2)                         # tail: PixelShuffle(2)
    tw, tb = params["tail_conv"]
    # tail conv: lane-dense NCHW output, add_mean folded into the bias
    y = conv3x3(y, tw, tb + mean, out_nchw=True)
    return y                                             # already NCHW


# ----------------------------------------------------------------------------
# Deterministic synthetic parameter init
# ----------------------------------------------------------------------------
def _conv3x3_params(key, cin, cout, scale=0.05):
    k1, k2 = jax.random.split(key)
    w = scale * jax.random.normal(k1, (9 * cin, cout), jnp.float32)
    b = scale * jax.random.normal(k2, (1, cout), jnp.float32)
    return (w.astype(jnp.bfloat16), b)


def _group_params(key, n_feats, n_resblocks, scale=0.05):
    nb4 = 4 * n_resblocks                 # sepconvs per group: [r1a, r1b, r2a, r2b] x blocks
    k = jax.random.split(key, 5)
    dw = scale * jax.random.normal(k[0], (nb4, 9, n_feats), jnp.float32)
    dwb = scale * jax.random.normal(k[1], (nb4, 1, n_feats), jnp.float32)
    pw = scale * jax.random.normal(k[2], (nb4, n_feats, n_feats), jnp.float32)
    pwb = scale * jax.random.normal(k[3], (nb4, 1, n_feats), jnp.float32)
    gw, gb = _conv3x3_params(k[4], n_feats, n_feats, scale)
    return {"dw": dw, "dwb": dwb, "pw": pw.astype(jnp.bfloat16), "pwb": pwb,
            "gw": gw, "gb": gb}


def init_params(key, n_colors, n_feats, n_resgroups, n_resblocks):
    keys = iter(jax.random.split(key, 8 + n_resgroups))
    params = {"head": _conv3x3_params(next(keys), n_colors, n_feats)}
    params["groups"] = [_group_params(next(keys), n_feats, n_resblocks)
                        for _ in range(n_resgroups)]
    params["body_conv"] = _conv3x3_params(next(keys), n_feats, n_feats)
    params["up_conv"] = _conv3x3_params(next(keys), n_feats, 4 * n_feats)
    params["tail_conv"] = _conv3x3_params(next(keys), n_feats, n_colors)
    return params


# ----------------------------------------------------------------------------
if __name__ == "__main__":
    # small config: n_colors=3, n_feats=32, n_resgroups=2, n_resblocks=2, scale=2
    N, C, H, W = 2, 3, 8, 8
    n_feats, n_resgroups, n_resblocks = 32, 2, 2
    rgb_range = 1.0

    key = jax.random.PRNGKey(0)
    kx, kp = jax.random.split(key)
    x = jax.random.uniform(kx, (N, C, H, W), jnp.float32)   # NCHW like PyTorch
    params = init_params(kp, C, n_feats, n_resgroups, n_resblocks)

    fwd = jax.jit(functools.partial(xyj_forward, rgb_range=rgb_range))
    out = jax.block_until_ready(fwd(x, params))

    assert out.shape == (N, C, 2 * H, 2 * W), out.shape
    assert bool(jnp.all(jnp.isfinite(out)))
    print("KERNEL_OK")
</pallas_src>

<mosaic_0001>
module attributes {stable_mosaic.version = 11 : i64} {
  func.func @conv3x3_kernel(%arg0: i32, %arg1: memref<1x8x8x3xf32, #tpu.memory_space<vmem>>, %arg2: memref<27x32xbf16, #tpu.memory_space<vmem>>, %arg3: memref<1x32xf32, #tpu.memory_space<vmem>>, %arg4: memref<1x3xf32, #tpu.memory_space<vmem>>, %arg5: memref<1x8x8x32xf32, #tpu.memory_space<vmem>>, %arg6: memref<10x17x3xf32, #tpu.memory_space<vmem>>) attributes {dimension_semantics = [#tpu.dimension_semantics<parallel>], iteration_bounds = array<i64: 2>, scalar_prefetch = 0 : i64, scratch_operands = 1 : i64, tpu.core_type = #tpu.core_type<tc>, window_params = [{transform_indices = @transform_0, window_bounds = array<i64: 1, 8, 8, 3>}, {pipeline_mode = #tpu.pipeline_mode<synchronous>, transform_indices = @transform_1, window_bounds = array<i64: 27, 32>}, {pipeline_mode = #tpu.pipeline_mode<synchronous>, transform_indices = @transform_2, window_bounds = array<i64: 1, 32>}, {pipeline_mode = #tpu.pipeline_mode<synchronous>, transform_indices = @transform_3, window_bounds = array<i64: 1, 3>}, {transform_indices = @transform_4, window_bounds = array<i64: 1, 8, 8, 32>}]} {
    %cst = arith.constant 0.000000e+00 : f32
    %0 = vector.broadcast %cst : f32 to vector<1x10x3xf32>
    %c0 = arith.constant 0 : index
    %c7 = arith.constant 7 : index
    %c0_0 = arith.constant 0 : index
    %1 = vector.load %arg6[%c0, %c7, %c0_0] : memref<10x17x3xf32, #tpu.memory_space<vmem>>, vector<1x10x3xf32>
    tpu.vector_store %arg6[%c0, %c7, %c0_0], %0 {strides = array<i32>} : memref<10x17x3xf32, #tpu.memory_space<vmem>>, vector<1x10x3xf32>,
    %cst_1 = arith.constant 0.000000e+00 : f32
    %2 = vector.broadcast %cst_1 : f32 to vector<1x10x3xf32>
    %c9 = arith.constant 9 : index
    %c7_2 = arith.constant 7 : index
    %c0_3 = arith.constant 0 : index
    %3 = vector.load %arg6[%c9, %c7_2, %c0_3] : memref<10x17x3xf32, #tpu.memory_space<vmem>>, vector<1x10x3xf32>
    tpu.vector_store %arg6[%c9, %c7_2, %c0_3], %2 {strides = array<i32>} : memref<10x17x3xf32, #tpu.memory_space<vmem>>, vector<1x10x3xf32>,
    %cst_4 = arith.constant 0.000000e+00 : f32
    %4 = vector.broadcast %cst_4 : f32 to vector<8x1x3xf32>
    %c1 = arith.constant 1 : index
    %c7_5 = arith.constant 7 : index
    %c0_6 = arith.constant 0 : index
    %5 = vector.load %arg6[%c1, %c7_5, %c0_6] : memref<10x17x3xf32, #tpu.memory_space<vmem>>, vector<8x1x3xf32>
    tpu.vector_store %arg6[%c1, %c7_5, %c0_6], %4 {strides = array<i32>} : memref<10x17x3xf32, #tpu.memory_space<vmem>>, vector<8x1x3xf32>,
    %cst_7 = arith.constant 0.000000e+00 : f32
    %6 = vector.broadcast %cst_7 : f32 to vector<8x1x3xf32>
    %c1_8 = arith.constant 1 : index
    %c16 = arith.constant 16 : index
    %c0_9 = arith.constant 0 : index
    %7 = vector.load %arg6[%c1_8, %c16, %c0_9] : memref<10x17x3xf32, #tpu.memory_space<vmem>>, vector<8x1x3xf32>
    tpu.vector_store %arg6[%c1_8, %c16, %c0_9], %6 {strides = array<i32>} : memref<10x17x3xf32, #tpu.memory_space<vmem>>, vector<8x1x3xf32>,
    %c0_10 = arith.constant 0 : index
    %c0_11 = arith.constant 0 : index
    %c0_12 = arith.constant 0 : index
    %c0_13 = arith.constant 0 : index
    %8 = vector.load %arg1[%c0_10, %c0_11, %c0_12, %c0_13] : memref<1x8x8x3xf32, #tpu.memory_space<vmem>>, vector<1x8x8x3xf32>
    %9 = vector.shape_cast %8 : vector<1x8x8x3xf32> to vector<8x8x3xf32>
    %c0_14 = arith.constant 0 : index
    %c0_15 = arith.constant 0 : index
    %10 = vector.load %arg4[%c0_14, %c0_15] : memref<1x3xf32, #tpu.memory_space<vmem>>, vector<1x3xf32>
    %11 = vector.shape_cast %10 : vector<1x3xf32> to vector<1x1x3xf32>
    %12 = vector.broadcast %11 : vector<1x1x3xf32> to vector<8x8x3xf32>
    %13 = arith.subf %9, %12 : vector<8x8x3xf32>
    %c1_16 = arith.constant 1 : index
    %c8 = arith.constant 8 : index
    %c0_17 = arith.constant 0 : index
    %14 = vector.load %arg6[%c1_16, %c8, %c0_17] : memref<10x17x3xf32, #tpu.memory_space<vmem>>, vector<8x8x3xf32>
    tpu.vector_store %arg6[%c1_16, %c8, %c0_17], %13 {strides = array<i32>} : memref<10x17x3xf32, #tpu.memory_space<vmem>>, vector<8x8x3xf32>,
    %c0_18 = arith.constant 0 : index
    %c7_19 = arith.constant 7 : index
    %c0_20 = arith.constant 0 : index
    %15 = vector.load %arg6[%c0_18, %c7_19, %c0_20] : memref<10x17x3xf32, #tpu.memory_space<vmem>>, vector<8x8x3xf32>
    %16 = vector.shape_cast %15 : vector<8x8x3xf32> to vector<64x3xf32>
    %c0_21 = arith.constant 0 : index
    %c8_22 = arith.constant 8 : index
    %c0_23 = arith.constant 0 : index
    %17 = vector.load %arg6[%c0_21, %c8_22, %c0_23] : memref<10x17x3xf32, #tpu.memory_space<vmem>>, vector<8x8x3xf32>
    %18 = vector.shape_cast %17 : vector<8x8x3xf32> to vector<64x3xf32>
    %c0_24 = arith.constant 0 : index
    %c9_25 = arith.constant 9 : index
    %c0_26 = arith.constant 0 : index
    %19 = vector.load %arg6[%c0_24, %c9_25, %c0_26] : memref<10x17x3xf32, #tpu.memory_space<vmem>>, vector<8x8x3xf32>
    %20 = vector.shape_cast %19 : vector<8x8x3xf32> to vector<64x3xf32>
    %c1_27 = arith.constant 1 : index
    %c7_28 = arith.constant 7 : index
    %c0_29 = arith.constant 0 : index
    %21 = vector.load %arg6[%c1_27, %c7_28, %c0_29] : memref<10x17x3xf32, #tpu.memory_space<vmem>>, vector<8x8x3xf32>
    %22 = vector.shape_cast %21 : vector<8x8x3xf32> to vector<64x3xf32>
    %c1_30 = arith.constant 1 : index
    %c8_31 = arith.constant 8 : index
    %c0_32 = arith.constant 0 : index
    %23 = vector.load %arg6[%c1_30, %c8_31, %c0_32] : memref<10x17x3xf32, #tpu.memory_space<vmem>>, vector<8x8x3xf32>
    %24 = vector.shape_cast %23 : vector<8x8x3xf32> to vector<64x3xf32>
    %c1_33 = arith.constant 1 : index
    %c9_34 = arith.constant 9 : index
    %c0_35 = arith.constant 0 : index
    %25 = vector.load %arg6[%c1_33, %c9_34, %c0_35] : memref<10x17x3xf32, #tpu.memory_space<vmem>>, vector<8x8x3xf32>
    %26 = vector.shape_cast %25 : vector<8x8x3xf32> to vector<64x3xf32>
    %c2 = arith.constant 2 : index
    %c7_36 = arith.constant 7 : index
    %c0_37 = arith.constant 0 : index
    %27 = vector.load %arg6[%c2, %c7_36, %c0_37] : memref<10x17x3xf32, #tpu.memory_space<vmem>>, vector<8x8x3xf32>
    %28 = vector.shape_cast %27 : vector<8x8x3xf32> to vector<64x3xf32>
    %c2_38 = arith.constant 2 : index
    %c8_39 = arith.constant 8 : index
    %c0_40 = arith.constant 0 : index
    %29 = vector.load %arg6[%c2_38, %c8_39, %c0_40] : memref<10x17x3xf32, #tpu.memory_space<vmem>>, vector<8x8x3xf32>
    %30 = vector.shape_cast %29 : vector<8x8x3xf32> to vector<64x3xf32>
    %c2_41 = arith.constant 2 : index
    %c9_42 = arith.constant 9 : index
    %c0_43 = arith.constant 0 : index
    %31 = vector.load %arg6[%c2_41, %c9_42, %c0_43] : memref<10x17x3xf32, #tpu.memory_space<vmem>>, vector<8x8x3xf32>
    %32 = vector.shape_cast %31 : vector<8x8x3xf32> to vector<64x3xf32>
    %33 = arith.truncf %16 : vector<64x3xf32> to vector<64x3xbf16>
    %34 = arith.truncf %18 : vector<64x3xf32> to vector<64x3xbf16>
    %35 = arith.truncf %20 : vector<64x3xf32> to vector<64x3xbf16>
    %36 = arith.truncf %22 : vector<64x3xf32> to vector<64x3xbf16>
    %37 = arith.truncf %24 : vector<64x3xf32> to vector<64x3xbf16>
    %38 = arith.truncf %26 : vector<64x3xf32> to vector<64x3xbf16>
    %39 = arith.truncf %28 : vector<64x3xf32> to vector<64x3xbf16>
    %40 = arith.truncf %30 : vector<64x3xf32> to vector<64x3xbf16>
    %41 = arith.truncf %32 : vector<64x3xf32> to vector<64x3xbf16>
    %42 = tpu.concatenate %33, %34, %35, %36, %37, %38, %39, %40, %41 in 1 : vector<64x3xbf16>, vector<64x3xbf16>, vector<64x3xbf16>, vector<64x3xbf16>, vector<64x3xbf16>, vector<64x3xbf16>, vector<64x3xbf16>, vector<64x3xbf16>, vector<64x3xbf16> -> vector<64x27xbf16>
    %c0_44 = arith.constant 0 : index
    %c0_45 = arith.constant 0 : index
    %43 = vector.load %arg2[%c0_44, %c0_45] : memref<27x32xbf16, #tpu.memory_space<vmem>>, vector<27x32xbf16>
    %cst_46 = arith.constant dense<0.000000e+00> : vector<64x32xf32>
    %44 = tpu.matmul %42, %43, %cst_46 {dimension_numbers = #tpu.dot_dimension_numbers<[1], [0], [0], [1], [0, 0, 1, 1], [], []>} : vector<64x27xbf16>, vector<27x32xbf16>, vector<64x32xf32> -> vector<64x32xf32>
    %c0_47 = arith.constant 0 : index
    %c0_48 = arith.constant 0 : index
    %45 = vector.load %arg3[%c0_47, %c0_48] : memref<1x32xf32, #tpu.memory_space<vmem>>, vector<1x32xf32>
    %46 = vector.broadcast %45 : vector<1x32xf32> to vector<64x32xf32>
    %47 = arith.addf %44, %46 : vector<64x32xf32>
    %48 = vector.shape_cast %47 : vector<64x32xf32> to vector<8x8x32xf32>
    %c0_49 = arith.constant 0 : index
    %c0_50 = arith.constant 0 : index
    %c0_51 = arith.constant 0 : index
    %c0_52 = arith.constant 0 : index
    %49 = vector.load %arg5[%c0_49, %c0_50, %c0_51, %c0_52] : memref<1x8x8x32xf32, #tpu.memory_space<vmem>>, vector<1x8x8x32xf32>
    %50 = vector.shape_cast %49 : vector<1x8x8x32xf32> to vector<8x8x32xf32>
    %51 = vector.shape_cast %48 : vector<8x8x32xf32> to vector<1x8x8x32xf32>
    tpu.vector_store %arg5[%c0_49, %c0_50, %c0_51, %c0_52], %51 {strides = array<i32>} : memref<1x8x8x32xf32, #tpu.memory_space<vmem>>, vector<1x8x8x32xf32>,
    return
  }
  func.func @transform_0(%arg0: i32) -> (i32, i32, i32, i32) {
    %c0_i32 = arith.constant 0 : i32
    %c0_i32_0 = arith.constant 0 : i32
    %c0_i32_1 = arith.constant 0 : i32
    %c0_i32_2 = arith.constant 0 : i32
    return %arg0, %c0_i32, %c0_i32_0, %c0_i32_1 : i32, i32, i32, i32
  }
  func.func @transform_1(%arg0: i32) -> (i32, i32) {
    %c0_i32 = arith.constant 0 : i32
    %c0_i32_0 = arith.constant 0 : i32
    %c0_i32_1 = arith.constant 0 : i32
    return %c0_i32, %c0_i32_0 : i32, i32
  }
  func.func @transform_2(%arg0: i32) -> (i32, i32) {
    %c0_i32 = arith.constant 0 : i32
    %c0_i32_0 = arith.constant 0 : i32
    %c0_i32_1 = arith.constant 0 : i32
    return %c0_i32, %c0_i32_0 : i32, i32
  }
  func.func @transform_3(%arg0: i32) -> (i32, i32) {
    %c0_i32 = arith.constant 0 : i32
    %c0_i32_0 = arith.constant 0 : i32
    %c0_i32_1 = arith.constant 0 : i32
    return %c0_i32, %c0_i32_0 : i32, i32
  }
  func.func @transform_4(%arg0: i32) -> (i32, i32, i32, i32) {
    %c0_i32 = arith.constant 0 : i32
    %c0_i32_0 = arith.constant 0 : i32
    %c0_i32_1 = arith.constant 0 : i32
    %c0_i32_2 = arith.constant 0 : i32
    return %arg0, %c0_i32, %c0_i32_0, %c0_i32_1 : i32, i32, i32, i32
  }
}

module attributes {stable_mosaic.version = 11 : i64} {
  func.func @conv3x3_kernel(%arg0: i32, %arg1: memref<1x8x8x32xf32, #tpu.memory_space<vmem>>, %arg2: memref<288x128xbf16, #tpu.memory_space<vmem>>, %arg3: memref<1x128xf32, #tpu.memory_space<vmem>>, %arg4: memref<1x8x8x128xf32, #tpu.memory_space<vmem>>, %arg5: memref<10x17x32xf32, #tpu.memory_space<vmem>>) attributes {dimension_semantics = [#tpu.dimension_semantics<parallel>], iteration_bounds = array<i64: 2>, scalar_prefetch = 0 : i64, scratch_operands = 1 : i64, tpu.core_type = #tpu.core_type<tc>, window_params = [{transform_indices = @transform_0, window_bounds = array<i64: 1, 8, 8, 32>}, {pipeline_mode = #tpu.pipeline_mode<synchronous>, transform_indices = @transform_1, window_bounds = array<i64: 288, 128>}, {pipeline_mode = #tpu.pipeline_mode<synchronous>, transform_indices = @transform_2, window_bounds = array<i64: 1, 128>}, {transform_indices = @transform_3, window_bounds = array<i64: 1, 8, 8, 128>}]} {
    %cst = arith.constant 0.000000e+00 : f32
    %0 = vector.broadcast %cst : f32 to vector<1x10x32xf32>
    %c0 = arith.constant 0 : index
    %c7 = arith.constant 7 : index
    %c0_0 = arith.constant 0 : index
    %1 = vector.load %arg5[%c0, %c7, %c0_0] : memref<10x17x32xf32, #tpu.memory_space<vmem>>, vector<1x10x32xf32>
    tpu.vector_store %arg5[%c0, %c7, %c0_0], %0 {strides = array<i32>} : memref<10x17x32xf32, #tpu.memory_space<vmem>>, vector<1x10x32xf32>,
    %cst_1 = arith.constant 0.000000e+00 : f32
    %2 = vector.broadcast %cst_1 : f32 to vector<1x10x32xf32>
    %c9 = arith.constant 9 : index
    %c7_2 = arith.constant 7 : index
    %c0_3 = arith.constant 0 : index
    %3 = vector.load %arg5[%c9, %c7_2, %c0_3] : memref<10x17x32xf32, #tpu.memory_space<vmem>>, vector<1x10x32xf32>
    tpu.vector_store %arg5[%c9, %c7_2, %c0_3], %2 {strides = array<i32>} : memref<10x17x32xf32, #tpu.memory_space<vmem>>, vector<1x10x32xf32>,
    %cst_4 = arith.constant 0.000000e+00 : f32
    %4 = vector.broadcast %cst_4 : f32 to vector<8x1x32xf32>
    %c1 = arith.constant 1 : index
    %c7_5 = arith.constant 7 : index
    %c0_6 = arith.constant 0 : index
    %5 = vector.load %arg5[%c1, %c7_5, %c0_6] : memref<10x17x32xf32, #tpu.memory_space<vmem>>, vector<8x1x32xf32>
    tpu.vector_store %arg5[%c1, %c7_5, %c0_6], %4 {strides = array<i32>} : memref<10x17x32xf32, #tpu.memory_space<vmem>>, vector<8x1x32xf32>,
    %cst_7 = arith.constant 0.000000e+00 : f32
    %6 = vector.broadcast %cst_7 : f32 to vector<8x1x32xf32>
    %c1_8 = arith.constant 1 : index
    %c16 = arith.constant 16 : index
    %c0_9 = arith.constant 0 : index
    %7 = vector.load %arg5[%c1_8, %c16, %c0_9] : memref<10x17x32xf32, #tpu.memory_space<vmem>>, vector<8x1x32xf32>
    tpu.vector_store %arg5[%c1_8, %c16, %c0_9], %6 {strides = array<i32>} : memref<10x17x32xf32, #tpu.memory_space<vmem>>, vector<8x1x32xf32>,
    %c0_10 = arith.constant 0 : index
    %c0_11 = arith.constant 0 : index
    %c0_12 = arith.constant 0 : index
    %c0_13 = arith.constant 0 : index
    %8 = vector.load %arg1[%c0_10, %c0_11, %c0_12, %c0_13] : memref<1x8x8x32xf32, #tpu.memory_space<vmem>>, vector<1x8x8x32xf32>
    %9 = vector.shape_cast %8 : vector<1x8x8x32xf32> to vector<8x8x32xf32>
    %c1_14 = arith.constant 1 : index
    %c8 = arith.constant 8 : index
    %c0_15 = arith.constant 0 : index
    %10 = vector.load %arg5[%c1_14, %c8, %c0_15] : memref<10x17x32xf32, #tpu.memory_space<vmem>>, vector<8x8x32xf32>
    tpu.vector_store %arg5[%c1_14, %c8, %c0_15], %9 {strides = array<i32>} : memref<10x17x32xf32, #tpu.memory_space<vmem>>, vector<8x8x32xf32>,
    %c0_16 = arith.constant 0 : index
    %c7_17 = arith.constant 7 : index
    %c0_18 = arith.constant 0 : index
    %11 = vector.load %arg5[%c0_16, %c7_17, %c0_18] : memref<10x17x32xf32, #tpu.memory_space<vmem>>, vector<8x8x32xf32>
    %12 = vector.shape_cast %11 : vector<8x8x32xf32> to vector<64x32xf32>
    %c0_19 = arith.constant 0 : index
    %c8_20 = arith.constant 8 : index
    %c0_21 = arith.constant 0 : index
    %13 = vector.load %arg5[%c0_19, %c8_20, %c0_21] : memref<10x17x32xf32, #tpu.memory_space<vmem>>, vector<8x8x32xf32>
    %14 = vector.shape_cast %13 : vector<8x8x32xf32> to vector<64x32xf32>
    %c0_22 = arith.constant 0 : index
    %c9_23 = arith.constant 9 : index
    %c0_24 = arith.constant 0 : index
    %15 = vector.load %arg5[%c0_22, %c9_23, %c0_24] : memref<10x17x32xf32, #tpu.memory_space<vmem>>, vector<8x8x32xf32>
    %16 = vector.shape_cast %15 : vector<8x8x32xf32> to vector<64x32xf32>
    %c1_25 = arith.constant 1 : index
    %c7_26 = arith.constant 7 : index
    %c0_27 = arith.constant 0 : index
    %17 = vector.load %arg5[%c1_25, %c7_26, %c0_27] : memref<10x17x32xf32, #tpu.memory_space<vmem>>, vector<8x8x32xf32>
    %18 = vector.shape_cast %17 : vector<8x8x32xf32> to vector<64x32xf32>
    %c1_28 = arith.constant 1 : index
    %c8_29 = arith.constant 8 : index
    %c0_30 = arith.constant 0 : index
    %19 = vector.load %arg5[%c1_28, %c8_29, %c0_30] : memref<10x17x32xf32, #tpu.memory_space<vmem>>, vector<8x8x32xf32>
    %20 = vector.shape_cast %19 : vector<8x8x32xf32> to vector<64x32xf32>
    %c1_31 = arith.constant 1 : index
    %c9_32 = arith.constant 9 : index
    %c0_33 = arith.constant 0 : index
    %21 = vector.load %arg5[%c1_31, %c9_32, %c0_33] : memref<10x17x32xf32, #tpu.memory_space<vmem>>, vector<8x8x32xf32>
    %22 = vector.shape_cast %21 : vector<8x8x32xf32> to vector<64x32xf32>
    %c2 = arith.constant 2 : index
    %c7_34 = arith.constant 7 : index
    %c0_35 = arith.constant 0 : index
    %23 = vector.load %arg5[%c2, %c7_34, %c0_35] : memref<10x17x32xf32, #tpu.memory_space<vmem>>, vector<8x8x32xf32>
    %24 = vector.shape_cast %23 : vector<8x8x32xf32> to vector<64x32xf32>
    %c2_36 = arith.constant 2 : index
    %c8_37 = arith.constant 8 : index
    %c0_38 = arith.constant 0 : index
    %25 = vector.load %arg5[%c2_36, %c8_37, %c0_38] : memref<10x17x32xf32, #tpu.memory_space<vmem>>, vector<8x8x32xf32>
    %26 = vector.shape_cast %25 : vector<8x8x32xf32> to vector<64x32xf32>
    %c2_39 = arith.constant 2 : index
    %c9_40 = arith.constant 9 : index
    %c0_41 = arith.constant 0 : index
    %27 = vector.load %arg5[%c2_39, %c9_40, %c0_41] : memref<10x17x32xf32, #tpu.memory_space<vmem>>, vector<8x8x32xf32>
    %28 = vector.shape_cast %27 : vector<8x8x32xf32> to vector<64x32xf32>
    %29 = arith.truncf %12 : vector<64x32xf32> to vector<64x32xbf16>
    %30 = arith.truncf %14 : vector<64x32xf32> to vector<64x32xbf16>
    %31 = arith.truncf %16 : vector<64x32xf32> to vector<64x32xbf16>
    %32 = arith.truncf %18 : vector<64x32xf32> to vector<64x32xbf16>
    %33 = arith.truncf %20 : vector<64x32xf32> to vector<64x32xbf16>
    %34 = arith.truncf %22 : vector<64x32xf32> to vector<64x32xbf16>
    %35 = arith.truncf %24 : vector<64x32xf32> to vector<64x32xbf16>
    %36 = arith.truncf %26 : vector<64x32xf32> to vector<64x32xbf16>
    %37 = arith.truncf %28 : vector<64x32xf32> to vector<64x32xbf16>
    %38 = tpu.concatenate %29, %30, %31, %32, %33, %34, %35, %36, %37 in 1 : vector<64x32xbf16>, vector<64x32xbf16>, vector<64x32xbf16>, vector<64x32xbf16>, vector<64x32xbf16>, vector<64x32xbf16>, vector<64x32xbf16>, vector<64x32xbf16>, vector<64x32xbf16> -> vector<64x288xbf16>
    %c0_42 = arith.constant 0 : index
    %c0_43 = arith.constant 0 : index
    %39 = vector.load %arg2[%c0_42, %c0_43] : memref<288x128xbf16, #tpu.memory_space<vmem>>, vector<288x128xbf16>
    %cst_44 = arith.constant dense<0.000000e+00> : vector<64x128xf32>
    %40 = tpu.matmul %38, %39, %cst_44 {dimension_numbers = #tpu.dot_dimension_numbers<[1], [0], [0], [1], [0, 0, 1, 1], [], []>} : vector<64x288xbf16>, vector<288x128xbf16>, vector<64x128xf32> -> vector<64x128xf32>
    %c0_45 = arith.constant 0 : index
    %c0_46 = arith.constant 0 : index
    %41 = vector.load %arg3[%c0_45, %c0_46] : memref<1x128xf32, #tpu.memory_space<vmem>>, vector<1x128xf32>
    %42 = vector.broadcast %41 : vector<1x128xf32> to vector<64x128xf32>
    %43 = arith.addf %40, %42 : vector<64x128xf32>
    %44 = vector.shape_cast %43 : vector<64x128xf32> to vector<8x8x128xf32>
    %c0_47 = arith.constant 0 : index
    %c0_48 = arith.constant 0 : index
    %c0_49 = arith.constant 0 : index
    %c0_50 = arith.constant 0 : index
    %45 = vector.load %arg4[%c0_47, %c0_48, %c0_49, %c0_50] : memref<1x8x8x128xf32, #tpu.memory_space<vmem>>, vector<1x8x8x128xf32>
    %46 = vector.shape_cast %45 : vector<1x8x8x128xf32> to vector<8x8x128xf32>
    %47 = vector.shape_cast %44 : vector<8x8x128xf32> to vector<1x8x8x128xf32>
    tpu.vector_store %arg4[%c0_47, %c0_48, %c0_49, %c0_50], %47 {strides = array<i32>} : memref<1x8x8x128xf32, #tpu.memory_space<vmem>>, vector<1x8x8x128xf32>,
    return
  }
  func.func @transform_0(%arg0: i32) -> (i32, i32, i32, i32) {
    %c0_i32 = arith.constant 0 : i32
    %c0_i32_0 = arith.constant 0 : i32
    %c0_i32_1 = arith.constant 0 : i32
    %c0_i32_2 = arith.constant 0 : i32
    return %arg0, %c0_i32, %c0_i32_0, %c0_i32_1 : i32, i32, i32, i32
  }
  func.func @transform_1(%arg0: i32) -> (i32, i32) {
    %c0_i32 = arith.constant 0 : i32
    %c0_i32_0 = arith.constant 0 : i32
    %c0_i32_1 = arith.constant 0 : i32
    return %c0_i32, %c0_i32_0 : i32, i32
  }
  func.func @transform_2(%arg0: i32) -> (i32, i32) {
    %c0_i32 = arith.constant 0 : i32
    %c0_i32_0 = arith.constant 0 : i32
    %c0_i32_1 = arith.constant 0 : i32
    return %c0_i32, %c0_i32_0 : i32, i32
  }
  func.func @transform_3(%arg0: i32) -> (i32, i32, i32, i32) {
    %c0_i32 = arith.constant 0 : i32
    %c0_i32_0 = arith.constant 0 : i32
    %c0_i32_1 = arith.constant 0 : i32
    %c0_i32_2 = arith.constant 0 : i32
    return %arg0, %c0_i32, %c0_i32_0, %c0_i32_1 : i32, i32, i32, i32
  }
}

module attributes {stable_mosaic.version = 11 : i64} {
  func.func @conv3x3_kernel(%arg0: i32, %arg1: memref<1x8x8x32xf32, #tpu.memory_space<vmem>>, %arg2: memref<288x32xbf16, #tpu.memory_space<vmem>>, %arg3: memref<1x32xf32, #tpu.memory_space<vmem>>, %arg4: memref<1x8x8x32xf32, #tpu.memory_space<vmem>>, %arg5: memref<1x8x8x32xf32, #tpu.memory_space<vmem>>, %arg6: memref<10x17x32xf32, #tpu.memory_space<vmem>>) attributes {dimension_semantics = [#tpu.dimension_semantics<parallel>], iteration_bounds = array<i64: 2>, scalar_prefetch = 0 : i64, scratch_operands = 1 : i64, tpu.core_type = #tpu.core_type<tc>, window_params = [{transform_indices = @transform_0, window_bounds = array<i64: 1, 8, 8, 32>}, {pipeline_mode = #tpu.pipeline_mode<synchronous>, transform_indices = @transform_1, window_bounds = array<i64: 288, 32>}, {pipeline_mode = #tpu.pipeline_mode<synchronous>, transform_indices = @transform_2, window_bounds = array<i64: 1, 32>}, {transform_indices = @transform_3, window_bounds = array<i64: 1, 8, 8, 32>}, {transform_indices = @transform_4, window_bounds = array<i64: 1, 8, 8, 32>}]} {
    %cst = arith.constant 0.000000e+00 : f32
    %0 = vector.broadcast %cst : f32 to vector<1x10x32xf32>
    %c0 = arith.constant 0 : index
    %c7 = arith.constant 7 : index
    %c0_0 = arith.constant 0 : index
    %1 = vector.load %arg6[%c0, %c7, %c0_0] : memref<10x17x32xf32, #tpu.memory_space<vmem>>, vector<1x10x32xf32>
    tpu.vector_store %arg6[%c0, %c7, %c0_0], %0 {strides = array<i32>} : memref<10x17x32xf32, #tpu.memory_space<vmem>>, vector<1x10x32xf32>,
    %cst_1 = arith.constant 0.000000e+00 : f32
    %2 = vector.broadcast %cst_1 : f32 to vector<1x10x32xf32>
    %c9 = arith.constant 9 : index
    %c7_2 = arith.constant 7 : index
    %c0_3 = arith.constant 0 : index
    %3 = vector.load %arg6[%c9, %c7_2, %c0_3] : memref<10x17x32xf32, #tpu.memory_space<vmem>>, vector<1x10x32xf32>
    tpu.vector_store %arg6[%c9, %c7_2, %c0_3], %2 {strides = array<i32>} : memref<10x17x32xf32, #tpu.memory_space<vmem>>, vector<1x10x32xf32>,
    %cst_4 = arith.constant 0.000000e+00 : f32
    %4 = vector.broadcast %cst_4 : f32 to vector<8x1x32xf32>
    %c1 = arith.constant 1 : index
    %c7_5 = arith.constant 7 : index
    %c0_6 = arith.constant 0 : index
    %5 = vector.load %arg6[%c1, %c7_5, %c0_6] : memref<10x17x32xf32, #tpu.memory_space<vmem>>, vector<8x1x32xf32>
    tpu.vector_store %arg6[%c1, %c7_5, %c0_6], %4 {strides = array<i32>} : memref<10x17x32xf32, #tpu.memory_space<vmem>>, vector<8x1x32xf32>,
    %cst_7 = arith.constant 0.000000e+00 : f32
    %6 = vector.broadcast %cst_7 : f32 to vector<8x1x32xf32>
    %c1_8 = arith.constant 1 : index
    %c16 = arith.constant 16 : index
    %c0_9 = arith.constant 0 : index
    %7 = vector.load %arg6[%c1_8, %c16, %c0_9] : memref<10x17x32xf32, #tpu.memory_space<vmem>>, vector<8x1x32xf32>
    tpu.vector_store %arg6[%c1_8, %c16, %c0_9], %6 {strides = array<i32>} : memref<10x17x32xf32, #tpu.memory_space<vmem>>, vector<8x1x32xf32>,
    %c0_10 = arith.constant 0 : index
    %c0_11 = arith.constant 0 : index
    %c0_12 = arith.constant 0 : index
    %c0_13 = arith.constant 0 : index
    %8 = vector.load %arg1[%c0_10, %c0_11, %c0_12, %c0_13] : memref<1x8x8x32xf32, #tpu.memory_space<vmem>>, vector<1x8x8x32xf32>
    %9 = vector.shape_cast %8 : vector<1x8x8x32xf32> to vector<8x8x32xf32>
    %c1_14 = arith.constant 1 : index
    %c8 = arith.constant 8 : index
    %c0_15 = arith.constant 0 : index
    %10 = vector.load %arg6[%c1_14, %c8, %c0_15] : memref<10x17x32xf32, #tpu.memory_space<vmem>>, vector<8x8x32xf32>
    tpu.vector_store %arg6[%c1_14, %c8, %c0_15], %9 {strides = array<i32>} : memref<10x17x32xf32, #tpu.memory_space<vmem>>, vector<8x8x32xf32>,
    %c0_16 = arith.constant 0 : index
    %c7_17 = arith.constant 7 : index
    %c0_18 = arith.constant 0 : index
    %11 = vector.load %arg6[%c0_16, %c7_17, %c0_18] : memref<10x17x32xf32, #tpu.memory_space<vmem>>, vector<8x8x32xf32>
    %12 = vector.shape_cast %11 : vector<8x8x32xf32> to vector<64x32xf32>
    %c0_19 = arith.constant 0 : index
    %c8_20 = arith.constant 8 : index
    %c0_21 = arith.constant 0 : index
    %13 = vector.load %arg6[%c0_19, %c8_20, %c0_21] : memref<10x17x32xf32, #tpu.memory_space<vmem>>, vector<8x8x32xf32>
    %14 = vector.shape_cast %13 : vector<8x8x32xf32> to vector<64x32xf32>
    %c0_22 = arith.constant 0 : index
    %c9_23 = arith.constant 9 : index
    %c0_24 = arith.constant 0 : index
    %15 = vector.load %arg6[%c0_22, %c9_23, %c0_24] : memref<10x17x32xf32, #tpu.memory_space<vmem>>, vector<8x8x32xf32>
    %16 = vector.shape_cast %15 : vector<8x8x32xf32> to vector<64x32xf32>
    %c1_25 = arith.constant 1 : index
    %c7_26 = arith.constant 7 : index
    %c0_27 = arith.constant 0 : index
    %17 = vector.load %arg6[%c1_25, %c7_26, %c0_27] : memref<10x17x32xf32, #tpu.memory_space<vmem>>, vector<8x8x32xf32>
    %18 = vector.shape_cast %17 : vector<8x8x32xf32> to vector<64x32xf32>
    %c1_28 = arith.constant 1 : index
    %c8_29 = arith.constant 8 : index
    %c0_30 = arith.constant 0 : index
    %19 = vector.load %arg6[%c1_28, %c8_29, %c0_30] : memref<10x17x32xf32, #tpu.memory_space<vmem>>, vector<8x8x32xf32>
    %20 = vector.shape_cast %19 : vector<8x8x32xf32> to vector<64x32xf32>
    %c1_31 = arith.constant 1 : index
    %c9_32 = arith.constant 9 : index
    %c0_33 = arith.constant 0 : index
    %21 = vector.load %arg6[%c1_31, %c9_32, %c0_33] : memref<10x17x32xf32, #tpu.memory_space<vmem>>, vector<8x8x32xf32>
    %22 = vector.shape_cast %21 : vector<8x8x32xf32> to vector<64x32xf32>
    %c2 = arith.constant 2 : index
    %c7_34 = arith.constant 7 : index
    %c0_35 = arith.constant 0 : index
    %23 = vector.load %arg6[%c2, %c7_34, %c0_35] : memref<10x17x32xf32, #tpu.memory_space<vmem>>, vector<8x8x32xf32>
    %24 = vector.shape_cast %23 : vector<8x8x32xf32> to vector<64x32xf32>
    %c2_36 = arith.constant 2 : index
    %c8_37 = arith.constant 8 : index
    %c0_38 = arith.constant 0 : index
    %25 = vector.load %arg6[%c2_36, %c8_37, %c0_38] : memref<10x17x32xf32, #tpu.memory_space<vmem>>, vector<8x8x32xf32>
    %26 = vector.shape_cast %25 : vector<8x8x32xf32> to vector<64x32xf32>
    %c2_39 = arith.constant 2 : index
    %c9_40 = arith.constant 9 : index
    %c0_41 = arith.constant 0 : index
    %27 = vector.load %arg6[%c2_39, %c9_40, %c0_41] : memref<10x17x32xf32, #tpu.memory_space<vmem>>, vector<8x8x32xf32>
    %28 = vector.shape_cast %27 : vector<8x8x32xf32> to vector<64x32xf32>
    %29 = arith.truncf %12 : vector<64x32xf32> to vector<64x32xbf16>
    %30 = arith.truncf %14 : vector<64x32xf32> to vector<64x32xbf16>
    %31 = arith.truncf %16 : vector<64x32xf32> to vector<64x32xbf16>
    %32 = arith.truncf %18 : vector<64x32xf32> to vector<64x32xbf16>
    %33 = arith.truncf %20 : vector<64x32xf32> to vector<64x32xbf16>
    %34 = arith.truncf %22 : vector<64x32xf32> to vector<64x32xbf16>
    %35 = arith.truncf %24 : vector<64x32xf32> to vector<64x32xbf16>
    %36 = arith.truncf %26 : vector<64x32xf32> to vector<64x32xbf16>
    %37 = arith.truncf %28 : vector<64x32xf32> to vector<64x32xbf16>
    %38 = tpu.concatenate %29, %30, %31, %32, %33, %34, %35, %36, %37 in 1 : vector<64x32xbf16>, vector<64x32xbf16>, vector<64x32xbf16>, vector<64x32xbf16>, vector<64x32xbf16>, vector<64x32xbf16>, vector<64x32xbf16>, vector<64x32xbf16>, vector<64x32xbf16> -> vector<64x288xbf16>
    %c0_42 = arith.constant 0 : index
    %c0_43 = arith.constant 0 : index
    %39 = vector.load %arg2[%c0_42, %c0_43] : memref<288x32xbf16, #tpu.memory_space<vmem>>, vector<288x32xbf16>
    %cst_44 = arith.constant dense<0.000000e+00> : vector<64x32xf32>
    %40 = tpu.matmul %38, %39, %cst_44 {dimension_numbers = #tpu.dot_dimension_numbers<[1], [0], [0], [1], [0, 0, 1, 1], [], []>} : vector<64x288xbf16>, vector<288x32xbf16>, vector<64x32xf32> -> vector<64x32xf32>
    %c0_45 = arith.constant 0 : index
    %c0_46 = arith.constant 0 : index
    %41 = vector.load %arg3[%c0_45, %c0_46] : memref<1x32xf32, #tpu.memory_space<vmem>>, vector<1x32xf32>
    %42 = vector.broadcast %41 : vector<1x32xf32> to vector<64x32xf32>
    %43 = arith.addf %40, %42 : vector<64x32xf32>
    %c0_47 = arith.constant 0 : index
    %c0_48 = arith.constant 0 : index
    %c0_49 = arith.constant 0 : index
    %c0_50 = arith.constant 0 : index
    %44 = vector.load %arg4[%c0_47, %c0_48, %c0_49, %c0_50] : memref<1x8x8x32xf32, #tpu.memory_space<vmem>>, vector<1x8x8x32xf32>
    %45 = vector.shape_cast %44 : vector<1x8x8x32xf32> to vector<8x8x32xf32>
    %46 = vector.shape_cast %45 : vector<8x8x32xf32> to vector<64x32xf32>
    %47 = arith.addf %43, %46 : vector<64x32xf32>
    %48 = vector.shape_cast %47 : vector<64x32xf32> to vector<8x8x32xf32>
    %c0_51 = arith.constant 0 : index
    %c0_52 = arith.constant 0 : index
    %c0_53 = arith.constant 0 : index
    %c0_54 = arith.constant 0 : index
    %49 = vector.load %arg5[%c0_51, %c0_52, %c0_53, %c0_54] : memref<1x8x8x32xf32, #tpu.memory_space<vmem>>, vector<1x8x8x32xf32>
    %50 = vector.shape_cast %49 : vector<1x8x8x32xf32> to vector<8x8x32xf32>
    %51 = vector.shape_cast %48 : vector<8x8x32xf32> to vector<1x8x8x32xf32>
    tpu.vector_store %arg5[%c0_51, %c0_52, %c0_53, %c0_54], %51 {strides = array<i32>} : memref<1x8x8x32xf32, #tpu.memory_space<vmem>>, vector<1x8x8x32xf32>,
    return
  }
  func.func @transform_0(%arg0: i32) -> (i32, i32, i32, i32) {
    %c0_i32 = arith.constant 0 : i32
    %c0_i32_0 = arith.constant 0 : i32
    %c0_i32_1 = arith.constant 0 : i32
    %c0_i32_2 = arith.constant 0 : i32
    return %arg0, %c0_i32, %c0_i32_0, %c0_i32_1 : i32, i32, i32, i32
  }
  func.func @transform_1(%arg0: i32) -> (i32, i32) {
    %c0_i32 = arith.constant 0 : i32
    %c0_i32_0 = arith.constant 0 : i32
    %c0_i32_1 = arith.constant 0 : i32
    return %c0_i32, %c0_i32_0 : i32, i32
  }
  func.func @transform_2(%arg0: i32) -> (i32, i32) {
    %c0_i32 = arith.constant 0 : i32
    %c0_i32_0 = arith.constant 0 : i32
    %c0_i32_1 = arith.constant 0 : i32
    return %c0_i32, %c0_i32_0 : i32, i32
  }
  func.func @transform_3(%arg0: i32) -> (i32, i32, i32, i32) {
    %c0_i32 = arith.constant 0 : i32
    %c0_i32_0 = arith.constant 0 : i32
    %c0_i32_1 = arith.constant 0 : i32
    %c0_i32_2 = arith.constant 0 : i32
    return %arg0, %c0_i32, %c0_i32_0, %c0_i32_1 : i32, i32, i32, i32
  }
  func.func @transform_4(%arg0: i32) -> (i32, i32, i32, i32) {
    %c0_i32 = arith.constant 0 : i32
    %c0_i32_0 = arith.constant 0 : i32
    %c0_i32_1 = arith.constant 0 : i32
    %c0_i32_2 = arith.constant 0 : i32
    return %arg0, %c0_i32, %c0_i32_0, %c0_i32_1 : i32, i32, i32, i32
  }
}

module attributes {stable_mosaic.version = 11 : i64} {
  func.func @resgroup_kernel(%arg0: i32, %arg1: memref<1x8x8x32xf32, #tpu.memory_space<vmem>>, %arg2: memref<8x9x32xf32, #tpu.memory_space<vmem>>, %arg3: memref<8x1x32xf32, #tpu.memory_space<vmem>>, %arg4: memref<8x32x32xbf16, #tpu.memory_space<vmem>>, %arg5: memref<8x1x32xf32, #tpu.memory_space<vmem>>, %arg6: memref<288x32xbf16, #tpu.memory_space<vmem>>, %arg7: memref<1x32xf32, #tpu.memory_space<vmem>>, %arg8: memref<1x8x8x32xf32, #tpu.memory_space<vmem>>, %arg9: memref<10x17x32xf32, #tpu.memory_space<vmem>>) attributes {dimension_semantics = [#tpu.dimension_semantics<parallel>], iteration_bounds = array<i64: 2>, scalar_prefetch = 0 : i64, scratch_operands = 1 : i64, tpu.core_type = #tpu.core_type<tc>, window_params = [{transform_indices = @transform_0, window_bounds = array<i64: 1, 8, 8, 32>}, {pipeline_mode = #tpu.pipeline_mode<synchronous>, transform_indices = @transform_1, window_bounds = array<i64: 8, 9, 32>}, {pipeline_mode = #tpu.pipeline_mode<synchronous>, transform_indices = @transform_2, window_bounds = array<i64: 8, 1, 32>}, {pipeline_mode = #tpu.pipeline_mode<synchronous>, transform_indices = @transform_3, window_bounds = array<i64: 8, 32, 32>}, {pipeline_mode = #tpu.pipeline_mode<synchronous>, transform_indices = @transform_4, window_bounds = array<i64: 8, 1, 32>}, {pipeline_mode = #tpu.pipeline_mode<synchronous>, transform_indices = @transform_5, window_bounds = array<i64: 288, 32>}, {pipeline_mode = #tpu.pipeline_mode<synchronous>, transform_indices = @transform_6, window_bounds = array<i64: 1, 32>}, {transform_indices = @transform_7, window_bounds = array<i64: 1, 8, 8, 32>}]} {
    %cst = arith.constant 0.000000e+00 : f32
    %0 = vector.broadcast %cst : f32 to vector<1x10x32xf32>
    %c0 = arith.constant 0 : index
    %c7 = arith.constant 7 : index
    %c0_0 = arith.constant 0 : index
    %1 = vector.load %arg9[%c0, %c7, %c0_0] : memref<10x17x32xf32, #tpu.memory_space<vmem>>, vector<1x10x32xf32>
    tpu.vector_store %arg9[%c0, %c7, %c0_0], %0 {strides = array<i32>} : memref<10x17x32xf32, #tpu.memory_space<vmem>>, vector<1x10x32xf32>,
    %cst_1 = arith.constant 0.000000e+00 : f32
    %2 = vector.broadcast %cst_1 : f32 to vector<1x10x32xf32>
    %c9 = arith.constant 9 : index
    %c7_2 = arith.constant 7 : index
    %c0_3 = arith.constant 0 : index
    %3 = vector.load %arg9[%c9, %c7_2, %c0_3] : memref<10x17x32xf32, #tpu.memory_space<vmem>>, vector<1x10x32xf32>
    tpu.vector_store %arg9[%c9, %c7_2, %c0_3], %2 {strides = array<i32>} : memref<10x17x32xf32, #tpu.memory_space<vmem>>, vector<1x10x32xf32>,
    %cst_4 = arith.constant 0.000000e+00 : f32
    %4 = vector.broadcast %cst_4 : f32 to vector<8x1x32xf32>
    %c1 = arith.constant 1 : index
    %c7_5 = arith.constant 7 : index
    %c0_6 = arith.constant 0 : index
    %5 = vector.load %arg9[%c1, %c7_5, %c0_6] : memref<10x17x32xf32, #tpu.memory_space<vmem>>, vector<8x1x32xf32>
    tpu.vector_store %arg9[%c1, %c7_5, %c0_6], %4 {strides = array<i32>} : memref<10x17x32xf32, #tpu.memory_space<vmem>>, vector<8x1x32xf32>,
    %cst_7 = arith.constant 0.000000e+00 : f32
    %6 = vector.broadcast %cst_7 : f32 to vector<8x1x32xf32>
    %c1_8 = arith.constant 1 : index
    %c16 = arith.constant 16 : index
    %c0_9 = arith.constant 0 : index
    %7 = vector.load %arg9[%c1_8, %c16, %c0_9] : memref<10x17x32xf32, #tpu.memory_space<vmem>>, vector<8x1x32xf32>
    tpu.vector_store %arg9[%c1_8, %c16, %c0_9], %6 {strides = array<i32>} : memref<10x17x32xf32, #tpu.memory_space<vmem>>, vector<8x1x32xf32>,
    %c0_10 = arith.constant 0 : index
    %c0_11 = arith.constant 0 : index
    %c0_12 = arith.constant 0 : index
    %c0_13 = arith.constant 0 : index
    %8 = vector.load %arg1[%c0_10, %c0_11, %c0_12, %c0_13] : memref<1x8x8x32xf32, #tpu.memory_space<vmem>>, vector<1x8x8x32xf32>
    %9 = vector.shape_cast %8 : vector<1x8x8x32xf32> to vector<8x8x32xf32>
    %c1_14 = arith.constant 1 : index
    %c8 = arith.constant 8 : index
    %c0_15 = arith.constant 0 : index
    %10 = vector.load %arg9[%c1_14, %c8, %c0_15] : memref<10x17x32xf32, #tpu.memory_space<vmem>>, vector<8x8x32xf32>
    tpu.vector_store %arg9[%c1_14, %c8, %c0_15], %9 {strides = array<i32>} : memref<10x17x32xf32, #tpu.memory_space<vmem>>, vector<8x8x32xf32>,
    %c0_16 = arith.constant 0 : index
    %c7_17 = arith.constant 7 : index
    %c0_18 = arith.constant 0 : index
    %11 = vector.load %arg9[%c0_16, %c7_17, %c0_18] : memref<10x17x32xf32, #tpu.memory_space<vmem>>, vector<8x8x32xf32>
    %12 = vector.shape_cast %11 : vector<8x8x32xf32> to vector<64x32xf32>
    %c0_19 = arith.constant 0 : index
    %c8_20 = arith.constant 8 : index
    %c0_21 = arith.constant 0 : index
    %13 = vector.load %arg9[%c0_19, %c8_20, %c0_21] : memref<10x17x32xf32, #tpu.memory_space<vmem>>, vector<8x8x32xf32>
    %14 = vector.shape_cast %13 : vector<8x8x32xf32> to vector<64x32xf32>
    %c0_22 = arith.constant 0 : index
    %c9_23 = arith.constant 9 : index
    %c0_24 = arith.constant 0 : index
    %15 = vector.load %arg9[%c0_22, %c9_23, %c0_24] : memref<10x17x32xf32, #tpu.memory_space<vmem>>, vector<8x8x32xf32>
    %16 = vector.shape_cast %15 : vector<8x8x32xf32> to vector<64x32xf32>
    %c1_25 = arith.constant 1 : index
    %c7_26 = arith.constant 7 : index
    %c0_27 = arith.constant 0 : index
    %17 = vector.load %arg9[%c1_25, %c7_26, %c0_27] : memref<10x17x32xf32, #tpu.memory_space<vmem>>, vector<8x8x32xf32>
    %18 = vector.shape_cast %17 : vector<8x8x32xf32> to vector<64x32xf32>
    %c1_28 = arith.constant 1 : index
    %c8_29 = arith.constant 8 : index
    %c0_30 = arith.constant 0 : index
    %19 = vector.load %arg9[%c1_28, %c8_29, %c0_30] : memref<10x17x32xf32, #tpu.memory_space<vmem>>, vector<8x8x32xf32>
    %20 = vector.shape_cast %19 : vector<8x8x32xf32> to vector<64x32xf32>
    %c1_31 = arith.constant 1 : index
    %c9_32 = arith.constant 9 : index
    %c0_33 = arith.constant 0 : index
    %21 = vector.load %arg9[%c1_31, %c9_32, %c0_33] : memref<10x17x32xf32, #tpu.memory_space<vmem>>, vector<8x8x32xf32>
    %22 = vector.shape_cast %21 : vector<8x8x32xf32> to vector<64x32xf32>
    %c2 = arith.constant 2 : index
    %c7_34 = arith.constant 7 : index
    %c0_35 = arith.constant 0 : index
    %23 = vector.load %arg9[%c2, %c7_34, %c0_35] : memref<10x17x32xf32, #tpu.memory_space<vmem>>, vector<8x8x32xf32>
    %24 = vector.shape_cast %23 : vector<8x8x32xf32> to vector<64x32xf32>
    %c2_36 = arith.constant 2 : index
    %c8_37 = arith.constant 8 : index
    %c0_38 = arith.constant 0 : index
    %25 = vector.load %arg9[%c2_36, %c8_37, %c0_38] : memref<10x17x32xf32, #tpu.memory_space<vmem>>, vector<8x8x32xf32>
    %26 = vector.shape_cast %25 : vector<8x8x32xf32> to vector<64x32xf32>
    %c2_39 = arith.constant 2 : index
    %c9_40 = arith.constant 9 : index
    %c0_41 = arith.constant 0 : index
    %27 = vector.load %arg9[%c2_39, %c9_40, %c0_41] : memref<10x17x32xf32, #tpu.memory_space<vmem>>, vector<8x8x32xf32>
    %28 = vector.shape_cast %27 : vector<8x8x32xf32> to vector<64x32xf32>
    %c0_42 = arith.constant 0 : index
    %c0_43 = arith.constant 0 : index
    %c0_44 = arith.constant 0 : index
    %29 = vector.load %arg2[%c0_42, %c0_43, %c0_44] : memref<8x9x32xf32, #tpu.memory_space<vmem>>, vector<1x9x32xf32>
    %30 = vector.shape_cast %29 : vector<1x9x32xf32> to vector<9x32xf32>
    %c0_45 = arith.constant 0 : index
    %c0_46 = arith.constant 0 : index
    %c0_47 = arith.constant 0 : index
    %31 = vector.load %arg3[%c0_45, %c0_46, %c0_47] : memref<8x1x32xf32, #tpu.memory_space<vmem>>, vector<1x1x32xf32>
    %32 = vector.shape_cast %31 : vector<1x1x32xf32> to vector<1x32xf32>
    %33 = vector.extract_strided_slice %30 {offsets = [0, 0], sizes = [1, 32], strides = [1, 1]} : vector<9x32xf32> to vector<1x32xf32>
    %34 = vector.broadcast %33 : vector<1x32xf32> to vector<64x32xf32>
    %35 = arith.mulf %12, %34 : vector<64x32xf32>
    %36 = vector.extract_strided_slice %30 {offsets = [1, 0], sizes = [1, 32], strides = [1, 1]} : vector<9x32xf32> to vector<1x32xf32>
    %37 = vector.broadcast %36 : vector<1x32xf32> to vector<64x32xf32>
    %38 = arith.mulf %14, %37 : vector<64x32xf32>
    %39 = arith.addf %35, %38 : vector<64x32xf32>
    %40 = vector.extract_strided_slice %30 {offsets = [2, 0], sizes = [1, 32], strides = [1, 1]} : vector<9x32xf32> to vector<1x32xf32>
    %41 = vector.broadcast %40 : vector<1x32xf32> to vector<64x32xf32>
    %42 = arith.mulf %16, %41 : vector<64x32xf32>
    %43 = arith.addf %39, %42 : vector<64x32xf32>
    %44 = vector.extract_strided_slice %30 {offsets = [3, 0], sizes = [1, 32], strides = [1, 1]} : vector<9x32xf32> to vector<1x32xf32>
    %45 = vector.broadcast %44 : vector<1x32xf32> to vector<64x32xf32>
    %46 = arith.mulf %18, %45 : vector<64x32xf32>
    %47 = arith.addf %43, %46 : vector<64x32xf32>
    %48 = vector.extract_strided_slice %30 {offsets = [4, 0], sizes = [1, 32], strides = [1, 1]} : vector<9x32xf32> to vector<1x32xf32>
    %49 = vector.broadcast %48 : vector<1x32xf32> to vector<64x32xf32>
    %50 = arith.mulf %20, %49 : vector<64x32xf32>
    %51 = arith.addf %47, %50 : vector<64x32xf32>
    %52 = vector.extract_strided_slice %30 {offsets = [5, 0], sizes = [1, 32], strides = [1, 1]} : vector<9x32xf32> to vector<1x32xf32>
    %53 = vector.broadcast %52 : vector<1x32xf32> to vector<64x32xf32>
    %54 = arith.mulf %22, %53 : vector<64x32xf32>
    %55 = arith.addf %51, %54 : vector<64x32xf32>
    %56 = vector.extract_strided_slice %30 {offsets = [6, 0], sizes = [1, 32], strides = [1, 1]} : vector<9x32xf32> to vector<1x32xf32>
    %57 = vector.broadcast %56 : vector<1x32xf32> to vector<64x32xf32>
    %58 = arith.mulf %24, %57 : vector<64x32xf32>
    %59 = arith.addf %55, %58 : vector<64x32xf32>
    %60 = vector.extract_strided_slice %30 {offsets = [7, 0], sizes = [1, 32], strides = [1, 1]} : vector<9x32xf32> to vector<1x32xf32>
    %61 = vector.broadcast %60 : vector<1x32xf32> to vector<64x32xf32>
    %62 = arith.mulf %26, %61 : vector<64x32xf32>
    %63 = arith.addf %59, %62 : vector<64x32xf32>
    %64 = vector.extract_strided_slice %30 {offsets = [8, 0], sizes = [1, 32], strides = [1, 1]} : vector<9x32xf32> to vector<1x32xf32>
    %65 = vector.broadcast %64 : vector<1x32xf32> to vector<64x32xf32>
    %66 = arith.mulf %28, %65 : vector<64x32xf32>
    %67 = arith.addf %63, %66 : vector<64x32xf32>
    %68 = vector.broadcast %32 : vector<1x32xf32> to vector<64x32xf32>
    %69 = arith.addf %67, %68 : vector<64x32xf32>
    %70 = arith.truncf %69 : vector<64x32xf32> to vector<64x32xbf16>
    %c0_48 = arith.constant 0 : index
    %c0_49 = arith.constant 0 : index
    %c0_50 = arith.constant 0 : index
    %71 = vector.load %arg4[%c0_48, %c0_49, %c0_50] : memref<8x32x32xbf16, #tpu.memory_space<vmem>>, vector<1x32x32xbf16>
    %72 = vector.shape_cast %71 : vector<1x32x32xbf16> to vector<32x32xbf16>
    %cst_51 = arith.constant dense<0.000000e+00> : vector<64x32xf32>
    %73 = tpu.matmul %70, %72, %cst_51 {dimension_numbers = #tpu.dot_dimension_numbers<[1], [0], [0], [1], [0, 0, 1, 1], [], []>} : vector<64x32xbf16>, vector<32x32xbf16>, vector<64x32xf32> -> vector<64x32xf32>
    %c0_52 = arith.constant 0 : index
    %c0_53 = arith.constant 0 : index
    %c0_54 = arith.constant 0 : index
    %74 = vector.load %arg5[%c0_52, %c0_53, %c0_54] : memref<8x1x32xf32, #tpu.memory_space<vmem>>, vector<1x1x32xf32>
    %75 = vector.shape_cast %74 : vector<1x1x32xf32> to vector<1x32xf32>
    %76 = vector.broadcast %75 : vector<1x32xf32> to vector<64x32xf32>
    %77 = arith.addf %73, %76 : vector<64x32xf32>
    %cst_55 = arith.constant 0.000000e+00 : f32
    %78 = vector.broadcast %cst_55 : f32 to vector<64x32xf32>
    %79 = arith.maximumf %77, %78 : vector<64x32xf32>
    %80 = vector.shape_cast %79 : vector<64x32xf32> to vector<8x8x32xf32>
    %c1_56 = arith.constant 1 : index
    %c8_57 = arith.constant 8 : index
    %c0_58 = arith.constant 0 : index
    %81 = vector.load %arg9[%c1_56, %c8_57, %c0_58] : memref<10x17x32xf32, #tpu.memory_space<vmem>>, vector<8x8x32xf32>
    tpu.vector_store %arg9[%c1_56, %c8_57, %c0_58], %80 {strides = array<i32>} : memref<10x17x32xf32, #tpu.memory_space<vmem>>, vector<8x8x32xf32>,
    %c0_59 = arith.constant 0 : index
    %c7_60 = arith.constant 7 : index
    %c0_61 = arith.constant 0 : index
    %82 = vector.load %arg9[%c0_59, %c7_60, %c0_61] : memref<10x17x32xf32, #tpu.memory_space<vmem>>, vector<8x8x32xf32>
    %83 = vector.shape_cast %82 : vector<8x8x32xf32> to vector<64x32xf32>
    %c0_62 = arith.constant 0 : index
    %c8_63 = arith.constant 8 : index
    %c0_64 = arith.constant 0 : index
    %84 = vector.load %arg9[%c0_62, %c8_63, %c0_64] : memref<10x17x32xf32, #tpu.memory_space<vmem>>, vector<8x8x32xf32>
    %85 = vector.shape_cast %84 : vector<8x8x32xf32> to vector<64x32xf32>
    %c0_65 = arith.constant 0 : index
    %c9_66 = arith.constant 9 : index
    %c0_67 = arith.constant 0 : index
    %86 = vector.load %arg9[%c0_65, %c9_66, %c0_67] : memref<10x17x32xf32, #tpu.memory_space<vmem>>, vector<8x8x32xf32>
    %87 = vector.shape_cast %86 : vector<8x8x32xf32> to vector<64x32xf32>
    %c1_68 = arith.constant 1 : index
    %c7_69 = arith.constant 7 : index
    %c0_70 = arith.constant 0 : index
    %88 = vector.load %arg9[%c1_68, %c7_69, %c0_70] : memref<10x17x32xf32, #tpu.memory_space<vmem>>, vector<8x8x32xf32>
    %89 = vector.shape_cast %88 : vector<8x8x32xf32> to vector<64x32xf32>
    %c1_71 = arith.constant 1 : index
    %c8_72 = arith.constant 8 : index
    %c0_73 = arith.constant 0 : index
    %90 = vector.load %arg9[%c1_71, %c8_72, %c0_73] : memref<10x17x32xf32, #tpu.memory_space<vmem>>, vector<8x8x32xf32>
    %91 = vector.shape_cast %90 : vector<8x8x32xf32> to vector<64x32xf32>
    %c1_74 = arith.constant 1 : index
    %c9_75 = arith.constant 9 : index
    %c0_76 = arith.constant 0 : index
    %92 = vector.load %arg9[%c1_74, %c9_75, %c0_76] : memref<10x17x32xf32, #tpu.memory_space<vmem>>, vector<8x8x32xf32>
    %93 = vector.shape_cast %92 : vector<8x8x32xf32> to vector<64x32xf32>
    %c2_77 = arith.constant 2 : index
    %c7_78 = arith.constant 7 : index
    %c0_79 = arith.constant 0 : index
    %94 = vector.load %arg9[%c2_77, %c7_78, %c0_79] : memref<10x17x32xf32, #tpu.memory_space<vmem>>, vector<8x8x32xf32>
    %95 = vector.shape_cast %94 : vector<8x8x32xf32> to vector<64x32xf32>
    %c2_80 = arith.constant 2 : index
    %c8_81 = arith.constant 8 : index
    %c0_82 = arith.constant 0 : index
    %96 = vector.load %arg9[%c2_80, %c8_81, %c0_82] : memref<10x17x32xf32, #tpu.memory_space<vmem>>, vector<8x8x32xf32>
    %97 = vector.shape_cast %96 : vector<8x8x32xf32> to vector<64x32xf32>
    %c2_83 = arith.constant 2 : index
    %c9_84 = arith.constant 9 : index
    %c0_85 = arith.constant 0 : index
    %98 = vector.load %arg9[%c2_83, %c9_84, %c0_85] : memref<10x17x32xf32, #tpu.memory_space<vmem>>, vector<8x8x32xf32>
    %99 = vector.shape_cast %98 : vector<8x8x32xf32> to vector<64x32xf32>
    %c1_86 = arith.constant 1 : index
    %c0_87 = arith.constant 0 : index
    %c0_88 = arith.constant 0 : index
    %100 = vector.load %arg2[%c1_86, %c0_87, %c0_88] : memref<8x9x32xf32, #tpu.memory_space<vmem>>, vector<1x9x32xf32>
    %101 = vector.shape_cast %100 : vector<1x9x32xf32> to vector<9x32xf32>
    %c1_89 = arith.constant 1 : index
    %c0_90 = arith.constant 0 : index
    %c0_91 = arith.constant 0 : index
    %102 = vector.load %arg3[%c1_89, %c0_90, %c0_91] : memref<8x1x32xf32, #tpu.memory_space<vmem>>, vector<1x1x32xf32>
    %103 = vector.shape_cast %102 : vector<1x1x32xf32> to vector<1x32xf32>
    %104 = vector.extract_strided_slice %101 {offsets = [0, 0], sizes = [1, 32], strides = [1, 1]} : vector<9x32xf32> to vector<1x32xf32>
    %105 = vector.broadcast %104 : vector<1x32xf32> to vector<64x32xf32>
    %106 = arith.mulf %83, %105 : vector<64x32xf32>
    %107 = vector.extract_strided_slice %101 {offsets = [1, 0], sizes = [1, 32], strides = [1, 1]} : vector<9x32xf32> to vector<1x32xf32>
    %108 = vector.broadcast %107 : vector<1x32xf32> to vector<64x32xf32>
    %109 = arith.mulf %85, %108 : vector<64x32xf32>
    %110 = arith.addf %106, %109 : vector<64x32xf32>
    %111 = vector.extract_strided_slice %101 {offsets = [2, 0], sizes = [1, 32], strides = [1, 1]} : vector<9x32xf32> to vector<1x32xf32>
    %112 = vector.broadcast %111 : vector<1x32xf32> to vector<64x32xf32>
    %113 = arith.mulf %87, %112 : vector<64x32xf32>
    %114 = arith.addf %110, %113 : vector<64x32xf32>
    %115 = vector.extract_strided_slice %101 {offsets = [3, 0], sizes = [1, 32], strides = [1, 1]} : vector<9x32xf32> to vector<1x32xf32>
    %116 = vector.broadcast %115 : vector<1x32xf32> to vector<64x32xf32>
    %117 = arith.mulf %89, %116 : vector<64x32xf32>
    %118 = arith.addf %114, %117 : vector<64x32xf32>
    %119 = vector.extract_strided_slice %101 {offsets = [4, 0], sizes = [1, 32], strides = [1, 1]} : vector<9x32xf32> to vector<1x32xf32>
    %120 = vector.broadcast %119 : vector<1x32xf32> to vector<64x32xf32>
    %121 = arith.mulf %91, %120 : vector<64x32xf32>
    %122 = arith.addf %118, %121 : vector<64x32xf32>
    %123 = vector.extract_strided_slice %101 {offsets = [5, 0], sizes = [1, 32], strides = [1, 1]} : vector<9x32xf32> to vector<1x32xf32>
    %124 = vector.broadcast %123 : vector<1x32xf32> to vector<64x32xf32>
    %125 = arith.mulf %93, %124 : vector<64x32xf32>
    %126 = arith.addf %122, %125 : vector<64x32xf32>
    %127 = vector.extract_strided_slice %101 {offsets = [6, 0], sizes = [1, 32], strides = [1, 1]} : vector<9x32xf32> to vector<1x32xf32>
    %128 = vector.broadcast %127 : vector<1x32xf32> to vector<64x32xf32>
    %129 = arith.mulf %95, %128 : vector<64x32xf32>
    %130 = arith.addf %126, %129 : vector<64x32xf32>
    %131 = vector.extract_strided_slice %101 {offsets = [7, 0], sizes = [1, 32], strides = [1, 1]} : vector<9x32xf32> to vector<1x32xf32>
    %132 = vector.broadcast %131 : vector<1x32xf32> to vector<64x32xf32>
    %133 = arith.mulf %97, %132 : vector<64x32xf32>
    %134 = arith.addf %130, %133 : vector<64x32xf32>
    %135 = vector.extract_strided_slice %101 {offsets = [8, 0], sizes = [1, 32], strides = [1, 1]} : vector<9x32xf32> to vector<1x32xf32>
    %136 = vector.broadcast %135 : vector<1x32xf32> to vector<64x32xf32>
    %137 = arith.mulf %99, %136 : vector<64x32xf32>
    %138 = arith.addf %134, %137 : vector<64x32xf32>
    %139 = vector.broadcast %103 : vector<1x32xf32> to vector<64x32xf32>
    %140 = arith.addf %138, %139 : vector<64x32xf32>
    %141 = arith.truncf %140 : vector<64x32xf32> to vector<64x32xbf16>
    %c1_92 = arith.constant 1 : index
    %c0_93 = arith.constant 0 : index
    %c0_94 = arith.constant 0 : index
    %142 = vector.load %arg4[%c1_92, %c0_93, %c0_94] : memref<8x32x32xbf16, #tpu.memory_space<vmem>>, vector<1x32x32xbf16>
    %143 = vector.shape_cast %142 : vector<1x32x32xbf16> to vector<32x32xbf16>
    %cst_95 = arith.constant dense<0.000000e+00> : vector<64x32xf32>
    %144 = tpu.matmul %141, %143, %cst_95 {dimension_numbers = #tpu.dot_dimension_numbers<[1], [0], [0], [1], [0, 0, 1, 1], [], []>} : vector<64x32xbf16>, vector<32x32xbf16>, vector<64x32xf32> -> vector<64x32xf32>
    %c1_96 = arith.constant 1 : index
    %c0_97 = arith.constant 0 : index
    %c0_98 = arith.constant 0 : index
    %145 = vector.load %arg5[%c1_96, %c0_97, %c0_98] : memref<8x1x32xf32, #tpu.memory_space<vmem>>, vector<1x1x32xf32>
    %146 = vector.shape_cast %145 : vector<1x1x32xf32> to vector<1x32xf32>
    %147 = vector.broadcast %146 : vector<1x32xf32> to vector<64x32xf32>
    %148 = arith.addf %144, %147 : vector<64x32xf32>
    %149 = vector.shape_cast %148 : vector<64x32xf32> to vector<8x8x32xf32>
    %150 = arith.addf %9, %149 : vector<8x8x32xf32>
    %c1_99 = arith.constant 1 : index
    %c8_100 = arith.constant 8 : index
    %c0_101 = arith.constant 0 : index
    %151 = vector.load %arg9[%c1_99, %c8_100, %c0_101] : memref<10x17x32xf32, #tpu.memory_space<vmem>>, vector<8x8x32xf32>
    tpu.vector_store %arg9[%c1_99, %c8_100, %c0_101], %150 {strides = array<i32>} : memref<10x17x32xf32, #tpu.memory_space<vmem>>, vector<8x8x32xf32>,
    %c0_102 = arith.constant 0 : index
    %c7_103 = arith.constant 7 : index
    %c0_104 = arith.constant 0 : index
    %152 = vector.load %arg9[%c0_102, %c7_103, %c0_104] : memref<10x17x32xf32, #tpu.memory_space<vmem>>, vector<8x8x32xf32>
    %153 = vector.shape_cast %152 : vector<8x8x32xf32> to vector<64x32xf32>
    %c0_105 = arith.constant 0 : index
    %c8_106 = arith.constant 8 : index
    %c0_107 = arith.constant 0 : index
    %154 = vector.load %arg9[%c0_105, %c8_106, %c0_107] : memref<10x17x32xf32, #tpu.memory_space<vmem>>, vector<8x8x32xf32>
    %155 = vector.shape_cast %154 : vector<8x8x32xf32> to vector<64x32xf32>
    %c0_108 = arith.constant 0 : index
    %c9_109 = arith.constant 9 : index
    %c0_110 = arith.constant 0 : index
    %156 = vector.load %arg9[%c0_108, %c9_109, %c0_110] : memref<10x17x32xf32, #tpu.memory_space<vmem>>, vector<8x8x32xf32>
    %157 = vector.shape_cast %156 : vector<8x8x32xf32> to vector<64x32xf32>
    %c1_111 = arith.constant 1 : index
    %c7_112 = arith.constant 7 : index
    %c0_113 = arith.constant 0 : index
    %158 = vector.load %arg9[%c1_111, %c7_112, %c0_113] : memref<10x17x32xf32, #tpu.memory_space<vmem>>, vector<8x8x32xf32>
    %159 = vector.shape_cast %158 : vector<8x8x32xf32> to vector<64x32xf32>
    %c1_114 = arith.constant 1 : index
    %c8_115 = arith.constant 8 : index
    %c0_116 = arith.constant 0 : index
    %160 = vector.load %arg9[%c1_114, %c8_115, %c0_116] : memref<10x17x32xf32, #tpu.memory_space<vmem>>, vector<8x8x32xf32>
    %161 = vector.shape_cast %160 : vector<8x8x32xf32> to vector<64x32xf32>
    %c1_117 = arith.constant 1 : index
    %c9_118 = arith.constant 9 : index
    %c0_119 = arith.constant 0 : index
    %162 = vector.load %arg9[%c1_117, %c9_118, %c0_119] : memref<10x17x32xf32, #tpu.memory_space<vmem>>, vector<8x8x32xf32>
    %163 = vector.shape_cast %162 : vector<8x8x32xf32> to vector<64x32xf32>
    %c2_120 = arith.constant 2 : index
    %c7_121 = arith.constant 7 : index
    %c0_122 = arith.constant 0 : index
    %164 = vector.load %arg9[%c2_120, %c7_121, %c0_122] : memref<10x17x32xf32, #tpu.memory_space<vmem>>, vector<8x8x32xf32>
    %165 = vector.shape_cast %164 : vector<8x8x32xf32> to vector<64x32xf32>
    %c2_123 = arith.constant 2 : index
    %c8_124 = arith.constant 8 : index
    %c0_125 = arith.constant 0 : index
    %166 = vector.load %arg9[%c2_123, %c8_124, %c0_125] : memref<10x17x32xf32, #tpu.memory_space<vmem>>, vector<8x8x32xf32>
    %167 = vector.shape_cast %166 : vector<8x8x32xf32> to vector<64x32xf32>
    %c2_126 = arith.constant 2 : index
    %c9_127 = arith.constant 9 : index
    %c0_128 = arith.constant 0 : index
    %168 = vector.load %arg9[%c2_126, %c9_127, %c0_128] : memref<10x17x32xf32, #tpu.memory_space<vmem>>, vector<8x8x32xf32>
    %169 = vector.shape_cast %168 : vector<8x8x32xf32> to vector<64x32xf32>
    %c2_129 = arith.constant 2 : index
    %c0_130 = arith.constant 0 : index
    %c0_131 = arith.constant 0 : index
    %170 = vector.load %arg2[%c2_129, %c0_130, %c0_131] : memref<8x9x32xf32, #tpu.memory_space<vmem>>, vector<1x9x32xf32>
    %171 = vector.shape_cast %170 : vector<1x9x32xf32> to vector<9x32xf32>
    %c2_132 = arith.constant 2 : index
    %c0_133 = arith.constant 0 : index
    %c0_134 = arith.constant 0 : index
    %172 = vector.load %arg3[%c2_132, %c0_133, %c0_134] : memref<8x1x32xf32, #tpu.memory_space<vmem>>, vector<1x1x32xf32>
    %173 = vector.shape_cast %172 : vector<1x1x32xf32> to vector<1x32xf32>
    %174 = vector.extract_strided_slice %171 {offsets = [0, 0], sizes = [1, 32], strides = [1, 1]} : vector<9x32xf32> to vector<1x32xf32>
    %175 = vector.broadcast %174 : vector<1x32xf32> to vector<64x32xf32>
    %176 = arith.mulf %153, %175 : vector<64x32xf32>
    %177 = vector.extract_strided_slice %171 {offsets = [1, 0], sizes = [1, 32], strides = [1, 1]} : vector<9x32xf32> to vector<1x32xf32>
    %178 = vector.broadcast %177 : vector<1x32xf32> to vector<64x32xf32>
    %179 = arith.mulf %155, %178 : vector<64x32xf32>
    %180 = arith.addf %176, %179 : vector<64x32xf32>
    %181 = vector.extract_strided_slice %171 {offsets = [2, 0], sizes = [1, 32], strides = [1, 1]} : vector<9x32xf32> to vector<1x32xf32>
    %182 = vector.broadcast %181 : vector<1x32xf32> to vector<64x32xf32>
    %183 = arith.mulf %157, %182 : vector<64x32xf32>
    %184 = arith.addf %180, %183 : vector<64x32xf32>
    %185 = vector.extract_strided_slice %171 {offsets = [3, 0], sizes = [1, 32], strides = [1, 1]} : vector<9x32xf32> to vector<1x32xf32>
    %186 = vector.broadcast %185 : vector<1x32xf32> to vector<64x32xf32>
    %187 = arith.mulf %159, %186 : vector<64x32xf32>
    %188 = arith.addf %184, %187 : vector<64x32xf32>
    %189 = vector.extract_strided_slice %171 {offsets = [4, 0], sizes = [1, 32], strides = [1, 1]} : vector<9x32xf32> to vector<1x32xf32>
    %190 = vector.broadcast %189 : vector<1x32xf32> to vector<64x32xf32>
    %191 = arith.mulf %161, %190 : vector<64x32xf32>
    %192 = arith.addf %188, %191 : vector<64x32xf32>
    %193 = vector.extract_strided_slice %171 {offsets = [5, 0], sizes = [1, 32], strides = [1, 1]} : vector<9x32xf32> to vector<1x32xf32>
    %194 = vector.broadcast %193 : vector<1x32xf32> to vector<64x32xf32>
    %195 = arith.mulf %163, %194 : vector<64x32xf32>
    %196 = arith.addf %192, %195 : vector<64x32xf32>
    %197 = vector.extract_strided_slice %171 {offsets = [6, 0], sizes = [1, 32], strides = [1, 1]} : vector<9x32xf32> to vector<1x32xf32>
    %198 = vector.broadcast %197 : vector<1x32xf32> to vector<64x32xf32>
    %199 = arith.mulf %165, %198 : vector<64x32xf32>
    %200 = arith.addf %196, %199 : vector<64x32xf32>
    %201 = vector.extract_strided_slice %171 {offsets = [7, 0], sizes = [1, 32], strides = [1, 1]} : vector<9x32xf32> to vector<1x32xf32>
    %202 = vector.broadcast %201 : vector<1x32xf32> to vector<64x32xf32>
    %203 = arith.mulf %167, %202 : vector<64x32xf32>
    %204 = arith.addf %200, %203 : vector<64x32xf32>
    %205 = vector.extract_strided_slice %171 {offsets = [8, 0], sizes = [1, 32], strides = [1, 1]} : vector<9x32xf32> to vector<1x32xf32>
    %206 = vector.broadcast %205 : vector<1x32xf32> to vector<64x32xf32>
    %207 = arith.mulf %169, %206 : vector<64x32xf32>
    %208 = arith.addf %204, %207 : vector<64x32xf32>
    %209 = vector.broadcast %173 : vector<1x32xf32> to vector<64x32xf32>
    %210 = arith.addf %208, %209 : vector<64x32xf32>
    %211 = arith.truncf %210 : vector<64x32xf32> to vector<64x32xbf16>
    %c2_135 = arith.constant 2 : index
    %c0_136 = arith.constant 0 : index
    %c0_137 = arith.constant 0 : index
    %212 = vector.load %arg4[%c2_135, %c0_136, %c0_137] : memref<8x32x32xbf16, #tpu.memory_space<vmem>>, vector<1x32x32xbf16>
    %213 = vector.shape_cast %212 : vector<1x32x32xbf16> to vector<32x32xbf16>
    %cst_138 = arith.constant dense<0.000000e+00> : vector<64x32xf32>
    %214 = tpu.matmul %211, %213, %cst_138 {dimension_numbers = #tpu.dot_dimension_numbers<[1], [0], [0], [1], [0, 0, 1, 1], [], []>} : vector<64x32xbf16>, vector<32x32xbf16>, vector<64x32xf32> -> vector<64x32xf32>
    %c2_139 = arith.constant 2 : index
    %c0_140 = arith.constant 0 : index
    %c0_141 = arith.constant 0 : index
    %215 = vector.load %arg5[%c2_139, %c0_140, %c0_141] : memref<8x1x32xf32, #tpu.memory_space<vmem>>, vector<1x1x32xf32>
    %216 = vector.shape_cast %215 : vector<1x1x32xf32> to vector<1x32xf32>
    %217 = vector.broadcast %216 : vector<1x32xf32> to vector<64x32xf32>
    %218 = arith.addf %214, %217 : vector<64x32xf32>
    %cst_142 = arith.constant 0.000000e+00 : f32
    %219 = vector.broadcast %cst_142 : f32 to vector<64x32xf32>
    %220 = arith.maximumf %218, %219 : vector<64x32xf32>
    %221 = vector.shape_cast %220 : vector<64x32xf32> to vector<8x8x32xf32>
    %c1_143 = arith.constant 1 : index
    %c8_144 = arith.constant 8 : index
    %c0_145 = arith.constant 0 : index
    %222 = vector.load %arg9[%c1_143, %c8_144, %c0_145] : memref<10x17x32xf32, #tpu.memory_space<vmem>>, vector<8x8x32xf32>
    tpu.vector_store %arg9[%c1_143, %c8_144, %c0_145], %221 {strides = array<i32>} : memref<10x17x32xf32, #tpu.memory_space<vmem>>, vector<8x8x32xf32>,
    %c0_146 = arith.constant 0 : index
    %c7_147 = arith.constant 7 : index
    %c0_148 = arith.constant 0 : index
    %223 = vector.load %arg9[%c0_146, %c7_147, %c0_148] : memref<10x17x32xf32, #tpu.memory_space<vmem>>, vector<8x8x32xf32>
    %224 = vector.shape_cast %223 : vector<8x8x32xf32> to vector<64x32xf32>
    %c0_149 = arith.constant 0 : index
    %c8_150 = arith.constant 8 : index
    %c0_151 = arith.constant 0 : index
    %225 = vector.load %arg9[%c0_149, %c8_150, %c0_151] : memref<10x17x32xf32, #tpu.memory_space<vmem>>, vector<8x8x32xf32>
    %226 = vector.shape_cast %225 : vector<8x8x32xf32> to vector<64x32xf32>
    %c0_152 = arith.constant 0 : index
    %c9_153 = arith.constant 9 : index
    %c0_154 = arith.constant 0 : index
    %227 = vector.load %arg9[%c0_152, %c9_153, %c0_154] : memref<10x17x32xf32, #tpu.memory_space<vmem>>, vector<8x8x32xf32>
    %228 = vector.shape_cast %227 : vector<8x8x32xf32> to vector<64x32xf32>
    %c1_155 = arith.constant 1 : index
    %c7_156 = arith.constant 7 : index
    %c0_157 = arith.constant 0 : index
    %229 = vector.load %arg9[%c1_155, %c7_156, %c0_157] : memref<10x17x32xf32, #tpu.memory_space<vmem>>, vector<8x8x32xf32>
    %230 = vector.shape_cast %229 : vector<8x8x32xf32> to vector<64x32xf32>
    %c1_158 = arith.constant 1 : index
    %c8_159 = arith.constant 8 : index
    %c0_160 = arith.constant 0 : index
    %231 = vector.load %arg9[%c1_158, %c8_159, %c0_160] : memref<10x17x32xf32, #tpu.memory_space<vmem>>, vector<8x8x32xf32>
    %232 = vector.shape_cast %231 : vector<8x8x32xf32> to vector<64x32xf32>
    %c1_161 = arith.constant 1 : index
    %c9_162 = arith.constant 9 : index
    %c0_163 = arith.constant 0 : index
    %233 = vector.load %arg9[%c1_161, %c9_162, %c0_163] : memref<10x17x32xf32, #tpu.memory_space<vmem>>, vector<8x8x32xf32>
    %234 = vector.shape_cast %233 : vector<8x8x32xf32> to vector<64x32xf32>
    %c2_164 = arith.constant 2 : index
    %c7_165 = arith.constant 7 : index
    %c0_166 = arith.constant 0 : index
    %235 = vector.load %arg9[%c2_164, %c7_165, %c0_166] : memref<10x17x32xf32, #tpu.memory_space<vmem>>, vector<8x8x32xf32>
    %236 = vector.shape_cast %235 : vector<8x8x32xf32> to vector<64x32xf32>
    %c2_167 = arith.constant 2 : index
    %c8_168 = arith.constant 8 : index
    %c0_169 = arith.constant 0 : index
    %237 = vector.load %arg9[%c2_167, %c8_168, %c0_169] : memref<10x17x32xf32, #tpu.memory_space<vmem>>, vector<8x8x32xf32>
    %238 = vector.shape_cast %237 : vector<8x8x32xf32> to vector<64x32xf32>
    %c2_170 = arith.constant 2 : index
    %c9_171 = arith.constant 9 : index
    %c0_172 = arith.constant 0 : index
    %239 = vector.load %arg9[%c2_170, %c9_171, %c0_172] : memref<10x17x32xf32, #tpu.memory_space<vmem>>, vector<8x8x32xf32>
    %240 = vector.shape_cast %239 : vector<8x8x32xf32> to vector<64x32xf32>
    %c3 = arith.constant 3 : index
    %c0_173 = arith.constant 0 : index
    %c0_174 = arith.constant 0 : index
    %241 = vector.load %arg2[%c3, %c0_173, %c0_174] : memref<8x9x32xf32, #tpu.memory_space<vmem>>, vector<1x9x32xf32>
    %242 = vector.shape_cast %241 : vector<1x9x32xf32> to vector<9x32xf32>
    %c3_175 = arith.constant 3 : index
    %c0_176 = arith.constant 0 : index
    %c0_177 = arith.constant 0 : index
    %243 = vector.load %arg3[%c3_175, %c0_176, %c0_177] : memref<8x1x32xf32, #tpu.memory_space<vmem>>, vector<1x1x32xf32>
    %244 = vector.shape_cast %243 : vector<1x1x32xf32> to vector<1x32xf32>
    %245 = vector.extract_strided_slice %242 {offsets = [0, 0], sizes = [1, 32], strides = [1, 1]} : vector<9x32xf32> to vector<1x32xf32>
    %246 = vector.broadcast %245 : vector<1x32xf32> to vector<64x32xf32>
    %247 = arith.mulf %224, %246 : vector<64x32xf32>
    %248 = vector.extract_strided_slice %242 {offsets = [1, 0], sizes = [1, 32], strides = [1, 1]} : vector<9x32xf32> to vector<1x32xf32>
    %249 = vector.broadcast %248 : vector<1x32xf32> to vector<64x32xf32>
    %250 = arith.mulf %226, %249 : vector<64x32xf32>
    %251 = arith.addf %247, %250 : vector<64x32xf32>
    %252 = vector.extract_strided_slice %242 {offsets = [2, 0], sizes = [1, 32], strides = [1, 1]} : vector<9x32xf32> to vector<1x32xf32>
    %253 = vector.broadcast %252 : vector<1x32xf32> to vector<64x32xf32>
    %254 = arith.mulf %228, %253 : vector<64x32xf32>
    %255 = arith.addf %251, %254 : vector<64x32xf32>
    %256 = vector.extract_strided_slice %242 {offsets = [3, 0], sizes = [1, 32], strides = [1, 1]} : vector<9x32xf32> to vector<1x32xf32>
    %257 = vector.broadcast %256 : vector<1x32xf32> to vector<64x32xf32>
    %258 = arith.mulf %230, %257 : vector<64x32xf32>
    %259 = arith.addf %255, %258 : vector<64x32xf32>
    %260 = vector.extract_strided_slice %242 {offsets = [4, 0], sizes = [1, 32], strides = [1, 1]} : vector<9x32xf32> to vector<1x32xf32>
    %261 = vector.broadcast %260 : vector<1x32xf32> to vector<64x32xf32>
    %262 = arith.mulf %232, %261 : vector<64x32xf32>
    %263 = arith.addf %259, %262 : vector<64x32xf32>
    %264 = vector.extract_strided_slice %242 {offsets = [5, 0], sizes = [1, 32], strides = [1, 1]} : vector<9x32xf32> to vector<1x32xf32>
    %265 = vector.broadcast %264 : vector<1x32xf32> to vector<64x32xf32>
    %266 = arith.mulf %234, %265 : vector<64x32xf32>
    %267 = arith.addf %263, %266 : vector<64x32xf32>
    %268 = vector.extract_strided_slice %242 {offsets = [6, 0], sizes = [1, 32], strides = [1, 1]} : vector<9x32xf32> to vector<1x32xf32>
    %269 = vector.broadcast %268 : vector<1x32xf32> to vector<64x32xf32>
    %270 = arith.mulf %236, %269 : vector<64x32xf32>
    %271 = arith.addf %267, %270 : vector<64x32xf32>
    %272 = vector.extract_strided_slice %242 {offsets = [7, 0], sizes = [1, 32], strides = [1, 1]} : vector<9x32xf32> to vector<1x32xf32>
    %273 = vector.broadcast %272 : vector<1x32xf32> to vector<64x32xf32>
    %274 = arith.mulf %238, %273 : vector<64x32xf32>
    %275 = arith.addf %271, %274 : vector<64x32xf32>
    %276 = vector.extract_strided_slice %242 {offsets = [8, 0], sizes = [1, 32], strides = [1, 1]} : vector<9x32xf32> to vector<1x32xf32>
    %277 = vector.broadcast %276 : vector<1x32xf32> to vector<64x32xf32>
    %278 = arith.mulf %240, %277 : vector<64x32xf32>
    %279 = arith.addf %275, %278 : vector<64x32xf32>
    %280 = vector.broadcast %244 : vector<1x32xf32> to vector<64x32xf32>
    %281 = arith.addf %279, %280 : vector<64x32xf32>
    %282 = arith.truncf %281 : vector<64x32xf32> to vector<64x32xbf16>
    %c3_178 = arith.constant 3 : index
    %c0_179 = arith.constant 0 : index
    %c0_180 = arith.constant 0 : index
    %283 = vector.load %arg4[%c3_178, %c0_179, %c0_180] : memref<8x32x32xbf16, #tpu.memory_space<vmem>>, vector<1x32x32xbf16>
    %284 = vector.shape_cast %283 : vector<1x32x32xbf16> to vector<32x32xbf16>
    %cst_181 = arith.constant dense<0.000000e+00> : vector<64x32xf32>
    %285 = tpu.matmul %282, %284, %cst_181 {dimension_numbers = #tpu.dot_dimension_numbers<[1], [0], [0], [1], [0, 0, 1, 1], [], []>} : vector<64x32xbf16>, vector<32x32xbf16>, vector<64x32xf32> -> vector<64x32xf32>
    %c3_182 = arith.constant 3 : index
    %c0_183 = arith.constant 0 : index
    %c0_184 = arith.constant 0 : index
    %286 = vector.load %arg5[%c3_182, %c0_183, %c0_184] : memref<8x1x32xf32, #tpu.memory_space<vmem>>, vector<1x1x32xf32>
    %287 = vector.shape_cast %286 : vector<1x1x32xf32> to vector<1x32xf32>
    %288 = vector.broadcast %287 : vector<1x32xf32> to vector<64x32xf32>
    %289 = arith.addf %285, %288 : vector<64x32xf32>
    %290 = vector.shape_cast %289 : vector<64x32xf32> to vector<8x8x32xf32>
    %291 = arith.addf %149, %290 : vector<8x8x32xf32>
    %cst_185 = arith.constant 5.000000e-01 : f32
    %292 = vector.broadcast %cst_185 : f32 to vector<8x8x32xf32>
    %293 = arith.mulf %292, %291 : vector<8x8x32xf32>
    %294 = arith.addf %150, %293 : vector<8x8x32xf32>
    %c1_186 = arith.constant 1 : index
    %c8_187 = arith.constant 8 : index
    %c0_188 = arith.constant 0 : index
    %295 = vector.load %arg9[%c1_186, %c8_187, %c0_188] : memref<10x17x32xf32, #tpu.memory_space<vmem>>, vector<8x8x32xf32>
    tpu.vector_store %arg9[%c1_186, %c8_187, %c0_188], %294 {strides = array<i32>} : memref<10x17x32xf32, #tpu.memory_space<vmem>>, vector<8x8x32xf32>,
    %c0_189 = arith.constant 0 : index
    %c7_190 = arith.constant 7 : index
    %c0_191 = arith.constant 0 : index
    %296 = vector.load %arg9[%c0_189, %c7_190, %c0_191] : memref<10x17x32xf32, #tpu.memory_space<vmem>>, vector<8x8x32xf32>
    %297 = vector.shape_cast %296 : vector<8x8x32xf32> to vector<64x32xf32>
    %c0_192 = arith.constant 0 : index
    %c8_193 = arith.constant 8 : index
    %c0_194 = arith.constant 0 : index
    %298 = vector.load %arg9[%c0_192, %c8_193, %c0_194] : memref<10x17x32xf32, #tpu.memory_space<vmem>>, vector<8x8x32xf32>
    %299 = vector.shape_cast %298 : vector<8x8x32xf32> to vector<64x32xf32>
    %c0_195 = arith.constant 0 : index
    %c9_196 = arith.constant 9 : index
    %c0_197 = arith.constant 0 : index
    %300 = vector.load %arg9[%c0_195, %c9_196, %c0_197] : memref<10x17x32xf32, #tpu.memory_space<vmem>>, vector<8x8x32xf32>
    %301 = vector.shape_cast %300 : vector<8x8x32xf32> to vector<64x32xf32>
    %c1_198 = arith.constant 1 : index
    %c7_199 = arith.constant 7 : index
    %c0_200 = arith.constant 0 : index
    %302 = vector.load %arg9[%c1_198, %c7_199, %c0_200] : memref<10x17x32xf32, #tpu.memory_space<vmem>>, vector<8x8x32xf32>
    %303 = vector.shape_cast %302 : vector<8x8x32xf32> to vector<64x32xf32>
    %c1_201 = arith.constant 1 : index
    %c8_202 = arith.constant 8 : index
    %c0_203 = arith.constant 0 : index
    %304 = vector.load %arg9[%c1_201, %c8_202, %c0_203] : memref<10x17x32xf32, #tpu.memory_space<vmem>>, vector<8x8x32xf32>
    %305 = vector.shape_cast %304 : vector<8x8x32xf32> to vector<64x32xf32>
    %c1_204 = arith.constant 1 : index
    %c9_205 = arith.constant 9 : index
    %c0_206 = arith.constant 0 : index
    %306 = vector.load %arg9[%c1_204, %c9_205, %c0_206] : memref<10x17x32xf32, #tpu.memory_space<vmem>>, vector<8x8x32xf32>
    %307 = vector.shape_cast %306 : vector<8x8x32xf32> to vector<64x32xf32>
    %c2_207 = arith.constant 2 : index
    %c7_208 = arith.constant 7 : index
    %c0_209 = arith.constant 0 : index
    %308 = vector.load %arg9[%c2_207, %c7_208, %c0_209] : memref<10x17x32xf32, #tpu.memory_space<vmem>>, vector<8x8x32xf32>
    %309 = vector.shape_cast %308 : vector<8x8x32xf32> to vector<64x32xf32>
    %c2_210 = arith.constant 2 : index
    %c8_211 = arith.constant 8 : index
    %c0_212 = arith.constant 0 : index
    %310 = vector.load %arg9[%c2_210, %c8_211, %c0_212] : memref<10x17x32xf32, #tpu.memory_space<vmem>>, vector<8x8x32xf32>
    %311 = vector.shape_cast %310 : vector<8x8x32xf32> to vector<64x32xf32>
    %c2_213 = arith.constant 2 : index
    %c9_214 = arith.constant 9 : index
    %c0_215 = arith.constant 0 : index
    %312 = vector.load %arg9[%c2_213, %c9_214, %c0_215] : memref<10x17x32xf32, #tpu.memory_space<vmem>>, vector<8x8x32xf32>
    %313 = vector.shape_cast %312 : vector<8x8x32xf32> to vector<64x32xf32>
    %c4 = arith.constant 4 : index
    %c0_216 = arith.constant 0 : index
    %c0_217 = arith.constant 0 : index
    %314 = vector.load %arg2[%c4, %c0_216, %c0_217] : memref<8x9x32xf32, #tpu.memory_space<vmem>>, vector<1x9x32xf32>
    %315 = vector.shape_cast %314 : vector<1x9x32xf32> to vector<9x32xf32>
    %c4_218 = arith.constant 4 : index
    %c0_219 = arith.constant 0 : index
    %c0_220 = arith.constant 0 : index
    %316 = vector.load %arg3[%c4_218, %c0_219, %c0_220] : memref<8x1x32xf32, #tpu.memory_space<vmem>>, vector<1x1x32xf32>
    %317 = vector.shape_cast %316 : vector<1x1x32xf32> to vector<1x32xf32>
    %318 = vector.extract_strided_slice %315 {offsets = [0, 0], sizes = [1, 32], strides = [1, 1]} : vector<9x32xf32> to vector<1x32xf32>
    %319 = vector.broadcast %318 : vector<1x32xf32> to vector<64x32xf32>
    %320 = arith.mulf %297, %319 : vector<64x32xf32>
    %321 = vector.extract_strided_slice %315 {offsets = [1, 0], sizes = [1, 32], strides = [1, 1]} : vector<9x32xf32> to vector<1x32xf32>
    %322 = vector.broadcast %321 : vector<1x32xf32> to vector<64x32xf32>
    %323 = arith.mulf %299, %322 : vector<64x32xf32>
    %324 = arith.addf %320, %323 : vector<64x32xf32>
    %325 = vector.extract_strided_slice %315 {offsets = [2, 0], sizes = [1, 32], strides = [1, 1]} : vector<9x32xf32> to vector<1x32xf32>
    %326 = vector.broadcast %325 : vector<1x32xf32> to vector<64x32xf32>
    %327 = arith.mulf %301, %326 : vector<64x32xf32>
    %328 = arith.addf %324, %327 : vector<64x32xf32>
    %329 = vector.extract_strided_slice %315 {offsets = [3, 0], sizes = [1, 32], strides = [1, 1]} : vector<9x32xf32> to vector<1x32xf32>
    %330 = vector.broadcast %329 : vector<1x32xf32> to vector<64x32xf32>
    %331 = arith.mulf %303, %330 : vector<64x32xf32>
    %332 = arith.addf %328, %331 : vector<64x32xf32>
    %333 = vector.extract_strided_slice %315 {offsets = [4, 0], sizes = [1, 32], strides = [1, 1]} : vector<9x32xf32> to vector<1x32xf32>
    %334 = vector.broadcast %333 : vector<1x32xf32> to vector<64x32xf32>
    %335 = arith.mulf %305, %334 : vector<64x32xf32>
    %336 = arith.addf %332, %335 : vector<64x32xf32>
    %337 = vector.extract_strided_slice %315 {offsets = [5, 0], sizes = [1, 32], strides = [1, 1]} : vector<9x32xf32> to vector<1x32xf32>
    %338 = vector.broadcast %337 : vector<1x32xf32> to vector<64x32xf32>
    %339 = arith.mulf %307, %338 : vector<64x32xf32>
    %340 = arith.addf %336, %339 : vector<64x32xf32>
    %341 = vector.extract_strided_slice %315 {offsets = [6, 0], sizes = [1, 32], strides = [1, 1]} : vector<9x32xf32> to vector<1x32xf32>
    %342 = vector.broadcast %341 : vector<1x32xf32> to vector<64x32xf32>
    %343 = arith.mulf %309, %342 : vector<64x32xf32>
    %344 = arith.addf %340, %343 : vector<64x32xf32>
    %345 = vector.extract_strided_slice %315 {offsets = [7, 0], sizes = [1, 32], strides = [1, 1]} : vector<9x32xf32> to vector<1x32xf32>
    %346 = vector.broadcast %345 : vector<1x32xf32> to vector<64x32xf32>
    %347 = arith.mulf %311, %346 : vector<64x32xf32>
    %348 = arith.addf %344, %347 : vector<64x32xf32>
    %349 = vector.extract_strided_slice %315 {offsets = [8, 0], sizes = [1, 32], strides = [1, 1]} : vector<9x32xf32> to vector<1x32xf32>
    %350 = vector.broadcast %349 : vector<1x32xf32> to vector<64x32xf32>
    %351 = arith.mulf %313, %350 : vector<64x32xf32>
    %352 = arith.addf %348, %351 : vector<64x32xf32>
    %353 = vector.broadcast %317 : vector<1x32xf32> to vector<64x32xf32>
    %354 = arith.addf %352, %353 : vector<64x32xf32>
    %355 = arith.truncf %354 : vector<64x32xf32> to vector<64x32xbf16>
    %c4_221 = arith.constant 4 : index
    %c0_222 = arith.constant 0 : index
    %c0_223 = arith.constant 0 : index
    %356 = vector.load %arg4[%c4_221, %c0_222, %c0_223] : memref<8x32x32xbf16, #tpu.memory_space<vmem>>, vector<1x32x32xbf16>
    %357 = vector.shape_cast %356 : vector<1x32x32xbf16> to vector<32x32xbf16>
    %cst_224 = arith.constant dense<0.000000e+00> : vector<64x32xf32>
    %358 = tpu.matmul %355, %357, %cst_224 {dimension_numbers = #tpu.dot_dimension_numbers<[1], [0], [0], [1], [0, 0, 1, 1], [], []>} : vector<64x32xbf16>, vector<32x32xbf16>, vector<64x32xf32> -> vector<64x32xf32>
    %c4_225 = arith.constant 4 : index
    %c0_226 = arith.constant 0 : index
    %c0_227 = arith.constant 0 : index
    %359 = vector.load %arg5[%c4_225, %c0_226, %c0_227] : memref<8x1x32xf32, #tpu.memory_space<vmem>>, vector<1x1x32xf32>
    %360 = vector.shape_cast %359 : vector<1x1x32xf32> to vector<1x32xf32>
    %361 = vector.broadcast %360 : vector<1x32xf32> to vector<64x32xf32>
    %362 = arith.addf %358, %361 : vector<64x32xf32>
    %cst_228 = arith.constant 0.000000e+00 : f32
    %363 = vector.broadcast %cst_228 : f32 to vector<64x32xf32>
    %364 = arith.maximumf %362, %363 : vector<64x32xf32>
    %365 = vector.shape_cast %364 : vector<64x32xf32> to vector<8x8x32xf32>
    %c1_229 = arith.constant 1 : index
    %c8_230 = arith.constant 8 : index
    %c0_231 = arith.constant 0 : index
    %366 = vector.load %arg9[%c1_229, %c8_230, %c0_231] : memref<10x17x32xf32, #tpu.memory_space<vmem>>, vector<8x8x32xf32>
    tpu.vector_store %arg9[%c1_229, %c8_230, %c0_231], %365 {strides = array<i32>} : memref<10x17x32xf32, #tpu.memory_space<vmem>>, vector<8x8x32xf32>,
    %c0_232 = arith.constant 0 : index
    %c7_233 = arith.constant 7 : index
    %c0_234 = arith.constant 0 : index
    %367 = vector.load %arg9[%c0_232, %c7_233, %c0_234] : memref<10x17x32xf32, #tpu.memory_space<vmem>>, vector<8x8x32xf32>
    %368 = vector.shape_cast %367 : vector<8x8x32xf32> to vector<64x32xf32>
    %c0_235 = arith.constant 0 : index
    %c8_236 = arith.constant 8 : index
    %c0_237 = arith.constant 0 : index
    %369 = vector.load %arg9[%c0_235, %c8_236, %c0_237] : memref<10x17x32xf32, #tpu.memory_space<vmem>>, vector<8x8x32xf32>
    %370 = vector.shape_cast %369 : vector<8x8x32xf32> to vector<64x32xf32>
    %c0_238 = arith.constant 0 : index
    %c9_239 = arith.constant 9 : index
    %c0_240 = arith.constant 0 : index
    %371 = vector.load %arg9[%c0_238, %c9_239, %c0_240] : memref<10x17x32xf32, #tpu.memory_space<vmem>>, vector<8x8x32xf32>
    %372 = vector.shape_cast %371 : vector<8x8x32xf32> to vector<64x32xf32>
    %c1_241 = arith.constant 1 : index
    %c7_242 = arith.constant 7 : index
    %c0_243 = arith.constant 0 : index
    %373 = vector.load %arg9[%c1_241, %c7_242, %c0_243] : memref<10x17x32xf32, #tpu.memory_space<vmem>>, vector<8x8x32xf32>
    %374 = vector.shape_cast %373 : vector<8x8x32xf32> to vector<64x32xf32>
    %c1_244 = arith.constant 1 : index
    %c8_245 = arith.constant 8 : index
    %c0_246 = arith.constant 0 : index
    %375 = vector.load %arg9[%c1_244, %c8_245, %c0_246] : memref<10x17x32xf32, #tpu.memory_space<vmem>>, vector<8x8x32xf32>
    %376 = vector.shape_cast %375 : vector<8x8x32xf32> to vector<64x32xf32>
    %c1_247 = arith.constant 1 : index
    %c9_248 = arith.constant 9 : index
    %c0_249 = arith.constant 0 : index
    %377 = vector.load %arg9[%c1_247, %c9_248, %c0_249] : memref<10x17x32xf32, #tpu.memory_space<vmem>>, vector<8x8x32xf32>
    %378 = vector.shape_cast %377 : vector<8x8x32xf32> to vector<64x32xf32>
    %c2_250 = arith.constant 2 : index
    %c7_251 = arith.constant 7 : index
    %c0_252 = arith.constant 0 : index
    %379 = vector.load %arg9[%c2_250, %c7_251, %c0_252] : memref<10x17x32xf32, #tpu.memory_space<vmem>>, vector<8x8x32xf32>
    %380 = vector.shape_cast %379 : vector<8x8x32xf32> to vector<64x32xf32>
    %c2_253 = arith.constant 2 : index
    %c8_254 = arith.constant 8 : index
    %c0_255 = arith.constant 0 : index
    %381 = vector.load %arg9[%c2_253, %c8_254, %c0_255] : memref<10x17x32xf32, #tpu.memory_space<vmem>>, vector<8x8x32xf32>
    %382 = vector.shape_cast %381 : vector<8x8x32xf32> to vector<64x32xf32>
    %c2_256 = arith.constant 2 : index
    %c9_257 = arith.constant 9 : index
    %c0_258 = arith.constant 0 : index
    %383 = vector.load %arg9[%c2_256, %c9_257, %c0_258] : memref<10x17x32xf32, #tpu.memory_space<vmem>>, vector<8x8x32xf32>
    %384 = vector.shape_cast %383 : vector<8x8x32xf32> to vector<64x32xf32>
    %c5 = arith.constant 5 : index
    %c0_259 = arith.constant 0 : index
    %c0_260 = arith.constant 0 : index
    %385 = vector.load %arg2[%c5, %c0_259, %c0_260] : memref<8x9x32xf32, #tpu.memory_space<vmem>>, vector<1x9x32xf32>
    %386 = vector.shape_cast %385 : vector<1x9x32xf32> to vector<9x32xf32>
    %c5_261 = arith.constant 5 : index
    %c0_262 = arith.constant 0 : index
    %c0_263 = arith.constant 0 : index
    %387 = vector.load %arg3[%c5_261, %c0_262, %c0_263] : memref<8x1x32xf32, #tpu.memory_space<vmem>>, vector<1x1x32xf32>
    %388 = vector.shape_cast %387 : vector<1x1x32xf32> to vector<1x32xf32>
    %389 = vector.extract_strided_slice %386 {offsets = [0, 0], sizes = [1, 32], strides = [1, 1]} : vector<9x32xf32> to vector<1x32xf32>
    %390 = vector.broadcast %389 : vector<1x32xf32> to vector<64x32xf32>
    %391 = arith.mulf %368, %390 : vector<64x32xf32>
    %392 = vector.extract_strided_slice %386 {offsets = [1, 0], sizes = [1, 32], strides = [1, 1]} : vector<9x32xf32> to vector<1x32xf32>
    %393 = vector.broadcast %392 : vector<1x32xf32> to vector<64x32xf32>
    %394 = arith.mulf %370, %393 : vector<64x32xf32>
    %395 = arith.addf %391, %394 : vector<64x32xf32>
    %396 = vector.extract_strided_slice %386 {offsets = [2, 0], sizes = [1, 32], strides = [1, 1]} : vector<9x32xf32> to vector<1x32xf32>
    %397 = vector.broadcast %396 : vector<1x32xf32> to vector<64x32xf32>
    %398 = arith.mulf %372, %397 : vector<64x32xf32>
    %399 = arith.addf %395, %398 : vector<64x32xf32>
    %400 = vector.extract_strided_slice %386 {offsets = [3, 0], sizes = [1, 32], strides = [1, 1]} : vector<9x32xf32> to vector<1x32xf32>
    %401 = vector.broadcast %400 : vector<1x32xf32> to vector<64x32xf32>
    %402 = arith.mulf %374, %401 : vector<64x32xf32>
    %403 = arith.addf %399, %402 : vector<64x32xf32>
    %404 = vector.extract_strided_slice %386 {offsets = [4, 0], sizes = [1, 32], strides = [1, 1]} : vector<9x32xf32> to vector<1x32xf32>
    %405 = vector.broadcast %404 : vector<1x32xf32> to vector<64x32xf32>
    %406 = arith.mulf %376, %405 : vector<64x32xf32>
    %407 = arith.addf %403, %406 : vector<64x32xf32>
    %408 = vector.extract_strided_slice %386 {offsets = [5, 0], sizes = [1, 32], strides = [1, 1]} : vector<9x32xf32> to vector<1x32xf32>
    %409 = vector.broadcast %408 : vector<1x32xf32> to vector<64x32xf32>
    %410 = arith.mulf %378, %409 : vector<64x32xf32>
    %411 = arith.addf %407, %410 : vector<64x32xf32>
    %412 = vector.extract_strided_slice %386 {offsets = [6, 0], sizes = [1, 32], strides = [1, 1]} : vector<9x32xf32> to vector<1x32xf32>
    %413 = vector.broadcast %412 : vector<1x32xf32> to vector<64x32xf32>
    %414 = arith.mulf %380, %413 : vector<64x32xf32>
    %415 = arith.addf %411, %414 : vector<64x32xf32>
    %416 = vector.extract_strided_slice %386 {offsets = [7, 0], sizes = [1, 32], strides = [1, 1]} : vector<9x32xf32> to vector<1x32xf32>
    %417 = vector.broadcast %416 : vector<1x32xf32> to vector<64x32xf32>
    %418 = arith.mulf %382, %417 : vector<64x32xf32>
    %419 = arith.addf %415, %418 : vector<64x32xf32>
    %420 = vector.extract_strided_slice %386 {offsets = [8, 0], sizes = [1, 32], strides = [1, 1]} : vector<9x32xf32> to vector<1x32xf32>
    %421 = vector.broadcast %420 : vector<1x32xf32> to vector<64x32xf32>
    %422 = arith.mulf %384, %421 : vector<64x32xf32>
    %423 = arith.addf %419, %422 : vector<64x32xf32>
    %424 = vector.broadcast %388 : vector<1x32xf32> to vector<64x32xf32>
    %425 = arith.addf %423, %424 : vector<64x32xf32>
    %426 = arith.truncf %425 : vector<64x32xf32> to vector<64x32xbf16>
    %c5_264 = arith.constant 5 : index
    %c0_265 = arith.constant 0 : index
    %c0_266 = arith.constant 0 : index
    %427 = vector.load %arg4[%c5_264, %c0_265, %c0_266] : memref<8x32x32xbf16, #tpu.memory_space<vmem>>, vector<1x32x32xbf16>
    %428 = vector.shape_cast %427 : vector<1x32x32xbf16> to vector<32x32xbf16>
    %cst_267 = arith.constant dense<0.000000e+00> : vector<64x32xf32>
    %429 = tpu.matmul %426, %428, %cst_267 {dimension_numbers = #tpu.dot_dimension_numbers<[1], [0], [0], [1], [0, 0, 1, 1], [], []>} : vector<64x32xbf16>, vector<32x32xbf16>, vector<64x32xf32> -> vector<64x32xf32>
    %c5_268 = arith.constant 5 : index
    %c0_269 = arith.constant 0 : index
    %c0_270 = arith.constant 0 : index
    %430 = vector.load %arg5[%c5_268, %c0_269, %c0_270] : memref<8x1x32xf32, #tpu.memory_space<vmem>>, vector<1x1x32xf32>
    %431 = vector.shape_cast %430 : vector<1x1x32xf32> to vector<1x32xf32>
    %432 = vector.broadcast %431 : vector<1x32xf32> to vector<64x32xf32>
    %433 = arith.addf %429, %432 : vector<64x32xf32>
    %434 = vector.shape_cast %433 : vector<64x32xf32> to vector<8x8x32xf32>
    %435 = arith.addf %294, %434 : vector<8x8x32xf32>
    %c1_271 = arith.constant 1 : index
    %c8_272 = arith.constant 8 : index
    %c0_273 = arith.constant 0 : index
    %436 = vector.load %arg9[%c1_271, %c8_272, %c0_273] : memref<10x17x32xf32, #tpu.memory_space<vmem>>, vector<8x8x32xf32>
    tpu.vector_store %arg9[%c1_271, %c8_272, %c0_273], %435 {strides = array<i32>} : memref<10x17x32xf32, #tpu.memory_space<vmem>>, vector<8x8x32xf32>,
    %c0_274 = arith.constant 0 : index
    %c7_275 = arith.constant 7 : index
    %c0_276 = arith.constant 0 : index
    %437 = vector.load %arg9[%c0_274, %c7_275, %c0_276] : memref<10x17x32xf32, #tpu.memory_space<vmem>>, vector<8x8x32xf32>
    %438 = vector.shape_cast %437 : vector<8x8x32xf32> to vector<64x32xf32>
    %c0_277 = arith.constant 0 : index
    %c8_278 = arith.constant 8 : index
    %c0_279 = arith.constant 0 : index
    %439 = vector.load %arg9[%c0_277, %c8_278, %c0_279] : memref<10x17x32xf32, #tpu.memory_space<vmem>>, vector<8x8x32xf32>
    %440 = vector.shape_cast %439 : vector<8x8x32xf32> to vector<64x32xf32>
    %c0_280 = arith.constant 0 : index
    %c9_281 = arith.constant 9 : index
    %c0_282 = arith.constant 0 : index
    %441 = vector.load %arg9[%c0_280, %c9_281, %c0_282] : memref<10x17x32xf32, #tpu.memory_space<vmem>>, vector<8x8x32xf32>
    %442 = vector.shape_cast %441 : vector<8x8x32xf32> to vector<64x32xf32>
    %c1_283 = arith.constant 1 : index
    %c7_284 = arith.constant 7 : index
    %c0_285 = arith.constant 0 : index
    %443 = vector.load %arg9[%c1_283, %c7_284, %c0_285] : memref<10x17x32xf32, #tpu.memory_space<vmem>>, vector<8x8x32xf32>
    %444 = vector.shape_cast %443 : vector<8x8x32xf32> to vector<64x32xf32>
    %c1_286 = arith.constant 1 : index
    %c8_287 = arith.constant 8 : index
    %c0_288 = arith.constant 0 : index
    %445 = vector.load %arg9[%c1_286, %c8_287, %c0_288] : memref<10x17x32xf32, #tpu.memory_space<vmem>>, vector<8x8x32xf32>
    %446 = vector.shape_cast %445 : vector<8x8x32xf32> to vector<64x32xf32>
    %c1_289 = arith.constant 1 : index
    %c9_290 = arith.constant 9 : index
    %c0_291 = arith.constant 0 : index
    %447 = vector.load %arg9[%c1_289, %c9_290, %c0_291] : memref<10x17x32xf32, #tpu.memory_space<vmem>>, vector<8x8x32xf32>
    %448 = vector.shape_cast %447 : vector<8x8x32xf32> to vector<64x32xf32>
    %c2_292 = arith.constant 2 : index
    %c7_293 = arith.constant 7 : index
    %c0_294 = arith.constant 0 : index
    %449 = vector.load %arg9[%c2_292, %c7_293, %c0_294] : memref<10x17x32xf32, #tpu.memory_space<vmem>>, vector<8x8x32xf32>
    %450 = vector.shape_cast %449 : vector<8x8x32xf32> to vector<64x32xf32>
    %c2_295 = arith.constant 2 : index
    %c8_296 = arith.constant 8 : index
    %c0_297 = arith.constant 0 : index
    %451 = vector.load %arg9[%c2_295, %c8_296, %c0_297] : memref<10x17x32xf32, #tpu.memory_space<vmem>>, vector<8x8x32xf32>
    %452 = vector.shape_cast %451 : vector<8x8x32xf32> to vector<64x32xf32>
    %c2_298 = arith.constant 2 : index
    %c9_299 = arith.constant 9 : index
    %c0_300 = arith.constant 0 : index
    %453 = vector.load %arg9[%c2_298, %c9_299, %c0_300] : memref<10x17x32xf32, #tpu.memory_space<vmem>>, vector<8x8x32xf32>
    %454 = vector.shape_cast %453 : vector<8x8x32xf32> to vector<64x32xf32>
    %c6 = arith.constant 6 : index
    %c0_301 = arith.constant 0 : index
    %c0_302 = arith.constant 0 : index
    %455 = vector.load %arg2[%c6, %c0_301, %c0_302] : memref<8x9x32xf32, #tpu.memory_space<vmem>>, vector<1x9x32xf32>
    %456 = vector.shape_cast %455 : vector<1x9x32xf32> to vector<9x32xf32>
    %c6_303 = arith.constant 6 : index
    %c0_304 = arith.constant 0 : index
    %c0_305 = arith.constant 0 : index
    %457 = vector.load %arg3[%c6_303, %c0_304, %c0_305] : memref<8x1x32xf32, #tpu.memory_space<vmem>>, vector<1x1x32xf32>
    %458 = vector.shape_cast %457 : vector<1x1x32xf32> to vector<1x32xf32>
    %459 = vector.extract_strided_slice %456 {offsets = [0, 0], sizes = [1, 32], strides = [1, 1]} : vector<9x32xf32> to vector<1x32xf32>
    %460 = vector.broadcast %459 : vector<1x32xf32> to vector<64x32xf32>
    %461 = arith.mulf %438, %460 : vector<64x32xf32>
    %462 = vector.extract_strided_slice %456 {offsets = [1, 0], sizes = [1, 32], strides = [1, 1]} : vector<9x32xf32> to vector<1x32xf32>
    %463 = vector.broadcast %462 : vector<1x32xf32> to vector<64x32xf32>
    %464 = arith.mulf %440, %463 : vector<64x32xf32>
    %465 = arith.addf %461, %464 : vector<64x32xf32>
    %466 = vector.extract_strided_slice %456 {offsets = [2, 0], sizes = [1, 32], strides = [1, 1]} : vector<9x32xf32> to vector<1x32xf32>
    %467 = vector.broadcast %466 : vector<1x32xf32> to vector<64x32xf32>
    %468 = arith.mulf %442, %467 : vector<64x32xf32>
    %469 = arith.addf %465, %468 : vector<64x32xf32>
    %470 = vector.extract_strided_slice %456 {offsets = [3, 0], sizes = [1, 32], strides = [1, 1]} : vector<9x32xf32> to vector<1x32xf32>
    %471 = vector.broadcast %470 : vector<1x32xf32> to vector<64x32xf32>
    %472 = arith.mulf %444, %471 : vector<64x32xf32>
    %473 = arith.addf %469, %472 : vector<64x32xf32>
    %474 = vector.extract_strided_slice %456 {offsets = [4, 0], sizes = [1, 32], strides = [1, 1]} : vector<9x32xf32> to vector<1x32xf32>
    %475 = vector.broadcast %474 : vector<1x32xf32> to vector<64x32xf32>
    %476 = arith.mulf %446, %475 : vector<64x32xf32>
    %477 = arith.addf %473, %476 : vector<64x32xf32>
    %478 = vector.extract_strided_slice %456 {offsets = [5, 0], sizes = [1, 32], strides = [1, 1]} : vector<9x32xf32> to vector<1x32xf32>
    %479 = vector.broadcast %478 : vector<1x32xf32> to vector<64x32xf32>
    %480 = arith.mulf %448, %479 : vector<64x32xf32>
    %481 = arith.addf %477, %480 : vector<64x32xf32>
    %482 = vector.extract_strided_slice %456 {offsets = [6, 0], sizes = [1, 32], strides = [1, 1]} : vector<9x32xf32> to vector<1x32xf32>
    %483 = vector.broadcast %482 : vector<1x32xf32> to vector<64x32xf32>
    %484 = arith.mulf %450, %483 : vector<64x32xf32>
    %485 = arith.addf %481, %484 : vector<64x32xf32>
    %486 = vector.extract_strided_slice %456 {offsets = [7, 0], sizes = [1, 32], strides = [1, 1]} : vector<9x32xf32> to vector<1x32xf32>
    %487 = vector.broadcast %486 : vector<1x32xf32> to vector<64x32xf32>
    %488 = arith.mulf %452, %487 : vector<64x32xf32>
    %489 = arith.addf %485, %488 : vector<64x32xf32>
    %490 = vector.extract_strided_slice %456 {offsets = [8, 0], sizes = [1, 32], strides = [1, 1]} : vector<9x32xf32> to vector<1x32xf32>
    %491 = vector.broadcast %490 : vector<1x32xf32> to vector<64x32xf32>
    %492 = arith.mulf %454, %491 : vector<64x32xf32>
    %493 = arith.addf %489, %492 : vector<64x32xf32>
    %494 = vector.broadcast %458 : vector<1x32xf32> to vector<64x32xf32>
    %495 = arith.addf %493, %494 : vector<64x32xf32>
    %496 = arith.truncf %495 : vector<64x32xf32> to vector<64x32xbf16>
    %c6_306 = arith.constant 6 : index
    %c0_307 = arith.constant 0 : index
    %c0_308 = arith.constant 0 : index
    %497 = vector.load %arg4[%c6_306, %c0_307, %c0_308] : memref<8x32x32xbf16, #tpu.memory_space<vmem>>, vector<1x32x32xbf16>
    %498 = vector.shape_cast %497 : vector<1x32x32xbf16> to vector<32x32xbf16>
    %cst_309 = arith.constant dense<0.000000e+00> : vector<64x32xf32>
    %499 = tpu.matmul %496, %498, %cst_309 {dimension_numbers = #tpu.dot_dimension_numbers<[1], [0], [0], [1], [0, 0, 1, 1], [], []>} : vector<64x32xbf16>, vector<32x32xbf16>, vector<64x32xf32> -> vector<64x32xf32>
    %c6_310 = arith.constant 6 : index
    %c0_311 = arith.constant 0 : index
    %c0_312 = arith.constant 0 : index
    %500 = vector.load %arg5[%c6_310, %c0_311, %c0_312] : memref<8x1x32xf32, #tpu.memory_space<vmem>>, vector<1x1x32xf32>
    %501 = vector.shape_cast %500 : vector<1x1x32xf32> to vector<1x32xf32>
    %502 = vector.broadcast %501 : vector<1x32xf32> to vector<64x32xf32>
    %503 = arith.addf %499, %502 : vector<64x32xf32>
    %cst_313 = arith.constant 0.000000e+00 : f32
    %504 = vector.broadcast %cst_313 : f32 to vector<64x32xf32>
    %505 = arith.maximumf %503, %504 : vector<64x32xf32>
    %506 = vector.shape_cast %505 : vector<64x32xf32> to vector<8x8x32xf32>
    %c1_314 = arith.constant 1 : index
    %c8_315 = arith.constant 8 : index
    %c0_316 = arith.constant 0 : index
    %507 = vector.load %arg9[%c1_314, %c8_315, %c0_316] : memref<10x17x32xf32, #tpu.memory_space<vmem>>, vector<8x8x32xf32>
    tpu.vector_store %arg9[%c1_314, %c8_315, %c0_316], %506 {strides = array<i32>} : memref<10x17x32xf32, #tpu.memory_space<vmem>>, vector<8x8x32xf32>,
    %c0_317 = arith.constant 0 : index
    %c7_318 = arith.constant 7 : index
    %c0_319 = arith.constant 0 : index
    %508 = vector.load %arg9[%c0_317, %c7_318, %c0_319] : memref<10x17x32xf32, #tpu.memory_space<vmem>>, vector<8x8x32xf32>
    %509 = vector.shape_cast %508 : vector<8x8x32xf32> to vector<64x32xf32>
    %c0_320 = arith.constant 0 : index
    %c8_321 = arith.constant 8 : index
    %c0_322 = arith.constant 0 : index
    %510 = vector.load %arg9[%c0_320, %c8_321, %c0_322] : memref<10x17x32xf32, #tpu.memory_space<vmem>>, vector<8x8x32xf32>
    %511 = vector.shape_cast %510 : vector<8x8x32xf32> to vector<64x32xf32>
    %c0_323 = arith.constant 0 : index
    %c9_324 = arith.constant 9 : index
    %c0_325 = arith.constant 0 : index
    %512 = vector.load %arg9[%c0_323, %c9_324, %c0_325] : memref<10x17x32xf32, #tpu.memory_space<vmem>>, vector<8x8x32xf32>
    %513 = vector.shape_cast %512 : vector<8x8x32xf32> to vector<64x32xf32>
    %c1_326 = arith.constant 1 : index
    %c7_327 = arith.constant 7 : index
    %c0_328 = arith.constant 0 : index
    %514 = vector.load %arg9[%c1_326, %c7_327, %c0_328] : memref<10x17x32xf32, #tpu.memory_space<vmem>>, vector<8x8x32xf32>
    %515 = vector.shape_cast %514 : vector<8x8x32xf32> to vector<64x32xf32>
    %c1_329 = arith.constant 1 : index
    %c8_330 = arith.constant 8 : index
    %c0_331 = arith.constant 0 : index
    %516 = vector.load %arg9[%c1_329, %c8_330, %c0_331] : memref<10x17x32xf32, #tpu.memory_space<vmem>>, vector<8x8x32xf32>
    %517 = vector.shape_cast %516 : vector<8x8x32xf32> to vector<64x32xf32>
    %c1_332 = arith.constant 1 : index
    %c9_333 = arith.constant 9 : index
    %c0_334 = arith.constant 0 : index
    %518 = vector.load %arg9[%c1_332, %c9_333, %c0_334] : memref<10x17x32xf32, #tpu.memory_space<vmem>>, vector<8x8x32xf32>
    %519 = vector.shape_cast %518 : vector<8x8x32xf32> to vector<64x32xf32>
    %c2_335 = arith.constant 2 : index
    %c7_336 = arith.constant 7 : index
    %c0_337 = arith.constant 0 : index
    %520 = vector.load %arg9[%c2_335, %c7_336, %c0_337] : memref<10x17x32xf32, #tpu.memory_space<vmem>>, vector<8x8x32xf32>
    %521 = vector.shape_cast %520 : vector<8x8x32xf32> to vector<64x32xf32>
    %c2_338 = arith.constant 2 : index
    %c8_339 = arith.constant 8 : index
    %c0_340 = arith.constant 0 : index
    %522 = vector.load %arg9[%c2_338, %c8_339, %c0_340] : memref<10x17x32xf32, #tpu.memory_space<vmem>>, vector<8x8x32xf32>
    %523 = vector.shape_cast %522 : vector<8x8x32xf32> to vector<64x32xf32>
    %c2_341 = arith.constant 2 : index
    %c9_342 = arith.constant 9 : index
    %c0_343 = arith.constant 0 : index
    %524 = vector.load %arg9[%c2_341, %c9_342, %c0_343] : memref<10x17x32xf32, #tpu.memory_space<vmem>>, vector<8x8x32xf32>
    %525 = vector.shape_cast %524 : vector<8x8x32xf32> to vector<64x32xf32>
    %c7_344 = arith.constant 7 : index
    %c0_345 = arith.constant 0 : index
    %c0_346 = arith.constant 0 : index
    %526 = vector.load %arg2[%c7_344, %c0_345, %c0_346] : memref<8x9x32xf32, #tpu.memory_space<vmem>>, vector<1x9x32xf32>
    %527 = vector.shape_cast %526 : vector<1x9x32xf32> to vector<9x32xf32>
    %c7_347 = arith.constant 7 : index
    %c0_348 = arith.constant 0 : index
    %c0_349 = arith.constant 0 : index
    %528 = vector.load %arg3[%c7_347, %c0_348, %c0_349] : memref<8x1x32xf32, #tpu.memory_space<vmem>>, vector<1x1x32xf32>
    %529 = vector.shape_cast %528 : vector<1x1x32xf32> to vector<1x32xf32>
    %530 = vector.extract_strided_slice %527 {offsets = [0, 0], sizes = [1, 32], strides = [1, 1]} : vector<9x32xf32> to vector<1x32xf32>
    %531 = vector.broadcast %530 : vector<1x32xf32> to vector<64x32xf32>
    %532 = arith.mulf %509, %531 : vector<64x32xf32>
    %533 = vector.extract_strided_slice %527 {offsets = [1, 0], sizes = [1, 32], strides = [1, 1]} : vector<9x32xf32> to vector<1x32xf32>
    %534 = vector.broadcast %533 : vector<1x32xf32> to vector<64x32xf32>
    %535 = arith.mulf %511, %534 : vector<64x32xf32>
    %536 = arith.addf %532, %535 : vector<64x32xf32>
    %537 = vector.extract_strided_slice %527 {offsets = [2, 0], sizes = [1, 32], strides = [1, 1]} : vector<9x32xf32> to vector<1x32xf32>
    %538 = vector.broadcast %537 : vector<1x32xf32> to vector<64x32xf32>
    %539 = arith.mulf %513, %538 : vector<64x32xf32>
    %540 = arith.addf %536, %539 : vector<64x32xf32>
    %541 = vector.extract_strided_slice %527 {offsets = [3, 0], sizes = [1, 32], strides = [1, 1]} : vector<9x32xf32> to vector<1x32xf32>
    %542 = vector.broadcast %541 : vector<1x32xf32> to vector<64x32xf32>
    %543 = arith.mulf %515, %542 : vector<64x32xf32>
    %544 = arith.addf %540, %543 : vector<64x32xf32>
    %545 = vector.extract_strided_slice %527 {offsets = [4, 0], sizes = [1, 32], strides = [1, 1]} : vector<9x32xf32> to vector<1x32xf32>
    %546 = vector.broadcast %545 : vector<1x32xf32> to vector<64x32xf32>
    %547 = arith.mulf %517, %546 : vector<64x32xf32>
    %548 = arith.addf %544, %547 : vector<64x32xf32>
    %549 = vector.extract_strided_slice %527 {offsets = [5, 0], sizes = [1, 32], strides = [1, 1]} : vector<9x32xf32> to vector<1x32xf32>
    %550 = vector.broadcast %549 : vector<1x32xf32> to vector<64x32xf32>
    %551 = arith.mulf %519, %550 : vector<64x32xf32>
    %552 = arith.addf %548, %551 : vector<64x32xf32>
    %553 = vector.extract_strided_slice %527 {offsets = [6, 0], sizes = [1, 32], strides = [1, 1]} : vector<9x32xf32> to vector<1x32xf32>
    %554 = vector.broadcast %553 : vector<1x32xf32> to vector<64x32xf32>
    %555 = arith.mulf %521, %554 : vector<64x32xf32>
    %556 = arith.addf %552, %555 : vector<64x32xf32>
    %557 = vector.extract_strided_slice %527 {offsets = [7, 0], sizes = [1, 32], strides = [1, 1]} : vector<9x32xf32> to vector<1x32xf32>
    %558 = vector.broadcast %557 : vector<1x32xf32> to vector<64x32xf32>
    %559 = arith.mulf %523, %558 : vector<64x32xf32>
    %560 = arith.addf %556, %559 : vector<64x32xf32>
    %561 = vector.extract_strided_slice %527 {offsets = [8, 0], sizes = [1, 32], strides = [1, 1]} : vector<9x32xf32> to vector<1x32xf32>
    %562 = vector.broadcast %561 : vector<1x32xf32> to vector<64x32xf32>
    %563 = arith.mulf %525, %562 : vector<64x32xf32>
    %564 = arith.addf %560, %563 : vector<64x32xf32>
    %565 = vector.broadcast %529 : vector<1x32xf32> to vector<64x32xf32>
    %566 = arith.addf %564, %565 : vector<64x32xf32>
    %567 = arith.truncf %566 : vector<64x32xf32> to vector<64x32xbf16>
    %c7_350 = arith.constant 7 : index
    %c0_351 = arith.constant 0 : index
    %c0_352 = arith.constant 0 : index
    %568 = vector.load %arg4[%c7_350, %c0_351, %c0_352] : memref<8x32x32xbf16, #tpu.memory_space<vmem>>, vector<1x32x32xbf16>
    %569 = vector.shape_cast %568 : vector<1x32x32xbf16> to vector<32x32xbf16>
    %cst_353 = arith.constant dense<0.000000e+00> : vector<64x32xf32>
    %570 = tpu.matmul %567, %569, %cst_353 {dimension_numbers = #tpu.dot_dimension_numbers<[1], [0], [0], [1], [0, 0, 1, 1], [], []>} : vector<64x32xbf16>, vector<32x32xbf16>, vector<64x32xf32> -> vector<64x32xf32>
    %c7_354 = arith.constant 7 : index
    %c0_355 = arith.constant 0 : index
    %c0_356 = arith.constant 0 : index
    %571 = vector.load %arg5[%c7_354, %c0_355, %c0_356] : memref<8x1x32xf32, #tpu.memory_space<vmem>>, vector<1x1x32xf32>
    %572 = vector.shape_cast %571 : vector<1x1x32xf32> to vector<1x32xf32>
    %573 = vector.broadcast %572 : vector<1x32xf32> to vector<64x32xf32>
    %574 = arith.addf %570, %573 : vector<64x32xf32>
    %575 = vector.shape_cast %574 : vector<64x32xf32> to vector<8x8x32xf32>
    %576 = arith.addf %434, %575 : vector<8x8x32xf32>
    %cst_357 = arith.constant 5.000000e-01 : f32
    %577 = vector.broadcast %cst_357 : f32 to vector<8x8x32xf32>
    %578 = arith.mulf %577, %576 : vector<8x8x32xf32>
    %579 = arith.addf %435, %578 : vector<8x8x32xf32>
    %c1_358 = arith.constant 1 : index
    %c8_359 = arith.constant 8 : index
    %c0_360 = arith.constant 0 : index
    %580 = vector.load %arg9[%c1_358, %c8_359, %c0_360] : memref<10x17x32xf32, #tpu.memory_space<vmem>>, vector<8x8x32xf32>
    tpu.vector_store %arg9[%c1_358, %c8_359, %c0_360], %579 {strides = array<i32>} : memref<10x17x32xf32, #tpu.memory_space<vmem>>, vector<8x8x32xf32>,
    %c0_361 = arith.constant 0 : index
    %c7_362 = arith.constant 7 : index
    %c0_363 = arith.constant 0 : index
    %581 = vector.load %arg9[%c0_361, %c7_362, %c0_363] : memref<10x17x32xf32, #tpu.memory_space<vmem>>, vector<8x8x32xf32>
    %582 = vector.shape_cast %581 : vector<8x8x32xf32> to vector<64x32xf32>
    %c0_364 = arith.constant 0 : index
    %c8_365 = arith.constant 8 : index
    %c0_366 = arith.constant 0 : index
    %583 = vector.load %arg9[%c0_364, %c8_365, %c0_366] : memref<10x17x32xf32, #tpu.memory_space<vmem>>, vector<8x8x32xf32>
    %584 = vector.shape_cast %583 : vector<8x8x32xf32> to vector<64x32xf32>
    %c0_367 = arith.constant 0 : index
    %c9_368 = arith.constant 9 : index
    %c0_369 = arith.constant 0 : index
    %585 = vector.load %arg9[%c0_367, %c9_368, %c0_369] : memref<10x17x32xf32, #tpu.memory_space<vmem>>, vector<8x8x32xf32>
    %586 = vector.shape_cast %585 : vector<8x8x32xf32> to vector<64x32xf32>
    %c1_370 = arith.constant 1 : index
    %c7_371 = arith.constant 7 : index
    %c0_372 = arith.constant 0 : index
    %587 = vector.load %arg9[%c1_370, %c7_371, %c0_372] : memref<10x17x32xf32, #tpu.memory_space<vmem>>, vector<8x8x32xf32>
    %588 = vector.shape_cast %587 : vector<8x8x32xf32> to vector<64x32xf32>
    %c1_373 = arith.constant 1 : index
    %c8_374 = arith.constant 8 : index
    %c0_375 = arith.constant 0 : index
    %589 = vector.load %arg9[%c1_373, %c8_374, %c0_375] : memref<10x17x32xf32, #tpu.memory_space<vmem>>, vector<8x8x32xf32>
    %590 = vector.shape_cast %589 : vector<8x8x32xf32> to vector<64x32xf32>
    %c1_376 = arith.constant 1 : index
    %c9_377 = arith.constant 9 : index
    %c0_378 = arith.constant 0 : index
    %591 = vector.load %arg9[%c1_376, %c9_377, %c0_378] : memref<10x17x32xf32, #tpu.memory_space<vmem>>, vector<8x8x32xf32>
    %592 = vector.shape_cast %591 : vector<8x8x32xf32> to vector<64x32xf32>
    %c2_379 = arith.constant 2 : index
    %c7_380 = arith.constant 7 : index
    %c0_381 = arith.constant 0 : index
    %593 = vector.load %arg9[%c2_379, %c7_380, %c0_381] : memref<10x17x32xf32, #tpu.memory_space<vmem>>, vector<8x8x32xf32>
    %594 = vector.shape_cast %593 : vector<8x8x32xf32> to vector<64x32xf32>
    %c2_382 = arith.constant 2 : index
    %c8_383 = arith.constant 8 : index
    %c0_384 = arith.constant 0 : index
    %595 = vector.load %arg9[%c2_382, %c8_383, %c0_384] : memref<10x17x32xf32, #tpu.memory_space<vmem>>, vector<8x8x32xf32>
    %596 = vector.shape_cast %595 : vector<8x8x32xf32> to vector<64x32xf32>
    %c2_385 = arith.constant 2 : index
    %c9_386 = arith.constant 9 : index
    %c0_387 = arith.constant 0 : index
    %597 = vector.load %arg9[%c2_385, %c9_386, %c0_387] : memref<10x17x32xf32, #tpu.memory_space<vmem>>, vector<8x8x32xf32>
    %598 = vector.shape_cast %597 : vector<8x8x32xf32> to vector<64x32xf32>
    %599 = arith.truncf %582 : vector<64x32xf32> to vector<64x32xbf16>
    %600 = arith.truncf %584 : vector<64x32xf32> to vector<64x32xbf16>
    %601 = arith.truncf %586 : vector<64x32xf32> to vector<64x32xbf16>
    %602 = arith.truncf %588 : vector<64x32xf32> to vector<64x32xbf16>
    %603 = arith.truncf %590 : vector<64x32xf32> to vector<64x32xbf16>
    %604 = arith.truncf %592 : vector<64x32xf32> to vector<64x32xbf16>
    %605 = arith.truncf %594 : vector<64x32xf32> to vector<64x32xbf16>
    %606 = arith.truncf %596 : vector<64x32xf32> to vector<64x32xbf16>
    %607 = arith.truncf %598 : vector<64x32xf32> to vector<64x32xbf16>
    %608 = tpu.concatenate %599, %600, %601, %602, %603, %604, %605, %606, %607 in 1 : vector<64x32xbf16>, vector<64x32xbf16>, vector<64x32xbf16>, vector<64x32xbf16>, vector<64x32xbf16>, vector<64x32xbf16>, vector<64x32xbf16>, vector<64x32xbf16>, vector<64x32xbf16> -> vector<64x288xbf16>
    %c0_388 = arith.constant 0 : index
    %c0_389 = arith.constant 0 : index
    %609 = vector.load %arg6[%c0_388, %c0_389] : memref<288x32xbf16, #tpu.memory_space<vmem>>, vector<288x32xbf16>
    %cst_390 = arith.constant dense<0.000000e+00> : vector<64x32xf32>
    %610 = tpu.matmul %608, %609, %cst_390 {dimension_numbers = #tpu.dot_dimension_numbers<[1], [0], [0], [1], [0, 0, 1, 1], [], []>} : vector<64x288xbf16>, vector<288x32xbf16>, vector<64x32xf32> -> vector<64x32xf32>
    %c0_391 = arith.constant 0 : index
    %c0_392 = arith.constant 0 : index
    %611 = vector.load %arg7[%c0_391, %c0_392] : memref<1x32xf32, #tpu.memory_space<vmem>>, vector<1x32xf32>
    %612 = vector.broadcast %611 : vector<1x32xf32> to vector<64x32xf32>
    %613 = arith.addf %610, %612 : vector<64x32xf32>
    %614 = vector.shape_cast %613 : vector<64x32xf32> to vector<8x8x32xf32>
    %615 = arith.addf %614, %9 : vector<8x8x32xf32>
    %c0_393 = arith.constant 0 : index
    %c0_394 = arith.constant 0 : index
    %c0_395 = arith.constant 0 : index
    %c0_396 = arith.constant 0 : index
    %616 = vector.load %arg8[%c0_393, %c0_394, %c0_395, %c0_396] : memref<1x8x8x32xf32, #tpu.memory_space<vmem>>, vector<1x8x8x32xf32>
    %617 = vector.shape_cast %616 : vector<1x8x8x32xf32> to vector<8x8x32xf32>
    %618 = vector.shape_cast %615 : vector<8x8x32xf32> to vector<1x8x8x32xf32>
    tpu.vector_store %arg8[%c0_393, %c0_394, %c0_395, %c0_396], %618 {strides = array<i32>} : memref<1x8x8x32xf32, #tpu.memory_space<vmem>>, vector<1x8x8x32xf32>,
    return
  }
  func.func @transform_0(%arg0: i32) -> (i32, i32, i32, i32) {
    %c0_i32 = arith.constant 0 : i32
    %c0_i32_0 = arith.constant 0 : i32
    %c0_i32_1 = arith.constant 0 : i32
    %c0_i32_2 = arith.constant 0 : i32
    return %arg0, %c0_i32, %c0_i32_0, %c0_i32_1 : i32, i32, i32, i32
  }
  func.func @transform_1(%arg0: i32) -> (i32, i32, i32) {
    %c0_i32 = arith.constant 0 : i32
    %c0_i32_0 = arith.constant 0 : i32
    %c0_i32_1 = arith.constant 0 : i32
    %c0_i32_2 = arith.constant 0 : i32
    return %c0_i32, %c0_i32_0, %c0_i32_1 : i32, i32, i32
  }
  func.func @transform_2(%arg0: i32) -> (i32, i32, i32) {
    %c0_i32 = arith.constant 0 : i32
    %c0_i32_0 = arith.constant 0 : i32
    %c0_i32_1 = arith.constant 0 : i32
    %c0_i32_2 = arith.constant 0 : i32
    return %c0_i32, %c0_i32_0, %c0_i32_1 : i32, i32, i32
  }
  func.func @transform_3(%arg0: i32) -> (i32, i32, i32) {
    %c0_i32 = arith.constant 0 : i32
    %c0_i32_0 = arith.constant 0 : i32
    %c0_i32_1 = arith.constant 0 : i32
    %c0_i32_2 = arith.constant 0 : i32
    return %c0_i32, %c0_i32_0, %c0_i32_1 : i32, i32, i32
  }
  func.func @transform_4(%arg0: i32) -> (i32, i32, i32) {
    %c0_i32 = arith.constant 0 : i32
    %c0_i32_0 = arith.constant 0 : i32
    %c0_i32_1 = arith.constant 0 : i32
    %c0_i32_2 = arith.constant 0 : i32
    return %c0_i32, %c0_i32_0, %c0_i32_1 : i32, i32, i32
  }
  func.func @transform_5(%arg0: i32) -> (i32, i32) {
    %c0_i32 = arith.constant 0 : i32
    %c0_i32_0 = arith.constant 0 : i32
    %c0_i32_1 = arith.constant 0 : i32
    return %c0_i32, %c0_i32_0 : i32, i32
  }
  func.func @transform_6(%arg0: i32) -> (i32, i32) {
    %c0_i32 = arith.constant 0 : i32
    %c0_i32_0 = arith.constant 0 : i32
    %c0_i32_1 = arith.constant 0 : i32
    return %c0_i32, %c0_i32_0 : i32, i32
  }
  func.func @transform_7(%arg0: i32) -> (i32, i32, i32, i32) {
    %c0_i32 = arith.constant 0 : i32
    %c0_i32_0 = arith.constant 0 : i32
    %c0_i32_1 = arith.constant 0 : i32
    %c0_i32_2 = arith.constant 0 : i32
    return %arg0, %c0_i32, %c0_i32_0, %c0_i32_1 : i32, i32, i32, i32
  }
}

module attributes {stable_mosaic.version = 11 : i64} {
  func.func @conv3x3_kernel(%arg0: i32, %arg1: memref<1x16x16x32xf32, #tpu.memory_space<vmem>>, %arg2: memref<288x3xbf16, #tpu.memory_space<vmem>>, %arg3: memref<1x3xf32, #tpu.memory_space<vmem>>, %arg4: memref<1x3x256xf32, #tpu.memory_space<vmem>>, %arg5: memref<18x25x32xf32, #tpu.memory_space<vmem>>) attributes {dimension_semantics = [#tpu.dimension_semantics<parallel>], iteration_bounds = array<i64: 2>, scalar_prefetch = 0 : i64, scratch_operands = 1 : i64, tpu.core_type = #tpu.core_type<tc>, window_params = [{transform_indices = @transform_0, window_bounds = array<i64: 1, 16, 16, 32>}, {pipeline_mode = #tpu.pipeline_mode<synchronous>, transform_indices = @transform_1, window_bounds = array<i64: 288, 3>}, {pipeline_mode = #tpu.pipeline_mode<synchronous>, transform_indices = @transform_2, window_bounds = array<i64: 1, 3>}, {transform_indices = @transform_3, window_bounds = array<i64: 1, 3, 256>}]} {
    %cst = arith.constant 0.000000e+00 : f32
    %0 = vector.broadcast %cst : f32 to vector<1x18x32xf32>
    %c0 = arith.constant 0 : index
    %c7 = arith.constant 7 : index
    %c0_0 = arith.constant 0 : index
    %1 = vector.load %arg5[%c0, %c7, %c0_0] : memref<18x25x32xf32, #tpu.memory_space<vmem>>, vector<1x18x32xf32>
    tpu.vector_store %arg5[%c0, %c7, %c0_0], %0 {strides = array<i32>} : memref<18x25x32xf32, #tpu.memory_space<vmem>>, vector<1x18x32xf32>,
    %cst_1 = arith.constant 0.000000e+00 : f32
    %2 = vector.broadcast %cst_1 : f32 to vector<1x18x32xf32>
    %c17 = arith.constant 17 : index
    %c7_2 = arith.constant 7 : index
    %c0_3 = arith.constant 0 : index
    %3 = vector.load %arg5[%c17, %c7_2, %c0_3] : memref<18x25x32xf32, #tpu.memory_space<vmem>>, vector<1x18x32xf32>
    tpu.vector_store %arg5[%c17, %c7_2, %c0_3], %2 {strides = array<i32>} : memref<18x25x32xf32, #tpu.memory_space<vmem>>, vector<1x18x32xf32>,
    %cst_4 = arith.constant 0.000000e+00 : f32
    %4 = vector.broadcast %cst_4 : f32 to vector<16x1x32xf32>
    %c1 = arith.constant 1 : index
    %c7_5 = arith.constant 7 : index
    %c0_6 = arith.constant 0 : index
    %5 = vector.load %arg5[%c1, %c7_5, %c0_6] : memref<18x25x32xf32, #tpu.memory_space<vmem>>, vector<16x1x32xf32>
    tpu.vector_store %arg5[%c1, %c7_5, %c0_6], %4 {strides = array<i32>} : memref<18x25x32xf32, #tpu.memory_space<vmem>>, vector<16x1x32xf32>,
    %cst_7 = arith.constant 0.000000e+00 : f32
    %6 = vector.broadcast %cst_7 : f32 to vector<16x1x32xf32>
    %c1_8 = arith.constant 1 : index
    %c24 = arith.constant 24 : index
    %c0_9 = arith.constant 0 : index
    %7 = vector.load %arg5[%c1_8, %c24, %c0_9] : memref<18x25x32xf32, #tpu.memory_space<vmem>>, vector<16x1x32xf32>
    tpu.vector_store %arg5[%c1_8, %c24, %c0_9], %6 {strides = array<i32>} : memref<18x25x32xf32, #tpu.memory_space<vmem>>, vector<16x1x32xf32>,
    %c0_10 = arith.constant 0 : index
    %c0_11 = arith.constant 0 : index
    %c0_12 = arith.constant 0 : index
    %c0_13 = arith.constant 0 : index
    %8 = vector.load %arg1[%c0_10, %c0_11, %c0_12, %c0_13] : memref<1x16x16x32xf32, #tpu.memory_space<vmem>>, vector<1x16x16x32xf32>
    %9 = vector.shape_cast %8 : vector<1x16x16x32xf32> to vector<16x16x32xf32>
    %c1_14 = arith.constant 1 : index
    %c8 = arith.constant 8 : index
    %c0_15 = arith.constant 0 : index
    %10 = vector.load %arg5[%c1_14, %c8, %c0_15] : memref<18x25x32xf32, #tpu.memory_space<vmem>>, vector<16x16x32xf32>
    tpu.vector_store %arg5[%c1_14, %c8, %c0_15], %9 {strides = array<i32>} : memref<18x25x32xf32, #tpu.memory_space<vmem>>, vector<16x16x32xf32>,
    %c0_16 = arith.constant 0 : index
    %c7_17 = arith.constant 7 : index
    %c0_18 = arith.constant 0 : index
    %11 = vector.load %arg5[%c0_16, %c7_17, %c0_18] : memref<18x25x32xf32, #tpu.memory_space<vmem>>, vector<16x16x32xf32>
    %12 = vector.shape_cast %11 : vector<16x16x32xf32> to vector<256x32xf32>
    %c0_19 = arith.constant 0 : index
    %c8_20 = arith.constant 8 : index
    %c0_21 = arith.constant 0 : index
    %13 = vector.load %arg5[%c0_19, %c8_20, %c0_21] : memref<18x25x32xf32, #tpu.memory_space<vmem>>, vector<16x16x32xf32>
    %14 = vector.shape_cast %13 : vector<16x16x32xf32> to vector<256x32xf32>
    %c0_22 = arith.constant 0 : index
    %c9 = arith.constant 9 : index
    %c0_23 = arith.constant 0 : index
    %15 = vector.load %arg5[%c0_22, %c9, %c0_23] : memref<18x25x32xf32, #tpu.memory_space<vmem>>, vector<16x16x32xf32>
    %16 = vector.shape_cast %15 : vector<16x16x32xf32> to vector<256x32xf32>
    %c1_24 = arith.constant 1 : index
    %c7_25 = arith.constant 7 : index
    %c0_26 = arith.constant 0 : index
    %17 = vector.load %arg5[%c1_24, %c7_25, %c0_26] : memref<18x25x32xf32, #tpu.memory_space<vmem>>, vector<16x16x32xf32>
    %18 = vector.shape_cast %17 : vector<16x16x32xf32> to vector<256x32xf32>
    %c1_27 = arith.constant 1 : index
    %c8_28 = arith.constant 8 : index
    %c0_29 = arith.constant 0 : index
    %19 = vector.load %arg5[%c1_27, %c8_28, %c0_29] : memref<18x25x32xf32, #tpu.memory_space<vmem>>, vector<16x16x32xf32>
    %20 = vector.shape_cast %19 : vector<16x16x32xf32> to vector<256x32xf32>
    %c1_30 = arith.constant 1 : index
    %c9_31 = arith.constant 9 : index
    %c0_32 = arith.constant 0 : index
    %21 = vector.load %arg5[%c1_30, %c9_31, %c0_32] : memref<18x25x32xf32, #tpu.memory_space<vmem>>, vector<16x16x32xf32>
    %22 = vector.shape_cast %21 : vector<16x16x32xf32> to vector<256x32xf32>
    %c2 = arith.constant 2 : index
    %c7_33 = arith.constant 7 : index
    %c0_34 = arith.constant 0 : index
    %23 = vector.load %arg5[%c2, %c7_33, %c0_34] : memref<18x25x32xf32, #tpu.memory_space<vmem>>, vector<16x16x32xf32>
    %24 = vector.shape_cast %23 : vector<16x16x32xf32> to vector<256x32xf32>
    %c2_35 = arith.constant 2 : index
    %c8_36 = arith.constant 8 : index
    %c0_37 = arith.constant 0 : index
    %25 = vector.load %arg5[%c2_35, %c8_36, %c0_37] : memref<18x25x32xf32, #tpu.memory_space<vmem>>, vector<16x16x32xf32>
    %26 = vector.shape_cast %25 : vector<16x16x32xf32> to vector<256x32xf32>
    %c2_38 = arith.constant 2 : index
    %c9_39 = arith.constant 9 : index
    %c0_40 = arith.constant 0 : index
    %27 = vector.load %arg5[%c2_38, %c9_39, %c0_40] : memref<18x25x32xf32, #tpu.memory_space<vmem>>, vector<16x16x32xf32>
    %28 = vector.shape_cast %27 : vector<16x16x32xf32> to vector<256x32xf32>
    %29 = arith.truncf %12 : vector<256x32xf32> to vector<256x32xbf16>
    %30 = arith.truncf %14 : vector<256x32xf32> to vector<256x32xbf16>
    %31 = arith.truncf %16 : vector<256x32xf32> to vector<256x32xbf16>
    %32 = arith.truncf %18 : vector<256x32xf32> to vector<256x32xbf16>
    %33 = arith.truncf %20 : vector<256x32xf32> to vector<256x32xbf16>
    %34 = arith.truncf %22 : vector<256x32xf32> to vector<256x32xbf16>
    %35 = arith.truncf %24 : vector<256x32xf32> to vector<256x32xbf16>
    %36 = arith.truncf %26 : vector<256x32xf32> to vector<256x32xbf16>
    %37 = arith.truncf %28 : vector<256x32xf32> to vector<256x32xbf16>
    %38 = tpu.concatenate %29, %30, %31, %32, %33, %34, %35, %36, %37 in 1 : vector<256x32xbf16>, vector<256x32xbf16>, vector<256x32xbf16>, vector<256x32xbf16>, vector<256x32xbf16>, vector<256x32xbf16>, vector<256x32xbf16>, vector<256x32xbf16>, vector<256x32xbf16> -> vector<256x288xbf16>
    %c0_41 = arith.constant 0 : index
    %c0_42 = arith.constant 0 : index
    %39 = vector.load %arg2[%c0_41, %c0_42] : memref<288x3xbf16, #tpu.memory_space<vmem>>, vector<288x3xbf16>
    %cst_43 = arith.constant dense<0.000000e+00> : vector<256x3xf32>
    %40 = tpu.matmul %38, %39, %cst_43 {dimension_numbers = #tpu.dot_dimension_numbers<[1], [0], [0], [1], [0, 0, 1, 1], [], []>} : vector<256x288xbf16>, vector<288x3xbf16>, vector<256x3xf32> -> vector<256x3xf32>
    %c0_44 = arith.constant 0 : index
    %c0_45 = arith.constant 0 : index
    %41 = vector.load %arg3[%c0_44, %c0_45] : memref<1x3xf32, #tpu.memory_space<vmem>>, vector<1x3xf32>
    %42 = vector.broadcast %41 : vector<1x3xf32> to vector<256x3xf32>
    %43 = arith.addf %40, %42 : vector<256x3xf32>
    %44 = tpu.transpose %43, [1, 0] : vector<256x3xf32> -> vector<3x256xf32>
    %c0_46 = arith.constant 0 : index
    %c0_47 = arith.constant 0 : index
    %c0_48 = arith.constant 0 : index
    %45 = vector.load %arg4[%c0_46, %c0_47, %c0_48] : memref<1x3x256xf32, #tpu.memory_space<vmem>>, vector<1x3x256xf32>
    %46 = vector.shape_cast %45 : vector<1x3x256xf32> to vector<3x256xf32>
    %47 = vector.shape_cast %44 : vector<3x256xf32> to vector<1x3x256xf32>
    tpu.vector_store %arg4[%c0_46, %c0_47, %c0_48], %47 {strides = array<i32>} : memref<1x3x256xf32, #tpu.memory_space<vmem>>, vector<1x3x256xf32>,
    return
  }
  func.func @transform_0(%arg0: i32) -> (i32, i32, i32, i32) {
    %c0_i32 = arith.constant 0 : i32
    %c0_i32_0 = arith.constant 0 : i32
    %c0_i32_1 = arith.constant 0 : i32
    %c0_i32_2 = arith.constant 0 : i32
    return %arg0, %c0_i32, %c0_i32_0, %c0_i32_1 : i32, i32, i32, i32
  }
  func.func @transform_1(%arg0: i32) -> (i32, i32) {
    %c0_i32 = arith.constant 0 : i32
    %c0_i32_0 = arith.constant 0 : i32
    %c0_i32_1 = arith.constant 0 : i32
    return %c0_i32, %c0_i32_0 : i32, i32
  }
  func.func @transform_2(%arg0: i32) -> (i32, i32) {
    %c0_i32 = arith.constant 0 : i32
    %c0_i32_0 = arith.constant 0 : i32
    %c0_i32_1 = arith.constant 0 : i32
    return %c0_i32, %c0_i32_0 : i32, i32
  }
  func.func @transform_3(%arg0: i32) -> (i32, i32, i32) {
    %c0_i32 = arith.constant 0 : i32
    %c0_i32_0 = arith.constant 0 : i32
    %c0_i32_1 = arith.constant 0 : i32
    return %arg0, %c0_i32, %c0_i32_0 : i32, i32, i32
  }
}

</mosaic_0001>

<llo_original>
// kernel: xyj_forward.6
$region0: #{xyj_forward.6}
  #allocation0 [shape = 'u32[]', space=smem, size = 0x4, offset = 0x4, fixed_abs, tag = 'smem constant byte address 0x4 - core index']
  #allocation1 [shape = 'u32[72,128]{1,0:T(1,128)}', space=vmem, size = 0x9000, scoped, tag = 'internal scratch']
  #allocation2 [shape = 'f32[10,17,3]{2,1,0:T(8,128)}', space=vmem, size = 0x1e000, scoped, tag = 'scratch operand']
  %s0 = inlined_call_operand.vmem [shape: f32[2,8,8,3], index: 0, kind: input, shape index: {}]
  %s1 = inlined_call_operand.vmem [shape: bf16[27,32], index: 1, kind: input, shape index: {}]
  %s2 = inlined_call_operand.vmem [shape: f32[1,32], index: 2, kind: input, shape index: {}]
  %s3 = inlined_call_operand.vmem [shape: f32[1,3], index: 3, kind: input, shape index: {}]
  %s4 = inlined_call_operand.vmem [shape: f32[2,8,8,32], index: 4, kind: output, shape index: {}]
  %s5 = sld [smem:[#allocation0]]
  $region49: #{xyj_forward.6} parent=0
    _
  %s7 = ssub.s32 1, %s5
  %s8 = scalar_select 0, %s7, %s5
  loop: start=0, step=1, limit=4
  $region2: #{xyj_forward.6} parent=0 // loop_pre_header
    _
  $region3: #{xyj_forward.6} parent=0 // loop_header
    %s10 = sphi 0, %s14
    %p11 = scmp.ge.s32.totalorder %s10, 4
    %s20 = sphi 0, %s22
    %s23 = sphi 0, %s20
    %s24 = sphi 0, %s23
    %s40 = sphi 0, %s24
    %s44 = sphi 0, %s44
    %s46 = sphi 0, %s44
    %s47 = sphi 0, %s46
    %s61 = sphi 0, %s47
    %s65 = sphi 0, %s65
    %s67 = sphi 0, %s65
    %s68 = sphi 0, %s67
    %s82 = sphi 0, %s68
    %s86 = sphi 0, %s86
    %s88 = sphi 0, %s86
    %s89 = sphi 0, %s88
    %s103 = sphi 0, %s89
    %s109 = sphi 0, %s111
    %s112 = sphi 0, %s109
    %s113 = sphi 0, %s112
    %s129 = sphi 0, %s113
  $region4: #{xyj_forward.6} parent=0 // loop_header_branch
    %13 = sbr.rel (%p11) target = $region8
  $region5: #{xyj_forward.6} parent=0 // loop_body
    %s15 = ssub.s32 %s10, 1
    %s16 = ssub.s32 %s10, 2
    %s17 = sadd.s32 %s10, 1
    %s18 = ssub.s32 %s10, %s17
    %p19 = scmp.eq.s32.totalorder %s18, 0
    %s21 = sadd.s32 %s20, 1
    %s22 = scalar_select %p19, %s20, %s21
    %p25 = pneg %p19
    %p26 = scmp.eq.s32.totalorder %s10, 1
    %p27 = por %p25, %p26
    %p28 = scmp.ne.s32.totalorder %s20, %s23
    %p29 = scmp.eq.s32.totalorder %s10, 0
    %p30 = por %p28, %p29
    %p31 = scmp.ne.s32.totalorder %s20, %s23
    %p32 = scmp.eq.s32.totalorder %s15, 1
    %p33 = por %p31, %p32
    %p34 = scmp.ne.s32.totalorder %s23, %s24
    %p35 = scmp.eq.s32.totalorder %s15, 0
    %p36 = por %p34, %p35
    %p37 = scmp.ne.s32.totalorder %s23, %s24
    %p38 = scmp.eq.s32.totalorder %s16, 1
    %p39 = por %p37, %p38
    %p41 = scmp.ne.s32.totalorder %s24, %s40
    %p42 = scmp.eq.s32.totalorder %s16, 0
    %p43 = por %p41, %p42
    %s45 = sadd.s32 %s44, 1
    %p48 = scmp.eq.s32.totalorder %s10, 1
    %p49 = scmp.ne.s32.totalorder %s44, %s46
    %p50 = scmp.eq.s32.totalorder %s10, 0
    %p51 = por %p49, %p50
    %p52 = scmp.ne.s32.totalorder %s44, %s46
    %p53 = scmp.eq.s32.totalorder %s15, 1
    %p54 = por %p52, %p53
    %p55 = scmp.ne.s32.totalorder %s46, %s47
    %p56 = scmp.eq.s32.totalorder %s15, 0
    %p57 = por %p55, %p56
    %p58 = scmp.ne.s32.totalorder %s46, %s47
    %p59 = scmp.eq.s32.totalorder %s16, 1
    %p60 = por %p58, %p59
    %p62 = scmp.ne.s32.totalorder %s47, %s61
    %p63 = scmp.eq.s32.totalorder %s16, 0
    %p64 = por %p62, %p63
    %s66 = sadd.s32 %s65, 1
    %p69 = scmp.eq.s32.totalorder %s10, 1
    %p70 = scmp.ne.s32.totalorder %s65, %s67
    %p71 = scmp.eq.s32.totalorder %s10, 0
    %p72 = por %p70, %p71
    %p73 = scmp.ne.s32.totalorder %s65, %s67
    %p74 = scmp.eq.s32.totalorder %s15, 1
    %p75 = por %p73, %p74
    %p76 = scmp.ne.s32.totalorder %s67, %s68
    %p77 = scmp.eq.s32.totalorder %s15, 0
    %p78 = por %p76, %p77
    %p79 = scmp.ne.s32.totalorder %s67, %s68
    %p80 = scmp.eq.s32.totalorder %s16, 1
    %p81 = por %p79, %p80
    %p83 = scmp.ne.s32.totalorder %s68, %s82
    %p84 = scmp.eq.s32.totalorder %s16, 0
    %p85 = por %p83, %p84
    %s87 = sadd.s32 %s86, 1
    %p90 = scmp.eq.s32.totalorder %s10, 1
    %p91 = scmp.ne.s32.totalorder %s86, %s88
    %p92 = scmp.eq.s32.totalorder %s10, 0
    %p93 = por %p91, %p92
    %p94 = scmp.ne.s32.totalorder %s86, %s88
    %p95 = scmp.eq.s32.totalorder %s15, 1
    %p96 = por %p94, %p95
    %p97 = scmp.ne.s32.totalorder %s88, %s89
    %p98 = scmp.eq.s32.totalorder %s15, 0
    %p99 = por %p97, %p98
    %p100 = scmp.ne.s32.totalorder %s88, %s89
    %p101 = scmp.eq.s32.totalorder %s16, 1
    %p102 = por %p100, %p101
    %p104 = scmp.ne.s32.totalorder %s89, %s103
    %p105 = scmp.eq.s32.totalorder %s16, 0
    %p106 = por %p104, %p105
    %s107 = ssub.s32 %s10, %s17
    %p108 = scmp.eq.s32.totalorder %s107, 0
    %s110 = sadd.s32 %s109, 1
    %s111 = scalar_select %p108, %s109, %s110
    %p114 = pneg %p108
    %p115 = scmp.eq.s32.totalorder %s10, 1
    %p116 = por %p114, %p115
    %p117 = scmp.ne.s32.totalorder %s109, %s112
    %p118 = scmp.eq.s32.totalorder %s10, 0
    %p119 = por %p117, %p118
    %p120 = scmp.ne.s32.totalorder %s109, %s112
    %p121 = scmp.eq.s32.totalorder %s15, 1
    %p122 = por %p120, %p121
    %p123 = scmp.ne.s32.totalorder %s112, %s113
    %p124 = scmp.eq.s32.totalorder %s15, 0
    %p125 = por %p123, %p124
    %p126 = scmp.ne.s32.totalorder %s112, %s113
    %p127 = scmp.eq.s32.totalorder %s16, 1
    %p128 = por %p126, %p127
    %p130 = scmp.ne.s32.totalorder %s113, %s129
    %p131 = scmp.eq.s32.totalorder %s16, 0
    %p132 = por %p130, %p131
    %p133 = scmp.le.s32.totalorder 1, %s10
    %p134 = scmp.lt.s32.totalorder %s10, 3
    %p135 = pnand %p133, %p134
    %p136 = pneg %p135
    // Predicated region
    $region9: #{xyj_forward.6} parent=5 // pred_check
      _
    $region10: #{xyj_forward.6} parent=5 // pred_check_branch
      %138 = sbr.rel (%p135) target = $region12
    $region11: #{xyj_forward.6} parent=5 // pred_region
      %s139 = ssub.s32 %s10, 1
      // Predicated region
      $region13: #{xyj_forward.6} parent=11 // pred_check
        %p140 = pneg %p57
      $region14: #{xyj_forward.6} parent=11 // pred_check_branch
        %142 = sbr.rel (%p140) target = $region16
      $region15: #{xyj_forward.6} parent=11 // pred_region
        _
      $region16: #{xyj_forward.6} parent=11 // pred_fallthru
        _
      // Predicated region
      $region17: #{xyj_forward.6} parent=11 // pred_check
        %p143 = pneg %p78
      $region18: #{xyj_forward.6} parent=11 // pred_check_branch
        %145 = sbr.rel (%p143) target = $region20
      $region19: #{xyj_forward.6} parent=11 // pred_region
        _
      $region20: #{xyj_forward.6} parent=11 // pred_fallthru
        _
      // Predicated region
      $region21: #{xyj_forward.6} parent=11 // pred_check
        %p146 = pneg %p99
      $region22: #{xyj_forward.6} parent=11 // pred_check_branch
        %148 = sbr.rel (%p146) target = $region24
      $region23: #{xyj_forward.6} parent=11 // pred_region
        _
      $region24: #{xyj_forward.6} parent=11 // pred_fallthru
        _
    $region12: #{xyj_forward.6} parent=5 // pred_fallthru
      _
    %p149 = scmp.lt.s32.totalorder %s10, 2
    // Predicated region
    $region25: #{xyj_forward.6} parent=5 // pred_check
      %p150 = pneg %p149
    $region26: #{xyj_forward.6} parent=5 // pred_check_branch
      %152 = sbr.rel (%p150) target = $region28
    $region27: #{xyj_forward.6} parent=5 // pred_region
      // Predicated region
      $region29: #{xyj_forward.6} parent=27 // pred_check
        %p153 = pneg %p30
      $region30: #{xyj_forward.6} parent=27 // pred_check_branch
        %155 = sbr.rel (%p153) target = $region32
      $region31: #{xyj_forward.6} parent=27 // pred_region
        %p156 = scmp.lt.s32.totalorder %s10, 1
        %s157 = scalar_select %p156, %s10, 1
        %s158 = smul.addr %s157, 8
        %s159 = smul.addr %s158, 8
        %s160 = scalar_lea.vmem %s0, %s159
      $region32: #{xyj_forward.6} parent=27 // pred_fallthru
        _
    $region28: #{xyj_forward.6} parent=5 // pred_fallthru
      _
    %p161 = scmp.le.s32.totalorder 1, %s10
    %p162 = scmp.lt.s32.totalorder %s10, 3
    %p163 = pnand %p161, %p162
    %p164 = pneg %p163
    // Predicated region
    $region33: #{xyj_forward.6} parent=5 // pred_check
      _
    $region34: #{xyj_forward.6} parent=5 // pred_check_branch
      %166 = sbr.rel (%p163) target = $region36
    $region35: #{xyj_forward.6} parent=5 // pred_region
      %s167 = ssub.s32 %s10, 1
      %p168 = scmp.lt.s32.totalorder %s15, 1
      %s169 = scalar_select %p168, %s15, 1
      %s170 = smul.addr %s169, 8
      %s171 = smul.addr %s170, 8
      %s172 = scalar_lea.vmem %s0, %s171
      %p173 = pneg %p36
      %p174 = pneg %p33
      %p175 = pneg %p57
      %p176 = pneg %p54
      %p177 = pneg %p78
      %p178 = pneg %p75
      %p179 = pneg %p99
      %p180 = pneg %p96
      %p181 = pneg %p125
      %p182 = pneg %p122
      %p183 = scmp.lt.s32.totalorder %s15, 1
      %s184 = scalar_select %p183, %s15, 1
      %s185 = smul.addr %s184, 8
      %s186 = smul.addr %s185, 8
      %s187 = scalar_lea.vmem %s4, %s186
      %p188 = scmp.lt.s32.totalorder %s15, 1
      %s189 = scalar_select %p188, %s15, 1
      %s190 = smul.addr %s189, 8
      %s191 = smul.addr %s190, 8
      %s192 = scalar_lea.vmem %s0, %s191
      %p193 = scmp.lt.s32.totalorder %s15, 1
      %s194 = scalar_select %p193, %s15, 1
      %s195 = smul.addr %s194, 8
      %s196 = smul.addr %s195, 8
      %s197 = scalar_lea.vmem %s4, %s196
      %vm199 = vcmask 23552
      %200 = vst.msk [vmem:[#allocation2 + $0x7] sm:$0xff] %vm199, 0.0
      %vm201 = vcmask 17408
      %202 = vst.msk [vmem:[#allocation2 + $0xf] sm:$0x3] %vm201, 0.0
      %s203 = scalar_lea.vmem [#allocation2], 216
      %204 = vst.msk [vmem:[%s203 + $0x7] sm:$0xff] %vm199, 0.0
      %205 = vst.msk [vmem:[%s203 + $0xf] sm:$0x3] %vm201, 0.0
      %s206 = scalar_lea.vmem [#allocation2], 24
      %vm207 = vcmask 16384
      %208 = vst.msk [vmem:[%s206 + $0x7] sm:$0x1] %vm207, 0.0
      %209 = vst.msk [vmem:[%s206 + $0x1f] sm:$0x1] %vm207, 0.0
      %210 = vst.msk [vmem:[%s206 + $0x37] sm:$0x1] %vm207, 0.0
      %211 = vst.msk [vmem:[%s206 + $0x4f] sm:$0x1] %vm207, 0.0
      %212 = vst.msk [vmem:[%s206 + $0x67] sm:$0x1] %vm207, 0.0
      %213 = vst.msk [vmem:[%s206 + $0x7f] sm:$0x1] %vm207, 0.0
      %214 = vst.msk [vmem:[%s206 + $0x97] sm:$0x1] %vm207, 0.0
      %215 = vst.msk [vmem:[%s206 + $0xaf] sm:$0x1] %vm207, 0.0
      %216 = vst.msk [vmem:[%s206 + $0x10] sm:$0x1] %vm207, 0.0
      %217 = vst.msk [vmem:[%s206 + $0x28] sm:$0x1] %vm207, 0.0
      %218 = vst.msk [vmem:[%s206 + $0x40] sm:$0x1] %vm207, 0.0
      %219 = vst.msk [vmem:[%s206 + $0x58] sm:$0x1] %vm207, 0.0
      %220 = vst.msk [vmem:[%s206 + $0x70] sm:$0x1] %vm207, 0.0
      %221 = vst.msk [vmem:[%s206 + $0x88] sm:$0x1] %vm207, 0.0
      %222 = vst.msk [vmem:[%s206 + $0xa0] sm:$0x1] %vm207, 0.0
      %223 = vst.msk [vmem:[%s206 + $0xb8] sm:$0x1] %vm207, 0.0
      %v224 = vld [vmem:[%s192] sm:$0xff]
      %v225 = vld [vmem:[%s192 + $0x8] sm:$0xff]
      %v226 = vld [vmem:[%s192 + $0x10] sm:$0xff]
      %v227 = vld [vmem:[%s192 + $0x18] sm:$0xff]
      %v228 = vld [vmem:[%s192 + $0x20] sm:$0xff]
      %v229 = vld [vmem:[%s192 + $0x28] sm:$0xff]
      %v230 = vld [vmem:[%s192 + $0x30] sm:$0xff]
      %v231 = vld [vmem:[%s192 + $0x38] sm:$0xff]
      %v232 = vld [vmem:[%s3] sm:$0x1]
      %v234 = vperm.slane %v232, 0
      %v236 = vsub.f32 %v224, %v234
      %v237 = vsub.f32 %v225, %v234
      %v238 = vsub.f32 %v226, %v234
      %v239 = vsub.f32 %v227, %v234
      %v240 = vsub.f32 %v228, %v234
      %v241 = vsub.f32 %v229, %v234
      %v242 = vsub.f32 %v230, %v234
      %v243 = vsub.f32 %v231, %v234
      %244 = vst.msk [vmem:[%s206 + $0x8] sm:$0xff] %vm199, %v236
      %245 = vst.msk [vmem:[%s206 + $0x20] sm:$0xff] %vm199, %v237
      %246 = vst.msk [vmem:[%s206 + $0x38] sm:$0xff] %vm199, %v238
      %247 = vst.msk [vmem:[%s206 + $0x50] sm:$0xff] %vm199, %v239
      %248 = vst.msk [vmem:[%s206 + $0x68] sm:$0xff] %vm199, %v240
      %249 = vst.msk [vmem:[%s206 + $0x80] sm:$0xff] %vm199, %v241
      %250 = vst.msk [vmem:[%s206 + $0x98] sm:$0xff] %vm199, %v242
      %251 = vst.msk [vmem:[%s206 + $0xb0] sm:$0xff] %vm199, %v243
      %v252 = vld [vmem:[#allocation2 + $0x7] sm:$0xff]
      %v253 = vld [vmem:[#allocation2 + $0x1f] sm:$0xff]
      %v254 = vld [vmem:[#allocation2 + $0x37] sm:$0xff]
      %v255 = vld [vmem:[#allocation2 + $0x4f] sm:$0xff]
      %v256 = vld [vmem:[#allocation2 + $0x67] sm:$0xff]
      %v257 = vld [vmem:[#allocation2 + $0x7f] sm:$0xff]
      %v258 = vld [vmem:[#allocation2 + $0x97] sm:$0xff]
      %v259 = vld [vmem:[#allocation2 + $0xaf] sm:$0xff]
      %v260 = vld [vmem:[#allocation2 + $0x8] sm:$0xff]
      %v261 = vld [vmem:[#allocation2 + $0x20] sm:$0xff]
      %v262 = vld [vmem:[#allocation2 + $0x38] sm:$0xff]
      %v263 = vld [vmem:[#allocation2 + $0x50] sm:$0xff]
      %v264 = vld [vmem:[#allocation2 + $0x68] sm:$0xff]
      %v265 = vld [vmem:[#allocation2 + $0x80] sm:$0xff]
      %v266 = vld [vmem:[#allocation2 + $0x98] sm:$0xff]
      %v267 = vld [vmem:[#allocation2 + $0xb0] sm:$0xff]
      %v268 = vld [vmem:[#allocation2 + $0x9] sm:$0xff]
      %v269 = vld [vmem:[#allocation2 + $0x21] sm:$0xff]
      %v270 = vld [vmem:[#allocation2 + $0x39] sm:$0xff]
      %v271 = vld [vmem:[#allocation2 + $0x51] sm:$0xff]
      %v272 = vld [vmem:[#allocation2 + $0x69] sm:$0xff]
      %v273 = vld [vmem:[#allocation2 + $0x81] sm:$0xff]
      %v274 = vld [vmem:[#allocation2 + $0x99] sm:$0xff]
      %v275 = vld [vmem:[#allocation2 + $0xb1] sm:$0xff]
      %v276 = vld [vmem:[%s206 + $0x7] sm:$0xff]
      %v277 = vld [vmem:[%s206 + $0x1f] sm:$0xff]
      %v278 = vld [vmem:[%s206 + $0x37] sm:$0xff]
      %v279 = vld [vmem:[%s206 + $0x4f] sm:$0xff]
      %v280 = vld [vmem:[%s206 + $0x67] sm:$0xff]
      %v281 = vld [vmem:[%s206 + $0x7f] sm:$0xff]
      %v282 = vld [vmem:[%s206 + $0x97] sm:$0xff]
      %v283 = vld [vmem:[%s206 + $0xaf] sm:$0xff]
      %v284 = vld [vmem:[%s206 + $0x8] sm:$0xff]
      %v285 = vld [vmem:[%s206 + $0x20] sm:$0xff]
      %v286 = vld [vmem:[%s206 + $0x38] sm:$0xff]
      %v287 = vld [vmem:[%s206 + $0x50] sm:$0xff]
      %v288 = vld [vmem:[%s206 + $0x68] sm:$0xff]
      %v289 = vld [vmem:[%s206 + $0x80] sm:$0xff]
      %v290 = vld [vmem:[%s206 + $0x98] sm:$0xff]
      %v291 = vld [vmem:[%s206 + $0xb0] sm:$0xff]
      %v292 = vld [vmem:[%s206 + $0x9] sm:$0xff]
      %v293 = vld [vmem:[%s206 + $0x21] sm:$0xff]
      %v294 = vld [vmem:[%s206 + $0x39] sm:$0xff]
      %v295 = vld [vmem:[%s206 + $0x51] sm:$0xff]
      %v296 = vld [vmem:[%s206 + $0x69] sm:$0xff]
      %v297 = vld [vmem:[%s206 + $0x81] sm:$0xff]
      %v298 = vld [vmem:[%s206 + $0x99] sm:$0xff]
      %v299 = vld [vmem:[%s206 + $0xb1] sm:$0xff]
      %s300 = scalar_lea.vmem [#allocation2], 48
      %v301 = vld [vmem:[%s300 + $0x7] sm:$0xff]
      %v302 = vld [vmem:[%s300 + $0x1f] sm:$0xff]
      %v303 = vld [vmem:[%s300 + $0x37] sm:$0xff]
      %v304 = vld [vmem:[%s300 + $0x4f] sm:$0xff]
      %v305 = vld [vmem:[%s300 + $0x67] sm:$0xff]
      %v306 = vld [vmem:[%s300 + $0x7f] sm:$0xff]
      %v307 = vld [vmem:[%s300 + $0x97] sm:$0xff]
      %v308 = vld [vmem:[%s300 + $0xaf] sm:$0xff]
      %v309 = vld [vmem:[%s300 + $0x8] sm:$0xff]
      %v310 = vld [vmem:[%s300 + $0x20] sm:$0xff]
      %v311 = vld [vmem:[%s300 + $0x38] sm:$0xff]
      %v312 = vld [vmem:[%s300 + $0x50] sm:$0xff]
      %v313 = vld [vmem:[%s300 + $0x68] sm:$0xff]
      %v314 = vld [vmem:[%s300 + $0x80] sm:$0xff]
      %v315 = vld [vmem:[%s300 + $0x98] sm:$0xff]
      %v316 = vld [vmem:[%s300 + $0xb0] sm:$0xff]
      %v317 = vld [vmem:[%s300 + $0x9] sm:$0xff]
      %v318 = vld [vmem:[%s300 + $0x21] sm:$0xff]
      %v319 = vld [vmem:[%s300 + $0x39] sm:$0xff]
      %v320 = vld [vmem:[%s300 + $0x51] sm:$0xff]
      %v321 = vld [vmem:[%s300 + $0x69] sm:$0xff]
      %v322 = vld [vmem:[%s300 + $0x81] sm:$0xff]
      %v323 = vld [vmem:[%s300 + $0x99] sm:$0xff]
      %v324 = vld [vmem:[%s300 + $0xb1] sm:$0xff]
      %v325 = vpack.c.bf16 %v252, %v252
      %v326 = vpack.c.bf16 %v253, %v253
      %v327 = vpack.c.bf16 %v254, %v254
      %v328 = vpack.c.bf16 %v255, %v255
      %v329 = vpack.c.bf16 %v256, %v256
      %v330 = vpack.c.bf16 %v257, %v257
      %v331 = vpack.c.bf16 %v258, %v258
      %v332 = vpack.c.bf16 %v259, %v259
      %v333 = vpack.c.bf16 %v260, %v260
      %v334 = vpack.c.bf16 %v261, %v261
      %v335 = vpack.c.bf16 %v262, %v262
      %v336 = vpack.c.bf16 %v263, %v263
      %v337 = vpack.c.bf16 %v264, %v264
      %v338 = vpack.c.bf16 %v265, %v265
      %v339 = vpack.c.bf16 %v266, %v266
      %v340 = vpack.c.bf16 %v267, %v267
      %v341 = vpack.c.bf16 %v268, %v268
      %v342 = vpack.c.bf16 %v269, %v269
      %v343 = vpack.c.bf16 %v270, %v270
      %v344 = vpack.c.bf16 %v271, %v271
      %v345 = vpack.c.bf16 %v272, %v272
      %v346 = vpack.c.bf16 %v273, %v273
      %v347 = vpack.c.bf16 %v274, %v274
      %v348 = vpack.c.bf16 %v275, %v275
      %v349 = vpack.c.bf16 %v276, %v276
      %v350 = vpack.c.bf16 %v277, %v277
      %v351 = vpack.c.bf16 %v278, %v278
      %v352 = vpack.c.bf16 %v279, %v279
      %v353 = vpack.c.bf16 %v280, %v280
      %v354 = vpack.c.bf16 %v281, %v281
      %v355 = vpack.c.bf16 %v282, %v282
      %v356 = vpack.c.bf16 %v283, %v283
      %v357 = vpack.c.bf16 %v284, %v284
      %v358 = vpack.c.bf16 %v285, %v285
      %v359 = vpack.c.bf16 %v286, %v286
      %v360 = vpack.c.bf16 %v287, %v287
      %v361 = vpack.c.bf16 %v288, %v288
      %v362 = vpack.c.bf16 %v289, %v289
      %v363 = vpack.c.bf16 %v290, %v290
      %v364 = vpack.c.bf16 %v291, %v291
      %v365 = vpack.c.bf16 %v292, %v292
      %v366 = vpack.c.bf16 %v293, %v293
      %v367 = vpack.c.bf16 %v294, %v294
      %v368 = vpack.c.bf16 %v295, %v295
      %v369 = vpack.c.bf16 %v296, %v296
      %v370 = vpack.c.bf16 %v297, %v297
      %v371 = vpack.c.bf16 %v298, %v298
      %v372 = vpack.c.bf16 %v299, %v299
      %v373 = vpack.c.bf16 %v301, %v301
      %v374 = vpack.c.bf16 %v302, %v302
      %v375 = vpack.c.bf16 %v303, %v303
      %v376 = vpack.c.bf16 %v304, %v304
      %v377 = vpack.c.bf16 %v305, %v305
      %v378 = vpack.c.bf16 %v306, %v306
      %v379 = vpack.c.bf16 %v307, %v307
      %v380 = vpack.c.bf16 %v308, %v308
      %v381 = vpack.c.bf16 %v309, %v309
      %v382 = vpack.c.bf16 %v310, %v310
      %v383 = vpack.c.bf16 %v311, %v311
      %v384 = vpack.c.bf16 %v312, %v312
      %v385 = vpack.c.bf16 %v313, %v313
      %v386 = vpack.c.bf16 %v314, %v314
      %v387 = vpack.c.bf16 %v315, %v315
      %v388 = vpack.c.bf16 %v316, %v316
      %v389 = vpack.c.bf16 %v317, %v317
      %v390 = vpack.c.bf16 %v318, %v318
      %v391 = vpack.c.bf16 %v319, %v319
      %v392 = vpack.c.bf16 %v320, %v320
      %v393 = vpack.c.bf16 %v321, %v321
      %v394 = vpack.c.bf16 %v322, %v322
      %v395 = vpack.c.bf16 %v323, %v323
      %v396 = vpack.c.bf16 %v324, %v324
      %v405 = vunpack.c.l.b16 %v325
      %v406 = vunpack.c.l.b16 %v326
      %v407 = vunpack.c.l.b16 %v327
      %v408 = vunpack.c.l.b16 %v328
      %v409 = vunpack.c.l.b16 %v329
      %v410 = vunpack.c.l.b16 %v330
      %v411 = vunpack.c.l.b16 %v331
      %v412 = vunpack.c.l.b16 %v332
      %v413 = vpack.c.b16 %v406, %v405
      %v414 = vpack.c.b16 %v408, %v407
      %v415 = vpack.c.b16 %v410, %v409
      %v416 = vpack.c.b16 %v412, %v411
      %v425 = vunpack.c.l.b16 %v333
      %v426 = vunpack.c.l.b16 %v334
      %v427 = vunpack.c.l.b16 %v335
      %v428 = vunpack.c.l.b16 %v336
      %v429 = vunpack.c.l.b16 %v337
      %v430 = vunpack.c.l.b16 %v338
      %v431 = vunpack.c.l.b16 %v339
      %v432 = vunpack.c.l.b16 %v340
      %v433 = vpack.c.b16 %v426, %v425
      %v434 = vpack.c.b16 %v428, %v427
      %v435 = vpack.c.b16 %v430, %v429
      %v436 = vpack.c.b16 %v432, %v431
      %437 = vrot.lane.b32.xlu0 %v433, 3
      %v438 = vpop.permute.xlu0 %437
      %439 = vrot.lane.b32.xlu0 %v434, 3
      %v440 = vpop.permute.xlu0 %439
      %441 = vrot.lane.b32.xlu0 %v435, 3
      %v442 = vpop.permute.xlu0 %441
      %443 = vrot.lane.b32.xlu0 %v436, 3
      %v444 = vpop.permute.xlu0 %443
      %v453 = vunpack.c.l.b16 %v341
      %v454 = vunpack.c.l.b16 %v342
      %v455 = vunpack.c.l.b16 %v343
      %v456 = vunpack.c.l.b16 %v344
      %v457 = vunpack.c.l.b16 %v345
      %v458 = vunpack.c.l.b16 %v346
      %v459 = vunpack.c.l.b16 %v347
      %v460 = vunpack.c.l.b16 %v348
      %v461 = vpack.c.b16 %v454, %v453
      %v462 = vpack.c.b16 %v456, %v455
      %v463 = vpack.c.b16 %v458, %v457
      %v464 = vpack.c.b16 %v460, %v459
      %465 = vrot.lane.b32.xlu0 %v461, 6
      %v466 = vpop.permute.xlu0 %465
      %467 = vrot.lane.b32.xlu0 %v462, 6
      %v468 = vpop.permute.xlu0 %467
      %469 = vrot.lane.b32.xlu0 %v463, 6
      %v470 = vpop.permute.xlu0 %469
      %471 = vrot.lane.b32.xlu0 %v464, 6
      %v472 = vpop.permute.xlu0 %471
      %v481 = vunpack.c.l.b16 %v349
      %v482 = vunpack.c.l.b16 %v350
      %v483 = vunpack.c.l.b16 %v351
      %v484 = vunpack.c.l.b16 %v352
      %v485 = vunpack.c.l.b16 %v353
      %v486 = vunpack.c.l.b16 %v354
      %v487 = vunpack.c.l.b16 %v355
      %v488 = vunpack.c.l.b16 %v356
      %v489 = vpack.c.b16 %v482, %v481
      %v490 = vpack.c.b16 %v484, %v483
      %v491 = vpack.c.b16 %v486, %v485
      %v492 = vpack.c.b16 %v488, %v487
      %493 = vrot.lane.b32.xlu0 %v489, 9
      %v494 = vpop.permute.xlu0 %493
      %495 = vrot.lane.b32.xlu0 %v490, 9
      %v496 = vpop.permute.xlu0 %495
      %497 = vrot.lane.b32.xlu0 %v491, 9
      %v498 = vpop.permute.xlu0 %497
      %499 = vrot.lane.b32.xlu0 %v492, 9
      %v500 = vpop.permute.xlu0 %499
      %v509 = vunpack.c.l.b16 %v357
      %v510 = vunpack.c.l.b16 %v358
      %v511 = vunpack.c.l.b16 %v359
      %v512 = vunpack.c.l.b16 %v360
      %v513 = vunpack.c.l.b16 %v361
      %v514 = vunpack.c.l.b16 %v362
      %v515 = vunpack.c.l.b16 %v363
      %v516 = vunpack.c.l.b16 %v364
      %v517 = vpack.c.b16 %v510, %v509
      %v518 = vpack.c.b16 %v512, %v511
      %v519 = vpack.c.b16 %v514, %v513
      %v520 = vpack.c.b16 %v516, %v515
      %521 = vrot.lane.b32.xlu0 %v517, 12
      %v522 = vpop.permute.xlu0 %521
      %523 = vrot.lane.b32.xlu0 %v518, 12
      %v524 = vpop.permute.xlu0 %523
      %525 = vrot.lane.b32.xlu0 %v519, 12
      %v526 = vpop.permute.xlu0 %525
      %527 = vrot.lane.b32.xlu0 %v520, 12
      %v528 = vpop.permute.xlu0 %527
      %v537 = vunpack.c.l.b16 %v365
      %v538 = vunpack.c.l.b16 %v366
      %v539 = vunpack.c.l.b16 %v367
      %v540 = vunpack.c.l.b16 %v368
      %v541 = vunpack.c.l.b16 %v369
      %v542 = vunpack.c.l.b16 %v370
      %v543 = vunpack.c.l.b16 %v371
      %v544 = vunpack.c.l.b16 %v372
      %v545 = vpack.c.b16 %v538, %v537
      %v546 = vpack.c.b16 %v540, %v539
      %v547 = vpack.c.b16 %v542, %v541
      %v548 = vpack.c.b16 %v544, %v543
      %549 = vrot.lane.b32.xlu0 %v545, 15
      %v550 = vpop.permute.xlu0 %549
      %551 = vrot.lane.b32.xlu0 %v546, 15
      %v552 = vpop.permute.xlu0 %551
      %553 = vrot.lane.b32.xlu0 %v547, 15
      %v554 = vpop.permute.xlu0 %553
      %555 = vrot.lane.b32.xlu0 %v548, 15
      %v556 = vpop.permute.xlu0 %555
      %v565 = vunpack.c.l.b16 %v373
      %v566 = vunpack.c.l.b16 %v374
      %v567 = vunpack.c.l.b16 %v375
      %v568 = vunpack.c.l.b16 %v376
      %v569 = vunpack.c.l.b16 %v377
      %v570 = vunpack.c.l.b16 %v378
      %v571 = vunpack.c.l.b16 %v379
      %v572 = vunpack.c.l.b16 %v380
      %v573 = vpack.c.b16 %v566, %v565
      %v574 = vpack.c.b16 %v568, %v567
      %v575 = vpack.c.b16 %v570, %v569
      %v576 = vpack.c.b16 %v572, %v571
      %577 = vrot.lane.b32.xlu0 %v573, 18
      %v578 = vpop.permute.xlu0 %577
      %579 = vrot.lane.b32.xlu0 %v574, 18
      %v580 = vpop.permute.xlu0 %579
      %581 = vrot.lane.b32.xlu0 %v575, 18
      %v582 = vpop.permute.xlu0 %581
      %583 = vrot.lane.b32.xlu0 %v576, 18
      %v584 = vpop.permute.xlu0 %583
      %v593 = vunpack.c.l.b16 %v381
      %v594 = vunpack.c.l.b16 %v382
      %v595 = vunpack.c.l.b16 %v383
      %v596 = vunpack.c.l.b16 %v384
      %v597 = vunpack.c.l.b16 %v385
      %v598 = vunpack.c.l.b16 %v386
      %v599 = vunpack.c.l.b16 %v387
      %v600 = vunpack.c.l.b16 %v388
      %v601 = vpack.c.b16 %v594, %v593
      %v602 = vpack.c.b16 %v596, %v595
      %v603 = vpack.c.b16 %v598, %v597
      %v604 = vpack.c.b16 %v600, %v599
      %605 = vrot.lane.b32.xlu0 %v601, 21
      %v606 = vpop.permute.xlu0 %605
      %607 = vrot.lane.b32.xlu0 %v602, 21
      %v608 = vpop.permute.xlu0 %607
      %609 = vrot.lane.b32.xlu0 %v603, 21
      %v610 = vpop.permute.xlu0 %609
      %611 = vrot.lane.b32.xlu0 %v604, 21
      %v612 = vpop.permute.xlu0 %611
      %v621 = vunpack.c.l.b16 %v389
      %v622 = vunpack.c.l.b16 %v390
      %v623 = vunpack.c.l.b16 %v391
      %v624 = vunpack.c.l.b16 %v392
      %v625 = vunpack.c.l.b16 %v393
      %v626 = vunpack.c.l.b16 %v394
      %v627 = vunpack.c.l.b16 %v395
      %v628 = vunpack.c.l.b16 %v396
      %v629 = vpack.c.b16 %v622, %v621
      %v630 = vpack.c.b16 %v624, %v623
      %v631 = vpack.c.b16 %v626, %v625
      %v632 = vpack.c.b16 %v628, %v627
      %633 = vrot.lane.b32.xlu0 %v629, 24
      %v634 = vpop.permute.xlu0 %633
      %635 = vrot.lane.b32.xlu0 %v630, 24
      %v636 = vpop.permute.xlu0 %635
      %637 = vrot.lane.b32.xlu0 %v631, 24
      %v638 = vpop.permute.xlu0 %637
      %639 = vrot.lane.b32.xlu0 %v632, 24
      %v640 = vpop.permute.xlu0 %639
      %v643 = vsel %vm199, %v413, %v438
      %v646 = vsel %vm199, %v414, %v440
      %v649 = vsel %vm199, %v415, %v442
      %v652 = vsel %vm199, %v416, %v444
      %vm653 = vcmask 48128
      %v655 = vsel %vm653, %v643, %v466
      %v657 = vsel %vm653, %v646, %v468
      %v659 = vsel %vm653, %v649, %v470
      %v661 = vsel %vm653, %v652, %v472
      %vm662 = vcmask 72704
      %v664 = vsel %vm662, %v655, %v494
      %v666 = vsel %vm662, %v657, %v496
      %v668 = vsel %vm662, %v659, %v498
      %v670 = vsel %vm662, %v661, %v500
      %vm671 = vcmask 97280
      %v673 = vsel %vm671, %v664, %v522
      %v675 = vsel %vm671, %v666, %v524
      %v677 = vsel %vm671, %v668, %v526
      %v679 = vsel %vm671, %v670, %v528
      %vm680 = vcmask 121856
      %v682 = vsel %vm680, %v673, %v550
      %v684 = vsel %vm680, %v675, %v552
      %v686 = vsel %vm680, %v677, %v554
      %v688 = vsel %vm680, %v679, %v556
      %vm689 = vcmask 146432
      %v691 = vsel %vm689, %v682, %v578
      %v693 = vsel %vm689, %v684, %v580
      %v695 = vsel %vm689, %v686, %v582
      %v697 = vsel %vm689, %v688, %v584
      %vm698 = vcmask 171008
      %v700 = vsel %vm698, %v691, %v606
      %v702 = vsel %vm698, %v693, %v608
      %v704 = vsel %vm698, %v695, %v610
      %v706 = vsel %vm698, %v697, %v612
      %vm707 = vcmask 195584
      %v709 = vsel %vm707, %v700, %v634
      %v711 = vsel %vm707, %v702, %v636
      %v713 = vsel %vm707, %v704, %v638
      %v715 = vsel %vm707, %v706, %v640
      %v716 = vld [vmem:[%s1] sm:$0xf]
      %v717 = vld [vmem:[%s1 + $0x4] sm:$0xf]
      %v718 = vld [vmem:[%s1 + $0x8] sm:$0xf]
      %v719 = vld [vmem:[%s1 + $0xc] sm:$0x3]
      %v720 = vld [vmem:[%s2] sm:$0x1]
      %v722 = vperm.slane %v720, 0
      %v728 = vunpack.c.l.b16 %v716
      %v729 = vunpack.c.l.b16 %v717
      %v730 = vunpack.c.l.b16 %v718
      %v731 = vunpack.c.l.b16 %v719
      %v732 = vpack.c.b16 %v729, %v728
      %v733 = vpack.c.b16 %v731, %v730
      %vm735 = vcmask 220160
      %v736 = vsel %vm735, %v709, 0
      %v738 = vsel %vm735, %v711, 0
      %v740 = vsel %vm735, %v713, 0
      %v742 = vsel %vm735, %v715, 0
      %vm744 = vcmask 1044480
      %vm745 = vcmask 1045504
      %v746 = vsel %vm744, 4294967295, 65535
      %v747 = vsel %vm745, %v746, 0
      %v749 = vand.u32 %v733, %v747
      %751 = vmatpush.bf16.msra.mxu0 0
      %752 = vmatpush.bf16.msra.mxu0 0
      %753 = vmatpush.bf16.msra.mxu0 0
      %754 = vmatpush.bf16.msra.mxu0 0
      %755 = vmatpush.bf16.msra.mxu0 0
      %756 = vmatpush.bf16.msra.mxu0 0
      %757 = vmatpush.bf16.msra.mxu0 %v749
      %758 = vmatpush.bf16.msra.mxu0 %v732
      %759 = vmatmul.bf16.gmra.mxu0 %v736
      %v760 = vpop.f32.mrf.mxu0
      %v761 = vadd.f32 %v722, %v760
      %v762 = vpop.f32.mrf.mxu0
      %v763 = vadd.f32 %v722, %v762
      %764 = vmatmul.bf16.gmra.mxu0 %v738
      %v765 = vpop.f32.mrf.mxu0
      %v766 = vadd.f32 %v722, %v765
      %v767 = vpop.f32.mrf.mxu0
      %v768 = vadd.f32 %v722, %v767
      %769 = vmatmul.bf16.gmra.mxu0 %v740
      %v770 = vpop.f32.mrf.mxu0
      %v771 = vadd.f32 %v722, %v770
      %v772 = vpop.f32.mrf.mxu0
      %v773 = vadd.f32 %v722, %v772
      %774 = vmatmul.bf16.gmra.mxu0 %v742
      %v775 = vpop.f32.mrf.mxu0
      %v776 = vadd.f32 %v722, %v775
      %v777 = vpop.f32.mrf.mxu0
      %v778 = vadd.f32 %v722, %v777
      %779 = vdwg.mxu0
      %vm780 = vcmask 261120
      %781 = vst.msk [vmem:[%s197] sm:$0xff] %vm780, %v761
      %782 = vst.msk [vmem:[%s197 + $0x8] sm:$0xff] %vm780, %v763
      %783 = vst.msk [vmem:[%s197 + $0x10] sm:$0xff] %vm780, %v766
      %784 = vst.msk [vmem:[%s197 + $0x18] sm:$0xff] %vm780, %v768
      %785 = vst.msk [vmem:[%s197 + $0x20] sm:$0xff] %vm780, %v771
      %786 = vst.msk [vmem:[%s197 + $0x28] sm:$0xff] %vm780, %v773
      %787 = vst.msk [vmem:[%s197 + $0x30] sm:$0xff] %vm780, %v776
      %788 = vst.msk [vmem:[%s197 + $0x38] sm:$0xff] %vm780, %v778
      %p789 = scmp.lt.s32.totalorder %s15, 1
      %s790 = scalar_select %p789, %s15, 1
      %s791 = smul.addr %s790, 8
      %s792 = smul.addr %s791, 8
      %s793 = scalar_lea.vmem %s4, %s792
      // Predicated region
      $region37: #{xyj_forward.6} parent=35 // pred_check
        %p794 = pneg %p122
      $region38: #{xyj_forward.6} parent=35 // pred_check_branch
        %796 = sbr.rel (%p794) target = $region40
      $region39: #{xyj_forward.6} parent=35 // pred_region
        _
      $region40: #{xyj_forward.6} parent=35 // pred_fallthru
        _
    $region36: #{xyj_forward.6} parent=5 // pred_fallthru
      _
    %p797 = scmp.le.s32.totalorder 2, %s10
    // Predicated region
    $region41: #{xyj_forward.6} parent=5 // pred_check
      %p798 = pneg %p797
    $region42: #{xyj_forward.6} parent=5 // pred_check_branch
      %800 = sbr.rel (%p798) target = $region44
    $region43: #{xyj_forward.6} parent=5 // pred_region
      %s801 = ssub.s32 %s10, 2
      // Predicated region
      $region45: #{xyj_forward.6} parent=43 // pred_check
        %p802 = pneg %p128
      $region46: #{xyj_forward.6} parent=43 // pred_check_branch
        %804 = sbr.rel (%p802) target = $region48
      $region47: #{xyj_forward.6} parent=43 // pred_region
        %p805 = scmp.lt.s32.totalorder %s16, 1
        %s806 = scalar_select %p805, %s16, 1
        %s807 = smul.addr %s806, 8
        %s808 = smul.addr %s807, 8
        %s809 = scalar_lea.vmem %s4, %s808
      $region48: #{xyj_forward.6} parent=43 // pred_fallthru
        _
    $region44: #{xyj_forward.6} parent=5 // pred_fallthru
      _
  $region6: #{xyj_forward.6} parent=0 // loop_footer
    %s14 = sadd.s32 1, %s10
  $region7: #{xyj_forward.6} parent=0 // loop_footer_branch
    %9 = sbr.rel target = $region3
  $region8: #{xyj_forward.6} parent=0 // loop_exit
    _

// kernel: xyj_forward.10
$region0: #{xyj_forward.10}
  #allocation0 [shape = 'u32[]', space=smem, size = 0x4, offset = 0x4, fixed_abs, tag = 'smem constant byte address 0x4 - core index']
  #allocation1 [shape = 'u32[72,128]{1,0:T(1,128)}', space=vmem, size = 0x9000, scoped, tag = 'internal scratch']
  #allocation2 [shape = 'f32[10,17,32]{2,1,0:T(8,128)}', space=vmem, size = 0x1e000, scoped, tag = 'scratch operand']
  %s0 = inlined_call_operand.vmem [shape: f32[2,8,8,32], index: 0, kind: input, shape index: {}]
  %s1 = inlined_call_operand.vmem [shape: bf16[288,128], index: 1, kind: input, shape index: {}]
  %s2 = inlined_call_operand.vmem [shape: f32[1,128], index: 2, kind: input, shape index: {}]
  %s3 = inlined_call_operand.vmem [shape: f32[2,8,8,128], index: 3, kind: output, shape index: {}]
  %s4 = sld [smem:[#allocation0]]
  $region45: #{xyj_forward.10} parent=0
    _
  %s6 = ssub.s32 1, %s4
  %s7 = scalar_select 0, %s6, %s4
  loop: start=0, step=1, limit=4
  $region2: #{xyj_forward.10} parent=0 // loop_pre_header
    _
  $region3: #{xyj_forward.10} parent=0 // loop_header
    %s9 = sphi 0, %s13
    %p10 = scmp.ge.s32.totalorder %s9, 4
    %s19 = sphi 0, %s21
    %s22 = sphi 0, %s19
    %s23 = sphi 0, %s22
    %s39 = sphi 0, %s23
    %s43 = sphi 0, %s43
    %s45 = sphi 0, %s43
    %s46 = sphi 0, %s45
    %s60 = sphi 0, %s46
    %s64 = sphi 0, %s64
    %s66 = sphi 0, %s64
    %s67 = sphi 0, %s66
    %s81 = sphi 0, %s67
    %s87 = sphi 0, %s89
    %s90 = sphi 0, %s87
    %s91 = sphi 0, %s90
    %s107 = sphi 0, %s91
  $region4: #{xyj_forward.10} parent=0 // loop_header_branch
    %12 = sbr.rel (%p10) target = $region8
  $region5: #{xyj_forward.10} parent=0 // loop_body
    %s14 = ssub.s32 %s9, 1
    %s15 = ssub.s32 %s9, 2
    %s16 = sadd.s32 %s9, 1
    %s17 = ssub.s32 %s9, %s16
    %p18 = scmp.eq.s32.totalorder %s17, 0
    %s20 = sadd.s32 %s19, 1
    %s21 = scalar_select %p18, %s19, %s20
    %p24 = pneg %p18
    %p25 = scmp.eq.s32.totalorder %s9, 1
    %p26 = por %p24, %p25
    %p27 = scmp.ne.s32.totalorder %s19, %s22
    %p28 = scmp.eq.s32.totalorder %s9, 0
    %p29 = por %p27, %p28
    %p30 = scmp.ne.s32.totalorder %s19, %s22
    %p31 = scmp.eq.s32.totalorder %s14, 1
    %p32 = por %p30, %p31
    %p33 = scmp.ne.s32.totalorder %s22, %s23
    %p34 = scmp.eq.s32.totalorder %s14, 0
    %p35 = por %p33, %p34
    %p36 = scmp.ne.s32.totalorder %s22, %s23
    %p37 = scmp.eq.s32.totalorder %s15, 1
    %p38 = por %p36, %p37
    %p40 = scmp.ne.s32.totalorder %s23, %s39
    %p41 = scmp.eq.s32.totalorder %s15, 0
    %p42 = por %p40, %p41
    %s44 = sadd.s32 %s43, 1
    %p47 = scmp.eq.s32.totalorder %s9, 1
    %p48 = scmp.ne.s32.totalorder %s43, %s45
    %p49 = scmp.eq.s32.totalorder %s9, 0
    %p50 = por %p48, %p49
    %p51 = scmp.ne.s32.totalorder %s43, %s45
    %p52 = scmp.eq.s32.totalorder %s14, 1
    %p53 = por %p51, %p52
    %p54 = scmp.ne.s32.totalorder %s45, %s46
    %p55 = scmp.eq.s32.totalorder %s14, 0
    %p56 = por %p54, %p55
    %p57 = scmp.ne.s32.totalorder %s45, %s46
    %p58 = scmp.eq.s32.totalorder %s15, 1
    %p59 = por %p57, %p58
    %p61 = scmp.ne.s32.totalorder %s46, %s60
    %p62 = scmp.eq.s32.totalorder %s15, 0
    %p63 = por %p61, %p62
    %s65 = sadd.s32 %s64, 1
    %p68 = scmp.eq.s32.totalorder %s9, 1
    %p69 = scmp.ne.s32.totalorder %s64, %s66
    %p70 = scmp.eq.s32.totalorder %s9, 0
    %p71 = por %p69, %p70
    %p72 = scmp.ne.s32.totalorder %s64, %s66
    %p73 = scmp.eq.s32.totalorder %s14, 1
    %p74 = por %p72, %p73
    %p75 = scmp.ne.s32.totalorder %s66, %s67
    %p76 = scmp.eq.s32.totalorder %s14, 0
    %p77 = por %p75, %p76
    %p78 = scmp.ne.s32.totalorder %s66, %s67
    %p79 = scmp.eq.s32.totalorder %s15, 1
    %p80 = por %p78, %p79
    %p82 = scmp.ne.s32.totalorder %s67, %s81
    %p83 = scmp.eq.s32.totalorder %s15, 0
    %p84 = por %p82, %p83
    %s85 = ssub.s32 %s9, %s16
    %p86 = scmp.eq.s32.totalorder %s85, 0
    %s88 = sadd.s32 %s87, 1
    %s89 = scalar_select %p86, %s87, %s88
    %p92 = pneg %p86
    %p93 = scmp.eq.s32.totalorder %s9, 1
    %p94 = por %p92, %p93
    %p95 = scmp.ne.s32.totalorder %s87, %s90
    %p96 = scmp.eq.s32.totalorder %s9, 0
    %p97 = por %p95, %p96
    %p98 = scmp.ne.s32.totalorder %s87, %s90
    %p99 = scmp.eq.s32.totalorder %s14, 1
    %p100 = por %p98, %p99
    %p101 = scmp.ne.s32.totalorder %s90, %s91
    %p102 = scmp.eq.s32.totalorder %s14, 0
    %p103 = por %p101, %p102
    %p104 = scmp.ne.s32.totalorder %s90, %s91
    %p105 = scmp.eq.s32.totalorder %s15, 1
    %p106 = por %p104, %p105
    %p108 = scmp.ne.s32.totalorder %s91, %s107
    %p109 = scmp.eq.s32.totalorder %s15, 0
    %p110 = por %p108, %p109
    %p111 = scmp.le.s32.totalorder 1, %s9
    %p112 = scmp.lt.s32.totalorder %s9, 3
    %p113 = pnand %p111, %p112
    %p114 = pneg %p113
    // Predicated region
    $region9: #{xyj_forward.10} parent=5 // pred_check
      _
    $region10: #{xyj_forward.10} parent=5 // pred_check_branch
      %116 = sbr.rel (%p113) target = $region12
    $region11: #{xyj_forward.10} parent=5 // pred_region
      %s117 = ssub.s32 %s9, 1
      // Predicated region
      $region13: #{xyj_forward.10} parent=11 // pred_check
        %p118 = pneg %p56
      $region14: #{xyj_forward.10} parent=11 // pred_check_branch
        %120 = sbr.rel (%p118) target = $region16
      $region15: #{xyj_forward.10} parent=11 // pred_region
        _
      $region16: #{xyj_forward.10} parent=11 // pred_fallthru
        _
      // Predicated region
      $region17: #{xyj_forward.10} parent=11 // pred_check
        %p121 = pneg %p77
      $region18: #{xyj_forward.10} parent=11 // pred_check_branch
        %123 = sbr.rel (%p121) target = $region20
      $region19: #{xyj_forward.10} parent=11 // pred_region
        _
      $region20: #{xyj_forward.10} parent=11 // pred_fallthru
        _
    $region12: #{xyj_forward.10} parent=5 // pred_fallthru
      _
    %p124 = scmp.lt.s32.totalorder %s9, 2
    // Predicated region
    $region21: #{xyj_forward.10} parent=5 // pred_check
      %p125 = pneg %p124
    $region22: #{xyj_forward.10} parent=5 // pred_check_branch
      %127 = sbr.rel (%p125) target = $region24
    $region23: #{xyj_forward.10} parent=5 // pred_region
      // Predicated region
      $region25: #{xyj_forward.10} parent=23 // pred_check
        %p128 = pneg %p29
      $region26: #{xyj_forward.10} parent=23 // pred_check_branch
        %130 = sbr.rel (%p128) target = $region28
      $region27: #{xyj_forward.10} parent=23 // pred_region
        %p131 = scmp.lt.s32.totalorder %s9, 1
        %s132 = scalar_select %p131, %s9, 1
        %s133 = smul.addr %s132, 8
        %s134 = smul.addr %s133, 8
        %s135 = scalar_lea.vmem %s0, %s134
      $region28: #{xyj_forward.10} parent=23 // pred_fallthru
        _
    $region24: #{xyj_forward.10} parent=5 // pred_fallthru
      _
    %p136 = scmp.le.s32.totalorder 1, %s9
    %p137 = scmp.lt.s32.totalorder %s9, 3
    %p138 = pnand %p136, %p137
    %p139 = pneg %p138
    // Predicated region
    $region29: #{xyj_forward.10} parent=5 // pred_check
      _
    $region30: #{xyj_forward.10} parent=5 // pred_check_branch
      %141 = sbr.rel (%p138) target = $region32
    $region31: #{xyj_forward.10} parent=5 // pred_region
      %s142 = ssub.s32 %s9, 1
      %p143 = scmp.lt.s32.totalorder %s14, 1
      %s144 = scalar_select %p143, %s14, 1
      %s145 = smul.addr %s144, 8
      %s146 = smul.addr %s145, 8
      %s147 = scalar_lea.vmem %s0, %s146
      %p148 = pneg %p35
      %p149 = pneg %p32
      %p150 = pneg %p56
      %p151 = pneg %p53
      %p152 = pneg %p77
      %p153 = pneg %p74
      %p154 = pneg %p103
      %p155 = pneg %p100
      %p156 = scmp.lt.s32.totalorder %s14, 1
      %s157 = scalar_select %p156, %s14, 1
      %s158 = smul.addr %s157, 8
      %s159 = smul.addr %s158, 8
      %s160 = scalar_lea.vmem %s3, %s159
      %p161 = scmp.lt.s32.totalorder %s14, 1
      %s162 = scalar_select %p161, %s14, 1
      %s163 = smul.addr %s162, 8
      %s164 = smul.addr %s163, 8
      %s165 = scalar_lea.vmem %s0, %s164
      %p166 = scmp.lt.s32.totalorder %s14, 1
      %s167 = scalar_select %p166, %s14, 1
      %s168 = smul.addr %s167, 8
      %s169 = smul.addr %s168, 8
      %s170 = scalar_lea.vmem %s3, %s169
      %vm172 = vcmask 261120
      %173 = vst.msk [vmem:[#allocation2 + $0x7] sm:$0xff] %vm172, 0.0
      %vm174 = vcmask 254976
      %175 = vst.msk [vmem:[#allocation2 + $0xf] sm:$0x3] %vm174, 0.0
      %s176 = scalar_lea.vmem [#allocation2], 216
      %177 = vst.msk [vmem:[%s176 + $0x7] sm:$0xff] %vm172, 0.0
      %178 = vst.msk [vmem:[%s176 + $0xf] sm:$0x3] %vm174, 0.0
      %s179 = scalar_lea.vmem [#allocation2], 24
      %vm180 = vcmask 253952
      %181 = vst.msk [vmem:[%s179 + $0x7] sm:$0x1] %vm180, 0.0
      %182 = vst.msk [vmem:[%s179 + $0x1f] sm:$0x1] %vm180, 0.0
      %183 = vst.msk [vmem:[%s179 + $0x37] sm:$0x1] %vm180, 0.0
      %184 = vst.msk [vmem:[%s179 + $0x4f] sm:$0x1] %vm180, 0.0
      %185 = vst.msk [vmem:[%s179 + $0x67] sm:$0x1] %vm180, 0.0
      %186 = vst.msk [vmem:[%s179 + $0x7f] sm:$0x1] %vm180, 0.0
      %187 = vst.msk [vmem:[%s179 + $0x97] sm:$0x1] %vm180, 0.0
      %188 = vst.msk [vmem:[%s179 + $0xaf] sm:$0x1] %vm180, 0.0
      %189 = vst.msk [vmem:[%s179 + $0x10] sm:$0x1] %vm180, 0.0
      %190 = vst.msk [vmem:[%s179 + $0x28] sm:$0x1] %vm180, 0.0
      %191 = vst.msk [vmem:[%s179 + $0x40] sm:$0x1] %vm180, 0.0
      %192 = vst.msk [vmem:[%s179 + $0x58] sm:$0x1] %vm180, 0.0
      %193 = vst.msk [vmem:[%s179 + $0x70] sm:$0x1] %vm180, 0.0
      %194 = vst.msk [vmem:[%s179 + $0x88] sm:$0x1] %vm180, 0.0
      %195 = vst.msk [vmem:[%s179 + $0xa0] sm:$0x1] %vm180, 0.0
      %196 = vst.msk [vmem:[%s179 + $0xb8] sm:$0x1] %vm180, 0.0
      %v197 = vld [vmem:[%s165] sm:$0xff]
      %v198 = vld [vmem:[%s165 + $0x8] sm:$0xff]
      %v199 = vld [vmem:[%s165 + $0x10] sm:$0xff]
      %v200 = vld [vmem:[%s165 + $0x18] sm:$0xff]
      %v201 = vld [vmem:[%s165 + $0x20] sm:$0xff]
      %v202 = vld [vmem:[%s165 + $0x28] sm:$0xff]
      %v203 = vld [vmem:[%s165 + $0x30] sm:$0xff]
      %v204 = vld [vmem:[%s165 + $0x38] sm:$0xff]
      %205 = vst.msk [vmem:[%s179 + $0x8] sm:$0xff] %vm172, %v197
      %206 = vst.msk [vmem:[%s179 + $0x20] sm:$0xff] %vm172, %v198
      %207 = vst.msk [vmem:[%s179 + $0x38] sm:$0xff] %vm172, %v199
      %208 = vst.msk [vmem:[%s179 + $0x50] sm:$0xff] %vm172, %v200
      %209 = vst.msk [vmem:[%s179 + $0x68] sm:$0xff] %vm172, %v201
      %210 = vst.msk [vmem:[%s179 + $0x80] sm:$0xff] %vm172, %v202
      %211 = vst.msk [vmem:[%s179 + $0x98] sm:$0xff] %vm172, %v203
      %212 = vst.msk [vmem:[%s179 + $0xb0] sm:$0xff] %vm172, %v204
      %v213 = vld [vmem:[#allocation2 + $0x7] sm:$0xff]
      %v214 = vld [vmem:[#allocation2 + $0x1f] sm:$0xff]
      %v215 = vld [vmem:[#allocation2 + $0x37] sm:$0xff]
      %v216 = vld [vmem:[#allocation2 + $0x4f] sm:$0xff]
      %v217 = vld [vmem:[#allocation2 + $0x67] sm:$0xff]
      %v218 = vld [vmem:[#allocation2 + $0x7f] sm:$0xff]
      %v219 = vld [vmem:[#allocation2 + $0x97] sm:$0xff]
      %v220 = vld [vmem:[#allocation2 + $0xaf] sm:$0xff]
      %v221 = vld [vmem:[#allocation2 + $0x8] sm:$0xff]
      %v222 = vld [vmem:[#allocation2 + $0x20] sm:$0xff]
      %v223 = vld [vmem:[#allocation2 + $0x38] sm:$0xff]
      %v224 = vld [vmem:[#allocation2 + $0x50] sm:$0xff]
      %v225 = vld [vmem:[#allocation2 + $0x68] sm:$0xff]
      %v226 = vld [vmem:[#allocation2 + $0x80] sm:$0xff]
      %v227 = vld [vmem:[#allocation2 + $0x98] sm:$0xff]
      %v228 = vld [vmem:[#allocation2 + $0xb0] sm:$0xff]
      %v229 = vld [vmem:[#allocation2 + $0x9] sm:$0xff]
      %v230 = vld [vmem:[#allocation2 + $0x21] sm:$0xff]
      %v231 = vld [vmem:[#allocation2 + $0x39] sm:$0xff]
      %v232 = vld [vmem:[#allocation2 + $0x51] sm:$0xff]
      %v233 = vld [vmem:[#allocation2 + $0x69] sm:$0xff]
      %v234 = vld [vmem:[#allocation2 + $0x81] sm:$0xff]
      %v235 = vld [vmem:[#allocation2 + $0x99] sm:$0xff]
      %v236 = vld [vmem:[#allocation2 + $0xb1] sm:$0xff]
      %v237 = vld [vmem:[%s179 + $0x7] sm:$0xff]
      %v238 = vld [vmem:[%s179 + $0x1f] sm:$0xff]
      %v239 = vld [vmem:[%s179 + $0x37] sm:$0xff]
      %v240 = vld [vmem:[%s179 + $0x4f] sm:$0xff]
      %v241 = vld [vmem:[%s179 + $0x67] sm:$0xff]
      %v242 = vld [vmem:[%s179 + $0x7f] sm:$0xff]
      %v243 = vld [vmem:[%s179 + $0x97] sm:$0xff]
      %v244 = vld [vmem:[%s179 + $0xaf] sm:$0xff]
      %v245 = vld [vmem:[%s179 + $0x8] sm:$0xff]
      %v246 = vld [vmem:[%s179 + $0x20] sm:$0xff]
      %v247 = vld [vmem:[%s179 + $0x38] sm:$0xff]
      %v248 = vld [vmem:[%s179 + $0x50] sm:$0xff]
      %v249 = vld [vmem:[%s179 + $0x68] sm:$0xff]
      %v250 = vld [vmem:[%s179 + $0x80] sm:$0xff]
      %v251 = vld [vmem:[%s179 + $0x98] sm:$0xff]
      %v252 = vld [vmem:[%s179 + $0xb0] sm:$0xff]
      %v253 = vld [vmem:[%s179 + $0x9] sm:$0xff]
      %v254 = vld [vmem:[%s179 + $0x21] sm:$0xff]
      %v255 = vld [vmem:[%s179 + $0x39] sm:$0xff]
      %v256 = vld [vmem:[%s179 + $0x51] sm:$0xff]
      %v257 = vld [vmem:[%s179 + $0x69] sm:$0xff]
      %v258 = vld [vmem:[%s179 + $0x81] sm:$0xff]
      %v259 = vld [vmem:[%s179 + $0x99] sm:$0xff]
      %v260 = vld [vmem:[%s179 + $0xb1] sm:$0xff]
      %s261 = scalar_lea.vmem [#allocation2], 48
      %v262 = vld [vmem:[%s261 + $0x7] sm:$0xff]
      %v263 = vld [vmem:[%s261 + $0x1f] sm:$0xff]
      %v264 = vld [vmem:[%s261 + $0x37] sm:$0xff]
      %v265 = vld [vmem:[%s261 + $0x4f] sm:$0xff]
      %v266 = vld [vmem:[%s261 + $0x67] sm:$0xff]
      %v267 = vld [vmem:[%s261 + $0x7f] sm:$0xff]
      %v268 = vld [vmem:[%s261 + $0x97] sm:$0xff]
      %v269 = vld [vmem:[%s261 + $0xaf] sm:$0xff]
      %v270 = vld [vmem:[%s261 + $0x8] sm:$0xff]
      %v271 = vld [vmem:[%s261 + $0x20] sm:$0xff]
      %v272 = vld [vmem:[%s261 + $0x38] sm:$0xff]
      %v273 = vld [vmem:[%s261 + $0x50] sm:$0xff]
      %v274 = vld [vmem:[%s261 + $0x68] sm:$0xff]
      %v275 = vld [vmem:[%s261 + $0x80] sm:$0xff]
      %v276 = vld [vmem:[%s261 + $0x98] sm:$0xff]
      %v277 = vld [vmem:[%s261 + $0xb0] sm:$0xff]
      %v278 = vld [vmem:[%s261 + $0x9] sm:$0xff]
      %v279 = vld [vmem:[%s261 + $0x21] sm:$0xff]
      %v280 = vld [vmem:[%s261 + $0x39] sm:$0xff]
      %v281 = vld [vmem:[%s261 + $0x51] sm:$0xff]
      %v282 = vld [vmem:[%s261 + $0x69] sm:$0xff]
      %v283 = vld [vmem:[%s261 + $0x81] sm:$0xff]
      %v284 = vld [vmem:[%s261 + $0x99] sm:$0xff]
      %v285 = vld [vmem:[%s261 + $0xb1] sm:$0xff]
      %v286 = vpack.c.bf16 %v213, %v213
      %v287 = vpack.c.bf16 %v214, %v214
      %v288 = vpack.c.bf16 %v215, %v215
      %v289 = vpack.c.bf16 %v216, %v216
      %v290 = vpack.c.bf16 %v217, %v217
      %v291 = vpack.c.bf16 %v218, %v218
      %v292 = vpack.c.bf16 %v219, %v219
      %v293 = vpack.c.bf16 %v220, %v220
      %v294 = vpack.c.bf16 %v221, %v221
      %v295 = vpack.c.bf16 %v222, %v222
      %v296 = vpack.c.bf16 %v223, %v223
      %v297 = vpack.c.bf16 %v224, %v224
      %v298 = vpack.c.bf16 %v225, %v225
      %v299 = vpack.c.bf16 %v226, %v226
      %v300 = vpack.c.bf16 %v227, %v227
      %v301 = vpack.c.bf16 %v228, %v228
      %v302 = vpack.c.bf16 %v229, %v229
      %v303 = vpack.c.bf16 %v230, %v230
      %v304 = vpack.c.bf16 %v231, %v231
      %v305 = vpack.c.bf16 %v232, %v232
      %v306 = vpack.c.bf16 %v233, %v233
      %v307 = vpack.c.bf16 %v234, %v234
      %v308 = vpack.c.bf16 %v235, %v235
      %v309 = vpack.c.bf16 %v236, %v236
      %v310 = vpack.c.bf16 %v237, %v237
      %v311 = vpack.c.bf16 %v238, %v238
      %v312 = vpack.c.bf16 %v239, %v239
      %v313 = vpack.c.bf16 %v240, %v240
      %v314 = vpack.c.bf16 %v241, %v241
      %v315 = vpack.c.bf16 %v242, %v242
      %v316 = vpack.c.bf16 %v243, %v243
      %v317 = vpack.c.bf16 %v244, %v244
      %v318 = vpack.c.bf16 %v245, %v245
      %v319 = vpack.c.bf16 %v246, %v246
      %v320 = vpack.c.bf16 %v247, %v247
      %v321 = vpack.c.bf16 %v248, %v248
      %v322 = vpack.c.bf16 %v249, %v249
      %v323 = vpack.c.bf16 %v250, %v250
      %v324 = vpack.c.bf16 %v251, %v251
      %v325 = vpack.c.bf16 %v252, %v252
      %v326 = vpack.c.bf16 %v253, %v253
      %v327 = vpack.c.bf16 %v254, %v254
      %v328 = vpack.c.bf16 %v255, %v255
      %v329 = vpack.c.bf16 %v256, %v256
      %v330 = vpack.c.bf16 %v257, %v257
      %v331 = vpack.c.bf16 %v258, %v258
      %v332 = vpack.c.bf16 %v259, %v259
      %v333 = vpack.c.bf16 %v260, %v260
      %v334 = vpack.c.bf16 %v262, %v262
      %v335 = vpack.c.bf16 %v263, %v263
      %v336 = vpack.c.bf16 %v264, %v264
      %v337 = vpack.c.bf16 %v265, %v265
      %v338 = vpack.c.bf16 %v266, %v266
      %v339 = vpack.c.bf16 %v267, %v267
      %v340 = vpack.c.bf16 %v268, %v268
      %v341 = vpack.c.bf16 %v269, %v269
      %v342 = vpack.c.bf16 %v270, %v270
      %v343 = vpack.c.bf16 %v271, %v271
      %v344 = vpack.c.bf16 %v272, %v272
      %v345 = vpack.c.bf16 %v273, %v273
      %v346 = vpack.c.bf16 %v274, %v274
      %v347 = vpack.c.bf16 %v275, %v275
      %v348 = vpack.c.bf16 %v276, %v276
      %v349 = vpack.c.bf16 %v277, %v277
      %v350 = vpack.c.bf16 %v278, %v278
      %v351 = vpack.c.bf16 %v279, %v279
      %v352 = vpack.c.bf16 %v280, %v280
      %v353 = vpack.c.bf16 %v281, %v281
      %v354 = vpack.c.bf16 %v282, %v282
      %v355 = vpack.c.bf16 %v283, %v283
      %v356 = vpack.c.bf16 %v284, %v284
      %v357 = vpack.c.bf16 %v285, %v285
      %v366 = vunpack.c.l.b16 %v286
      %v367 = vunpack.c.l.b16 %v287
      %v368 = vunpack.c.l.b16 %v288
      %v369 = vunpack.c.l.b16 %v289
      %v370 = vunpack.c.l.b16 %v290
      %v371 = vunpack.c.l.b16 %v291
      %v372 = vunpack.c.l.b16 %v292
      %v373 = vunpack.c.l.b16 %v293
      %v374 = vpack.c.b16 %v367, %v366
      %v375 = vpack.c.b16 %v369, %v368
      %v376 = vpack.c.b16 %v371, %v370
      %v377 = vpack.c.b16 %v373, %v372
      %v386 = vunpack.c.l.b16 %v294
      %v387 = vunpack.c.l.b16 %v295
      %v388 = vunpack.c.l.b16 %v296
      %v389 = vunpack.c.l.b16 %v297
      %v390 = vunpack.c.l.b16 %v298
      %v391 = vunpack.c.l.b16 %v299
      %v392 = vunpack.c.l.b16 %v300
      %v393 = vunpack.c.l.b16 %v301
      %v394 = vpack.c.b16 %v387, %v386
      %v395 = vpack.c.b16 %v389, %v388
      %v396 = vpack.c.b16 %v391, %v390
      %v397 = vpack.c.b16 %v393, %v392
      %398 = vrot.lane.b32.xlu0 %v394, 32
      %v399 = vpop.permute.xlu0 %398
      %400 = vrot.lane.b32.xlu0 %v395, 32
      %v401 = vpop.permute.xlu0 %400
      %402 = vrot.lane.b32.xlu0 %v396, 32
      %v403 = vpop.permute.xlu0 %402
      %404 = vrot.lane.b32.xlu0 %v397, 32
      %v405 = vpop.permute.xlu0 %404
      %v414 = vunpack.c.l.b16 %v302
      %v415 = vunpack.c.l.b16 %v303
      %v416 = vunpack.c.l.b16 %v304
      %v417 = vunpack.c.l.b16 %v305
      %v418 = vunpack.c.l.b16 %v306
      %v419 = vunpack.c.l.b16 %v307
      %v420 = vunpack.c.l.b16 %v308
      %v421 = vunpack.c.l.b16 %v309
      %v422 = vpack.c.b16 %v415, %v414
      %v423 = vpack.c.b16 %v417, %v416
      %v424 = vpack.c.b16 %v419, %v418
      %v425 = vpack.c.b16 %v421, %v420
      %426 = vrot.lane.b32.xlu0 %v422, 64
      %v427 = vpop.permute.xlu0 %426
      %428 = vrot.lane.b32.xlu0 %v423, 64
      %v429 = vpop.permute.xlu0 %428
      %430 = vrot.lane.b32.xlu0 %v424, 64
      %v431 = vpop.permute.xlu0 %430
      %432 = vrot.lane.b32.xlu0 %v425, 64
      %v433 = vpop.permute.xlu0 %432
      %v442 = vunpack.c.l.b16 %v310
      %v443 = vunpack.c.l.b16 %v311
      %v444 = vunpack.c.l.b16 %v312
      %v445 = vunpack.c.l.b16 %v313
      %v446 = vunpack.c.l.b16 %v314
      %v447 = vunpack.c.l.b16 %v315
      %v448 = vunpack.c.l.b16 %v316
      %v449 = vunpack.c.l.b16 %v317
      %v450 = vpack.c.b16 %v443, %v442
      %v451 = vpack.c.b16 %v445, %v444
      %v452 = vpack.c.b16 %v447, %v446
      %v453 = vpack.c.b16 %v449, %v448
      %454 = vrot.lane.b32.xlu0 %v450, 96
      %v455 = vpop.permute.xlu0 %454
      %456 = vrot.lane.b32.xlu0 %v451, 96
      %v457 = vpop.permute.xlu0 %456
      %458 = vrot.lane.b32.xlu0 %v452, 96
      %v459 = vpop.permute.xlu0 %458
      %460 = vrot.lane.b32.xlu0 %v453, 96
      %v461 = vpop.permute.xlu0 %460
      %v470 = vunpack.c.l.b16 %v318
      %v471 = vunpack.c.l.b16 %v319
      %v472 = vunpack.c.l.b16 %v320
      %v473 = vunpack.c.l.b16 %v321
      %v474 = vunpack.c.l.b16 %v322
      %v475 = vunpack.c.l.b16 %v323
      %v476 = vunpack.c.l.b16 %v324
      %v477 = vunpack.c.l.b16 %v325
      %v478 = vpack.c.b16 %v471, %v470
      %v479 = vpack.c.b16 %v473, %v472
      %v480 = vpack.c.b16 %v475, %v474
      %v481 = vpack.c.b16 %v477, %v476
      %v490 = vunpack.c.l.b16 %v326
      %v491 = vunpack.c.l.b16 %v327
      %v492 = vunpack.c.l.b16 %v328
      %v493 = vunpack.c.l.b16 %v329
      %v494 = vunpack.c.l.b16 %v330
      %v495 = vunpack.c.l.b16 %v331
      %v496 = vunpack.c.l.b16 %v332
      %v497 = vunpack.c.l.b16 %v333
      %v498 = vpack.c.b16 %v491, %v490
      %v499 = vpack.c.b16 %v493, %v492
      %v500 = vpack.c.b16 %v495, %v494
      %v501 = vpack.c.b16 %v497, %v496
      %502 = vrot.lane.b32.xlu0 %v498, 32
      %v503 = vpop.permute.xlu0 %502
      %504 = vrot.lane.b32.xlu0 %v499, 32
      %v505 = vpop.permute.xlu0 %504
      %506 = vrot.lane.b32.xlu0 %v500, 32
      %v507 = vpop.permute.xlu0 %506
      %508 = vrot.lane.b32.xlu0 %v501, 32
      %v509 = vpop.permute.xlu0 %508
      %v518 = vunpack.c.l.b16 %v334
      %v519 = vunpack.c.l.b16 %v335
      %v520 = vunpack.c.l.b16 %v336
      %v521 = vunpack.c.l.b16 %v337
      %v522 = vunpack.c.l.b16 %v338
      %v523 = vunpack.c.l.b16 %v339
      %v524 = vunpack.c.l.b16 %v340
      %v525 = vunpack.c.l.b16 %v341
      %v526 = vpack.c.b16 %v519, %v518
      %v527 = vpack.c.b16 %v521, %v520
      %v528 = vpack.c.b16 %v523, %v522
      %v529 = vpack.c.b16 %v525, %v524
      %530 = vrot.lane.b32.xlu0 %v526, 64
      %v531 = vpop.permute.xlu0 %530
      %532 = vrot.lane.b32.xlu0 %v527, 64
      %v533 = vpop.permute.xlu0 %532
      %534 = vrot.lane.b32.xlu0 %v528, 64
      %v535 = vpop.permute.xlu0 %534
      %536 = vrot.lane.b32.xlu0 %v529, 64
      %v537 = vpop.permute.xlu0 %536
      %v546 = vunpack.c.l.b16 %v342
      %v547 = vunpack.c.l.b16 %v343
      %v548 = vunpack.c.l.b16 %v344
      %v549 = vunpack.c.l.b16 %v345
      %v550 = vunpack.c.l.b16 %v346
      %v551 = vunpack.c.l.b16 %v347
      %v552 = vunpack.c.l.b16 %v348
      %v553 = vunpack.c.l.b16 %v349
      %v554 = vpack.c.b16 %v547, %v546
      %v555 = vpack.c.b16 %v549, %v548
      %v556 = vpack.c.b16 %v551, %v550
      %v557 = vpack.c.b16 %v553, %v552
      %558 = vrot.lane.b32.xlu0 %v554, 96
      %v559 = vpop.permute.xlu0 %558
      %560 = vrot.lane.b32.xlu0 %v555, 96
      %v561 = vpop.permute.xlu0 %560
      %562 = vrot.lane.b32.xlu0 %v556, 96
      %v563 = vpop.permute.xlu0 %562
      %564 = vrot.lane.b32.xlu0 %v557, 96
      %v565 = vpop.permute.xlu0 %564
      %v574 = vunpack.c.l.b16 %v350
      %v575 = vunpack.c.l.b16 %v351
      %v576 = vunpack.c.l.b16 %v352
      %v577 = vunpack.c.l.b16 %v353
      %v578 = vunpack.c.l.b16 %v354
      %v579 = vunpack.c.l.b16 %v355
      %v580 = vunpack.c.l.b16 %v356
      %v581 = vunpack.c.l.b16 %v357
      %v582 = vpack.c.b16 %v575, %v574
      %v583 = vpack.c.b16 %v577, %v576
      %v584 = vpack.c.b16 %v579, %v578
      %v585 = vpack.c.b16 %v581, %v580
      %v588 = vsel %vm172, %v374, %v399
      %v591 = vsel %vm172, %v375, %v401
      %v594 = vsel %vm172, %v376, %v403
      %v597 = vsel %vm172, %v377, %v405
      %vm598 = vcmask 523264
      %v600 = vsel %vm598, %v588, %v427
      %v602 = vsel %vm598, %v591, %v429
      %v604 = vsel %vm598, %v594, %v431
      %v606 = vsel %vm598, %v597, %v433
      %vm607 = vcmask 785408
      %v609 = vsel %vm607, %v600, %v455
      %v612 = vsel %vm607, %v602, %v457
      %v615 = vsel %vm607, %v604, %v459
      %v618 = vsel %vm607, %v606, %v461
      %v622 = vsel %vm172, %v478, %v503
      %v625 = vsel %vm172, %v479, %v505
      %v628 = vsel %vm172, %v480, %v507
      %v631 = vsel %vm172, %v481, %v509
      %v633 = vsel %vm598, %v622, %v531
      %v635 = vsel %vm598, %v625, %v533
      %v637 = vsel %vm598, %v628, %v535
      %v639 = vsel %vm598, %v631, %v537
      %v641 = vsel %vm607, %v633, %v559
      %v644 = vsel %vm607, %v635, %v561
      %v647 = vsel %vm607, %v637, %v563
      %v650 = vsel %vm607, %v639, %v565
      %v652 = vld [vmem:[%s1] sm:$0xf]
      %v653 = vld [vmem:[%s1 + $0x4] sm:$0xf]
      %v654 = vld [vmem:[%s1 + $0x8] sm:$0xf]
      %v655 = vld [vmem:[%s1 + $0xc] sm:$0xf]
      %v656 = vld [vmem:[%s1 + $0x10] sm:$0xf]
      %v657 = vld [vmem:[%s1 + $0x14] sm:$0xf]
      %v658 = vld [vmem:[%s1 + $0x18] sm:$0xf]
      %v659 = vld [vmem:[%s1 + $0x1c] sm:$0xf]
      %v660 = vld [vmem:[%s1 + $0x20] sm:$0xf]
      %v661 = vld [vmem:[%s1 + $0x24] sm:$0xf]
      %v662 = vld [vmem:[%s1 + $0x28] sm:$0xf]
      %v663 = vld [vmem:[%s1 + $0x2c] sm:$0xf]
      %v664 = vld [vmem:[%s1 + $0x30] sm:$0xf]
      %v665 = vld [vmem:[%s1 + $0x34] sm:$0xf]
      %v666 = vld [vmem:[%s1 + $0x38] sm:$0xf]
      %v667 = vld [vmem:[%s1 + $0x3c] sm:$0xf]
      %v668 = vld [vmem:[%s1 + $0x40] sm:$0xf]
      %v669 = vld [vmem:[%s1 + $0x44] sm:$0xf]
      %v670 = vld [vmem:[%s1 + $0x48] sm:$0xf]
      %v671 = vld [vmem:[%s1 + $0x4c] sm:$0xf]
      %v672 = vld [vmem:[%s1 + $0x50] sm:$0xf]
      %v673 = vld [vmem:[%s1 + $0x54] sm:$0xf]
      %v674 = vld [vmem:[%s1 + $0x58] sm:$0xf]
      %v675 = vld [vmem:[%s1 + $0x5c] sm:$0xf]
      %v676 = vld [vmem:[%s1 + $0x60] sm:$0xf]
      %v677 = vld [vmem:[%s1 + $0x64] sm:$0xf]
      %v678 = vld [vmem:[%s1 + $0x68] sm:$0xf]
      %v679 = vld [vmem:[%s1 + $0x6c] sm:$0xf]
      %v680 = vld [vmem:[%s1 + $0x70] sm:$0xf]
      %v681 = vld [vmem:[%s1 + $0x74] sm:$0xf]
      %v682 = vld [vmem:[%s1 + $0x78] sm:$0xf]
      %v683 = vld [vmem:[%s1 + $0x7c] sm:$0xf]
      %v684 = vld [vmem:[%s1 + $0x80] sm:$0xf]
      %v685 = vld [vmem:[%s1 + $0x84] sm:$0xf]
      %v686 = vld [vmem:[%s1 + $0x88] sm:$0xf]
      %v687 = vld [vmem:[%s1 + $0x8c] sm:$0xf]
      %v688 = vld [vmem:[%s2] sm:$0x1]
      %v690 = vperm.slane %v688, 0
      %v728 = vunpack.c.l.b16 %v652
      %v729 = vunpack.c.l.b16 %v653
      %v730 = vunpack.c.l.b16 %v654
      %v731 = vunpack.c.l.b16 %v655
      %v732 = vunpack.c.l.b16 %v656
      %v733 = vunpack.c.l.b16 %v657
      %v734 = vunpack.c.l.b16 %v658
      %v735 = vunpack.c.l.b16 %v659
      %v736 = vunpack.c.l.b16 %v660
      %v737 = vunpack.c.l.b16 %v661
      %v738 = vunpack.c.l.b16 %v662
      %v739 = vunpack.c.l.b16 %v663
      %v740 = vunpack.c.l.b16 %v664
      %v741 = vunpack.c.l.b16 %v665
      %v742 = vunpack.c.l.b16 %v666
      %v743 = vunpack.c.l.b16 %v667
      %v744 = vunpack.c.l.b16 %v668
      %v745 = vunpack.c.l.b16 %v669
      %v746 = vunpack.c.l.b16 %v670
      %v747 = vunpack.c.l.b16 %v671
      %v748 = vunpack.c.l.b16 %v672
      %v749 = vunpack.c.l.b16 %v673
      %v750 = vunpack.c.l.b16 %v674
      %v751 = vunpack.c.l.b16 %v675
      %v752 = vunpack.c.l.b16 %v676
      %v753 = vunpack.c.l.b16 %v677
      %v754 = vunpack.c.l.b16 %v678
      %v755 = vunpack.c.l.b16 %v679
      %v756 = vunpack.c.l.b16 %v680
      %v757 = vunpack.c.l.b16 %v681
      %v758 = vunpack.c.l.b16 %v682
      %v759 = vunpack.c.l.b16 %v683
      %v760 = vunpack.c.l.b16 %v684
      %v761 = vunpack.c.l.b16 %v685
      %v762 = vunpack.c.l.b16 %v686
      %v763 = vunpack.c.l.b16 %v687
      %v764 = vpack.c.b16 %v729, %v728
      %v765 = vpack.c.b16 %v731, %v730
      %v766 = vpack.c.b16 %v733, %v732
      %v767 = vpack.c.b16 %v735, %v734
      %v768 = vpack.c.b16 %v737, %v736
      %v769 = vpack.c.b16 %v739, %v738
      %v770 = vpack.c.b16 %v741, %v740
      %v771 = vpack.c.b16 %v743, %v742
      %v772 = vpack.c.b16 %v745, %v744
      %v773 = vpack.c.b16 %v747, %v746
      %v774 = vpack.c.b16 %v749, %v748
      %v775 = vpack.c.b16 %v751, %v750
      %v776 = vpack.c.b16 %v753, %v752
      %v777 = vpack.c.b16 %v755, %v754
      %v778 = vpack.c.b16 %v757, %v756
      %v779 = vpack.c.b16 %v759, %v758
      %v780 = vpack.c.b16 %v761, %v760
      %v781 = vpack.c.b16 %v763, %v762
      %v801 = vsel %vm172, %v582, 0
      %v804 = vsel %vm172, %v583, 0
      %v807 = vsel %vm172, %v584, 0
      %v810 = vsel %vm172, %v585, 0
      %812 = vmatpush.bf16.msra.mxu0 %v771
      %813 = vmatpush.bf16.msra.mxu0 %v770
      %814 = vmatpush.bf16.msra.mxu0 %v769
      %815 = vmatpush.bf16.msra.mxu0 %v768
      %816 = vmatpush.bf16.msra.mxu0 %v767
      %817 = vmatpush.bf16.msra.mxu0 %v766
      %818 = vmatpush.bf16.msra.mxu0 %v765
      %819 = vmatpush.bf16.msra.mxu0 %v764
      %820 = vmatmul.bf16.gmra.mxu0 %v609
      %v821 = vpop.f32.mrf.mxu0
      %v822 = vadd.f32 %v690, %v821
      %v823 = vpop.f32.mrf.mxu0
      %v824 = vadd.f32 %v690, %v823
      %825 = vmatmul.bf16.gmra.mxu0 %v612
      %v826 = vpop.f32.mrf.mxu0
      %v827 = vadd.f32 %v690, %v826
      %v828 = vpop.f32.mrf.mxu0
      %v829 = vadd.f32 %v690, %v828
      %830 = vmatmul.bf16.gmra.mxu0 %v615
      %v831 = vpop.f32.mrf.mxu0
      %v832 = vadd.f32 %v690, %v831
      %v833 = vpop.f32.mrf.mxu0
      %v834 = vadd.f32 %v690, %v833
      %835 = vmatmul.bf16.gmra.mxu0 %v618
      %v836 = vpop.f32.mrf.mxu0
      %v837 = vadd.f32 %v690, %v836
      %v838 = vpop.f32.mrf.mxu0
      %v839 = vadd.f32 %v690, %v838
      %840 = vdwg.mxu0
      %841 = vmatpush.bf16.msra.mxu0 %v779
      %842 = vmatpush.bf16.msra.mxu0 %v778
      %843 = vmatpush.bf16.msra.mxu0 %v777
      %844 = vmatpush.bf16.msra.mxu0 %v776
      %845 = vmatpush.bf16.msra.mxu0 %v775
      %846 = vmatpush.bf16.msra.mxu0 %v774
      %847 = vmatpush.bf16.msra.mxu0 %v773
      %848 = vmatpush.bf16.msra.mxu0 %v772
      %849 = vmatmul.bf16.gmra.mxu0 %v641
      %v850 = vpop.f32.mrf.mxu0
      %v851 = vadd.f32 %v822, %v850
      %v852 = vpop.f32.mrf.mxu0
      %v853 = vadd.f32 %v824, %v852
      %854 = vmatmul.bf16.gmra.mxu0 %v644
      %v855 = vpop.f32.mrf.mxu0
      %v856 = vadd.f32 %v827, %v855
      %v857 = vpop.f32.mrf.mxu0
      %v858 = vadd.f32 %v829, %v857
      %859 = vmatmul.bf16.gmra.mxu0 %v647
      %v860 = vpop.f32.mrf.mxu0
      %v861 = vadd.f32 %v832, %v860
      %v862 = vpop.f32.mrf.mxu0
      %v863 = vadd.f32 %v834, %v862
      %864 = vmatmul.bf16.gmra.mxu0 %v650
      %v865 = vpop.f32.mrf.mxu0
      %v866 = vadd.f32 %v837, %v865
      %v867 = vpop.f32.mrf.mxu0
      %v868 = vadd.f32 %v839, %v867
      %869 = vdwg.mxu0
      %870 = vmatpush.bf16.msra.mxu0 0
      %871 = vmatpush.bf16.msra.mxu0 0
      %872 = vmatpush.bf16.msra.mxu0 0
      %873 = vmatpush.bf16.msra.mxu0 0
      %874 = vmatpush.bf16.msra.mxu0 0
      %875 = vmatpush.bf16.msra.mxu0 0
      %876 = vmatpush.bf16.msra.mxu0 %v781
      %877 = vmatpush.bf16.msra.mxu0 %v780
      %878 = vmatmul.bf16.gmra.mxu0 %v801
      %v879 = vpop.f32.mrf.mxu0
      %v880 = vadd.f32 %v851, %v879
      %v881 = vpop.f32.mrf.mxu0
      %v882 = vadd.f32 %v853, %v881
      %883 = vmatmul.bf16.gmra.mxu0 %v804
      %v884 = vpop.f32.mrf.mxu0
      %v885 = vadd.f32 %v856, %v884
      %v886 = vpop.f32.mrf.mxu0
      %v887 = vadd.f32 %v858, %v886
      %888 = vmatmul.bf16.gmra.mxu0 %v807
      %v889 = vpop.f32.mrf.mxu0
      %v890 = vadd.f32 %v861, %v889
      %v891 = vpop.f32.mrf.mxu0
      %v892 = vadd.f32 %v863, %v891
      %893 = vmatmul.bf16.gmra.mxu0 %v810
      %v894 = vpop.f32.mrf.mxu0
      %v895 = vadd.f32 %v866, %v894
      %v896 = vpop.f32.mrf.mxu0
      %v897 = vadd.f32 %v868, %v896
      %898 = vdwg.mxu0
      %899 = vst [vmem:[%s170] sm:$0xff] %v880
      %900 = vst [vmem:[%s170 + $0x8] sm:$0xff] %v882
      %901 = vst [vmem:[%s170 + $0x10] sm:$0xff] %v885
      %902 = vst [vmem:[%s170 + $0x18] sm:$0xff] %v887
      %903 = vst [vmem:[%s170 + $0x20] sm:$0xff] %v890
      %904 = vst [vmem:[%s170 + $0x28] sm:$0xff] %v892
      %905 = vst [vmem:[%s170 + $0x30] sm:$0xff] %v895
      %906 = vst [vmem:[%s170 + $0x38] sm:$0xff] %v897
      %p907 = scmp.lt.s32.totalorder %s14, 1
      %s908 = scalar_select %p907, %s14, 1
      %s909 = smul.addr %s908, 8
      %s910 = smul.addr %s909, 8
      %s911 = scalar_lea.vmem %s3, %s910
      // Predicated region
      $region33: #{xyj_forward.10} parent=31 // pred_check
        %p912 = pneg %p100
      $region34: #{xyj_forward.10} parent=31 // pred_check_branch
        %914 = sbr.rel (%p912) target = $region36
      $region35: #{xyj_forward.10} parent=31 // pred_region
        _
      $region36: #{xyj_forward.10} parent=31 // pred_fallthru
        _
    $region32: #{xyj_forward.10} parent=5 // pred_fallthru
      _
    %p915 = scmp.le.s32.totalorder 2, %s9
    // Predicated region
    $region37: #{xyj_forward.10} parent=5 // pred_check
      %p916 = pneg %p915
    $region38: #{xyj_forward.10} parent=5 // pred_check_branch
      %918 = sbr.rel (%p916) target = $region40
    $region39: #{xyj_forward.10} parent=5 // pred_region
      %s919 = ssub.s32 %s9, 2
      // Predicated region
      $region41: #{xyj_forward.10} parent=39 // pred_check
        %p920 = pneg %p106
      $region42: #{xyj_forward.10} parent=39 // pred_check_branch
        %922 = sbr.rel (%p920) target = $region44
      $region43: #{xyj_forward.10} parent=39 // pred_region
        %p923 = scmp.lt.s32.totalorder %s15, 1
        %s924 = scalar_select %p923, %s15, 1
        %s925 = smul.addr %s924, 8
        %s926 = smul.addr %s925, 8
        %s927 = scalar_lea.vmem %s3, %s926
      $region44: #{xyj_forward.10} parent=39 // pred_fallthru
        _
    $region40: #{xyj_forward.10} parent=5 // pred_fallthru
      _
  $region6: #{xyj_forward.10} parent=0 // loop_footer
    %s13 = sadd.s32 1, %s9
  $region7: #{xyj_forward.10} parent=0 // loop_footer_branch
    %8 = sbr.rel target = $region3
  $region8: #{xyj_forward.10} parent=0 // loop_exit
    _

// kernel: xyj_forward.9
$region0: #{xyj_forward.9}
  #allocation0 [shape = 'u32[]', space=smem, size = 0x4, offset = 0x4, fixed_abs, tag = 'smem constant byte address 0x4 - core index']
  #allocation1 [shape = 'u32[72,128]{1,0:T(1,128)}', space=vmem, size = 0x9000, scoped, tag = 'internal scratch']
  #allocation2 [shape = 'f32[10,17,32]{2,1,0:T(8,128)}', space=vmem, size = 0x1e000, scoped, tag = 'scratch operand']
  %s0 = inlined_call_operand.vmem [shape: f32[2,8,8,32], index: 0, kind: input, shape index: {}]
  %s1 = inlined_call_operand.vmem [shape: bf16[288,32], index: 1, kind: input, shape index: {}]
  %s2 = inlined_call_operand.vmem [shape: f32[1,32], index: 2, kind: input, shape index: {}]
  %s3 = inlined_call_operand.vmem [shape: f32[2,8,8,32], index: 3, kind: input, shape index: {}]
  %s4 = inlined_call_operand.vmem [shape: f32[2,8,8,32], index: 4, kind: output, shape index: {}]
  %s5 = sld [smem:[#allocation0]]
  $region49: #{xyj_forward.9} parent=0
    _
  %s7 = ssub.s32 1, %s5
  %s8 = scalar_select 0, %s7, %s5
  loop: start=0, step=1, limit=4
  $region2: #{xyj_forward.9} parent=0 // loop_pre_header
    _
  $region3: #{xyj_forward.9} parent=0 // loop_header
    %s10 = sphi 0, %s14
    %p11 = scmp.ge.s32.totalorder %s10, 4
    %s20 = sphi 0, %s22
    %s23 = sphi 0, %s20
    %s24 = sphi 0, %s23
    %s40 = sphi 0, %s24
    %s44 = sphi 0, %s44
    %s46 = sphi 0, %s44
    %s47 = sphi 0, %s46
    %s61 = sphi 0, %s47
    %s65 = sphi 0, %s65
    %s67 = sphi 0, %s65
    %s68 = sphi 0, %s67
    %s82 = sphi 0, %s68
    %s88 = sphi 0, %s90
    %s91 = sphi 0, %s88
    %s92 = sphi 0, %s91
    %s108 = sphi 0, %s92
    %s114 = sphi 0, %s116
    %s117 = sphi 0, %s114
    %s118 = sphi 0, %s117
    %s134 = sphi 0, %s118
  $region4: #{xyj_forward.9} parent=0 // loop_header_branch
    %13 = sbr.rel (%p11) target = $region8
  $region5: #{xyj_forward.9} parent=0 // loop_body
    %s15 = ssub.s32 %s10, 1
    %s16 = ssub.s32 %s10, 2
    %s17 = sadd.s32 %s10, 1
    %s18 = ssub.s32 %s10, %s17
    %p19 = scmp.eq.s32.totalorder %s18, 0
    %s21 = sadd.s32 %s20, 1
    %s22 = scalar_select %p19, %s20, %s21
    %p25 = pneg %p19
    %p26 = scmp.eq.s32.totalorder %s10, 1
    %p27 = por %p25, %p26
    %p28 = scmp.ne.s32.totalorder %s20, %s23
    %p29 = scmp.eq.s32.totalorder %s10, 0
    %p30 = por %p28, %p29
    %p31 = scmp.ne.s32.totalorder %s20, %s23
    %p32 = scmp.eq.s32.totalorder %s15, 1
    %p33 = por %p31, %p32
    %p34 = scmp.ne.s32.totalorder %s23, %s24
    %p35 = scmp.eq.s32.totalorder %s15, 0
    %p36 = por %p34, %p35
    %p37 = scmp.ne.s32.totalorder %s23, %s24
    %p38 = scmp.eq.s32.totalorder %s16, 1
    %p39 = por %p37, %p38
    %p41 = scmp.ne.s32.totalorder %s24, %s40
    %p42 = scmp.eq.s32.totalorder %s16, 0
    %p43 = por %p41, %p42
    %s45 = sadd.s32 %s44, 1
    %p48 = scmp.eq.s32.totalorder %s10, 1
    %p49 = scmp.ne.s32.totalorder %s44, %s46
    %p50 = scmp.eq.s32.totalorder %s10, 0
    %p51 = por %p49, %p50
    %p52 = scmp.ne.s32.totalorder %s44, %s46
    %p53 = scmp.eq.s32.totalorder %s15, 1
    %p54 = por %p52, %p53
    %p55 = scmp.ne.s32.totalorder %s46, %s47
    %p56 = scmp.eq.s32.totalorder %s15, 0
    %p57 = por %p55, %p56
    %p58 = scmp.ne.s32.totalorder %s46, %s47
    %p59 = scmp.eq.s32.totalorder %s16, 1
    %p60 = por %p58, %p59
    %p62 = scmp.ne.s32.totalorder %s47, %s61
    %p63 = scmp.eq.s32.totalorder %s16, 0
    %p64 = por %p62, %p63
    %s66 = sadd.s32 %s65, 1
    %p69 = scmp.eq.s32.totalorder %s10, 1
    %p70 = scmp.ne.s32.totalorder %s65, %s67
    %p71 = scmp.eq.s32.totalorder %s10, 0
    %p72 = por %p70, %p71
    %p73 = scmp.ne.s32.totalorder %s65, %s67
    %p74 = scmp.eq.s32.totalorder %s15, 1
    %p75 = por %p73, %p74
    %p76 = scmp.ne.s32.totalorder %s67, %s68
    %p77 = scmp.eq.s32.totalorder %s15, 0
    %p78 = por %p76, %p77
    %p79 = scmp.ne.s32.totalorder %s67, %s68
    %p80 = scmp.eq.s32.totalorder %s16, 1
    %p81 = por %p79, %p80
    %p83 = scmp.ne.s32.totalorder %s68, %s82
    %p84 = scmp.eq.s32.totalorder %s16, 0
    %p85 = por %p83, %p84
    %s86 = ssub.s32 %s10, %s17
    %p87 = scmp.eq.s32.totalorder %s86, 0
    %s89 = sadd.s32 %s88, 1
    %s90 = scalar_select %p87, %s88, %s89
    %p93 = pneg %p87
    %p94 = scmp.eq.s32.totalorder %s10, 1
    %p95 = por %p93, %p94
    %p96 = scmp.ne.s32.totalorder %s88, %s91
    %p97 = scmp.eq.s32.totalorder %s10, 0
    %p98 = por %p96, %p97
    %p99 = scmp.ne.s32.totalorder %s88, %s91
    %p100 = scmp.eq.s32.totalorder %s15, 1
    %p101 = por %p99, %p100
    %p102 = scmp.ne.s32.totalorder %s91, %s92
    %p103 = scmp.eq.s32.totalorder %s15, 0
    %p104 = por %p102, %p103
    %p105 = scmp.ne.s32.totalorder %s91, %s92
    %p106 = scmp.eq.s32.totalorder %s16, 1
    %p107 = por %p105, %p106
    %p109 = scmp.ne.s32.totalorder %s92, %s108
    %p110 = scmp.eq.s32.totalorder %s16, 0
    %p111 = por %p109, %p110
    %s112 = ssub.s32 %s10, %s17
    %p113 = scmp.eq.s32.totalorder %s112, 0
    %s115 = sadd.s32 %s114, 1
    %s116 = scalar_select %p113, %s114, %s115
    %p119 = pneg %p113
    %p120 = scmp.eq.s32.totalorder %s10, 1
    %p121 = por %p119, %p120
    %p122 = scmp.ne.s32.totalorder %s114, %s117
    %p123 = scmp.eq.s32.totalorder %s10, 0
    %p124 = por %p122, %p123
    %p125 = scmp.ne.s32.totalorder %s114, %s117
    %p126 = scmp.eq.s32.totalorder %s15, 1
    %p127 = por %p125, %p126
    %p128 = scmp.ne.s32.totalorder %s117, %s118
    %p129 = scmp.eq.s32.totalorder %s15, 0
    %p130 = por %p128, %p129
    %p131 = scmp.ne.s32.totalorder %s117, %s118
    %p132 = scmp.eq.s32.totalorder %s16, 1
    %p133 = por %p131, %p132
    %p135 = scmp.ne.s32.totalorder %s118, %s134
    %p136 = scmp.eq.s32.totalorder %s16, 0
    %p137 = por %p135, %p136
    %p138 = scmp.le.s32.totalorder 1, %s10
    %p139 = scmp.lt.s32.totalorder %s10, 3
    %p140 = pnand %p138, %p139
    %p141 = pneg %p140
    // Predicated region
    $region9: #{xyj_forward.9} parent=5 // pred_check
      _
    $region10: #{xyj_forward.9} parent=5 // pred_check_branch
      %143 = sbr.rel (%p140) target = $region12
    $region11: #{xyj_forward.9} parent=5 // pred_region
      %s144 = ssub.s32 %s10, 1
      // Predicated region
      $region13: #{xyj_forward.9} parent=11 // pred_check
        %p145 = pneg %p57
      $region14: #{xyj_forward.9} parent=11 // pred_check_branch
        %147 = sbr.rel (%p145) target = $region16
      $region15: #{xyj_forward.9} parent=11 // pred_region
        _
      $region16: #{xyj_forward.9} parent=11 // pred_fallthru
        _
      // Predicated region
      $region17: #{xyj_forward.9} parent=11 // pred_check
        %p148 = pneg %p78
      $region18: #{xyj_forward.9} parent=11 // pred_check_branch
        %150 = sbr.rel (%p148) target = $region20
      $region19: #{xyj_forward.9} parent=11 // pred_region
        _
      $region20: #{xyj_forward.9} parent=11 // pred_fallthru
        _
    $region12: #{xyj_forward.9} parent=5 // pred_fallthru
      _
    %p151 = scmp.lt.s32.totalorder %s10, 2
    // Predicated region
    $region21: #{xyj_forward.9} parent=5 // pred_check
      %p152 = pneg %p151
    $region22: #{xyj_forward.9} parent=5 // pred_check_branch
      %154 = sbr.rel (%p152) target = $region24
    $region23: #{xyj_forward.9} parent=5 // pred_region
      // Predicated region
      $region25: #{xyj_forward.9} parent=23 // pred_check
        %p155 = pneg %p30
      $region26: #{xyj_forward.9} parent=23 // pred_check_branch
        %157 = sbr.rel (%p155) target = $region28
      $region27: #{xyj_forward.9} parent=23 // pred_region
        %p158 = scmp.lt.s32.totalorder %s10, 1
        %s159 = scalar_select %p158, %s10, 1
        %s160 = smul.addr %s159, 8
        %s161 = smul.addr %s160, 8
        %s162 = scalar_lea.vmem %s0, %s161
      $region28: #{xyj_forward.9} parent=23 // pred_fallthru
        _
      // Predicated region
      $region29: #{xyj_forward.9} parent=23 // pred_check
        %p163 = pneg %p98
      $region30: #{xyj_forward.9} parent=23 // pred_check_branch
        %165 = sbr.rel (%p163) target = $region32
      $region31: #{xyj_forward.9} parent=23 // pred_region
        %p166 = scmp.lt.s32.totalorder %s10, 1
        %s167 = scalar_select %p166, %s10, 1
        %s168 = smul.addr %s167, 8
        %s169 = smul.addr %s168, 8
        %s170 = scalar_lea.vmem %s3, %s169
      $region32: #{xyj_forward.9} parent=23 // pred_fallthru
        _
    $region24: #{xyj_forward.9} parent=5 // pred_fallthru
      _
    %p171 = scmp.le.s32.totalorder 1, %s10
    %p172 = scmp.lt.s32.totalorder %s10, 3
    %p173 = pnand %p171, %p172
    %p174 = pneg %p173
    // Predicated region
    $region33: #{xyj_forward.9} parent=5 // pred_check
      _
    $region34: #{xyj_forward.9} parent=5 // pred_check_branch
      %176 = sbr.rel (%p173) target = $region36
    $region35: #{xyj_forward.9} parent=5 // pred_region
      %s177 = ssub.s32 %s10, 1
      %p178 = scmp.lt.s32.totalorder %s15, 1
      %s179 = scalar_select %p178, %s15, 1
      %s180 = smul.addr %s179, 8
      %s181 = smul.addr %s180, 8
      %s182 = scalar_lea.vmem %s0, %s181
      %p183 = pneg %p36
      %p184 = pneg %p33
      %p185 = pneg %p57
      %p186 = pneg %p54
      %p187 = pneg %p78
      %p188 = pneg %p75
      %p189 = scmp.lt.s32.totalorder %s15, 1
      %s190 = scalar_select %p189, %s15, 1
      %s191 = smul.addr %s190, 8
      %s192 = smul.addr %s191, 8
      %s193 = scalar_lea.vmem %s3, %s192
      %p194 = pneg %p104
      %p195 = pneg %p101
      %p196 = pneg %p130
      %p197 = pneg %p127
      %p198 = scmp.lt.s32.totalorder %s15, 1
      %s199 = scalar_select %p198, %s15, 1
      %s200 = smul.addr %s199, 8
      %s201 = smul.addr %s200, 8
      %s202 = scalar_lea.vmem %s4, %s201
      %p203 = scmp.lt.s32.totalorder %s15, 1
      %s204 = scalar_select %p203, %s15, 1
      %s205 = smul.addr %s204, 8
      %s206 = smul.addr %s205, 8
      %s207 = scalar_lea.vmem %s0, %s206
      %p208 = scmp.lt.s32.totalorder %s15, 1
      %s209 = scalar_select %p208, %s15, 1
      %s210 = smul.addr %s209, 8
      %s211 = smul.addr %s210, 8
      %s212 = scalar_lea.vmem %s3, %s211
      %p213 = scmp.lt.s32.totalorder %s15, 1
      %s214 = scalar_select %p213, %s15, 1
      %s215 = smul.addr %s214, 8
      %s216 = smul.addr %s215, 8
      %s217 = scalar_lea.vmem %s4, %s216
      %vm219 = vcmask 261120
      %220 = vst.msk [vmem:[#allocation2 + $0x7] sm:$0xff] %vm219, 0.0
      %vm221 = vcmask 254976
      %222 = vst.msk [vmem:[#allocation2 + $0xf] sm:$0x3] %vm221, 0.0
      %s223 = scalar_lea.vmem [#allocation2], 216
      %224 = vst.msk [vmem:[%s223 + $0x7] sm:$0xff] %vm219, 0.0
      %225 = vst.msk [vmem:[%s223 + $0xf] sm:$0x3] %vm221, 0.0
      %s226 = scalar_lea.vmem [#allocation2], 24
      %vm227 = vcmask 253952
      %228 = vst.msk [vmem:[%s226 + $0x7] sm:$0x1] %vm227, 0.0
      %229 = vst.msk [vmem:[%s226 + $0x1f] sm:$0x1] %vm227, 0.0
      %230 = vst.msk [vmem:[%s226 + $0x37] sm:$0x1] %vm227, 0.0
      %231 = vst.msk [vmem:[%s226 + $0x4f] sm:$0x1] %vm227, 0.0
      %232 = vst.msk [vmem:[%s226 + $0x67] sm:$0x1] %vm227, 0.0
      %233 = vst.msk [vmem:[%s226 + $0x7f] sm:$0x1] %vm227, 0.0
      %234 = vst.msk [vmem:[%s226 + $0x97] sm:$0x1] %vm227, 0.0
      %235 = vst.msk [vmem:[%s226 + $0xaf] sm:$0x1] %vm227, 0.0
      %236 = vst.msk [vmem:[%s226 + $0x10] sm:$0x1] %vm227, 0.0
      %237 = vst.msk [vmem:[%s226 + $0x28] sm:$0x1] %vm227, 0.0
      %238 = vst.msk [vmem:[%s226 + $0x40] sm:$0x1] %vm227, 0.0
      %239 = vst.msk [vmem:[%s226 + $0x58] sm:$0x1] %vm227, 0.0
      %240 = vst.msk [vmem:[%s226 + $0x70] sm:$0x1] %vm227, 0.0
      %241 = vst.msk [vmem:[%s226 + $0x88] sm:$0x1] %vm227, 0.0
      %242 = vst.msk [vmem:[%s226 + $0xa0] sm:$0x1] %vm227, 0.0
      %243 = vst.msk [vmem:[%s226 + $0xb8] sm:$0x1] %vm227, 0.0
      %v244 = vld [vmem:[%s207] sm:$0xff]
      %v245 = vld [vmem:[%s207 + $0x8] sm:$0xff]
      %v246 = vld [vmem:[%s207 + $0x10] sm:$0xff]
      %v247 = vld [vmem:[%s207 + $0x18] sm:$0xff]
      %v248 = vld [vmem:[%s207 + $0x20] sm:$0xff]
      %v249 = vld [vmem:[%s207 + $0x28] sm:$0xff]
      %v250 = vld [vmem:[%s207 + $0x30] sm:$0xff]
      %v251 = vld [vmem:[%s207 + $0x38] sm:$0xff]
      %252 = vst.msk [vmem:[%s226 + $0x8] sm:$0xff] %vm219, %v244
      %253 = vst.msk [vmem:[%s226 + $0x20] sm:$0xff] %vm219, %v245
      %254 = vst.msk [vmem:[%s226 + $0x38] sm:$0xff] %vm219, %v246
      %255 = vst.msk [vmem:[%s226 + $0x50] sm:$0xff] %vm219, %v247
      %256 = vst.msk [vmem:[%s226 + $0x68] sm:$0xff] %vm219, %v248
      %257 = vst.msk [vmem:[%s226 + $0x80] sm:$0xff] %vm219, %v249
      %258 = vst.msk [vmem:[%s226 + $0x98] sm:$0xff] %vm219, %v250
      %259 = vst.msk [vmem:[%s226 + $0xb0] sm:$0xff] %vm219, %v251
      %v260 = vld [vmem:[#allocation2 + $0x7] sm:$0xff]
      %v261 = vld [vmem:[#allocation2 + $0x1f] sm:$0xff]
      %v262 = vld [vmem:[#allocation2 + $0x37] sm:$0xff]
      %v263 = vld [vmem:[#allocation2 + $0x4f] sm:$0xff]
      %v264 = vld [vmem:[#allocation2 + $0x67] sm:$0xff]
      %v265 = vld [vmem:[#allocation2 + $0x7f] sm:$0xff]
      %v266 = vld [vmem:[#allocation2 + $0x97] sm:$0xff]
      %v267 = vld [vmem:[#allocation2 + $0xaf] sm:$0xff]
      %v268 = vld [vmem:[#allocation2 + $0x8] sm:$0xff]
      %v269 = vld [vmem:[#allocation2 + $0x20] sm:$0xff]
      %v270 = vld [vmem:[#allocation2 + $0x38] sm:$0xff]
      %v271 = vld [vmem:[#allocation2 + $0x50] sm:$0xff]
      %v272 = vld [vmem:[#allocation2 + $0x68] sm:$0xff]
      %v273 = vld [vmem:[#allocation2 + $0x80] sm:$0xff]
      %v274 = vld [vmem:[#allocation2 + $0x98] sm:$0xff]
      %v275 = vld [vmem:[#allocation2 + $0xb0] sm:$0xff]
      %v276 = vld [vmem:[#allocation2 + $0x9] sm:$0xff]
      %v277 = vld [vmem:[#allocation2 + $0x21] sm:$0xff]
      %v278 = vld [vmem:[#allocation2 + $0x39] sm:$0xff]
      %v279 = vld [vmem:[#allocation2 + $0x51] sm:$0xff]
      %v280 = vld [vmem:[#allocation2 + $0x69] sm:$0xff]
      %v281 = vld [vmem:[#allocation2 + $0x81] sm:$0xff]
      %v282 = vld [vmem:[#allocation2 + $0x99] sm:$0xff]
      %v283 = vld [vmem:[#allocation2 + $0xb1] sm:$0xff]
      %v284 = vld [vmem:[%s226 + $0x7] sm:$0xff]
      %v285 = vld [vmem:[%s226 + $0x1f] sm:$0xff]
      %v286 = vld [vmem:[%s226 + $0x37] sm:$0xff]
      %v287 = vld [vmem:[%s226 + $0x4f] sm:$0xff]
      %v288 = vld [vmem:[%s226 + $0x67] sm:$0xff]
      %v289 = vld [vmem:[%s226 + $0x7f] sm:$0xff]
      %v290 = vld [vmem:[%s226 + $0x97] sm:$0xff]
      %v291 = vld [vmem:[%s226 + $0xaf] sm:$0xff]
      %v292 = vld [vmem:[%s226 + $0x8] sm:$0xff]
      %v293 = vld [vmem:[%s226 + $0x20] sm:$0xff]
      %v294 = vld [vmem:[%s226 + $0x38] sm:$0xff]
      %v295 = vld [vmem:[%s226 + $0x50] sm:$0xff]
      %v296 = vld [vmem:[%s226 + $0x68] sm:$0xff]
      %v297 = vld [vmem:[%s226 + $0x80] sm:$0xff]
      %v298 = vld [vmem:[%s226 + $0x98] sm:$0xff]
      %v299 = vld [vmem:[%s226 + $0xb0] sm:$0xff]
      %v300 = vld [vmem:[%s226 + $0x9] sm:$0xff]
      %v301 = vld [vmem:[%s226 + $0x21] sm:$0xff]
      %v302 = vld [vmem:[%s226 + $0x39] sm:$0xff]
      %v303 = vld [vmem:[%s226 + $0x51] sm:$0xff]
      %v304 = vld [vmem:[%s226 + $0x69] sm:$0xff]
      %v305 = vld [vmem:[%s226 + $0x81] sm:$0xff]
      %v306 = vld [vmem:[%s226 + $0x99] sm:$0xff]
      %v307 = vld [vmem:[%s226 + $0xb1] sm:$0xff]
      %s308 = scalar_lea.vmem [#allocation2], 48
      %v309 = vld [vmem:[%s308 + $0x7] sm:$0xff]
      %v310 = vld [vmem:[%s308 + $0x1f] sm:$0xff]
      %v311 = vld [vmem:[%s308 + $0x37] sm:$0xff]
      %v312 = vld [vmem:[%s308 + $0x4f] sm:$0xff]
      %v313 = vld [vmem:[%s308 + $0x67] sm:$0xff]
      %v314 = vld [vmem:[%s308 + $0x7f] sm:$0xff]
      %v315 = vld [vmem:[%s308 + $0x97] sm:$0xff]
      %v316 = vld [vmem:[%s308 + $0xaf] sm:$0xff]
      %v317 = vld [vmem:[%s308 + $0x8] sm:$0xff]
      %v318 = vld [vmem:[%s308 + $0x20] sm:$0xff]
      %v319 = vld [vmem:[%s308 + $0x38] sm:$0xff]
      %v320 = vld [vmem:[%s308 + $0x50] sm:$0xff]
      %v321 = vld [vmem:[%s308 + $0x68] sm:$0xff]
      %v322 = vld [vmem:[%s308 + $0x80] sm:$0xff]
      %v323 = vld [vmem:[%s308 + $0x98] sm:$0xff]
      %v324 = vld [vmem:[%s308 + $0xb0] sm:$0xff]
      %v325 = vld [vmem:[%s308 + $0x9] sm:$0xff]
      %v326 = vld [vmem:[%s308 + $0x21] sm:$0xff]
      %v327 = vld [vmem:[%s308 + $0x39] sm:$0xff]
      %v328 = vld [vmem:[%s308 + $0x51] sm:$0xff]
      %v329 = vld [vmem:[%s308 + $0x69] sm:$0xff]
      %v330 = vld [vmem:[%s308 + $0x81] sm:$0xff]
      %v331 = vld [vmem:[%s308 + $0x99] sm:$0xff]
      %v332 = vld [vmem:[%s308 + $0xb1] sm:$0xff]
      %v333 = vpack.c.bf16 %v260, %v260
      %v334 = vpack.c.bf16 %v261, %v261
      %v335 = vpack.c.bf16 %v262, %v262
      %v336 = vpack.c.bf16 %v263, %v263
      %v337 = vpack.c.bf16 %v264, %v264
      %v338 = vpack.c.bf16 %v265, %v265
      %v339 = vpack.c.bf16 %v266, %v266
      %v340 = vpack.c.bf16 %v267, %v267
      %v341 = vpack.c.bf16 %v268, %v268
      %v342 = vpack.c.bf16 %v269, %v269
      %v343 = vpack.c.bf16 %v270, %v270
      %v344 = vpack.c.bf16 %v271, %v271
      %v345 = vpack.c.bf16 %v272, %v272
      %v346 = vpack.c.bf16 %v273, %v273
      %v347 = vpack.c.bf16 %v274, %v274
      %v348 = vpack.c.bf16 %v275, %v275
      %v349 = vpack.c.bf16 %v276, %v276
      %v350 = vpack.c.bf16 %v277, %v277
      %v351 = vpack.c.bf16 %v278, %v278
      %v352 = vpack.c.bf16 %v279, %v279
      %v353 = vpack.c.bf16 %v280, %v280
      %v354 = vpack.c.bf16 %v281, %v281
      %v355 = vpack.c.bf16 %v282, %v282
      %v356 = vpack.c.bf16 %v283, %v283
      %v357 = vpack.c.bf16 %v284, %v284
      %v358 = vpack.c.bf16 %v285, %v285
      %v359 = vpack.c.bf16 %v286, %v286
      %v360 = vpack.c.bf16 %v287, %v287
      %v361 = vpack.c.bf16 %v288, %v288
      %v362 = vpack.c.bf16 %v289, %v289
      %v363 = vpack.c.bf16 %v290, %v290
      %v364 = vpack.c.bf16 %v291, %v291
      %v365 = vpack.c.bf16 %v292, %v292
      %v366 = vpack.c.bf16 %v293, %v293
      %v367 = vpack.c.bf16 %v294, %v294
      %v368 = vpack.c.bf16 %v295, %v295
      %v369 = vpack.c.bf16 %v296, %v296
      %v370 = vpack.c.bf16 %v297, %v297
      %v371 = vpack.c.bf16 %v298, %v298
      %v372 = vpack.c.bf16 %v299, %v299
      %v373 = vpack.c.bf16 %v300, %v300
      %v374 = vpack.c.bf16 %v301, %v301
      %v375 = vpack.c.bf16 %v302, %v302
      %v376 = vpack.c.bf16 %v303, %v303
      %v377 = vpack.c.bf16 %v304, %v304
      %v378 = vpack.c.bf16 %v305, %v305
      %v379 = vpack.c.bf16 %v306, %v306
      %v380 = vpack.c.bf16 %v307, %v307
      %v381 = vpack.c.bf16 %v309, %v309
      %v382 = vpack.c.bf16 %v310, %v310
      %v383 = vpack.c.bf16 %v311, %v311
      %v384 = vpack.c.bf16 %v312, %v312
      %v385 = vpack.c.bf16 %v313, %v313
      %v386 = vpack.c.bf16 %v314, %v314
      %v387 = vpack.c.bf16 %v315, %v315
      %v388 = vpack.c.bf16 %v316, %v316
      %v389 = vpack.c.bf16 %v317, %v317
      %v390 = vpack.c.bf16 %v318, %v318
      %v391 = vpack.c.bf16 %v319, %v319
      %v392 = vpack.c.bf16 %v320, %v320
      %v393 = vpack.c.bf16 %v321, %v321
      %v394 = vpack.c.bf16 %v322, %v322
      %v395 = vpack.c.bf16 %v323, %v323
      %v396 = vpack.c.bf16 %v324, %v324
      %v397 = vpack.c.bf16 %v325, %v325
      %v398 = vpack.c.bf16 %v326, %v326
      %v399 = vpack.c.bf16 %v327, %v327
      %v400 = vpack.c.bf16 %v328, %v328
      %v401 = vpack.c.bf16 %v329, %v329
      %v402 = vpack.c.bf16 %v330, %v330
      %v403 = vpack.c.bf16 %v331, %v331
      %v404 = vpack.c.bf16 %v332, %v332
      %v413 = vunpack.c.l.b16 %v333
      %v414 = vunpack.c.l.b16 %v334
      %v415 = vunpack.c.l.b16 %v335
      %v416 = vunpack.c.l.b16 %v336
      %v417 = vunpack.c.l.b16 %v337
      %v418 = vunpack.c.l.b16 %v338
      %v419 = vunpack.c.l.b16 %v339
      %v420 = vunpack.c.l.b16 %v340
      %v421 = vpack.c.b16 %v414, %v413
      %v422 = vpack.c.b16 %v416, %v415
      %v423 = vpack.c.b16 %v418, %v417
      %v424 = vpack.c.b16 %v420, %v419
      %v433 = vunpack.c.l.b16 %v341
      %v434 = vunpack.c.l.b16 %v342
      %v435 = vunpack.c.l.b16 %v343
      %v436 = vunpack.c.l.b16 %v344
      %v437 = vunpack.c.l.b16 %v345
      %v438 = vunpack.c.l.b16 %v346
      %v439 = vunpack.c.l.b16 %v347
      %v440 = vunpack.c.l.b16 %v348
      %v441 = vpack.c.b16 %v434, %v433
      %v442 = vpack.c.b16 %v436, %v435
      %v443 = vpack.c.b16 %v438, %v437
      %v444 = vpack.c.b16 %v440, %v439
      %445 = vrot.lane.b32.xlu0 %v441, 32
      %v446 = vpop.permute.xlu0 %445
      %447 = vrot.lane.b32.xlu0 %v442, 32
      %v448 = vpop.permute.xlu0 %447
      %449 = vrot.lane.b32.xlu0 %v443, 32
      %v450 = vpop.permute.xlu0 %449
      %451 = vrot.lane.b32.xlu0 %v444, 32
      %v452 = vpop.permute.xlu0 %451
      %v461 = vunpack.c.l.b16 %v349
      %v462 = vunpack.c.l.b16 %v350
      %v463 = vunpack.c.l.b16 %v351
      %v464 = vunpack.c.l.b16 %v352
      %v465 = vunpack.c.l.b16 %v353
      %v466 = vunpack.c.l.b16 %v354
      %v467 = vunpack.c.l.b16 %v355
      %v468 = vunpack.c.l.b16 %v356
      %v469 = vpack.c.b16 %v462, %v461
      %v470 = vpack.c.b16 %v464, %v463
      %v471 = vpack.c.b16 %v466, %v465
      %v472 = vpack.c.b16 %v468, %v467
      %473 = vrot.lane.b32.xlu0 %v469, 64
      %v474 = vpop.permute.xlu0 %473
      %475 = vrot.lane.b32.xlu0 %v470, 64
      %v476 = vpop.permute.xlu0 %475
      %477 = vrot.lane.b32.xlu0 %v471, 64
      %v478 = vpop.permute.xlu0 %477
      %479 = vrot.lane.b32.xlu0 %v472, 64
      %v480 = vpop.permute.xlu0 %479
      %v489 = vunpack.c.l.b16 %v357
      %v490 = vunpack.c.l.b16 %v358
      %v491 = vunpack.c.l.b16 %v359
      %v492 = vunpack.c.l.b16 %v360
      %v493 = vunpack.c.l.b16 %v361
      %v494 = vunpack.c.l.b16 %v362
      %v495 = vunpack.c.l.b16 %v363
      %v496 = vunpack.c.l.b16 %v364
      %v497 = vpack.c.b16 %v490, %v489
      %v498 = vpack.c.b16 %v492, %v491
      %v499 = vpack.c.b16 %v494, %v493
      %v500 = vpack.c.b16 %v496, %v495
      %501 = vrot.lane.b32.xlu0 %v497, 96
      %v502 = vpop.permute.xlu0 %501
      %503 = vrot.lane.b32.xlu0 %v498, 96
      %v504 = vpop.permute.xlu0 %503
      %505 = vrot.lane.b32.xlu0 %v499, 96
      %v506 = vpop.permute.xlu0 %505
      %507 = vrot.lane.b32.xlu0 %v500, 96
      %v508 = vpop.permute.xlu0 %507
      %v517 = vunpack.c.l.b16 %v365
      %v518 = vunpack.c.l.b16 %v366
      %v519 = vunpack.c.l.b16 %v367
      %v520 = vunpack.c.l.b16 %v368
      %v521 = vunpack.c.l.b16 %v369
      %v522 = vunpack.c.l.b16 %v370
      %v523 = vunpack.c.l.b16 %v371
      %v524 = vunpack.c.l.b16 %v372
      %v525 = vpack.c.b16 %v518, %v517
      %v526 = vpack.c.b16 %v520, %v519
      %v527 = vpack.c.b16 %v522, %v521
      %v528 = vpack.c.b16 %v524, %v523
      %v537 = vunpack.c.l.b16 %v373
      %v538 = vunpack.c.l.b16 %v374
      %v539 = vunpack.c.l.b16 %v375
      %v540 = vunpack.c.l.b16 %v376
      %v541 = vunpack.c.l.b16 %v377
      %v542 = vunpack.c.l.b16 %v378
      %v543 = vunpack.c.l.b16 %v379
      %v544 = vunpack.c.l.b16 %v380
      %v545 = vpack.c.b16 %v538, %v537
      %v546 = vpack.c.b16 %v540, %v539
      %v547 = vpack.c.b16 %v542, %v541
      %v548 = vpack.c.b16 %v544, %v543
      %549 = vrot.lane.b32.xlu0 %v545, 32
      %v550 = vpop.permute.xlu0 %549
      %551 = vrot.lane.b32.xlu0 %v546, 32
      %v552 = vpop.permute.xlu0 %551
      %553 = vrot.lane.b32.xlu0 %v547, 32
      %v554 = vpop.permute.xlu0 %553
      %555 = vrot.lane.b32.xlu0 %v548, 32
      %v556 = vpop.permute.xlu0 %555
      %v565 = vunpack.c.l.b16 %v381
      %v566 = vunpack.c.l.b16 %v382
      %v567 = vunpack.c.l.b16 %v383
      %v568 = vunpack.c.l.b16 %v384
      %v569 = vunpack.c.l.b16 %v385
      %v570 = vunpack.c.l.b16 %v386
      %v571 = vunpack.c.l.b16 %v387
      %v572 = vunpack.c.l.b16 %v388
      %v573 = vpack.c.b16 %v566, %v565
      %v574 = vpack.c.b16 %v568, %v567
      %v575 = vpack.c.b16 %v570, %v569
      %v576 = vpack.c.b16 %v572, %v571
      %577 = vrot.lane.b32.xlu0 %v573, 64
      %v578 = vpop.permute.xlu0 %577
      %579 = vrot.lane.b32.xlu0 %v574, 64
      %v580 = vpop.permute.xlu0 %579
      %581 = vrot.lane.b32.xlu0 %v575, 64
      %v582 = vpop.permute.xlu0 %581
      %583 = vrot.lane.b32.xlu0 %v576, 64
      %v584 = vpop.permute.xlu0 %583
      %v593 = vunpack.c.l.b16 %v389
      %v594 = vunpack.c.l.b16 %v390
      %v595 = vunpack.c.l.b16 %v391
      %v596 = vunpack.c.l.b16 %v392
      %v597 = vunpack.c.l.b16 %v393
      %v598 = vunpack.c.l.b16 %v394
      %v599 = vunpack.c.l.b16 %v395
      %v600 = vunpack.c.l.b16 %v396
      %v601 = vpack.c.b16 %v594, %v593
      %v602 = vpack.c.b16 %v596, %v595
      %v603 = vpack.c.b16 %v598, %v597
      %v604 = vpack.c.b16 %v600, %v599
      %605 = vrot.lane.b32.xlu0 %v601, 96
      %v606 = vpop.permute.xlu0 %605
      %607 = vrot.lane.b32.xlu0 %v602, 96
      %v608 = vpop.permute.xlu0 %607
      %609 = vrot.lane.b32.xlu0 %v603, 96
      %v610 = vpop.permute.xlu0 %609
      %611 = vrot.lane.b32.xlu0 %v604, 96
      %v612 = vpop.permute.xlu0 %611
      %v621 = vunpack.c.l.b16 %v397
      %v622 = vunpack.c.l.b16 %v398
      %v623 = vunpack.c.l.b16 %v399
      %v624 = vunpack.c.l.b16 %v400
      %v625 = vunpack.c.l.b16 %v401
      %v626 = vunpack.c.l.b16 %v402
      %v627 = vunpack.c.l.b16 %v403
      %v628 = vunpack.c.l.b16 %v404
      %v629 = vpack.c.b16 %v622, %v621
      %v630 = vpack.c.b16 %v624, %v623
      %v631 = vpack.c.b16 %v626, %v625
      %v632 = vpack.c.b16 %v628, %v627
      %v635 = vsel %vm219, %v421, %v446
      %v638 = vsel %vm219, %v422, %v448
      %v641 = vsel %vm219, %v423, %v450
      %v644 = vsel %vm219, %v424, %v452
      %vm645 = vcmask 523264
      %v647 = vsel %vm645, %v635, %v474
      %v649 = vsel %vm645, %v638, %v476
      %v651 = vsel %vm645, %v641, %v478
      %v653 = vsel %vm645, %v644, %v480
      %vm654 = vcmask 785408
      %v656 = vsel %vm654, %v647, %v502
      %v659 = vsel %vm654, %v649, %v504
      %v662 = vsel %vm654, %v651, %v506
      %v665 = vsel %vm654, %v653, %v508
      %v669 = vsel %vm219, %v525, %v550
      %v672 = vsel %vm219, %v526, %v552
      %v675 = vsel %vm219, %v527, %v554
      %v678 = vsel %vm219, %v528, %v556
      %v680 = vsel %vm645, %v669, %v578
      %v682 = vsel %vm645, %v672, %v580
      %v684 = vsel %vm645, %v675, %v582
      %v686 = vsel %vm645, %v678, %v584
      %v688 = vsel %vm654, %v680, %v606
      %v691 = vsel %vm654, %v682, %v608
      %v694 = vsel %vm654, %v684, %v610
      %v697 = vsel %vm654, %v686, %v612
      %v699 = vld [vmem:[%s1] sm:$0xf]
      %v700 = vld [vmem:[%s1 + $0x4] sm:$0xf]
      %v701 = vld [vmem:[%s1 + $0x8] sm:$0xf]
      %v702 = vld [vmem:[%s1 + $0xc] sm:$0xf]
      %v703 = vld [vmem:[%s1 + $0x10] sm:$0xf]
      %v704 = vld [vmem:[%s1 + $0x14] sm:$0xf]
      %v705 = vld [vmem:[%s1 + $0x18] sm:$0xf]
      %v706 = vld [vmem:[%s1 + $0x1c] sm:$0xf]
      %v707 = vld [vmem:[%s1 + $0x20] sm:$0xf]
      %v708 = vld [vmem:[%s1 + $0x24] sm:$0xf]
      %v709 = vld [vmem:[%s1 + $0x28] sm:$0xf]
      %v710 = vld [vmem:[%s1 + $0x2c] sm:$0xf]
      %v711 = vld [vmem:[%s1 + $0x30] sm:$0xf]
      %v712 = vld [vmem:[%s1 + $0x34] sm:$0xf]
      %v713 = vld [vmem:[%s1 + $0x38] sm:$0xf]
      %v714 = vld [vmem:[%s1 + $0x3c] sm:$0xf]
      %v715 = vld [vmem:[%s1 + $0x40] sm:$0xf]
      %v716 = vld [vmem:[%s1 + $0x44] sm:$0xf]
      %v717 = vld [vmem:[%s1 + $0x48] sm:$0xf]
      %v718 = vld [vmem:[%s1 + $0x4c] sm:$0xf]
      %v719 = vld [vmem:[%s1 + $0x50] sm:$0xf]
      %v720 = vld [vmem:[%s1 + $0x54] sm:$0xf]
      %v721 = vld [vmem:[%s1 + $0x58] sm:$0xf]
      %v722 = vld [vmem:[%s1 + $0x5c] sm:$0xf]
      %v723 = vld [vmem:[%s1 + $0x60] sm:$0xf]
      %v724 = vld [vmem:[%s1 + $0x64] sm:$0xf]
      %v725 = vld [vmem:[%s1 + $0x68] sm:$0xf]
      %v726 = vld [vmem:[%s1 + $0x6c] sm:$0xf]
      %v727 = vld [vmem:[%s1 + $0x70] sm:$0xf]
      %v728 = vld [vmem:[%s1 + $0x74] sm:$0xf]
      %v729 = vld [vmem:[%s1 + $0x78] sm:$0xf]
      %v730 = vld [vmem:[%s1 + $0x7c] sm:$0xf]
      %v731 = vld [vmem:[%s1 + $0x80] sm:$0xf]
      %v732 = vld [vmem:[%s1 + $0x84] sm:$0xf]
      %v733 = vld [vmem:[%s1 + $0x88] sm:$0xf]
      %v734 = vld [vmem:[%s1 + $0x8c] sm:$0xf]
      %v735 = vld [vmem:[%s2] sm:$0x1]
      %v737 = vperm.slane %v735, 0
      %v775 = vunpack.c.l.b16 %v699
      %v776 = vunpack.c.l.b16 %v700
      %v777 = vunpack.c.l.b16 %v701
      %v778 = vunpack.c.l.b16 %v702
      %v779 = vunpack.c.l.b16 %v703
      %v780 = vunpack.c.l.b16 %v704
      %v781 = vunpack.c.l.b16 %v705
      %v782 = vunpack.c.l.b16 %v706
      %v783 = vunpack.c.l.b16 %v707
      %v784 = vunpack.c.l.b16 %v708
      %v785 = vunpack.c.l.b16 %v709
      %v786 = vunpack.c.l.b16 %v710
      %v787 = vunpack.c.l.b16 %v711
      %v788 = vunpack.c.l.b16 %v712
      %v789 = vunpack.c.l.b16 %v713
      %v790 = vunpack.c.l.b16 %v714
      %v791 = vunpack.c.l.b16 %v715
      %v792 = vunpack.c.l.b16 %v716
      %v793 = vunpack.c.l.b16 %v717
      %v794 = vunpack.c.l.b16 %v718
      %v795 = vunpack.c.l.b16 %v719
      %v796 = vunpack.c.l.b16 %v720
      %v797 = vunpack.c.l.b16 %v721
      %v798 = vunpack.c.l.b16 %v722
      %v799 = vunpack.c.l.b16 %v723
      %v800 = vunpack.c.l.b16 %v724
      %v801 = vunpack.c.l.b16 %v725
      %v802 = vunpack.c.l.b16 %v726
      %v803 = vunpack.c.l.b16 %v727
      %v804 = vunpack.c.l.b16 %v728
      %v805 = vunpack.c.l.b16 %v729
      %v806 = vunpack.c.l.b16 %v730
      %v807 = vunpack.c.l.b16 %v731
      %v808 = vunpack.c.l.b16 %v732
      %v809 = vunpack.c.l.b16 %v733
      %v810 = vunpack.c.l.b16 %v734
      %v811 = vpack.c.b16 %v776, %v775
      %v812 = vpack.c.b16 %v778, %v777
      %v813 = vpack.c.b16 %v780, %v779
      %v814 = vpack.c.b16 %v782, %v781
      %v815 = vpack.c.b16 %v784, %v783
      %v816 = vpack.c.b16 %v786, %v785
      %v817 = vpack.c.b16 %v788, %v787
      %v818 = vpack.c.b16 %v790, %v789
      %v819 = vpack.c.b16 %v792, %v791
      %v820 = vpack.c.b16 %v794, %v793
      %v821 = vpack.c.b16 %v796, %v795
      %v822 = vpack.c.b16 %v798, %v797
      %v823 = vpack.c.b16 %v800, %v799
      %v824 = vpack.c.b16 %v802, %v801
      %v825 = vpack.c.b16 %v804, %v803
      %v826 = vpack.c.b16 %v806, %v805
      %v827 = vpack.c.b16 %v808, %v807
      %v828 = vpack.c.b16 %v810, %v809
      %v848 = vsel %vm219, %v629, 0
      %v851 = vsel %vm219, %v630, 0
      %v854 = vsel %vm219, %v631, 0
      %v857 = vsel %vm219, %v632, 0
      %859 = vmatpush.bf16.msra.mxu0 %v818
      %860 = vmatpush.bf16.msra.mxu0 %v817
      %861 = vmatpush.bf16.msra.mxu0 %v816
      %862 = vmatpush.bf16.msra.mxu0 %v815
      %863 = vmatpush.bf16.msra.mxu0 %v814
      %864 = vmatpush.bf16.msra.mxu0 %v813
      %865 = vmatpush.bf16.msra.mxu0 %v812
      %866 = vmatpush.bf16.msra.mxu0 %v811
      %867 = vmatmul.bf16.gmra.mxu0 %v656
      %v868 = vpop.f32.mrf.mxu0
      %v869 = vadd.f32 %v737, %v868
      %v870 = vpop.f32.mrf.mxu0
      %v871 = vadd.f32 %v737, %v870
      %872 = vmatmul.bf16.gmra.mxu0 %v659
      %v873 = vpop.f32.mrf.mxu0
      %v874 = vadd.f32 %v737, %v873
      %v875 = vpop.f32.mrf.mxu0
      %v876 = vadd.f32 %v737, %v875
      %877 = vmatmul.bf16.gmra.mxu0 %v662
      %v878 = vpop.f32.mrf.mxu0
      %v879 = vadd.f32 %v737, %v878
      %v880 = vpop.f32.mrf.mxu0
      %v881 = vadd.f32 %v737, %v880
      %882 = vmatmul.bf16.gmra.mxu0 %v665
      %v883 = vpop.f32.mrf.mxu0
      %v884 = vadd.f32 %v737, %v883
      %v885 = vpop.f32.mrf.mxu0
      %v886 = vadd.f32 %v737, %v885
      %887 = vdwg.mxu0
      %888 = vmatpush.bf16.msra.mxu0 %v826
      %889 = vmatpush.bf16.msra.mxu0 %v825
      %890 = vmatpush.bf16.msra.mxu0 %v824
      %891 = vmatpush.bf16.msra.mxu0 %v823
      %892 = vmatpush.bf16.msra.mxu0 %v822
      %893 = vmatpush.bf16.msra.mxu0 %v821
      %894 = vmatpush.bf16.msra.mxu0 %v820
      %895 = vmatpush.bf16.msra.mxu0 %v819
      %896 = vmatmul.bf16.gmra.mxu0 %v688
      %v897 = vpop.f32.mrf.mxu0
      %v898 = vadd.f32 %v869, %v897
      %v899 = vpop.f32.mrf.mxu0
      %v900 = vadd.f32 %v871, %v899
      %901 = vmatmul.bf16.gmra.mxu0 %v691
      %v902 = vpop.f32.mrf.mxu0
      %v903 = vadd.f32 %v874, %v902
      %v904 = vpop.f32.mrf.mxu0
      %v905 = vadd.f32 %v876, %v904
      %906 = vmatmul.bf16.gmra.mxu0 %v694
      %v907 = vpop.f32.mrf.mxu0
      %v908 = vadd.f32 %v879, %v907
      %v909 = vpop.f32.mrf.mxu0
      %v910 = vadd.f32 %v881, %v909
      %911 = vmatmul.bf16.gmra.mxu0 %v697
      %v912 = vpop.f32.mrf.mxu0
      %v913 = vadd.f32 %v884, %v912
      %v914 = vpop.f32.mrf.mxu0
      %v915 = vadd.f32 %v886, %v914
      %916 = vdwg.mxu0
      %917 = vmatpush.bf16.msra.mxu0 0
      %918 = vmatpush.bf16.msra.mxu0 0
      %919 = vmatpush.bf16.msra.mxu0 0
      %920 = vmatpush.bf16.msra.mxu0 0
      %921 = vmatpush.bf16.msra.mxu0 0
      %922 = vmatpush.bf16.msra.mxu0 0
      %923 = vmatpush.bf16.msra.mxu0 %v828
      %924 = vmatpush.bf16.msra.mxu0 %v827
      %925 = vmatmul.bf16.gmra.mxu0 %v848
      %v926 = vpop.f32.mrf.mxu0
      %v927 = vadd.f32 %v898, %v926
      %v928 = vpop.f32.mrf.mxu0
      %v929 = vadd.f32 %v900, %v928
      %930 = vmatmul.bf16.gmra.mxu0 %v851
      %v931 = vpop.f32.mrf.mxu0
      %v932 = vadd.f32 %v903, %v931
      %v933 = vpop.f32.mrf.mxu0
      %v934 = vadd.f32 %v905, %v933
      %935 = vmatmul.bf16.gmra.mxu0 %v854
      %v936 = vpop.f32.mrf.mxu0
      %v937 = vadd.f32 %v908, %v936
      %v938 = vpop.f32.mrf.mxu0
      %v939 = vadd.f32 %v910, %v938
      %940 = vmatmul.bf16.gmra.mxu0 %v857
      %v941 = vpop.f32.mrf.mxu0
      %v942 = vadd.f32 %v913, %v941
      %v943 = vpop.f32.mrf.mxu0
      %v944 = vadd.f32 %v915, %v943
      %945 = vdwg.mxu0
      %v946 = vld [vmem:[%s212] sm:$0xff]
      %v947 = vld [vmem:[%s212 + $0x8] sm:$0xff]
      %v948 = vld [vmem:[%s212 + $0x10] sm:$0xff]
      %v949 = vld [vmem:[%s212 + $0x18] sm:$0xff]
      %v950 = vld [vmem:[%s212 + $0x20] sm:$0xff]
      %v951 = vld [vmem:[%s212 + $0x28] sm:$0xff]
      %v952 = vld [vmem:[%s212 + $0x30] sm:$0xff]
      %v953 = vld [vmem:[%s212 + $0x38] sm:$0xff]
      %v954 = vadd.f32 %v927, %v946
      %v955 = vadd.f32 %v929, %v947
      %v956 = vadd.f32 %v932, %v948
      %v957 = vadd.f32 %v934, %v949
      %v958 = vadd.f32 %v937, %v950
      %v959 = vadd.f32 %v939, %v951
      %v960 = vadd.f32 %v942, %v952
      %v961 = vadd.f32 %v944, %v953
      %962 = vst.msk [vmem:[%s217] sm:$0xff] %vm219, %v954
      %963 = vst.msk [vmem:[%s217 + $0x8] sm:$0xff] %vm219, %v955
      %964 = vst.msk [vmem:[%s217 + $0x10] sm:$0xff] %vm219, %v956
      %965 = vst.msk [vmem:[%s217 + $0x18] sm:$0xff] %vm219, %v957
      %966 = vst.msk [vmem:[%s217 + $0x20] sm:$0xff] %vm219, %v958
      %967 = vst.msk [vmem:[%s217 + $0x28] sm:$0xff] %vm219, %v959
      %968 = vst.msk [vmem:[%s217 + $0x30] sm:$0xff] %vm219, %v960
      %969 = vst.msk [vmem:[%s217 + $0x38] sm:$0xff] %vm219, %v961
      %p970 = scmp.lt.s32.totalorder %s15, 1
      %s971 = scalar_select %p970, %s15, 1
      %s972 = smul.addr %s971, 8
      %s973 = smul.addr %s972, 8
      %s974 = scalar_lea.vmem %s4, %s973
      // Predicated region
      $region37: #{xyj_forward.9} parent=35 // pred_check
        %p975 = pneg %p127
      $region38: #{xyj_forward.9} parent=35 // pred_check_branch
        %977 = sbr.rel (%p975) target = $region40
      $region39: #{xyj_forward.9} parent=35 // pred_region
        _
      $region40: #{xyj_forward.9} parent=35 // pred_fallthru
        _
    $region36: #{xyj_forward.9} parent=5 // pred_fallthru
      _
    %p978 = scmp.le.s32.totalorder 2, %s10
    // Predicated region
    $region41: #{xyj_forward.9} parent=5 // pred_check
      %p979 = pneg %p978
    $region42: #{xyj_forward.9} parent=5 // pred_check_branch
      %981 = sbr.rel (%p979) target = $region44
    $region43: #{xyj_forward.9} parent=5 // pred_region
      %s982 = ssub.s32 %s10, 2
      // Predicated region
      $region45: #{xyj_forward.9} parent=43 // pred_check
        %p983 = pneg %p133
      $region46: #{xyj_forward.9} parent=43 // pred_check_branch
        %985 = sbr.rel (%p983) target = $region48
      $region47: #{xyj_forward.9} parent=43 // pred_region
        %p986 = scmp.lt.s32.totalorder %s16, 1
        %s987 = scalar_select %p986, %s16, 1
        %s988 = smul.addr %s987, 8
        %s989 = smul.addr %s988, 8
        %s990 = scalar_lea.vmem %s4, %s989
      $region48: #{xyj_forward.9} parent=43 // pred_fallthru
        _
    $region44: #{xyj_forward.9} parent=5 // pred_fallthru
      _
  $region6: #{xyj_forward.9} parent=0 // loop_footer
    %s14 = sadd.s32 1, %s10
  $region7: #{xyj_forward.9} parent=0 // loop_footer_branch
    %9 = sbr.rel target = $region3
  $region8: #{xyj_forward.9} parent=0 // loop_exit
    _

// kernel: xyj_forward.11
$region0: #{xyj_forward.11}
  #allocation0 [shape = 'u32[]', space=smem, size = 0x4, offset = 0x4, fixed_abs, tag = 'smem constant byte address 0x4 - core index']
  #allocation1 [shape = 'u32[72,128]{1,0:T(1,128)}', space=vmem, size = 0x9000, scoped, tag = 'internal scratch']
  #allocation2 [shape = 'f32[18,25,32]{2,1,0:T(8,128)}', space=vmem, size = 0x48000, scoped, tag = 'scratch operand']
  %s0 = inlined_call_operand.vmem [shape: f32[2,16,16,32], index: 0, kind: input, shape index: {}]
  %s1 = inlined_call_operand.vmem [shape: bf16[288,3], index: 1, kind: input, shape index: {}]
  %s2 = inlined_call_operand.vmem [shape: f32[1,3], index: 2, kind: input, shape index: {}]
  %s3 = inlined_call_operand.vmem [shape: f32[2,3,256], index: 3, kind: output, shape index: {}]
  %s4 = sld [smem:[#allocation0]]
  $region45: #{xyj_forward.11} parent=0
    _
  %s6 = ssub.s32 1, %s4
  %s7 = scalar_select 0, %s6, %s4
  loop: start=0, step=1, limit=4
  $region2: #{xyj_forward.11} parent=0 // loop_pre_header
    _
  $region3: #{xyj_forward.11} parent=0 // loop_header
    %s9 = sphi 0, %s13
    %p10 = scmp.ge.s32.totalorder %s9, 4
    %s19 = sphi 0, %s21
    %s22 = sphi 0, %s19
    %s23 = sphi 0, %s22
    %s39 = sphi 0, %s23
    %s43 = sphi 0, %s43
    %s45 = sphi 0, %s43
    %s46 = sphi 0, %s45
    %s60 = sphi 0, %s46
    %s64 = sphi 0, %s64
    %s66 = sphi 0, %s64
    %s67 = sphi 0, %s66
    %s81 = sphi 0, %s67
    %s87 = sphi 0, %s89
    %s90 = sphi 0, %s87
    %s91 = sphi 0, %s90
    %s107 = sphi 0, %s91
  $region4: #{xyj_forward.11} parent=0 // loop_header_branch
    %12 = sbr.rel (%p10) target = $region8
  $region5: #{xyj_forward.11} parent=0 // loop_body
    %s14 = ssub.s32 %s9, 1
    %s15 = ssub.s32 %s9, 2
    %s16 = sadd.s32 %s9, 1
    %s17 = ssub.s32 %s9, %s16
    %p18 = scmp.eq.s32.totalorder %s17, 0
    %s20 = sadd.s32 %s19, 1
    %s21 = scalar_select %p18, %s19, %s20
    %p24 = pneg %p18
    %p25 = scmp.eq.s32.totalorder %s9, 1
    %p26 = por %p24, %p25
    %p27 = scmp.ne.s32.totalorder %s19, %s22
    %p28 = scmp.eq.s32.totalorder %s9, 0
    %p29 = por %p27, %p28
    %p30 = scmp.ne.s32.totalorder %s19, %s22
    %p31 = scmp.eq.s32.totalorder %s14, 1
    %p32 = por %p30, %p31
    %p33 = scmp.ne.s32.totalorder %s22, %s23
    %p34 = scmp.eq.s32.totalorder %s14, 0
    %p35 = por %p33, %p34
    %p36 = scmp.ne.s32.totalorder %s22, %s23
    %p37 = scmp.eq.s32.totalorder %s15, 1
    %p38 = por %p36, %p37
    %p40 = scmp.ne.s32.totalorder %s23, %s39
    %p41 = scmp.eq.s32.totalorder %s15, 0
    %p42 = por %p40, %p41
    %s44 = sadd.s32 %s43, 1
    %p47 = scmp.eq.s32.totalorder %s9, 1
    %p48 = scmp.ne.s32.totalorder %s43, %s45
    %p49 = scmp.eq.s32.totalorder %s9, 0
    %p50 = por %p48, %p49
    %p51 = scmp.ne.s32.totalorder %s43, %s45
    %p52 = scmp.eq.s32.totalorder %s14, 1
    %p53 = por %p51, %p52
    %p54 = scmp.ne.s32.totalorder %s45, %s46
    %p55 = scmp.eq.s32.totalorder %s14, 0
    %p56 = por %p54, %p55
    %p57 = scmp.ne.s32.totalorder %s45, %s46
    %p58 = scmp.eq.s32.totalorder %s15, 1
    %p59 = por %p57, %p58
    %p61 = scmp.ne.s32.totalorder %s46, %s60
    %p62 = scmp.eq.s32.totalorder %s15, 0
    %p63 = por %p61, %p62
    %s65 = sadd.s32 %s64, 1
    %p68 = scmp.eq.s32.totalorder %s9, 1
    %p69 = scmp.ne.s32.totalorder %s64, %s66
    %p70 = scmp.eq.s32.totalorder %s9, 0
    %p71 = por %p69, %p70
    %p72 = scmp.ne.s32.totalorder %s64, %s66
    %p73 = scmp.eq.s32.totalorder %s14, 1
    %p74 = por %p72, %p73
    %p75 = scmp.ne.s32.totalorder %s66, %s67
    %p76 = scmp.eq.s32.totalorder %s14, 0
    %p77 = por %p75, %p76
    %p78 = scmp.ne.s32.totalorder %s66, %s67
    %p79 = scmp.eq.s32.totalorder %s15, 1
    %p80 = por %p78, %p79
    %p82 = scmp.ne.s32.totalorder %s67, %s81
    %p83 = scmp.eq.s32.totalorder %s15, 0
    %p84 = por %p82, %p83
    %s85 = ssub.s32 %s9, %s16
    %p86 = scmp.eq.s32.totalorder %s85, 0
    %s88 = sadd.s32 %s87, 1
    %s89 = scalar_select %p86, %s87, %s88
    %p92 = pneg %p86
    %p93 = scmp.eq.s32.totalorder %s9, 1
    %p94 = por %p92, %p93
    %p95 = scmp.ne.s32.totalorder %s87, %s90
    %p96 = scmp.eq.s32.totalorder %s9, 0
    %p97 = por %p95, %p96
    %p98 = scmp.ne.s32.totalorder %s87, %s90
    %p99 = scmp.eq.s32.totalorder %s14, 1
    %p100 = por %p98, %p99
    %p101 = scmp.ne.s32.totalorder %s90, %s91
    %p102 = scmp.eq.s32.totalorder %s14, 0
    %p103 = por %p101, %p102
    %p104 = scmp.ne.s32.totalorder %s90, %s91
    %p105 = scmp.eq.s32.totalorder %s15, 1
    %p106 = por %p104, %p105
    %p108 = scmp.ne.s32.totalorder %s91, %s107
    %p109 = scmp.eq.s32.totalorder %s15, 0
    %p110 = por %p108, %p109
    %p111 = scmp.le.s32.totalorder 1, %s9
    %p112 = scmp.lt.s32.totalorder %s9, 3
    %p113 = pnand %p111, %p112
    %p114 = pneg %p113
    // Predicated region
    $region9: #{xyj_forward.11} parent=5 // pred_check
      _
    $region10: #{xyj_forward.11} parent=5 // pred_check_branch
      %116 = sbr.rel (%p113) target = $region12
    $region11: #{xyj_forward.11} parent=5 // pred_region
      %s117 = ssub.s32 %s9, 1
      // Predicated region
      $region13: #{xyj_forward.11} parent=11 // pred_check
        %p118 = pneg %p56
      $region14: #{xyj_forward.11} parent=11 // pred_check_branch
        %120 = sbr.rel (%p118) target = $region16
      $region15: #{xyj_forward.11} parent=11 // pred_region
        _
      $region16: #{xyj_forward.11} parent=11 // pred_fallthru
        _
      // Predicated region
      $region17: #{xyj_forward.11} parent=11 // pred_check
        %p121 = pneg %p77
      $region18: #{xyj_forward.11} parent=11 // pred_check_branch
        %123 = sbr.rel (%p121) target = $region20
      $region19: #{xyj_forward.11} parent=11 // pred_region
        _
      $region20: #{xyj_forward.11} parent=11 // pred_fallthru
        _
    $region12: #{xyj_forward.11} parent=5 // pred_fallthru
      _
    %p124 = scmp.lt.s32.totalorder %s9, 2
    // Predicated region
    $region21: #{xyj_forward.11} parent=5 // pred_check
      %p125 = pneg %p124
    $region22: #{xyj_forward.11} parent=5 // pred_check_branch
      %127 = sbr.rel (%p125) target = $region24
    $region23: #{xyj_forward.11} parent=5 // pred_region
      // Predicated region
      $region25: #{xyj_forward.11} parent=23 // pred_check
        %p128 = pneg %p29
      $region26: #{xyj_forward.11} parent=23 // pred_check_branch
        %130 = sbr.rel (%p128) target = $region28
      $region27: #{xyj_forward.11} parent=23 // pred_region
        %p131 = scmp.lt.s32.totalorder %s9, 1
        %s132 = scalar_select %p131, %s9, 1
        %s133 = smul.addr %s132, 32
        %s134 = smul.addr %s133, 8
        %s135 = scalar_lea.vmem %s0, %s134
      $region28: #{xyj_forward.11} parent=23 // pred_fallthru
        _
    $region24: #{xyj_forward.11} parent=5 // pred_fallthru
      _
    %p136 = scmp.le.s32.totalorder 1, %s9
    %p137 = scmp.lt.s32.totalorder %s9, 3
    %p138 = pnand %p136, %p137
    %p139 = pneg %p138
    // Predicated region
    $region29: #{xyj_forward.11} parent=5 // pred_check
      _
    $region30: #{xyj_forward.11} parent=5 // pred_check_branch
      %141 = sbr.rel (%p138) target = $region32
    $region31: #{xyj_forward.11} parent=5 // pred_region
      %s142 = ssub.s32 %s9, 1
      %p143 = scmp.lt.s32.totalorder %s14, 1
      %s144 = scalar_select %p143, %s14, 1
      %s145 = smul.addr %s144, 32
      %s146 = smul.addr %s145, 8
      %s147 = scalar_lea.vmem %s0, %s146
      %p148 = pneg %p35
      %p149 = pneg %p32
      %p150 = pneg %p56
      %p151 = pneg %p53
      %p152 = pneg %p77
      %p153 = pneg %p74
      %p154 = pneg %p103
      %p155 = pneg %p100
      %p156 = scmp.lt.s32.totalorder %s14, 1
      %s157 = scalar_select %p156, %s14, 1
      %s158 = smul.addr %s157, 2
      %s159 = smul.addr %s158, 4
      %s160 = scalar_lea.vmem %s3, %s159
      %p161 = scmp.lt.s32.totalorder %s14, 1
      %s162 = scalar_select %p161, %s14, 1
      %s163 = smul.addr %s162, 32
      %s164 = smul.addr %s163, 8
      %s165 = scalar_lea.vmem %s0, %s164
      %p166 = scmp.lt.s32.totalorder %s14, 1
      %s167 = scalar_select %p166, %s14, 1
      %s168 = smul.addr %s167, 2
      %s169 = smul.addr %s168, 4
      %s170 = scalar_lea.vmem %s3, %s169
      %vm172 = vcmask 261120
      %173 = vst.msk [vmem:[#allocation2 + $0x7] sm:$0xff] %vm172, 0.0
      %174 = vst.msk [vmem:[#allocation2 + $0xf] sm:$0xff] %vm172, 0.0
      %vm175 = vcmask 254976
      %176 = vst.msk [vmem:[#allocation2 + $0x17] sm:$0x3] %vm175, 0.0
      %s177 = scalar_lea.vmem [#allocation2], 544
      %178 = vst.msk [vmem:[%s177 + $0x7] sm:$0xff] %vm172, 0.0
      %179 = vst.msk [vmem:[%s177 + $0xf] sm:$0xff] %vm172, 0.0
      %180 = vst.msk [vmem:[%s177 + $0x17] sm:$0x3] %vm175, 0.0
      %s181 = scalar_lea.vmem [#allocation2], 32
      %vm182 = vcmask 253952
      %183 = vst.msk [vmem:[%s181 + $0x7] sm:$0x1] %vm182, 0.0
      %184 = vst.msk [vmem:[%s181 + $0x27] sm:$0x1] %vm182, 0.0
      %185 = vst.msk [vmem:[%s181 + $0x47] sm:$0x1] %vm182, 0.0
      %186 = vst.msk [vmem:[%s181 + $0x67] sm:$0x1] %vm182, 0.0
      %187 = vst.msk [vmem:[%s181 + $0x87] sm:$0x1] %vm182, 0.0
      %188 = vst.msk [vmem:[%s181 + $0xa7] sm:$0x1] %vm182, 0.0
      %189 = vst.msk [vmem:[%s181 + $0xc7] sm:$0x1] %vm182, 0.0
      %190 = vst.msk [vmem:[%s181 + $0xe7] sm:$0x1] %vm182, 0.0
      %191 = vst.msk [vmem:[%s181 + $0x107] sm:$0x1] %vm182, 0.0
      %192 = vst.msk [vmem:[%s181 + $0x127] sm:$0x1] %vm182, 0.0
      %193 = vst.msk [vmem:[%s181 + $0x147] sm:$0x1] %vm182, 0.0
      %194 = vst.msk [vmem:[%s181 + $0x167] sm:$0x1] %vm182, 0.0
      %195 = vst.msk [vmem:[%s181 + $0x187] sm:$0x1] %vm182, 0.0
      %196 = vst.msk [vmem:[%s181 + $0x1a7] sm:$0x1] %vm182, 0.0
      %197 = vst.msk [vmem:[%s181 + $0x1c7] sm:$0x1] %vm182, 0.0
      %198 = vst.msk [vmem:[%s181 + $0x1e7] sm:$0x1] %vm182, 0.0
      %199 = vst.msk [vmem:[%s181 + $0x18] sm:$0x1] %vm182, 0.0
      %200 = vst.msk [vmem:[%s181 + $0x38] sm:$0x1] %vm182, 0.0
      %201 = vst.msk [vmem:[%s181 + $0x58] sm:$0x1] %vm182, 0.0
      %202 = vst.msk [vmem:[%s181 + $0x78] sm:$0x1] %vm182, 0.0
      %203 = vst.msk [vmem:[%s181 + $0x98] sm:$0x1] %vm182, 0.0
      %204 = vst.msk [vmem:[%s181 + $0xb8] sm:$0x1] %vm182, 0.0
      %205 = vst.msk [vmem:[%s181 + $0xd8] sm:$0x1] %vm182, 0.0
      %206 = vst.msk [vmem:[%s181 + $0xf8] sm:$0x1] %vm182, 0.0
      %207 = vst.msk [vmem:[%s181 + $0x118] sm:$0x1] %vm182, 0.0
      %208 = vst.msk [vmem:[%s181 + $0x138] sm:$0x1] %vm182, 0.0
      %209 = vst.msk [vmem:[%s181 + $0x158] sm:$0x1] %vm182, 0.0
      %210 = vst.msk [vmem:[%s181 + $0x178] sm:$0x1] %vm182, 0.0
      %211 = vst.msk [vmem:[%s181 + $0x198] sm:$0x1] %vm182, 0.0
      %212 = vst.msk [vmem:[%s181 + $0x1b8] sm:$0x1] %vm182, 0.0
      %213 = vst.msk [vmem:[%s181 + $0x1d8] sm:$0x1] %vm182, 0.0
      %214 = vst.msk [vmem:[%s181 + $0x1f8] sm:$0x1] %vm182, 0.0
      %v215 = vld [vmem:[%s165] sm:$0xff]
      %v216 = vld [vmem:[%s165 + $0x8] sm:$0xff]
      %v217 = vld [vmem:[%s165 + $0x10] sm:$0xff]
      %v218 = vld [vmem:[%s165 + $0x18] sm:$0xff]
      %v219 = vld [vmem:[%s165 + $0x20] sm:$0xff]
      %v220 = vld [vmem:[%s165 + $0x28] sm:$0xff]
      %v221 = vld [vmem:[%s165 + $0x30] sm:$0xff]
      %v222 = vld [vmem:[%s165 + $0x38] sm:$0xff]
      %v223 = vld [vmem:[%s165 + $0x40] sm:$0xff]
      %v224 = vld [vmem:[%s165 + $0x48] sm:$0xff]
      %v225 = vld [vmem:[%s165 + $0x50] sm:$0xff]
      %v226 = vld [vmem:[%s165 + $0x58] sm:$0xff]
      %v227 = vld [vmem:[%s165 + $0x60] sm:$0xff]
      %v228 = vld [vmem:[%s165 + $0x68] sm:$0xff]
      %v229 = vld [vmem:[%s165 + $0x70] sm:$0xff]
      %v230 = vld [vmem:[%s165 + $0x78] sm:$0xff]
      %v231 = vld [vmem:[%s165 + $0x80] sm:$0xff]
      %v232 = vld [vmem:[%s165 + $0x88] sm:$0xff]
      %v233 = vld [vmem:[%s165 + $0x90] sm:$0xff]
      %v234 = vld [vmem:[%s165 + $0x98] sm:$0xff]
      %v235 = vld [vmem:[%s165 + $0xa0] sm:$0xff]
      %v236 = vld [vmem:[%s165 + $0xa8] sm:$0xff]
      %v237 = vld [vmem:[%s165 + $0xb0] sm:$0xff]
      %v238 = vld [vmem:[%s165 + $0xb8] sm:$0xff]
      %v239 = vld [vmem:[%s165 + $0xc0] sm:$0xff]
      %v240 = vld [vmem:[%s165 + $0xc8] sm:$0xff]
      %v241 = vld [vmem:[%s165 + $0xd0] sm:$0xff]
      %v242 = vld [vmem:[%s165 + $0xd8] sm:$0xff]
      %v243 = vld [vmem:[%s165 + $0xe0] sm:$0xff]
      %v244 = vld [vmem:[%s165 + $0xe8] sm:$0xff]
      %v245 = vld [vmem:[%s165 + $0xf0] sm:$0xff]
      %v246 = vld [vmem:[%s165 + $0xf8] sm:$0xff]
      %247 = vst.msk [vmem:[%s181 + $0x8] sm:$0xff] %vm172, %v215
      %248 = vst.msk [vmem:[%s181 + $0x10] sm:$0xff] %vm172, %v216
      %249 = vst.msk [vmem:[%s181 + $0x28] sm:$0xff] %vm172, %v217
      %250 = vst.msk [vmem:[%s181 + $0x30] sm:$0xff] %vm172, %v218
      %251 = vst.msk [vmem:[%s181 + $0x48] sm:$0xff] %vm172, %v219
      %252 = vst.msk [vmem:[%s181 + $0x50] sm:$0xff] %vm172, %v220
      %253 = vst.msk [vmem:[%s181 + $0x68] sm:$0xff] %vm172, %v221
      %254 = vst.msk [vmem:[%s181 + $0x70] sm:$0xff] %vm172, %v222
      %255 = vst.msk [vmem:[%s181 + $0x88] sm:$0xff] %vm172, %v223
      %256 = vst.msk [vmem:[%s181 + $0x90] sm:$0xff] %vm172, %v224
      %257 = vst.msk [vmem:[%s181 + $0xa8] sm:$0xff] %vm172, %v225
      %258 = vst.msk [vmem:[%s181 + $0xb0] sm:$0xff] %vm172, %v226
      %259 = vst.msk [vmem:[%s181 + $0xc8] sm:$0xff] %vm172, %v227
      %260 = vst.msk [vmem:[%s181 + $0xd0] sm:$0xff] %vm172, %v228
      %261 = vst.msk [vmem:[%s181 + $0xe8] sm:$0xff] %vm172, %v229
      %262 = vst.msk [vmem:[%s181 + $0xf0] sm:$0xff] %vm172, %v230
      %263 = vst.msk [vmem:[%s181 + $0x108] sm:$0xff] %vm172, %v231
      %264 = vst.msk [vmem:[%s181 + $0x110] sm:$0xff] %vm172, %v232
      %265 = vst.msk [vmem:[%s181 + $0x128] sm:$0xff] %vm172, %v233
      %266 = vst.msk [vmem:[%s181 + $0x130] sm:$0xff] %vm172, %v234
      %267 = vst.msk [vmem:[%s181 + $0x148] sm:$0xff] %vm172, %v235
      %268 = vst.msk [vmem:[%s181 + $0x150] sm:$0xff] %vm172, %v236
      %269 = vst.msk [vmem:[%s181 + $0x168] sm:$0xff] %vm172, %v237
      %270 = vst.msk [vmem:[%s181 + $0x170] sm:$0xff] %vm172, %v238
      %271 = vst.msk [vmem:[%s181 + $0x188] sm:$0xff] %vm172, %v239
      %272 = vst.msk [vmem:[%s181 + $0x190] sm:$0xff] %vm172, %v240
      %273 = vst.msk [vmem:[%s181 + $0x1a8] sm:$0xff] %vm172, %v241
      %274 = vst.msk [vmem:[%s181 + $0x1b0] sm:$0xff] %vm172, %v242
      %275 = vst.msk [vmem:[%s181 + $0x1c8] sm:$0xff] %vm172, %v243
      %276 = vst.msk [vmem:[%s181 + $0x1d0] sm:$0xff] %vm172, %v244
      %277 = vst.msk [vmem:[%s181 + $0x1e8] sm:$0xff] %vm172, %v245
      %278 = vst.msk [vmem:[%s181 + $0x1f0] sm:$0xff] %vm172, %v246
      %v279 = vld [vmem:[#allocation2 + $0x7] sm:$0xff]
      %v280 = vld [vmem:[#allocation2 + $0xf] sm:$0xff]
      %v281 = vld [vmem:[#allocation2 + $0x27] sm:$0xff]
      %v282 = vld [vmem:[#allocation2 + $0x2f] sm:$0xff]
      %v283 = vld [vmem:[#allocation2 + $0x47] sm:$0xff]
      %v284 = vld [vmem:[#allocation2 + $0x4f] sm:$0xff]
      %v285 = vld [vmem:[#allocation2 + $0x67] sm:$0xff]
      %v286 = vld [vmem:[#allocation2 + $0x6f] sm:$0xff]
      %v287 = vld [vmem:[#allocation2 + $0x87] sm:$0xff]
      %v288 = vld [vmem:[#allocation2 + $0x8f] sm:$0xff]
      %v289 = vld [vmem:[#allocation2 + $0xa7] sm:$0xff]
      %v290 = vld [vmem:[#allocation2 + $0xaf] sm:$0xff]
      %v291 = vld [vmem:[#allocation2 + $0xc7] sm:$0xff]
      %v292 = vld [vmem:[#allocation2 + $0xcf] sm:$0xff]
      %v293 = vld [vmem:[#allocation2 + $0xe7] sm:$0xff]
      %v294 = vld [vmem:[#allocation2 + $0xef] sm:$0xff]
      %v295 = vld [vmem:[#allocation2 + $0x107] sm:$0xff]
      %v296 = vld [vmem:[#allocation2 + $0x10f] sm:$0xff]
      %v297 = vld [vmem:[#allocation2 + $0x127] sm:$0xff]
      %v298 = vld [vmem:[#allocation2 + $0x12f] sm:$0xff]
      %v299 = vld [vmem:[#allocation2 + $0x147] sm:$0xff]
      %v300 = vld [vmem:[#allocation2 + $0x14f] sm:$0xff]
      %v301 = vld [vmem:[#allocation2 + $0x167] sm:$0xff]
      %v302 = vld [vmem:[#allocation2 + $0x16f] sm:$0xff]
      %v303 = vld [vmem:[#allocation2 + $0x187] sm:$0xff]
      %v304 = vld [vmem:[#allocation2 + $0x18f] sm:$0xff]
      %v305 = vld [vmem:[#allocation2 + $0x1a7] sm:$0xff]
      %v306 = vld [vmem:[#allocation2 + $0x1af] sm:$0xff]
      %v307 = vld [vmem:[#allocation2 + $0x1c7] sm:$0xff]
      %v308 = vld [vmem:[#allocation2 + $0x1cf] sm:$0xff]
      %v309 = vld [vmem:[#allocation2 + $0x1e7] sm:$0xff]
      %v310 = vld [vmem:[#allocation2 + $0x1ef] sm:$0xff]
      %v311 = vld [vmem:[#allocation2 + $0x8] sm:$0xff]
      %v312 = vld [vmem:[#allocation2 + $0x10] sm:$0xff]
      %v313 = vld [vmem:[#allocation2 + $0x28] sm:$0xff]
      %v314 = vld [vmem:[#allocation2 + $0x30] sm:$0xff]
      %v315 = vld [vmem:[#allocation2 + $0x48] sm:$0xff]
      %v316 = vld [vmem:[#allocation2 + $0x50] sm:$0xff]
      %v317 = vld [vmem:[#allocation2 + $0x68] sm:$0xff]
      %v318 = vld [vmem:[#allocation2 + $0x70] sm:$0xff]
      %v319 = vld [vmem:[#allocation2 + $0x88] sm:$0xff]
      %v320 = vld [vmem:[#allocation2 + $0x90] sm:$0xff]
      %v321 = vld [vmem:[#allocation2 + $0xa8] sm:$0xff]
      %v322 = vld [vmem:[#allocation2 + $0xb0] sm:$0xff]
      %v323 = vld [vmem:[#allocation2 + $0xc8] sm:$0xff]
      %v324 = vld [vmem:[#allocation2 + $0xd0] sm:$0xff]
      %v325 = vld [vmem:[#allocation2 + $0xe8] sm:$0xff]
      %v326 = vld [vmem:[#allocation2 + $0xf0] sm:$0xff]
      %v327 = vld [vmem:[#allocation2 + $0x108] sm:$0xff]
      %v328 = vld [vmem:[#allocation2 + $0x110] sm:$0xff]
      %v329 = vld [vmem:[#allocation2 + $0x128] sm:$0xff]
      %v330 = vld [vmem:[#allocation2 + $0x130] sm:$0xff]
      %v331 = vld [vmem:[#allocation2 + $0x148] sm:$0xff]
      %v332 = vld [vmem:[#allocation2 + $0x150] sm:$0xff]
      %v333 = vld [vmem:[#allocation2 + $0x168] sm:$0xff]
      %v334 = vld [vmem:[#allocation2 + $0x170] sm:$0xff]
      %v335 = vld [vmem:[#allocation2 + $0x188] sm:$0xff]
      %v336 = vld [vmem:[#allocation2 + $0x190] sm:$0xff]
      %v337 = vld [vmem:[#allocation2 + $0x1a8] sm:$0xff]
      %v338 = vld [vmem:[#allocation2 + $0x1b0] sm:$0xff]
      %v339 = vld [vmem:[#allocation2 + $0x1c8] sm:$0xff]
      %v340 = vld [vmem:[#allocation2 + $0x1d0] sm:$0xff]
      %v341 = vld [vmem:[#allocation2 + $0x1e8] sm:$0xff]
      %v342 = vld [vmem:[#allocation2 + $0x1f0] sm:$0xff]
      %v343 = vld [vmem:[#allocation2 + $0x9] sm:$0xff]
      %v344 = vld [vmem:[#allocation2 + $0x11] sm:$0xff]
      %v345 = vld [vmem:[#allocation2 + $0x29] sm:$0xff]
      %v346 = vld [vmem:[#allocation2 + $0x31] sm:$0xff]
      %v347 = vld [vmem:[#allocation2 + $0x49] sm:$0xff]
      %v348 = vld [vmem:[#allocation2 + $0x51] sm:$0xff]
      %v349 = vld [vmem:[#allocation2 + $0x69] sm:$0xff]
      %v350 = vld [vmem:[#allocation2 + $0x71] sm:$0xff]
      %v351 = vld [vmem:[#allocation2 + $0x89] sm:$0xff]
      %v352 = vld [vmem:[#allocation2 + $0x91] sm:$0xff]
      %v353 = vld [vmem:[#allocation2 + $0xa9] sm:$0xff]
      %v354 = vld [vmem:[#allocation2 + $0xb1] sm:$0xff]
      %v355 = vld [vmem:[#allocation2 + $0xc9] sm:$0xff]
      %v356 = vld [vmem:[#allocation2 + $0xd1] sm:$0xff]
      %v357 = vld [vmem:[#allocation2 + $0xe9] sm:$0xff]
      %v358 = vld [vmem:[#allocation2 + $0xf1] sm:$0xff]
      %v359 = vld [vmem:[#allocation2 + $0x109] sm:$0xff]
      %v360 = vld [vmem:[#allocation2 + $0x111] sm:$0xff]
      %v361 = vld [vmem:[#allocation2 + $0x129] sm:$0xff]
      %v362 = vld [vmem:[#allocation2 + $0x131] sm:$0xff]
      %v363 = vld [vmem:[#allocation2 + $0x149] sm:$0xff]
      %v364 = vld [vmem:[#allocation2 + $0x151] sm:$0xff]
      %v365 = vld [vmem:[#allocation2 + $0x169] sm:$0xff]
      %v366 = vld [vmem:[#allocation2 + $0x171] sm:$0xff]
      %v367 = vld [vmem:[#allocation2 + $0x189] sm:$0xff]
      %v368 = vld [vmem:[#allocation2 + $0x191] sm:$0xff]
      %v369 = vld [vmem:[#allocation2 + $0x1a9] sm:$0xff]
      %v370 = vld [vmem:[#allocation2 + $0x1b1] sm:$0xff]
      %v371 = vld [vmem:[#allocation2 + $0x1c9] sm:$0xff]
      %v372 = vld [vmem:[#allocation2 + $0x1d1] sm:$0xff]
      %v373 = vld [vmem:[#allocation2 + $0x1e9] sm:$0xff]
      %v374 = vld [vmem:[#allocation2 + $0x1f1] sm:$0xff]
      %v375 = vld [vmem:[%s181 + $0x7] sm:$0xff]
      %v376 = vld [vmem:[%s181 + $0xf] sm:$0xff]
      %v377 = vld [vmem:[%s181 + $0x27] sm:$0xff]
      %v378 = vld [vmem:[%s181 + $0x2f] sm:$0xff]
      %v379 = vld [vmem:[%s181 + $0x47] sm:$0xff]
      %v380 = vld [vmem:[%s181 + $0x4f] sm:$0xff]
      %v381 = vld [vmem:[%s181 + $0x67] sm:$0xff]
      %v382 = vld [vmem:[%s181 + $0x6f] sm:$0xff]
      %v383 = vld [vmem:[%s181 + $0x87] sm:$0xff]
      %v384 = vld [vmem:[%s181 + $0x8f] sm:$0xff]
      %v385 = vld [vmem:[%s181 + $0xa7] sm:$0xff]
      %v386 = vld [vmem:[%s181 + $0xaf] sm:$0xff]
      %v387 = vld [vmem:[%s181 + $0xc7] sm:$0xff]
      %v388 = vld [vmem:[%s181 + $0xcf] sm:$0xff]
      %v389 = vld [vmem:[%s181 + $0xe7] sm:$0xff]
      %v390 = vld [vmem:[%s181 + $0xef] sm:$0xff]
      %v391 = vld [vmem:[%s181 + $0x107] sm:$0xff]
      %v392 = vld [vmem:[%s181 + $0x10f] sm:$0xff]
      %v393 = vld [vmem:[%s181 + $0x127] sm:$0xff]
      %v394 = vld [vmem:[%s181 + $0x12f] sm:$0xff]
      %v395 = vld [vmem:[%s181 + $0x147] sm:$0xff]
      %v396 = vld [vmem:[%s181 + $0x14f] sm:$0xff]
      %v397 = vld [vmem:[%s181 + $0x167] sm:$0xff]
      %v398 = vld [vmem:[%s181 + $0x16f] sm:$0xff]
      %v399 = vld [vmem:[%s181 + $0x187] sm:$0xff]
      %v400 = vld [vmem:[%s181 + $0x18f] sm:$0xff]
      %v401 = vld [vmem:[%s181 + $0x1a7] sm:$0xff]
      %v402 = vld [vmem:[%s181 + $0x1af] sm:$0xff]
      %v403 = vld [vmem:[%s181 + $0x1c7] sm:$0xff]
      %v404 = vld [vmem:[%s181 + $0x1cf] sm:$0xff]
      %v405 = vld [vmem:[%s181 + $0x1e7] sm:$0xff]
      %v406 = vld [vmem:[%s181 + $0x1ef] sm:$0xff]
      %v407 = vld [vmem:[%s181 + $0x8] sm:$0xff]
      %v408 = vld [vmem:[%s181 + $0x10] sm:$0xff]
      %v409 = vld [vmem:[%s181 + $0x28] sm:$0xff]
      %v410 = vld [vmem:[%s181 + $0x30] sm:$0xff]
      %v411 = vld [vmem:[%s181 + $0x48] sm:$0xff]
      %v412 = vld [vmem:[%s181 + $0x50] sm:$0xff]
      %v413 = vld [vmem:[%s181 + $0x68] sm:$0xff]
      %v414 = vld [vmem:[%s181 + $0x70] sm:$0xff]
      %v415 = vld [vmem:[%s181 + $0x88] sm:$0xff]
      %v416 = vld [vmem:[%s181 + $0x90] sm:$0xff]
      %v417 = vld [vmem:[%s181 + $0xa8] sm:$0xff]
      %v418 = vld [vmem:[%s181 + $0xb0] sm:$0xff]
      %v419 = vld [vmem:[%s181 + $0xc8] sm:$0xff]
      %v420 = vld [vmem:[%s181 + $0xd0] sm:$0xff]
      %v421 = vld [vmem:[%s181 + $0xe8] sm:$0xff]
      %v422 = vld [vmem:[%s181 + $0xf0] sm:$0xff]
      %v423 = vld [vmem:[%s181 + $0x108] sm:$0xff]
      %v424 = vld [vmem:[%s181 + $0x110] sm:$0xff]
      %v425 = vld [vmem:[%s181 + $0x128] sm:$0xff]
      %v426 = vld [vmem:[%s181 + $0x130] sm:$0xff]
      %v427 = vld [vmem:[%s181 + $0x148] sm:$0xff]
      %v428 = vld [vmem:[%s181 + $0x150] sm:$0xff]
      %v429 = vld [vmem:[%s181 + $0x168] sm:$0xff]
      %v430 = vld [vmem:[%s181 + $0x170] sm:$0xff]
      %v431 = vld [vmem:[%s181 + $0x188] sm:$0xff]
      %v432 = vld [vmem:[%s181 + $0x190] sm:$0xff]
      %v433 = vld [vmem:[%s181 + $0x1a8] sm:$0xff]
      %v434 = vld [vmem:[%s181 + $0x1b0] sm:$0xff]
      %v435 = vld [vmem:[%s181 + $0x1c8] sm:$0xff]
      %v436 = vld [vmem:[%s181 + $0x1d0] sm:$0xff]
      %v437 = vld [vmem:[%s181 + $0x1e8] sm:$0xff]
      %v438 = vld [vmem:[%s181 + $0x1f0] sm:$0xff]
      %v439 = vld [vmem:[%s181 + $0x9] sm:$0xff]
      %v440 = vld [vmem:[%s181 + $0x11] sm:$0xff]
      %v441 = vld [vmem:[%s181 + $0x29] sm:$0xff]
      %v442 = vld [vmem:[%s181 + $0x31] sm:$0xff]
      %v443 = vld [vmem:[%s181 + $0x49] sm:$0xff]
      %v444 = vld [vmem:[%s181 + $0x51] sm:$0xff]
      %v445 = vld [vmem:[%s181 + $0x69] sm:$0xff]
      %v446 = vld [vmem:[%s181 + $0x71] sm:$0xff]
      %v447 = vld [vmem:[%s181 + $0x89] sm:$0xff]
      %v448 = vld [vmem:[%s181 + $0x91] sm:$0xff]
      %v449 = vld [vmem:[%s181 + $0xa9] sm:$0xff]
      %v450 = vld [vmem:[%s181 + $0xb1] sm:$0xff]
      %v451 = vld [vmem:[%s181 + $0xc9] sm:$0xff]
      %v452 = vld [vmem:[%s181 + $0xd1] sm:$0xff]
      %v453 = vld [vmem:[%s181 + $0xe9] sm:$0xff]
      %v454 = vld [vmem:[%s181 + $0xf1] sm:$0xff]
      %v455 = vld [vmem:[%s181 + $0x109] sm:$0xff]
      %v456 = vld [vmem:[%s181 + $0x111] sm:$0xff]
      %v457 = vld [vmem:[%s181 + $0x129] sm:$0xff]
      %v458 = vld [vmem:[%s181 + $0x131] sm:$0xff]
      %v459 = vld [vmem:[%s181 + $0x149] sm:$0xff]
      %v460 = vld [vmem:[%s181 + $0x151] sm:$0xff]
      %v461 = vld [vmem:[%s181 + $0x169] sm:$0xff]
      %v462 = vld [vmem:[%s181 + $0x171] sm:$0xff]
      %v463 = vld [vmem:[%s181 + $0x189] sm:$0xff]
      %v464 = vld [vmem:[%s181 + $0x191] sm:$0xff]
      %v465 = vld [vmem:[%s181 + $0x1a9] sm:$0xff]
      %v466 = vld [vmem:[%s181 + $0x1b1] sm:$0xff]
      %v467 = vld [vmem:[%s181 + $0x1c9] sm:$0xff]
      %v468 = vld [vmem:[%s181 + $0x1d1] sm:$0xff]
      %v469 = vld [vmem:[%s181 + $0x1e9] sm:$0xff]
      %v470 = vld [vmem:[%s181 + $0x1f1] sm:$0xff]
      %s471 = scalar_lea.vmem [#allocation2], 64
      %v472 = vld [vmem:[%s471 + $0x7] sm:$0xff]
      %v473 = vld [vmem:[%s471 + $0xf] sm:$0xff]
      %v474 = vld [vmem:[%s471 + $0x27] sm:$0xff]
      %v475 = vld [vmem:[%s471 + $0x2f] sm:$0xff]
      %v476 = vld [vmem:[%s471 + $0x47] sm:$0xff]
      %v477 = vld [vmem:[%s471 + $0x4f] sm:$0xff]
      %v478 = vld [vmem:[%s471 + $0x67] sm:$0xff]
      %v479 = vld [vmem:[%s471 + $0x6f] sm:$0xff]
      %v480 = vld [vmem:[%s471 + $0x87] sm:$0xff]
      %v481 = vld [vmem:[%s471 + $0x8f] sm:$0xff]
      %v482 = vld [vmem:[%s471 + $0xa7] sm:$0xff]
      %v483 = vld [vmem:[%s471 + $0xaf] sm:$0xff]
      %v484 = vld [vmem:[%s471 + $0xc7] sm:$0xff]
      %v485 = vld [vmem:[%s471 + $0xcf] sm:$0xff]
      %v486 = vld [vmem:[%s471 + $0xe7] sm:$0xff]
      %v487 = vld [vmem:[%s471 + $0xef] sm:$0xff]
      %v488 = vld [vmem:[%s471 + $0x107] sm:$0xff]
      %v489 = vld [vmem:[%s471 + $0x10f] sm:$0xff]
      %v490 = vld [vmem:[%s471 + $0x127] sm:$0xff]
      %v491 = vld [vmem:[%s471 + $0x12f] sm:$0xff]
      %v492 = vld [vmem:[%s471 + $0x147] sm:$0xff]
      %v493 = vld [vmem:[%s471 + $0x14f] sm:$0xff]
      %v494 = vld [vmem:[%s471 + $0x167] sm:$0xff]
      %v495 = vld [vmem:[%s471 + $0x16f] sm:$0xff]
      %v496 = vld [vmem:[%s471 + $0x187] sm:$0xff]
      %v497 = vld [vmem:[%s471 + $0x18f] sm:$0xff]
      %v498 = vld [vmem:[%s471 + $0x1a7] sm:$0xff]
      %v499 = vld [vmem:[%s471 + $0x1af] sm:$0xff]
      %v500 = vld [vmem:[%s471 + $0x1c7] sm:$0xff]
      %v501 = vld [vmem:[%s471 + $0x1cf] sm:$0xff]
      %v502 = vld [vmem:[%s471 + $0x1e7] sm:$0xff]
      %v503 = vld [vmem:[%s471 + $0x1ef] sm:$0xff]
      %v504 = vld [vmem:[%s471 + $0x8] sm:$0xff]
      %v505 = vld [vmem:[%s471 + $0x10] sm:$0xff]
      %v506 = vld [vmem:[%s471 + $0x28] sm:$0xff]
      %v507 = vld [vmem:[%s471 + $0x30] sm:$0xff]
      %v508 = vld [vmem:[%s471 + $0x48] sm:$0xff]
      %v509 = vld [vmem:[%s471 + $0x50] sm:$0xff]
      %v510 = vld [vmem:[%s471 + $0x68] sm:$0xff]
      %v511 = vld [vmem:[%s471 + $0x70] sm:$0xff]
      %v512 = vld [vmem:[%s471 + $0x88] sm:$0xff]
      %v513 = vld [vmem:[%s471 + $0x90] sm:$0xff]
      %v514 = vld [vmem:[%s471 + $0xa8] sm:$0xff]
      %v515 = vld [vmem:[%s471 + $0xb0] sm:$0xff]
      %v516 = vld [vmem:[%s471 + $0xc8] sm:$0xff]
      %v517 = vld [vmem:[%s471 + $0xd0] sm:$0xff]
      %v518 = vld [vmem:[%s471 + $0xe8] sm:$0xff]
      %v519 = vld [vmem:[%s471 + $0xf0] sm:$0xff]
      %v520 = vld [vmem:[%s471 + $0x108] sm:$0xff]
      %v521 = vld [vmem:[%s471 + $0x110] sm:$0xff]
      %v522 = vld [vmem:[%s471 + $0x128] sm:$0xff]
      %v523 = vld [vmem:[%s471 + $0x130] sm:$0xff]
      %v524 = vld [vmem:[%s471 + $0x148] sm:$0xff]
      %v525 = vld [vmem:[%s471 + $0x150] sm:$0xff]
      %v526 = vld [vmem:[%s471 + $0x168] sm:$0xff]
      %v527 = vld [vmem:[%s471 + $0x170] sm:$0xff]
      %v528 = vld [vmem:[%s471 + $0x188] sm:$0xff]
      %v529 = vld [vmem:[%s471 + $0x190] sm:$0xff]
      %v530 = vld [vmem:[%s471 + $0x1a8] sm:$0xff]
      %v531 = vld [vmem:[%s471 + $0x1b0] sm:$0xff]
      %v532 = vld [vmem:[%s471 + $0x1c8] sm:$0xff]
      %v533 = vld [vmem:[%s471 + $0x1d0] sm:$0xff]
      %v534 = vld [vmem:[%s471 + $0x1e8] sm:$0xff]
      %v535 = vld [vmem:[%s471 + $0x1f0] sm:$0xff]
      %v536 = vld [vmem:[%s471 + $0x9] sm:$0xff]
      %v537 = vld [vmem:[%s471 + $0x11] sm:$0xff]
      %v538 = vld [vmem:[%s471 + $0x29] sm:$0xff]
      %v539 = vld [vmem:[%s471 + $0x31] sm:$0xff]
      %v540 = vld [vmem:[%s471 + $0x49] sm:$0xff]
      %v541 = vld [vmem:[%s471 + $0x51] sm:$0xff]
      %v542 = vld [vmem:[%s471 + $0x69] sm:$0xff]
      %v543 = vld [vmem:[%s471 + $0x71] sm:$0xff]
      %v544 = vld [vmem:[%s471 + $0x89] sm:$0xff]
      %v545 = vld [vmem:[%s471 + $0x91] sm:$0xff]
      %v546 = vld [vmem:[%s471 + $0xa9] sm:$0xff]
      %v547 = vld [vmem:[%s471 + $0xb1] sm:$0xff]
      %v548 = vld [vmem:[%s471 + $0xc9] sm:$0xff]
      %v549 = vld [vmem:[%s471 + $0xd1] sm:$0xff]
      %v550 = vld [vmem:[%s471 + $0xe9] sm:$0xff]
      %v551 = vld [vmem:[%s471 + $0xf1] sm:$0xff]
      %v552 = vld [vmem:[%s471 + $0x109] sm:$0xff]
      %v553 = vld [vmem:[%s471 + $0x111] sm:$0xff]
      %v554 = vld [vmem:[%s471 + $0x129] sm:$0xff]
      %v555 = vld [vmem:[%s471 + $0x131] sm:$0xff]
      %v556 = vld [vmem:[%s471 + $0x149] sm:$0xff]
      %v557 = vld [vmem:[%s471 + $0x151] sm:$0xff]
      %v558 = vld [vmem:[%s471 + $0x169] sm:$0xff]
      %v559 = vld [vmem:[%s471 + $0x171] sm:$0xff]
      %v560 = vld [vmem:[%s471 + $0x189] sm:$0xff]
      %v561 = vld [vmem:[%s471 + $0x191] sm:$0xff]
      %v562 = vld [vmem:[%s471 + $0x1a9] sm:$0xff]
      %v563 = vld [vmem:[%s471 + $0x1b1] sm:$0xff]
      %v564 = vld [vmem:[%s471 + $0x1c9] sm:$0xff]
      %v565 = vld [vmem:[%s471 + $0x1d1] sm:$0xff]
      %v566 = vld [vmem:[%s471 + $0x1e9] sm:$0xff]
      %v567 = vld [vmem:[%s471 + $0x1f1] sm:$0xff]
      %v568 = vpack.c.bf16 %v279, %v279
      %v569 = vpack.c.bf16 %v280, %v280
      %v570 = vpack.c.bf16 %v281, %v281
      %v571 = vpack.c.bf16 %v282, %v282
      %v572 = vpack.c.bf16 %v283, %v283
      %v573 = vpack.c.bf16 %v284, %v284
      %v574 = vpack.c.bf16 %v285, %v285
      %v575 = vpack.c.bf16 %v286, %v286
      %v576 = vpack.c.bf16 %v287, %v287
      %v577 = vpack.c.bf16 %v288, %v288
      %v578 = vpack.c.bf16 %v289, %v289
      %v579 = vpack.c.bf16 %v290, %v290
      %v580 = vpack.c.bf16 %v291, %v291
      %v581 = vpack.c.bf16 %v292, %v292
      %v582 = vpack.c.bf16 %v293, %v293
      %v583 = vpack.c.bf16 %v294, %v294
      %v584 = vpack.c.bf16 %v295, %v295
      %v585 = vpack.c.bf16 %v296, %v296
      %v586 = vpack.c.bf16 %v297, %v297
      %v587 = vpack.c.bf16 %v298, %v298
      %v588 = vpack.c.bf16 %v299, %v299
      %v589 = vpack.c.bf16 %v300, %v300
      %v590 = vpack.c.bf16 %v301, %v301
      %v591 = vpack.c.bf16 %v302, %v302
      %v592 = vpack.c.bf16 %v303, %v303
      %v593 = vpack.c.bf16 %v304, %v304
      %v594 = vpack.c.bf16 %v305, %v305
      %v595 = vpack.c.bf16 %v306, %v306
      %v596 = vpack.c.bf16 %v307, %v307
      %v597 = vpack.c.bf16 %v308, %v308
      %v598 = vpack.c.bf16 %v309, %v309
      %v599 = vpack.c.bf16 %v310, %v310
      %v600 = vpack.c.bf16 %v311, %v311
      %v601 = vpack.c.bf16 %v312, %v312
      %v602 = vpack.c.bf16 %v313, %v313
      %v603 = vpack.c.bf16 %v314, %v314
      %v604 = vpack.c.bf16 %v315, %v315
      %v605 = vpack.c.bf16 %v316, %v316
      %v606 = vpack.c.bf16 %v317, %v317
      %v607 = vpack.c.bf16 %v318, %v318
      %v608 = vpack.c.bf16 %v319, %v319
      %v609 = vpack.c.bf16 %v320, %v320
      %v610 = vpack.c.bf16 %v321, %v321
      %v611 = vpack.c.bf16 %v322, %v322
      %v612 = vpack.c.bf16 %v323, %v323
      %v613 = vpack.c.bf16 %v324, %v324
      %v614 = vpack.c.bf16 %v325, %v325
      %v615 = vpack.c.bf16 %v326, %v326
      %v616 = vpack.c.bf16 %v327, %v327
      %v617 = vpack.c.bf16 %v328, %v328
      %v618 = vpack.c.bf16 %v329, %v329
      %v619 = vpack.c.bf16 %v330, %v330
      %v620 = vpack.c.bf16 %v331, %v331
      %v621 = vpack.c.bf16 %v332, %v332
      %v622 = vpack.c.bf16 %v333, %v333
      %v623 = vpack.c.bf16 %v334, %v334
      %v624 = vpack.c.bf16 %v335, %v335
      %v625 = vpack.c.bf16 %v336, %v336
      %v626 = vpack.c.bf16 %v337, %v337
      %v627 = vpack.c.bf16 %v338, %v338
      %v628 = vpack.c.bf16 %v339, %v339
      %v629 = vpack.c.bf16 %v340, %v340
      %v630 = vpack.c.bf16 %v341, %v341
      %v631 = vpack.c.bf16 %v342, %v342
      %v632 = vpack.c.bf16 %v343, %v343
      %v633 = vpack.c.bf16 %v344, %v344
      %v634 = vpack.c.bf16 %v345, %v345
      %v635 = vpack.c.bf16 %v346, %v346
      %v636 = vpack.c.bf16 %v347, %v347
      %v637 = vpack.c.bf16 %v348, %v348
      %v638 = vpack.c.bf16 %v349, %v349
      %v639 = vpack.c.bf16 %v350, %v350
      %v640 = vpack.c.bf16 %v351, %v351
      %v641 = vpack.c.bf16 %v352, %v352
      %v642 = vpack.c.bf16 %v353, %v353
      %v643 = vpack.c.bf16 %v354, %v354
      %v644 = vpack.c.bf16 %v355, %v355
      %v645 = vpack.c.bf16 %v356, %v356
      %v646 = vpack.c.bf16 %v357, %v357
      %v647 = vpack.c.bf16 %v358, %v358
      %v648 = vpack.c.bf16 %v359, %v359
      %v649 = vpack.c.bf16 %v360, %v360
      %v650 = vpack.c.bf16 %v361, %v361
      %v651 = vpack.c.bf16 %v362, %v362
      %v652 = vpack.c.bf16 %v363, %v363
      %v653 = vpack.c.bf16 %v364, %v364
      %v654 = vpack.c.bf16 %v365, %v365
      %v655 = vpack.c.bf16 %v366, %v366
      %v656 = vpack.c.bf16 %v367, %v367
      %v657 = vpack.c.bf16 %v368, %v368
      %v658 = vpack.c.bf16 %v369, %v369
      %v659 = vpack.c.bf16 %v370, %v370
      %v660 = vpack.c.bf16 %v371, %v371
      %v661 = vpack.c.bf16 %v372, %v372
      %v662 = vpack.c.bf16 %v373, %v373
      %v663 = vpack.c.bf16 %v374, %v374
      %v664 = vpack.c.bf16 %v375, %v375
      %v665 = vpack.c.bf16 %v376, %v376
      %v666 = vpack.c.bf16 %v377, %v377
      %v667 = vpack.c.bf16 %v378, %v378
      %v668 = vpack.c.bf16 %v379, %v379
      %v669 = vpack.c.bf16 %v380, %v380
      %v670 = vpack.c.bf16 %v381, %v381
      %v671 = vpack.c.bf16 %v382, %v382
      %v672 = vpack.c.bf16 %v383, %v383
      %v673 = vpack.c.bf16 %v384, %v384
      %v674 = vpack.c.bf16 %v385, %v385
      %v675 = vpack.c.bf16 %v386, %v386
      %v676 = vpack.c.bf16 %v387, %v387
      %v677 = vpack.c.bf16 %v388, %v388
      %v678 = vpack.c.bf16 %v389, %v389
      %v679 = vpack.c.bf16 %v390, %v390
      %v680 = vpack.c.bf16 %v391, %v391
      %v681 = vpack.c.bf16 %v392, %v392
      %v682 = vpack.c.bf16 %v393, %v393
      %v683 = vpack.c.bf16 %v394, %v394
      %v684 = vpack.c.bf16 %v395, %v395
      %v685 = vpack.c.bf16 %v396, %v396
      %v686 = vpack.c.bf16 %v397, %v397
      %v687 = vpack.c.bf16 %v398, %v398
      %v688 = vpack.c.bf16 %v399, %v399
      %v689 = vpack.c.bf16 %v400, %v400
      %v690 = vpack.c.bf16 %v401, %v401
      %v691 = vpack.c.bf16 %v402, %v402
      %v692 = vpack.c.bf16 %v403, %v403
      %v693 = vpack.c.bf16 %v404, %v404
      %v694 = vpack.c.bf16 %v405, %v405
      %v695 = vpack.c.bf16 %v406, %v406
      %v696 = vpack.c.bf16 %v407, %v407
      %v697 = vpack.c.bf16 %v408, %v408
      %v698 = vpack.c.bf16 %v409, %v409
      %v699 = vpack.c.bf16 %v410, %v410
      %v700 = vpack.c.bf16 %v411, %v411
      %v701 = vpack.c.bf16 %v412, %v412
      %v702 = vpack.c.bf16 %v413, %v413
      %v703 = vpack.c.bf16 %v414, %v414
      %v704 = vpack.c.bf16 %v415, %v415
      %v705 = vpack.c.bf16 %v416, %v416
      %v706 = vpack.c.bf16 %v417, %v417
      %v707 = vpack.c.bf16 %v418, %v418
      %v708 = vpack.c.bf16 %v419, %v419
      %v709 = vpack.c.bf16 %v420, %v420
      %v710 = vpack.c.bf16 %v421, %v421
      %v711 = vpack.c.bf16 %v422, %v422
      %v712 = vpack.c.bf16 %v423, %v423
      %v713 = vpack.c.bf16 %v424, %v424
      %v714 = vpack.c.bf16 %v425, %v425
      %v715 = vpack.c.bf16 %v426, %v426
      %v716 = vpack.c.bf16 %v427, %v427
      %v717 = vpack.c.bf16 %v428, %v428
      %v718 = vpack.c.bf16 %v429, %v429
      %v719 = vpack.c.bf16 %v430, %v430
      %v720 = vpack.c.bf16 %v431, %v431
      %v721 = vpack.c.bf16 %v432, %v432
      %v722 = vpack.c.bf16 %v433, %v433
      %v723 = vpack.c.bf16 %v434, %v434
      %v724 = vpack.c.bf16 %v435, %v435
      %v725 = vpack.c.bf16 %v436, %v436
      %v726 = vpack.c.bf16 %v437, %v437
      %v727 = vpack.c.bf16 %v438, %v438
      %v728 = vpack.c.bf16 %v439, %v439
      %v729 = vpack.c.bf16 %v440, %v440
      %v730 = vpack.c.bf16 %v441, %v441
      %v731 = vpack.c.bf16 %v442, %v442
      %v732 = vpack.c.bf16 %v443, %v443
      %v733 = vpack.c.bf16 %v444, %v444
      %v734 = vpack.c.bf16 %v445, %v445
      %v735 = vpack.c.bf16 %v446, %v446
      %v736 = vpack.c.bf16 %v447, %v447
      %v737 = vpack.c.bf16 %v448, %v448
      %v738 = vpack.c.bf16 %v449, %v449
      %v739 = vpack.c.bf16 %v450, %v450
      %v740 = vpack.c.bf16 %v451, %v451
      %v741 = vpack.c.bf16 %v452, %v452
      %v742 = vpack.c.bf16 %v453, %v453
      %v743 = vpack.c.bf16 %v454, %v454
      %v744 = vpack.c.bf16 %v455, %v455
      %v745 = vpack.c.bf16 %v456, %v456
      %v746 = vpack.c.bf16 %v457, %v457
      %v747 = vpack.c.bf16 %v458, %v458
      %v748 = vpack.c.bf16 %v459, %v459
      %v749 = vpack.c.bf16 %v460, %v460
      %v750 = vpack.c.bf16 %v461, %v461
      %v751 = vpack.c.bf16 %v462, %v462
      %v752 = vpack.c.bf16 %v463, %v463
      %v753 = vpack.c.bf16 %v464, %v464
      %v754 = vpack.c.bf16 %v465, %v465
      %v755 = vpack.c.bf16 %v466, %v466
      %v756 = vpack.c.bf16 %v467, %v467
      %v757 = vpack.c.bf16 %v468, %v468
      %v758 = vpack.c.bf16 %v469, %v469
      %v759 = vpack.c.bf16 %v470, %v470
      %v760 = vpack.c.bf16 %v472, %v472
      %v761 = vpack.c.bf16 %v473, %v473
      %v762 = vpack.c.bf16 %v474, %v474
      %v763 = vpack.c.bf16 %v475, %v475
      %v764 = vpack.c.bf16 %v476, %v476
      %v765 = vpack.c.bf16 %v477, %v477
      %v766 = vpack.c.bf16 %v478, %v478
      %v767 = vpack.c.bf16 %v479, %v479
      %v768 = vpack.c.bf16 %v480, %v480
      %v769 = vpack.c.bf16 %v481, %v481
      %v770 = vpack.c.bf16 %v482, %v482
      %v771 = vpack.c.bf16 %v483, %v483
      %v772 = vpack.c.bf16 %v484, %v484
      %v773 = vpack.c.bf16 %v485, %v485
      %v774 = vpack.c.bf16 %v486, %v486
      %v775 = vpack.c.bf16 %v487, %v487
      %v776 = vpack.c.bf16 %v488, %v488
      %v777 = vpack.c.bf16 %v489, %v489
      %v778 = vpack.c.bf16 %v490, %v490
      %v779 = vpack.c.bf16 %v491, %v491
      %v780 = vpack.c.bf16 %v492, %v492
      %v781 = vpack.c.bf16 %v493, %v493
      %v782 = vpack.c.bf16 %v494, %v494
      %v783 = vpack.c.bf16 %v495, %v495
      %v784 = vpack.c.bf16 %v496, %v496
      %v785 = vpack.c.bf16 %v497, %v497
      %v786 = vpack.c.bf16 %v498, %v498
      %v787 = vpack.c.bf16 %v499, %v499
      %v788 = vpack.c.bf16 %v500, %v500
      %v789 = vpack.c.bf16 %v501, %v501
      %v790 = vpack.c.bf16 %v502, %v502
      %v791 = vpack.c.bf16 %v503, %v503
      %v792 = vpack.c.bf16 %v504, %v504
      %v793 = vpack.c.bf16 %v505, %v505
      %v794 = vpack.c.bf16 %v506, %v506
      %v795 = vpack.c.bf16 %v507, %v507
      %v796 = vpack.c.bf16 %v508, %v508
      %v797 = vpack.c.bf16 %v509, %v509
      %v798 = vpack.c.bf16 %v510, %v510
      %v799 = vpack.c.bf16 %v511, %v511
      %v800 = vpack.c.bf16 %v512, %v512
      %v801 = vpack.c.bf16 %v513, %v513
      %v802 = vpack.c.bf16 %v514, %v514
      %v803 = vpack.c.bf16 %v515, %v515
      %v804 = vpack.c.bf16 %v516, %v516
      %v805 = vpack.c.bf16 %v517, %v517
      %v806 = vpack.c.bf16 %v518, %v518
      %v807 = vpack.c.bf16 %v519, %v519
      %v808 = vpack.c.bf16 %v520, %v520
      %v809 = vpack.c.bf16 %v521, %v521
      %v810 = vpack.c.bf16 %v522, %v522
      %v811 = vpack.c.bf16 %v523, %v523
      %v812 = vpack.c.bf16 %v524, %v524
      %v813 = vpack.c.bf16 %v525, %v525
      %v814 = vpack.c.bf16 %v526, %v526
      %v815 = vpack.c.bf16 %v527, %v527
      %v816 = vpack.c.bf16 %v528, %v528
      %v817 = vpack.c.bf16 %v529, %v529
      %v818 = vpack.c.bf16 %v530, %v530
      %v819 = vpack.c.bf16 %v531, %v531
      %v820 = vpack.c.bf16 %v532, %v532
      %v821 = vpack.c.bf16 %v533, %v533
      %v822 = vpack.c.bf16 %v534, %v534
      %v823 = vpack.c.bf16 %v535, %v535
      %v824 = vpack.c.bf16 %v536, %v536
      %v825 = vpack.c.bf16 %v537, %v537
      %v826 = vpack.c.bf16 %v538, %v538
      %v827 = vpack.c.bf16 %v539, %v539
      %v828 = vpack.c.bf16 %v540, %v540
      %v829 = vpack.c.bf16 %v541, %v541
      %v830 = vpack.c.bf16 %v542, %v542
      %v831 = vpack.c.bf16 %v543, %v543
      %v832 = vpack.c.bf16 %v544, %v544
      %v833 = vpack.c.bf16 %v545, %v545
      %v834 = vpack.c.bf16 %v546, %v546
      %v835 = vpack.c.bf16 %v547, %v547
      %v836 = vpack.c.bf16 %v548, %v548
      %v837 = vpack.c.bf16 %v549, %v549
      %v838 = vpack.c.bf16 %v550, %v550
      %v839 = vpack.c.bf16 %v551, %v551
      %v840 = vpack.c.bf16 %v552, %v552
      %v841 = vpack.c.bf16 %v553, %v553
      %v842 = vpack.c.bf16 %v554, %v554
      %v843 = vpack.c.bf16 %v555, %v555
      %v844 = vpack.c.bf16 %v556, %v556
      %v845 = vpack.c.bf16 %v557, %v557
      %v846 = vpack.c.bf16 %v558, %v558
      %v847 = vpack.c.bf16 %v559, %v559
      %v848 = vpack.c.bf16 %v560, %v560
      %v849 = vpack.c.bf16 %v561, %v561
      %v850 = vpack.c.bf16 %v562, %v562
      %v851 = vpack.c.bf16 %v563, %v563
      %v852 = vpack.c.bf16 %v564, %v564
      %v853 = vpack.c.bf16 %v565, %v565
      %v854 = vpack.c.bf16 %v566, %v566
      %v855 = vpack.c.bf16 %v567, %v567
      %v888 = vunpack.c.l.b16 %v568
      %v889 = vunpack.c.l.b16 %v569
      %v890 = vunpack.c.l.b16 %v570
      %v891 = vunpack.c.l.b16 %v571
      %v892 = vunpack.c.l.b16 %v572
      %v893 = vunpack.c.l.b16 %v573
      %v894 = vunpack.c.l.b16 %v574
      %v895 = vunpack.c.l.b16 %v575
      %v896 = vunpack.c.l.b16 %v576
      %v897 = vunpack.c.l.b16 %v577
      %v898 = vunpack.c.l.b16 %v578
      %v899 = vunpack.c.l.b16 %v579
      %v900 = vunpack.c.l.b16 %v580
      %v901 = vunpack.c.l.b16 %v581
      %v902 = vunpack.c.l.b16 %v582
      %v903 = vunpack.c.l.b16 %v583
      %v904 = vunpack.c.l.b16 %v584
      %v905 = vunpack.c.l.b16 %v585
      %v906 = vunpack.c.l.b16 %v586
      %v907 = vunpack.c.l.b16 %v587
      %v908 = vunpack.c.l.b16 %v588
      %v909 = vunpack.c.l.b16 %v589
      %v910 = vunpack.c.l.b16 %v590
      %v911 = vunpack.c.l.b16 %v591
      %v912 = vunpack.c.l.b16 %v592
      %v913 = vunpack.c.l.b16 %v593
      %v914 = vunpack.c.l.b16 %v594
      %v915 = vunpack.c.l.b16 %v595
      %v916 = vunpack.c.l.b16 %v596
      %v917 = vunpack.c.l.b16 %v597
      %v918 = vunpack.c.l.b16 %v598
      %v919 = vunpack.c.l.b16 %v599
      %v920 = vpack.c.b16 %v889, %v888
      %v921 = vpack.c.b16 %v891, %v890
      %v922 = vpack.c.b16 %v893, %v892
      %v923 = vpack.c.b16 %v895, %v894
      %v924 = vpack.c.b16 %v897, %v896
      %v925 = vpack.c.b16 %v899, %v898
      %v926 = vpack.c.b16 %v901, %v900
      %v927 = vpack.c.b16 %v903, %v902
      %v928 = vpack.c.b16 %v905, %v904
      %v929 = vpack.c.b16 %v907, %v906
      %v930 = vpack.c.b16 %v909, %v908
      %v931 = vpack.c.b16 %v911, %v910
      %v932 = vpack.c.b16 %v913, %v912
      %v933 = vpack.c.b16 %v915, %v914
      %v934 = vpack.c.b16 %v917, %v916
      %v935 = vpack.c.b16 %v919, %v918
      %v968 = vunpack.c.l.b16 %v600
      %v969 = vunpack.c.l.b16 %v601
      %v970 = vunpack.c.l.b16 %v602
      %v971 = vunpack.c.l.b16 %v603
      %v972 = vunpack.c.l.b16 %v604
      %v973 = vunpack.c.l.b16 %v605
      %v974 = vunpack.c.l.b16 %v606
      %v975 = vunpack.c.l.b16 %v607
      %v976 = vunpack.c.l.b16 %v608
      %v977 = vunpack.c.l.b16 %v609
      %v978 = vunpack.c.l.b16 %v610
      %v979 = vunpack.c.l.b16 %v611
      %v980 = vunpack.c.l.b16 %v612
      %v981 = vunpack.c.l.b16 %v613
      %v982 = vunpack.c.l.b16 %v614
      %v983 = vunpack.c.l.b16 %v615
      %v984 = vunpack.c.l.b16 %v616
      %v985 = vunpack.c.l.b16 %v617
      %v986 = vunpack.c.l.b16 %v618
      %v987 = vunpack.c.l.b16 %v619
      %v988 = vunpack.c.l.b16 %v620
      %v989 = vunpack.c.l.b16 %v621
      %v990 = vunpack.c.l.b16 %v622
      %v991 = vunpack.c.l.b16 %v623
      %v992 = vunpack.c.l.b16 %v624
      %v993 = vunpack.c.l.b16 %v625
      %v994 = vunpack.c.l.b16 %v626
      %v995 = vunpack.c.l.b16 %v627
      %v996 = vunpack.c.l.b16 %v628
      %v997 = vunpack.c.l.b16 %v629
      %v998 = vunpack.c.l.b16 %v630
      %v999 = vunpack.c.l.b16 %v631
      %v1000 = vpack.c.b16 %v969, %v968
      %v1001 = vpack.c.b16 %v971, %v970
      %v1002 = vpack.c.b16 %v973, %v972
      %v1003 = vpack.c.b16 %v975, %v974
      %v1004 = vpack.c.b16 %v977, %v976
      %v1005 = vpack.c.b16 %v979, %v978
      %v1006 = vpack.c.b16 %v981, %v980
      %v1007 = vpack.c.b16 %v983, %v982
      %v1008 = vpack.c.b16 %v985, %v984
      %v1009 = vpack.c.b16 %v987, %v986
      %v1010 = vpack.c.b16 %v989, %v988
      %v1011 = vpack.c.b16 %v991, %v990
      %v1012 = vpack.c.b16 %v993, %v992
      %v1013 = vpack.c.b16 %v995, %v994
      %v1014 = vpack.c.b16 %v997, %v996
      %v1015 = vpack.c.b16 %v999, %v998
      %1016 = vrot.lane.b32.xlu0 %v1000, 32
      %v1017 = vpop.permute.xlu0 %1016
      %1018 = vrot.lane.b32.xlu0 %v1001, 32
      %v1019 = vpop.permute.xlu0 %1018
      %1020 = vrot.lane.b32.xlu0 %v1002, 32
      %v1021 = vpop.permute.xlu0 %1020
      %1022 = vrot.lane.b32.xlu0 %v1003, 32
      %v1023 = vpop.permute.xlu0 %1022
      %1024 = vrot.lane.b32.xlu0 %v1004, 32
      %v1025 = vpop.permute.xlu0 %1024
      %1026 = vrot.lane.b32.xlu0 %v1005, 32
      %v1027 = vpop.permute.xlu0 %1026
      %1028 = vrot.lane.b32.xlu0 %v1006, 32
      %v1029 = vpop.permute.xlu0 %1028
      %1030 = vrot.lane.b32.xlu0 %v1007, 32
      %v1031 = vpop.permute.xlu0 %1030
      %1032 = vrot.lane.b32.xlu0 %v1008, 32
      %v1033 = vpop.permute.xlu0 %1032
      %1034 = vrot.lane.b32.xlu0 %v1009, 32
      %v1035 = vpop.permute.xlu0 %1034
      %1036 = vrot.lane.b32.xlu0 %v1010, 32
      %v1037 = vpop.permute.xlu0 %1036
      %1038 = vrot.lane.b32.xlu0 %v1011, 32
      %v1039 = vpop.permute.xlu0 %1038
      %1040 = vrot.lane.b32.xlu0 %v1012, 32
      %v1041 = vpop.permute.xlu0 %1040
      %1042 = vrot.lane.b32.xlu0 %v1013, 32
      %v1043 = vpop.permute.xlu0 %1042
      %1044 = vrot.lane.b32.xlu0 %v1014, 32
      %v1045 = vpop.permute.xlu0 %1044
      %1046 = vrot.lane.b32.xlu0 %v1015, 32
      %v1047 = vpop.permute.xlu0 %1046
      %v1080 = vunpack.c.l.b16 %v632
      %v1081 = vunpack.c.l.b16 %v633
      %v1082 = vunpack.c.l.b16 %v634
      %v1083 = vunpack.c.l.b16 %v635
      %v1084 = vunpack.c.l.b16 %v636
      %v1085 = vunpack.c.l.b16 %v637
      %v1086 = vunpack.c.l.b16 %v638
      %v1087 = vunpack.c.l.b16 %v639
      %v1088 = vunpack.c.l.b16 %v640
      %v1089 = vunpack.c.l.b16 %v641
      %v1090 = vunpack.c.l.b16 %v642
      %v1091 = vunpack.c.l.b16 %v643
      %v1092 = vunpack.c.l.b16 %v644
      %v1093 = vunpack.c.l.b16 %v645
      %v1094 = vunpack.c.l.b16 %v646
      %v1095 = vunpack.c.l.b16 %v647
      %v1096 = vunpack.c.l.b16 %v648
      %v1097 = vunpack.c.l.b16 %v649
      %v1098 = vunpack.c.l.b16 %v650
      %v1099 = vunpack.c.l.b16 %v651
      %v1100 = vunpack.c.l.b16 %v652
      %v1101 = vunpack.c.l.b16 %v653
      %v1102 = vunpack.c.l.b16 %v654
      %v1103 = vunpack.c.l.b16 %v655
      %v1104 = vunpack.c.l.b16 %v656
      %v1105 = vunpack.c.l.b16 %v657
      %v1106 = vunpack.c.l.b16 %v658
      %v1107 = vunpack.c.l.b16 %v659
      %v1108 = vunpack.c.l.b16 %v660
      %v1109 = vunpack.c.l.b16 %v661
      %v1110 = vunpack.c.l.b16 %v662
      %v1111 = vunpack.c.l.b16 %v663
      %v1112 = vpack.c.b16 %v1081, %v1080
      %v1113 = vpack.c.b16 %v1083, %v1082
      %v1114 = vpack.c.b16 %v1085, %v1084
      %v1115 = vpack.c.b16 %v1087, %v1086
      %v1116 = vpack.c.b16 %v1089, %v1088
      %v1117 = vpack.c.b16 %v1091, %v1090
      %v1118 = vpack.c.b16 %v1093, %v1092
      %v1119 = vpack.c.b16 %v1095, %v1094
      %v1120 = vpack.c.b16 %v1097, %v1096
      %v1121 = vpack.c.b16 %v1099, %v1098
      %v1122 = vpack.c.b16 %v1101, %v1100
      %v1123 = vpack.c.b16 %v1103, %v1102
      %v1124 = vpack.c.b16 %v1105, %v1104
      %v1125 = vpack.c.b16 %v1107, %v1106
      %v1126 = vpack.c.b16 %v1109, %v1108
      %v1127 = vpack.c.b16 %v1111, %v1110
      %1128 = vrot.lane.b32.xlu0 %v1112, 64
      %v1129 = vpop.permute.xlu0 %1128
      %1130 = vrot.lane.b32.xlu0 %v1113, 64
      %v1131 = vpop.permute.xlu0 %1130
      %1132 = vrot.lane.b32.xlu0 %v1114, 64
      %v1133 = vpop.permute.xlu0 %1132
      %1134 = vrot.lane.b32.xlu0 %v1115, 64
      %v1135 = vpop.permute.xlu0 %1134
      %1136 = vrot.lane.b32.xlu0 %v1116, 64
      %v1137 = vpop.permute.xlu0 %1136
      %1138 = vrot.lane.b32.xlu0 %v1117, 64
      %v1139 = vpop.permute.xlu0 %1138
      %1140 = vrot.lane.b32.xlu0 %v1118, 64
      %v1141 = vpop.permute.xlu0 %1140
      %1142 = vrot.lane.b32.xlu0 %v1119, 64
      %v1143 = vpop.permute.xlu0 %1142
      %1144 = vrot.lane.b32.xlu0 %v1120, 64
      %v1145 = vpop.permute.xlu0 %1144
      %1146 = vrot.lane.b32.xlu0 %v1121, 64
      %v1147 = vpop.permute.xlu0 %1146
      %1148 = vrot.lane.b32.xlu0 %v1122, 64
      %v1149 = vpop.permute.xlu0 %1148
      %1150 = vrot.lane.b32.xlu0 %v1123, 64
      %v1151 = vpop.permute.xlu0 %1150
      %1152 = vrot.lane.b32.xlu0 %v1124, 64
      %v1153 = vpop.permute.xlu0 %1152
      %1154 = vrot.lane.b32.xlu0 %v1125, 64
      %v1155 = vpop.permute.xlu0 %1154
      %1156 = vrot.lane.b32.xlu0 %v1126, 64
      %v1157 = vpop.permute.xlu0 %1156
      %1158 = vrot.lane.b32.xlu0 %v1127, 64
      %v1159 = vpop.permute.xlu0 %1158
      %v1192 = vunpack.c.l.b16 %v664
      %v1193 = vunpack.c.l.b16 %v665
      %v1194 = vunpack.c.l.b16 %v666
      %v1195 = vunpack.c.l.b16 %v667
      %v1196 = vunpack.c.l.b16 %v668
      %v1197 = vunpack.c.l.b16 %v669
      %v1198 = vunpack.c.l.b16 %v670
      %v1199 = vunpack.c.l.b16 %v671
      %v1200 = vunpack.c.l.b16 %v672
      %v1201 = vunpack.c.l.b16 %v673
      %v1202 = vunpack.c.l.b16 %v674
      %v1203 = vunpack.c.l.b16 %v675
      %v1204 = vunpack.c.l.b16 %v676
      %v1205 = vunpack.c.l.b16 %v677
      %v1206 = vunpack.c.l.b16 %v678
      %v1207 = vunpack.c.l.b16 %v679
      %v1208 = vunpack.c.l.b16 %v680
      %v1209 = vunpack.c.l.b16 %v681
      %v1210 = vunpack.c.l.b16 %v682
      %v1211 = vunpack.c.l.b16 %v683
      %v1212 = vunpack.c.l.b16 %v684
      %v1213 = vunpack.c.l.b16 %v685
      %v1214 = vunpack.c.l.b16 %v686
      %v1215 = vunpack.c.l.b16 %v687
      %v1216 = vunpack.c.l.b16 %v688
      %v1217 = vunpack.c.l.b16 %v689
      %v1218 = vunpack.c.l.b16 %v690
      %v1219 = vunpack.c.l.b16 %v691
      %v1220 = vunpack.c.l.b16 %v692
      %v1221 = vunpack.c.l.b16 %v693
      %v1222 = vunpack.c.l.b16 %v694
      %v1223 = vunpack.c.l.b16 %v695
      %v1224 = vpack.c.b16 %v1193, %v1192
      %v1225 = vpack.c.b16 %v1195, %v1194
      %v1226 = vpack.c.b16 %v1197, %v1196
      %v1227 = vpack.c.b16 %v1199, %v1198
      %v1228 = vpack.c.b16 %v1201, %v1200
      %v1229 = vpack.c.b16 %v1203, %v1202
      %v1230 = vpack.c.b16 %v1205, %v1204
      %v1231 = vpack.c.b16 %v1207, %v1206
      %v1232 = vpack.c.b16 %v1209, %v1208
      %v1233 = vpack.c.b16 %v1211, %v1210
      %v1234 = vpack.c.b16 %v1213, %v1212
      %v1235 = vpack.c.b16 %v1215, %v1214
      %v1236 = vpack.c.b16 %v1217, %v1216
      %v1237 = vpack.c.b16 %v1219, %v1218
      %v1238 = vpack.c.b16 %v1221, %v1220
      %v1239 = vpack.c.b16 %v1223, %v1222
      %1240 = vrot.lane.b32.xlu0 %v1224, 96
      %v1241 = vpop.permute.xlu0 %1240
      %1242 = vrot.lane.b32.xlu0 %v1225, 96
      %v1243 = vpop.permute.xlu0 %1242
      %1244 = vrot.lane.b32.xlu0 %v1226, 96
      %v1245 = vpop.permute.xlu0 %1244
      %1246 = vrot.lane.b32.xlu0 %v1227, 96
      %v1247 = vpop.permute.xlu0 %1246
      %1248 = vrot.lane.b32.xlu0 %v1228, 96
      %v1249 = vpop.permute.xlu0 %1248
      %1250 = vrot.lane.b32.xlu0 %v1229, 96
      %v1251 = vpop.permute.xlu0 %1250
      %1252 = vrot.lane.b32.xlu0 %v1230, 96
      %v1253 = vpop.permute.xlu0 %1252
      %1254 = vrot.lane.b32.xlu0 %v1231, 96
      %v1255 = vpop.permute.xlu0 %1254
      %1256 = vrot.lane.b32.xlu0 %v1232, 96
      %v1257 = vpop.permute.xlu0 %1256
      %1258 = vrot.lane.b32.xlu0 %v1233, 96
      %v1259 = vpop.permute.xlu0 %1258
      %1260 = vrot.lane.b32.xlu0 %v1234, 96
      %v1261 = vpop.permute.xlu0 %1260
      %1262 = vrot.lane.b32.xlu0 %v1235, 96
      %v1263 = vpop.permute.xlu0 %1262
      %1264 = vrot.lane.b32.xlu0 %v1236, 96
      %v1265 = vpop.permute.xlu0 %1264
      %1266 = vrot.lane.b32.xlu0 %v1237, 96
      %v1267 = vpop.permute.xlu0 %1266
      %1268 = vrot.lane.b32.xlu0 %v1238, 96
      %v1269 = vpop.permute.xlu0 %1268
      %1270 = vrot.lane.b32.xlu0 %v1239, 96
      %v1271 = vpop.permute.xlu0 %1270
      %v1304 = vunpack.c.l.b16 %v696
      %v1305 = vunpack.c.l.b16 %v697
      %v1306 = vunpack.c.l.b16 %v698
      %v1307 = vunpack.c.l.b16 %v699
      %v1308 = vunpack.c.l.b16 %v700
      %v1309 = vunpack.c.l.b16 %v701
      %v1310 = vunpack.c.l.b16 %v702
      %v1311 = vunpack.c.l.b16 %v703
      %v1312 = vunpack.c.l.b16 %v704
      %v1313 = vunpack.c.l.b16 %v705
      %v1314 = vunpack.c.l.b16 %v706
      %v1315 = vunpack.c.l.b16 %v707
      %v1316 = vunpack.c.l.b16 %v708
      %v1317 = vunpack.c.l.b16 %v709
      %v1318 = vunpack.c.l.b16 %v710
      %v1319 = vunpack.c.l.b16 %v711
      %v1320 = vunpack.c.l.b16 %v712
      %v1321 = vunpack.c.l.b16 %v713
      %v1322 = vunpack.c.l.b16 %v714
      %v1323 = vunpack.c.l.b16 %v715
      %v1324 = vunpack.c.l.b16 %v716
      %v1325 = vunpack.c.l.b16 %v717
      %v1326 = vunpack.c.l.b16 %v718
      %v1327 = vunpack.c.l.b16 %v719
      %v1328 = vunpack.c.l.b16 %v720
      %v1329 = vunpack.c.l.b16 %v721
      %v1330 = vunpack.c.l.b16 %v722
      %v1331 = vunpack.c.l.b16 %v723
      %v1332 = vunpack.c.l.b16 %v724
      %v1333 = vunpack.c.l.b16 %v725
      %v1334 = vunpack.c.l.b16 %v726
      %v1335 = vunpack.c.l.b16 %v727
      %v1336 = vpack.c.b16 %v1305, %v1304
      %v1337 = vpack.c.b16 %v1307, %v1306
      %v1338 = vpack.c.b16 %v1309, %v1308
      %v1339 = vpack.c.b16 %v1311, %v1310
      %v1340 = vpack.c.b16 %v1313, %v1312
      %v1341 = vpack.c.b16 %v1315, %v1314
      %v1342 = vpack.c.b16 %v1317, %v1316
      %v1343 = vpack.c.b16 %v1319, %v1318
      %v1344 = vpack.c.b16 %v1321, %v1320
      %v1345 = vpack.c.b16 %v1323, %v1322
      %v1346 = vpack.c.b16 %v1325, %v1324
      %v1347 = vpack.c.b16 %v1327, %v1326
      %v1348 = vpack.c.b16 %v1329, %v1328
      %v1349 = vpack.c.b16 %v1331, %v1330
      %v1350 = vpack.c.b16 %v1333, %v1332
      %v1351 = vpack.c.b16 %v1335, %v1334
      %v1384 = vunpack.c.l.b16 %v728
      %v1385 = vunpack.c.l.b16 %v729
      %v1386 = vunpack.c.l.b16 %v730
      %v1387 = vunpack.c.l.b16 %v731
      %v1388 = vunpack.c.l.b16 %v732
      %v1389 = vunpack.c.l.b16 %v733
      %v1390 = vunpack.c.l.b16 %v734
      %v1391 = vunpack.c.l.b16 %v735
      %v1392 = vunpack.c.l.b16 %v736
      %v1393 = vunpack.c.l.b16 %v737
      %v1394 = vunpack.c.l.b16 %v738
      %v1395 = vunpack.c.l.b16 %v739
      %v1396 = vunpack.c.l.b16 %v740
      %v1397 = vunpack.c.l.b16 %v741
      %v1398 = vunpack.c.l.b16 %v742
      %v1399 = vunpack.c.l.b16 %v743
      %v1400 = vunpack.c.l.b16 %v744
      %v1401 = vunpack.c.l.b16 %v745
      %v1402 = vunpack.c.l.b16 %v746
      %v1403 = vunpack.c.l.b16 %v747
      %v1404 = vunpack.c.l.b16 %v748
      %v1405 = vunpack.c.l.b16 %v749
      %v1406 = vunpack.c.l.b16 %v750
      %v1407 = vunpack.c.l.b16 %v751
      %v1408 = vunpack.c.l.b16 %v752
      %v1409 = vunpack.c.l.b16 %v753
      %v1410 = vunpack.c.l.b16 %v754
      %v1411 = vunpack.c.l.b16 %v755
      %v1412 = vunpack.c.l.b16 %v756
      %v1413 = vunpack.c.l.b16 %v757
      %v1414 = vunpack.c.l.b16 %v758
      %v1415 = vunpack.c.l.b16 %v759
      %v1416 = vpack.c.b16 %v1385, %v1384
      %v1417 = vpack.c.b16 %v1387, %v1386
      %v1418 = vpack.c.b16 %v1389, %v1388
      %v1419 = vpack.c.b16 %v1391, %v1390
      %v1420 = vpack.c.b16 %v1393, %v1392
      %v1421 = vpack.c.b16 %v1395, %v1394
      %v1422 = vpack.c.b16 %v1397, %v1396
      %v1423 = vpack.c.b16 %v1399, %v1398
      %v1424 = vpack.c.b16 %v1401, %v1400
      %v1425 = vpack.c.b16 %v1403, %v1402
      %v1426 = vpack.c.b16 %v1405, %v1404
      %v1427 = vpack.c.b16 %v1407, %v1406
      %v1428 = vpack.c.b16 %v1409, %v1408
      %v1429 = vpack.c.b16 %v1411, %v1410
      %v1430 = vpack.c.b16 %v1413, %v1412
      %v1431 = vpack.c.b16 %v1415, %v1414
      %1432 = vrot.lane.b32.xlu0 %v1416, 32
      %v1433 = vpop.permute.xlu0 %1432
      %1434 = vrot.lane.b32.xlu0 %v1417, 32
      %v1435 = vpop.permute.xlu0 %1434
      %1436 = vrot.lane.b32.xlu0 %v1418, 32
      %v1437 = vpop.permute.xlu0 %1436
      %1438 = vrot.lane.b32.xlu0 %v1419, 32
      %v1439 = vpop.permute.xlu0 %1438
      %1440 = vrot.lane.b32.xlu0 %v1420, 32
      %v1441 = vpop.permute.xlu0 %1440
      %1442 = vrot.lane.b32.xlu0 %v1421, 32
      %v1443 = vpop.permute.xlu0 %1442
      %1444 = vrot.lane.b32.xlu0 %v1422, 32
      %v1445 = vpop.permute.xlu0 %1444
      %1446 = vrot.lane.b32.xlu0 %v1423, 32
      %v1447 = vpop.permute.xlu0 %1446
      %1448 = vrot.lane.b32.xlu0 %v1424, 32
      %v1449 = vpop.permute.xlu0 %1448
      %1450 = vrot.lane.b32.xlu0 %v1425, 32
      %v1451 = vpop.permute.xlu0 %1450
      %1452 = vrot.lane.b32.xlu0 %v1426, 32
      %v1453 = vpop.permute.xlu0 %1452
      %1454 = vrot.lane.b32.xlu0 %v1427, 32
      %v1455 = vpop.permute.xlu0 %1454
      %1456 = vrot.lane.b32.xlu0 %v1428, 32
      %v1457 = vpop.permute.xlu0 %1456
      %1458 = vrot.lane.b32.xlu0 %v1429, 32
      %v1459 = vpop.permute.xlu0 %1458
      %1460 = vrot.lane.b32.xlu0 %v1430, 32
      %v1461 = vpop.permute.xlu0 %1460
      %1462 = vrot.lane.b32.xlu0 %v1431, 32
      %v1463 = vpop.permute.xlu0 %1462
      %v1496 = vunpack.c.l.b16 %v760
      %v1497 = vunpack.c.l.b16 %v761
      %v1498 = vunpack.c.l.b16 %v762
      %v1499 = vunpack.c.l.b16 %v763
      %v1500 = vunpack.c.l.b16 %v764
      %v1501 = vunpack.c.l.b16 %v765
      %v1502 = vunpack.c.l.b16 %v766
      %v1503 = vunpack.c.l.b16 %v767
      %v1504 = vunpack.c.l.b16 %v768
      %v1505 = vunpack.c.l.b16 %v769
      %v1506 = vunpack.c.l.b16 %v770
      %v1507 = vunpack.c.l.b16 %v771
      %v1508 = vunpack.c.l.b16 %v772
      %v1509 = vunpack.c.l.b16 %v773
      %v1510 = vunpack.c.l.b16 %v774
      %v1511 = vunpack.c.l.b16 %v775
      %v1512 = vunpack.c.l.b16 %v776
      %v1513 = vunpack.c.l.b16 %v777
      %v1514 = vunpack.c.l.b16 %v778
      %v1515 = vunpack.c.l.b16 %v779
      %v1516 = vunpack.c.l.b16 %v780
      %v1517 = vunpack.c.l.b16 %v781
      %v1518 = vunpack.c.l.b16 %v782
      %v1519 = vunpack.c.l.b16 %v783
      %v1520 = vunpack.c.l.b16 %v784
      %v1521 = vunpack.c.l.b16 %v785
      %v1522 = vunpack.c.l.b16 %v786
      %v1523 = vunpack.c.l.b16 %v787
      %v1524 = vunpack.c.l.b16 %v788
      %v1525 = vunpack.c.l.b16 %v789
      %v1526 = vunpack.c.l.b16 %v790
      %v1527 = vunpack.c.l.b16 %v791
      %v1528 = vpack.c.b16 %v1497, %v1496
      %v1529 = vpack.c.b16 %v1499, %v1498
      %v1530 = vpack.c.b16 %v1501, %v1500
      %v1531 = vpack.c.b16 %v1503, %v1502
      %v1532 = vpack.c.b16 %v1505, %v1504
      %v1533 = vpack.c.b16 %v1507, %v1506
      %v1534 = vpack.c.b16 %v1509, %v1508
      %v1535 = vpack.c.b16 %v1511, %v1510
      %v1536 = vpack.c.b16 %v1513, %v1512
      %v1537 = vpack.c.b16 %v1515, %v1514
      %v1538 = vpack.c.b16 %v1517, %v1516
      %v1539 = vpack.c.b16 %v1519, %v1518
      %v1540 = vpack.c.b16 %v1521, %v1520
      %v1541 = vpack.c.b16 %v1523, %v1522
      %v1542 = vpack.c.b16 %v1525, %v1524
      %v1543 = vpack.c.b16 %v1527, %v1526
      %1544 = vrot.lane.b32.xlu0 %v1528, 64
      %v1545 = vpop.permute.xlu0 %1544
      %1546 = vrot.lane.b32.xlu0 %v1529, 64
      %v1547 = vpop.permute.xlu0 %1546
      %1548 = vrot.lane.b32.xlu0 %v1530, 64
      %v1549 = vpop.permute.xlu0 %1548
      %1550 = vrot.lane.b32.xlu0 %v1531, 64
      %v1551 = vpop.permute.xlu0 %1550
      %1552 = vrot.lane.b32.xlu0 %v1532, 64
      %v1553 = vpop.permute.xlu0 %1552
      %1554 = vrot.lane.b32.xlu0 %v1533, 64
      %v1555 = vpop.permute.xlu0 %1554
      %1556 = vrot.lane.b32.xlu0 %v1534, 64
      %v1557 = vpop.permute.xlu0 %1556
      %1558 = vrot.lane.b32.xlu0 %v1535, 64
      %v1559 = vpop.permute.xlu0 %1558
      %1560 = vrot.lane.b32.xlu0 %v1536, 64
      %v1561 = vpop.permute.xlu0 %1560
      %1562 = vrot.lane.b32.xlu0 %v1537, 64
      %v1563 = vpop.permute.xlu0 %1562
      %1564 = vrot.lane.b32.xlu0 %v1538, 64
      %v1565 = vpop.permute.xlu0 %1564
      %1566 = vrot.lane.b32.xlu0 %v1539, 64
      %v1567 = vpop.permute.xlu0 %1566
      %1568 = vrot.lane.b32.xlu0 %v1540, 64
      %v1569 = vpop.permute.xlu0 %1568
      %1570 = vrot.lane.b32.xlu0 %v1541, 64
      %v1571 = vpop.permute.xlu0 %1570
      %1572 = vrot.lane.b32.xlu0 %v1542, 64
      %v1573 = vpop.permute.xlu0 %1572
      %1574 = vrot.lane.b32.xlu0 %v1543, 64
      %v1575 = vpop.permute.xlu0 %1574
      %v1608 = vunpack.c.l.b16 %v792
      %v1609 = vunpack.c.l.b16 %v793
      %v1610 = vunpack.c.l.b16 %v794
      %v1611 = vunpack.c.l.b16 %v795
      %v1612 = vunpack.c.l.b16 %v796
      %v1613 = vunpack.c.l.b16 %v797
      %v1614 = vunpack.c.l.b16 %v798
      %v1615 = vunpack.c.l.b16 %v799
      %v1616 = vunpack.c.l.b16 %v800
      %v1617 = vunpack.c.l.b16 %v801
      %v1618 = vunpack.c.l.b16 %v802
      %v1619 = vunpack.c.l.b16 %v803
      %v1620 = vunpack.c.l.b16 %v804
      %v1621 = vunpack.c.l.b16 %v805
      %v1622 = vunpack.c.l.b16 %v806
      %v1623 = vunpack.c.l.b16 %v807
      %v1624 = vunpack.c.l.b16 %v808
      %v1625 = vunpack.c.l.b16 %v809
      %v1626 = vunpack.c.l.b16 %v810
      %v1627 = vunpack.c.l.b16 %v811
      %v1628 = vunpack.c.l.b16 %v812
      %v1629 = vunpack.c.l.b16 %v813
      %v1630 = vunpack.c.l.b16 %v814
      %v1631 = vunpack.c.l.b16 %v815
      %v1632 = vunpack.c.l.b16 %v816
      %v1633 = vunpack.c.l.b16 %v817
      %v1634 = vunpack.c.l.b16 %v818
      %v1635 = vunpack.c.l.b16 %v819
      %v1636 = vunpack.c.l.b16 %v820
      %v1637 = vunpack.c.l.b16 %v821
      %v1638 = vunpack.c.l.b16 %v822
      %v1639 = vunpack.c.l.b16 %v823
      %v1640 = vpack.c.b16 %v1609, %v1608
      %v1641 = vpack.c.b16 %v1611, %v1610
      %v1642 = vpack.c.b16 %v1613, %v1612
      %v1643 = vpack.c.b16 %v1615, %v1614
      %v1644 = vpack.c.b16 %v1617, %v1616
      %v1645 = vpack.c.b16 %v1619, %v1618
      %v1646 = vpack.c.b16 %v1621, %v1620
      %v1647 = vpack.c.b16 %v1623, %v1622
      %v1648 = vpack.c.b16 %v1625, %v1624
      %v1649 = vpack.c.b16 %v1627, %v1626
      %v1650 = vpack.c.b16 %v1629, %v1628
      %v1651 = vpack.c.b16 %v1631, %v1630
      %v1652 = vpack.c.b16 %v1633, %v1632
      %v1653 = vpack.c.b16 %v1635, %v1634
      %v1654 = vpack.c.b16 %v1637, %v1636
      %v1655 = vpack.c.b16 %v1639, %v1638
      %1656 = vrot.lane.b32.xlu0 %v1640, 96
      %v1657 = vpop.permute.xlu0 %1656
      %1658 = vrot.lane.b32.xlu0 %v1641, 96
      %v1659 = vpop.permute.xlu0 %1658
      %1660 = vrot.lane.b32.xlu0 %v1642, 96
      %v1661 = vpop.permute.xlu0 %1660
      %1662 = vrot.lane.b32.xlu0 %v1643, 96
      %v1663 = vpop.permute.xlu0 %1662
      %1664 = vrot.lane.b32.xlu0 %v1644, 96
      %v1665 = vpop.permute.xlu0 %1664
      %1666 = vrot.lane.b32.xlu0 %v1645, 96
      %v1667 = vpop.permute.xlu0 %1666
      %1668 = vrot.lane.b32.xlu0 %v1646, 96
      %v1669 = vpop.permute.xlu0 %1668
      %1670 = vrot.lane.b32.xlu0 %v1647, 96
      %v1671 = vpop.permute.xlu0 %1670
      %1672 = vrot.lane.b32.xlu0 %v1648, 96
      %v1673 = vpop.permute.xlu0 %1672
      %1674 = vrot.lane.b32.xlu0 %v1649, 96
      %v1675 = vpop.permute.xlu0 %1674
      %1676 = vrot.lane.b32.xlu0 %v1650, 96
      %v1677 = vpop.permute.xlu0 %1676
      %1678 = vrot.lane.b32.xlu0 %v1651, 96
      %v1679 = vpop.permute.xlu0 %1678
      %1680 = vrot.lane.b32.xlu0 %v1652, 96
      %v1681 = vpop.permute.xlu0 %1680
      %1682 = vrot.lane.b32.xlu0 %v1653, 96
      %v1683 = vpop.permute.xlu0 %1682
      %1684 = vrot.lane.b32.xlu0 %v1654, 96
      %v1685 = vpop.permute.xlu0 %1684
      %1686 = vrot.lane.b32.xlu0 %v1655, 96
      %v1687 = vpop.permute.xlu0 %1686
      %v1720 = vunpack.c.l.b16 %v824
      %v1721 = vunpack.c.l.b16 %v825
      %v1722 = vunpack.c.l.b16 %v826
      %v1723 = vunpack.c.l.b16 %v827
      %v1724 = vunpack.c.l.b16 %v828
      %v1725 = vunpack.c.l.b16 %v829
      %v1726 = vunpack.c.l.b16 %v830
      %v1727 = vunpack.c.l.b16 %v831
      %v1728 = vunpack.c.l.b16 %v832
      %v1729 = vunpack.c.l.b16 %v833
      %v1730 = vunpack.c.l.b16 %v834
      %v1731 = vunpack.c.l.b16 %v835
      %v1732 = vunpack.c.l.b16 %v836
      %v1733 = vunpack.c.l.b16 %v837
      %v1734 = vunpack.c.l.b16 %v838
      %v1735 = vunpack.c.l.b16 %v839
      %v1736 = vunpack.c.l.b16 %v840
      %v1737 = vunpack.c.l.b16 %v841
      %v1738 = vunpack.c.l.b16 %v842
      %v1739 = vunpack.c.l.b16 %v843
      %v1740 = vunpack.c.l.b16 %v844
      %v1741 = vunpack.c.l.b16 %v845
      %v1742 = vunpack.c.l.b16 %v846
      %v1743 = vunpack.c.l.b16 %v847
      %v1744 = vunpack.c.l.b16 %v848
      %v1745 = vunpack.c.l.b16 %v849
      %v1746 = vunpack.c.l.b16 %v850
      %v1747 = vunpack.c.l.b16 %v851
      %v1748 = vunpack.c.l.b16 %v852
      %v1749 = vunpack.c.l.b16 %v853
      %v1750 = vunpack.c.l.b16 %v854
      %v1751 = vunpack.c.l.b16 %v855
      %v1752 = vpack.c.b16 %v1721, %v1720
      %v1753 = vpack.c.b16 %v1723, %v1722
      %v1754 = vpack.c.b16 %v1725, %v1724
      %v1755 = vpack.c.b16 %v1727, %v1726
      %v1756 = vpack.c.b16 %v1729, %v1728
      %v1757 = vpack.c.b16 %v1731, %v1730
      %v1758 = vpack.c.b16 %v1733, %v1732
      %v1759 = vpack.c.b16 %v1735, %v1734
      %v1760 = vpack.c.b16 %v1737, %v1736
      %v1761 = vpack.c.b16 %v1739, %v1738
      %v1762 = vpack.c.b16 %v1741, %v1740
      %v1763 = vpack.c.b16 %v1743, %v1742
      %v1764 = vpack.c.b16 %v1745, %v1744
      %v1765 = vpack.c.b16 %v1747, %v1746
      %v1766 = vpack.c.b16 %v1749, %v1748
      %v1767 = vpack.c.b16 %v1751, %v1750
      %v1770 = vsel %vm172, %v920, %v1017
      %v1773 = vsel %vm172, %v921, %v1019
      %v1776 = vsel %vm172, %v922, %v1021
      %v1779 = vsel %vm172, %v923, %v1023
      %v1782 = vsel %vm172, %v924, %v1025
      %v1785 = vsel %vm172, %v925, %v1027
      %v1788 = vsel %vm172, %v926, %v1029
      %v1791 = vsel %vm172, %v927, %v1031
      %v1794 = vsel %vm172, %v928, %v1033
      %v1797 = vsel %vm172, %v929, %v1035
      %v1800 = vsel %vm172, %v930, %v1037
      %v1803 = vsel %vm172, %v931, %v1039
      %v1806 = vsel %vm172, %v932, %v1041
      %v1809 = vsel %vm172, %v933, %v1043
      %v1812 = vsel %vm172, %v934, %v1045
      %v1815 = vsel %vm172, %v935, %v1047
      %vm1816 = vcmask 523264
      %v1818 = vsel %vm1816, %v1770, %v1129
      %v1820 = vsel %vm1816, %v1773, %v1131
      %v1822 = vsel %vm1816, %v1776, %v1133
      %v1824 = vsel %vm1816, %v1779, %v1135
      %v1826 = vsel %vm1816, %v1782, %v1137
      %v1828 = vsel %vm1816, %v1785, %v1139
      %v1830 = vsel %vm1816, %v1788, %v1141
      %v1832 = vsel %vm1816, %v1791, %v1143
      %v1834 = vsel %vm1816, %v1794, %v1145
      %v1836 = vsel %vm1816, %v1797, %v1147
      %v1838 = vsel %vm1816, %v1800, %v1149
      %v1840 = vsel %vm1816, %v1803, %v1151
      %v1842 = vsel %vm1816, %v1806, %v1153
      %v1844 = vsel %vm1816, %v1809, %v1155
      %v1846 = vsel %vm1816, %v1812, %v1157
      %v1848 = vsel %vm1816, %v1815, %v1159
      %vm1849 = vcmask 785408
      %v1851 = vsel %vm1849, %v1818, %v1241
      %v1854 = vsel %vm1849, %v1820, %v1243
      %v1857 = vsel %vm1849, %v1822, %v1245
      %v1860 = vsel %vm1849, %v1824, %v1247
      %v1863 = vsel %vm1849, %v1826, %v1249
      %v1866 = vsel %vm1849, %v1828, %v1251
      %v1869 = vsel %vm1849, %v1830, %v1253
      %v1872 = vsel %vm1849, %v1832, %v1255
      %v1875 = vsel %vm1849, %v1834, %v1257
      %v1878 = vsel %vm1849, %v1836, %v1259
      %v1881 = vsel %vm1849, %v1838, %v1261
      %v1884 = vsel %vm1849, %v1840, %v1263
      %v1887 = vsel %vm1849, %v1842, %v1265
      %v1890 = vsel %vm1849, %v1844, %v1267
      %v1893 = vsel %vm1849, %v1846, %v1269
      %v1896 = vsel %vm1849, %v1848, %v1271
      %v1900 = vsel %vm172, %v1336, %v1433
      %v1903 = vsel %vm172, %v1337, %v1435
      %v1906 = vsel %vm172, %v1338, %v1437
      %v1909 = vsel %vm172, %v1339, %v1439
      %v1912 = vsel %vm172, %v1340, %v1441
      %v1915 = vsel %vm172, %v1341, %v1443
      %v1918 = vsel %vm172, %v1342, %v1445
      %v1921 = vsel %vm172, %v1343, %v1447
      %v1924 = vsel %vm172, %v1344, %v1449
      %v1927 = vsel %vm172, %v1345, %v1451
      %v1930 = vsel %vm172, %v1346, %v1453
      %v1933 = vsel %vm172, %v1347, %v1455
      %v1936 = vsel %vm172, %v1348, %v1457
      %v1939 = vsel %vm172, %v1349, %v1459
      %v1942 = vsel %vm172, %v1350, %v1461
      %v1945 = vsel %vm172, %v1351, %v1463
      %v1947 = vsel %vm1816, %v1900, %v1545
      %v1949 = vsel %vm1816, %v1903, %v1547
      %v1951 = vsel %vm1816, %v1906, %v1549
      %v1953 = vsel %vm1816, %v1909, %v1551
      %v1955 = vsel %vm1816, %v1912, %v1553
      %v1957 = vsel %vm1816, %v1915, %v1555
      %v1959 = vsel %vm1816, %v1918, %v1557
      %v1961 = vsel %vm1816, %v1921, %v1559
      %v1963 = vsel %vm1816, %v1924, %v1561
      %v1965 = vsel %vm1816, %v1927, %v1563
      %v1967 = vsel %vm1816, %v1930, %v1565
      %v1969 = vsel %vm1816, %v1933, %v1567
      %v1971 = vsel %vm1816, %v1936, %v1569
      %v1973 = vsel %vm1816, %v1939, %v1571
      %v1975 = vsel %vm1816, %v1942, %v1573
      %v1977 = vsel %vm1816, %v1945, %v1575
      %v1979 = vsel %vm1849, %v1947, %v1657
      %v1982 = vsel %vm1849, %v1949, %v1659
      %v1985 = vsel %vm1849, %v1951, %v1661
      %v1988 = vsel %vm1849, %v1953, %v1663
      %v1991 = vsel %vm1849, %v1955, %v1665
      %v1994 = vsel %vm1849, %v1957, %v1667
      %v1997 = vsel %vm1849, %v1959, %v1669
      %v2000 = vsel %vm1849, %v1961, %v1671
      %v2003 = vsel %vm1849, %v1963, %v1673
      %v2006 = vsel %vm1849, %v1965, %v1675
      %v2009 = vsel %vm1849, %v1967, %v1677
      %v2012 = vsel %vm1849, %v1969, %v1679
      %v2015 = vsel %vm1849, %v1971, %v1681
      %v2018 = vsel %vm1849, %v1973, %v1683
      %v2021 = vsel %vm1849, %v1975, %v1685
      %v2024 = vsel %vm1849, %v1977, %v1687
      %v2026 = vld [vmem:[%s1] sm:$0xf]
      %v2027 = vld [vmem:[%s1 + $0x4] sm:$0xf]
      %v2028 = vld [vmem:[%s1 + $0x8] sm:$0xf]
      %v2029 = vld [vmem:[%s1 + $0xc] sm:$0xf]
      %v2030 = vld [vmem:[%s1 + $0x10] sm:$0xf]
      %v2031 = vld [vmem:[%s1 + $0x14] sm:$0xf]
      %v2032 = vld [vmem:[%s1 + $0x18] sm:$0xf]
      %v2033 = vld [vmem:[%s1 + $0x1c] sm:$0xf]
      %v2034 = vld [vmem:[%s1 + $0x20] sm:$0xf]
      %v2035 = vld [vmem:[%s1 + $0x24] sm:$0xf]
      %v2036 = vld [vmem:[%s1 + $0x28] sm:$0xf]
      %v2037 = vld [vmem:[%s1 + $0x2c] sm:$0xf]
      %v2038 = vld [vmem:[%s1 + $0x30] sm:$0xf]
      %v2039 = vld [vmem:[%s1 + $0x34] sm:$0xf]
      %v2040 = vld [vmem:[%s1 + $0x38] sm:$0xf]
      %v2041 = vld [vmem:[%s1 + $0x3c] sm:$0xf]
      %v2042 = vld [vmem:[%s1 + $0x40] sm:$0xf]
      %v2043 = vld [vmem:[%s1 + $0x44] sm:$0xf]
      %v2044 = vld [vmem:[%s1 + $0x48] sm:$0xf]
      %v2045 = vld [vmem:[%s1 + $0x4c] sm:$0xf]
      %v2046 = vld [vmem:[%s1 + $0x50] sm:$0xf]
      %v2047 = vld [vmem:[%s1 + $0x54] sm:$0xf]
      %v2048 = vld [vmem:[%s1 + $0x58] sm:$0xf]
      %v2049 = vld [vmem:[%s1 + $0x5c] sm:$0xf]
      %v2050 = vld [vmem:[%s1 + $0x60] sm:$0xf]
      %v2051 = vld [vmem:[%s1 + $0x64] sm:$0xf]
      %v2052 = vld [vmem:[%s1 + $0x68] sm:$0xf]
      %v2053 = vld [vmem:[%s1 + $0x6c] sm:$0xf]
      %v2054 = vld [vmem:[%s1 + $0x70] sm:$0xf]
      %v2055 = vld [vmem:[%s1 + $0x74] sm:$0xf]
      %v2056 = vld [vmem:[%s1 + $0x78] sm:$0xf]
      %v2057 = vld [vmem:[%s1 + $0x7c] sm:$0xf]
      %v2058 = vld [vmem:[%s1 + $0x80] sm:$0xf]
      %v2059 = vld [vmem:[%s1 + $0x84] sm:$0xf]
      %v2060 = vld [vmem:[%s1 + $0x88] sm:$0xf]
      %v2061 = vld [vmem:[%s1 + $0x8c] sm:$0xf]
      %v2062 = vld [vmem:[%s2] sm:$0x1]
      %v2064 = vperm.slane %v2062, 0
      %v2102 = vunpack.c.l.b16 %v2026
      %v2103 = vunpack.c.l.b16 %v2027
      %v2104 = vunpack.c.l.b16 %v2028
      %v2105 = vunpack.c.l.b16 %v2029
      %v2106 = vunpack.c.l.b16 %v2030
      %v2107 = vunpack.c.l.b16 %v2031
      %v2108 = vunpack.c.l.b16 %v2032
      %v2109 = vunpack.c.l.b16 %v2033
      %v2110 = vunpack.c.l.b16 %v2034
      %v2111 = vunpack.c.l.b16 %v2035
      %v2112 = vunpack.c.l.b16 %v2036
      %v2113 = vunpack.c.l.b16 %v2037
      %v2114 = vunpack.c.l.b16 %v2038
      %v2115 = vunpack.c.l.b16 %v2039
      %v2116 = vunpack.c.l.b16 %v2040
      %v2117 = vunpack.c.l.b16 %v2041
      %v2118 = vunpack.c.l.b16 %v2042
      %v2119 = vunpack.c.l.b16 %v2043
      %v2120 = vunpack.c.l.b16 %v2044
      %v2121 = vunpack.c.l.b16 %v2045
      %v2122 = vunpack.c.l.b16 %v2046
      %v2123 = vunpack.c.l.b16 %v2047
      %v2124 = vunpack.c.l.b16 %v2048
      %v2125 = vunpack.c.l.b16 %v2049
      %v2126 = vunpack.c.l.b16 %v2050
      %v2127 = vunpack.c.l.b16 %v2051
      %v2128 = vunpack.c.l.b16 %v2052
      %v2129 = vunpack.c.l.b16 %v2053
      %v2130 = vunpack.c.l.b16 %v2054
      %v2131 = vunpack.c.l.b16 %v2055
      %v2132 = vunpack.c.l.b16 %v2056
      %v2133 = vunpack.c.l.b16 %v2057
      %v2134 = vunpack.c.l.b16 %v2058
      %v2135 = vunpack.c.l.b16 %v2059
      %v2136 = vunpack.c.l.b16 %v2060
      %v2137 = vunpack.c.l.b16 %v2061
      %v2138 = vpack.c.b16 %v2103, %v2102
      %v2139 = vpack.c.b16 %v2105, %v2104
      %v2140 = vpack.c.b16 %v2107, %v2106
      %v2141 = vpack.c.b16 %v2109, %v2108
      %v2142 = vpack.c.b16 %v2111, %v2110
      %v2143 = vpack.c.b16 %v2113, %v2112
      %v2144 = vpack.c.b16 %v2115, %v2114
      %v2145 = vpack.c.b16 %v2117, %v2116
      %v2146 = vpack.c.b16 %v2119, %v2118
      %v2147 = vpack.c.b16 %v2121, %v2120
      %v2148 = vpack.c.b16 %v2123, %v2122
      %v2149 = vpack.c.b16 %v2125, %v2124
      %v2150 = vpack.c.b16 %v2127, %v2126
      %v2151 = vpack.c.b16 %v2129, %v2128
      %v2152 = vpack.c.b16 %v2131, %v2130
      %v2153 = vpack.c.b16 %v2133, %v2132
      %v2154 = vpack.c.b16 %v2135, %v2134
      %v2155 = vpack.c.b16 %v2137, %v2136
      %v2175 = vsel %vm172, %v1752, 0
      %v2178 = vsel %vm172, %v1753, 0
      %v2181 = vsel %vm172, %v1754, 0
      %v2184 = vsel %vm172, %v1755, 0
      %v2187 = vsel %vm172, %v1756, 0
      %v2190 = vsel %vm172, %v1757, 0
      %v2193 = vsel %vm172, %v1758, 0
      %v2196 = vsel %vm172, %v1759, 0
      %v2199 = vsel %vm172, %v1760, 0
      %v2202 = vsel %vm172, %v1761, 0
      %v2205 = vsel %vm172, %v1762, 0
      %v2208 = vsel %vm172, %v1763, 0
      %v2211 = vsel %vm172, %v1764, 0
      %v2214 = vsel %vm172, %v1765, 0
      %v2217 = vsel %vm172, %v1766, 0
      %v2220 = vsel %vm172, %v1767, 0
      %2222 = vmatpush.bf16.msra.mxu0 %v2145
      %2223 = vmatpush.bf16.msra.mxu0 %v2144
      %2224 = vmatpush.bf16.msra.mxu0 %v2143
      %2225 = vmatpush.bf16.msra.mxu0 %v2142
      %2226 = vmatpush.bf16.msra.mxu0 %v2141
      %2227 = vmatpush.bf16.msra.mxu0 %v2140
      %2228 = vmatpush.bf16.msra.mxu0 %v2139
      %2229 = vmatpush.bf16.msra.mxu0 %v2138
      %2230 = vmatmul.bf16.gmra.mxu0 %v1851
      %v2231 = vpop.f32.mrf.mxu0
      %v2232 = vadd.f32 %v2064, %v2231
      %v2233 = vpop.f32.mrf.mxu0
      %v2234 = vadd.f32 %v2064, %v2233
      %2235 = vmatmul.bf16.gmra.mxu0 %v1854
      %v2236 = vpop.f32.mrf.mxu0
      %v2237 = vadd.f32 %v2064, %v2236
      %v2238 = vpop.f32.mrf.mxu0
      %v2239 = vadd.f32 %v2064, %v2238
      %2240 = vmatmul.bf16.gmra.mxu0 %v1857
      %v2241 = vpop.f32.mrf.mxu0
      %v2242 = vadd.f32 %v2064, %v2241
      %v2243 = vpop.f32.mrf.mxu0
      %v2244 = vadd.f32 %v2064, %v2243
      %2245 = vmatmul.bf16.gmra.mxu0 %v1860
      %v2246 = vpop.f32.mrf.mxu0
      %v2247 = vadd.f32 %v2064, %v2246
      %v2248 = vpop.f32.mrf.mxu0
      %v2249 = vadd.f32 %v2064, %v2248
      %2250 = vmatmul.bf16.gmra.mxu0 %v1863
      %v2251 = vpop.f32.mrf.mxu0
      %v2252 = vadd.f32 %v2064, %v2251
      %v2253 = vpop.f32.mrf.mxu0
      %v2254 = vadd.f32 %v2064, %v2253
      %2255 = vmatmul.bf16.gmra.mxu0 %v1866
      %v2256 = vpop.f32.mrf.mxu0
      %v2257 = vadd.f32 %v2064, %v2256
      %v2258 = vpop.f32.mrf.mxu0
      %v2259 = vadd.f32 %v2064, %v2258
      %2260 = vmatmul.bf16.gmra.mxu0 %v1869
      %v2261 = vpop.f32.mrf.mxu0
      %v2262 = vadd.f32 %v2064, %v2261
      %v2263 = vpop.f32.mrf.mxu0
      %v2264 = vadd.f32 %v2064, %v2263
      %2265 = vmatmul.bf16.gmra.mxu0 %v1872
      %v2266 = vpop.f32.mrf.mxu0
      %v2267 = vadd.f32 %v2064, %v2266
      %v2268 = vpop.f32.mrf.mxu0
      %v2269 = vadd.f32 %v2064, %v2268
      %2270 = vmatmul.bf16.gmra.mxu0 %v1875
      %v2271 = vpop.f32.mrf.mxu0
      %v2272 = vadd.f32 %v2064, %v2271
      %v2273 = vpop.f32.mrf.mxu0
      %v2274 = vadd.f32 %v2064, %v2273
      %2275 = vmatmul.bf16.gmra.mxu0 %v1878
      %v2276 = vpop.f32.mrf.mxu0
      %v2277 = vadd.f32 %v2064, %v2276
      %v2278 = vpop.f32.mrf.mxu0
      %v2279 = vadd.f32 %v2064, %v2278
      %2280 = vmatmul.bf16.gmra.mxu0 %v1881
      %v2281 = vpop.f32.mrf.mxu0
      %v2282 = vadd.f32 %v2064, %v2281
      %v2283 = vpop.f32.mrf.mxu0
      %v2284 = vadd.f32 %v2064, %v2283
      %2285 = vmatmul.bf16.gmra.mxu0 %v1884
      %v2286 = vpop.f32.mrf.mxu0
      %v2287 = vadd.f32 %v2064, %v2286
      %v2288 = vpop.f32.mrf.mxu0
      %v2289 = vadd.f32 %v2064, %v2288
      %2290 = vmatmul.bf16.gmra.mxu0 %v1887
      %v2291 = vpop.f32.mrf.mxu0
      %v2292 = vadd.f32 %v2064, %v2291
      %v2293 = vpop.f32.mrf.mxu0
      %v2294 = vadd.f32 %v2064, %v2293
      %2295 = vmatmul.bf16.gmra.mxu0 %v1890
      %v2296 = vpop.f32.mrf.mxu0
      %v2297 = vadd.f32 %v2064, %v2296
      %v2298 = vpop.f32.mrf.mxu0
      %v2299 = vadd.f32 %v2064, %v2298
      %2300 = vmatmul.bf16.gmra.mxu0 %v1893
      %v2301 = vpop.f32.mrf.mxu0
      %v2302 = vadd.f32 %v2064, %v2301
      %v2303 = vpop.f32.mrf.mxu0
      %v2304 = vadd.f32 %v2064, %v2303
      %2305 = vmatmul.bf16.gmra.mxu0 %v1896
      %v2306 = vpop.f32.mrf.mxu0
      %v2307 = vadd.f32 %v2064, %v2306
      %v2308 = vpop.f32.mrf.mxu0
      %v2309 = vadd.f32 %v2064, %v2308
      %2310 = vdwg.mxu0
      %2311 = vmatpush.bf16.msra.mxu0 %v2153
      %2312 = vmatpush.bf16.msra.mxu0 %v2152
      %2313 = vmatpush.bf16.msra.mxu0 %v2151
      %2314 = vmatpush.bf16.msra.mxu0 %v2150
      %2315 = vmatpush.bf16.msra.mxu0 %v2149
      %2316 = vmatpush.bf16.msra.mxu0 %v2148
      %2317 = vmatpush.bf16.msra.mxu0 %v2147
      %2318 = vmatpush.bf16.msra.mxu0 %v2146
      %2319 = vmatmul.bf16.gmra.mxu0 %v1979
      %v2320 = vpop.f32.mrf.mxu0
      %v2321 = vadd.f32 %v2232, %v2320
      %v2322 = vpop.f32.mrf.mxu0
      %v2323 = vadd.f32 %v2234, %v2322
      %2324 = vmatmul.bf16.gmra.mxu0 %v1982
      %v2325 = vpop.f32.mrf.mxu0
      %v2326 = vadd.f32 %v2237, %v2325
      %v2327 = vpop.f32.mrf.mxu0
      %v2328 = vadd.f32 %v2239, %v2327
      %2329 = vmatmul.bf16.gmra.mxu0 %v1985
      %v2330 = vpop.f32.mrf.mxu0
      %v2331 = vadd.f32 %v2242, %v2330
      %v2332 = vpop.f32.mrf.mxu0
      %v2333 = vadd.f32 %v2244, %v2332
      %2334 = vmatmul.bf16.gmra.mxu0 %v1988
      %v2335 = vpop.f32.mrf.mxu0
      %v2336 = vadd.f32 %v2247, %v2335
      %v2337 = vpop.f32.mrf.mxu0
      %v2338 = vadd.f32 %v2249, %v2337
      %2339 = vmatmul.bf16.gmra.mxu0 %v1991
      %v2340 = vpop.f32.mrf.mxu0
      %v2341 = vadd.f32 %v2252, %v2340
      %v2342 = vpop.f32.mrf.mxu0
      %v2343 = vadd.f32 %v2254, %v2342
      %2344 = vmatmul.bf16.gmra.mxu0 %v1994
      %v2345 = vpop.f32.mrf.mxu0
      %v2346 = vadd.f32 %v2257, %v2345
      %v2347 = vpop.f32.mrf.mxu0
      %v2348 = vadd.f32 %v2259, %v2347
      %2349 = vmatmul.bf16.gmra.mxu0 %v1997
      %v2350 = vpop.f32.mrf.mxu0
      %v2351 = vadd.f32 %v2262, %v2350
      %v2352 = vpop.f32.mrf.mxu0
      %v2353 = vadd.f32 %v2264, %v2352
      %2354 = vmatmul.bf16.gmra.mxu0 %v2000
      %v2355 = vpop.f32.mrf.mxu0
      %v2356 = vadd.f32 %v2267, %v2355
      %v2357 = vpop.f32.mrf.mxu0
      %v2358 = vadd.f32 %v2269, %v2357
      %2359 = vmatmul.bf16.gmra.mxu0 %v2003
      %v2360 = vpop.f32.mrf.mxu0
      %v2361 = vadd.f32 %v2272, %v2360
      %v2362 = vpop.f32.mrf.mxu0
      %v2363 = vadd.f32 %v2274, %v2362
      %2364 = vmatmul.bf16.gmra.mxu0 %v2006
      %v2365 = vpop.f32.mrf.mxu0
      %v2366 = vadd.f32 %v2277, %v2365
      %v2367 = vpop.f32.mrf.mxu0
      %v2368 = vadd.f32 %v2279, %v2367
      %2369 = vmatmul.bf16.gmra.mxu0 %v2009
      %v2370 = vpop.f32.mrf.mxu0
      %v2371 = vadd.f32 %v2282, %v2370
      %v2372 = vpop.f32.mrf.mxu0
      %v2373 = vadd.f32 %v2284, %v2372
      %2374 = vmatmul.bf16.gmra.mxu0 %v2012
      %v2375 = vpop.f32.mrf.mxu0
      %v2376 = vadd.f32 %v2287, %v2375
      %v2377 = vpop.f32.mrf.mxu0
      %v2378 = vadd.f32 %v2289, %v2377
      %2379 = vmatmul.bf16.gmra.mxu0 %v2015
      %v2380 = vpop.f32.mrf.mxu0
      %v2381 = vadd.f32 %v2292, %v2380
      %v2382 = vpop.f32.mrf.mxu0
      %v2383 = vadd.f32 %v2294, %v2382
      %2384 = vmatmul.bf16.gmra.mxu0 %v2018
      %v2385 = vpop.f32.mrf.mxu0
      %v2386 = vadd.f32 %v2297, %v2385
      %v2387 = vpop.f32.mrf.mxu0
      %v2388 = vadd.f32 %v2299, %v2387
      %2389 = vmatmul.bf16.gmra.mxu0 %v2021
      %v2390 = vpop.f32.mrf.mxu0
      %v2391 = vadd.f32 %v2302, %v2390
      %v2392 = vpop.f32.mrf.mxu0
      %v2393 = vadd.f32 %v2304, %v2392
      %2394 = vmatmul.bf16.gmra.mxu0 %v2024
      %v2395 = vpop.f32.mrf.mxu0
      %v2396 = vadd.f32 %v2307, %v2395
      %v2397 = vpop.f32.mrf.mxu0
      %v2398 = vadd.f32 %v2309, %v2397
      %2399 = vdwg.mxu0
      %2400 = vmatpush.bf16.msra.mxu0 0
      %2401 = vmatpush.bf16.msra.mxu0 0
      %2402 = vmatpush.bf16.msra.mxu0 0
      %2403 = vmatpush.bf16.msra.mxu0 0
      %2404 = vmatpush.bf16.msra.mxu0 0
      %2405 = vmatpush.bf16.msra.mxu0 0
      %2406 = vmatpush.bf16.msra.mxu0 %v2155
      %2407 = vmatpush.bf16.msra.mxu0 %v2154
      %2408 = vmatmul.bf16.gmra.mxu0 %v2175
      %v2409 = vpop.f32.mrf.mxu0
      %v2410 = vadd.f32 %v2321, %v2409
      %v2411 = vpop.f32.mrf.mxu0
      %v2412 = vadd.f32 %v2323, %v2411
      %2413 = vmatmul.bf16.gmra.mxu0 %v2178
      %v2414 = vpop.f32.mrf.mxu0
      %v2415 = vadd.f32 %v2326, %v2414
      %v2416 = vpop.f32.mrf.mxu0
      %v2417 = vadd.f32 %v2328, %v2416
      %2418 = vmatmul.bf16.gmra.mxu0 %v2181
      %v2419 = vpop.f32.mrf.mxu0
      %v2420 = vadd.f32 %v2331, %v2419
      %v2421 = vpop.f32.mrf.mxu0
      %v2422 = vadd.f32 %v2333, %v2421
      %2423 = vmatmul.bf16.gmra.mxu0 %v2184
      %v2424 = vpop.f32.mrf.mxu0
      %v2425 = vadd.f32 %v2336, %v2424
      %v2426 = vpop.f32.mrf.mxu0
      %v2427 = vadd.f32 %v2338, %v2426
      %2428 = vmatmul.bf16.gmra.mxu0 %v2187
      %v2429 = vpop.f32.mrf.mxu0
      %v2430 = vadd.f32 %v2341, %v2429
      %v2431 = vpop.f32.mrf.mxu0
      %v2432 = vadd.f32 %v2343, %v2431
      %2433 = vmatmul.bf16.gmra.mxu0 %v2190
      %v2434 = vpop.f32.mrf.mxu0
      %v2435 = vadd.f32 %v2346, %v2434
      %v2436 = vpop.f32.mrf.mxu0
      %v2437 = vadd.f32 %v2348, %v2436
      %2438 = vmatmul.bf16.gmra.mxu0 %v2193
      %v2439 = vpop.f32.mrf.mxu0
      %v2440 = vadd.f32 %v2351, %v2439
      %v2441 = vpop.f32.mrf.mxu0
      %v2442 = vadd.f32 %v2353, %v2441
      %2443 = vmatmul.bf16.gmra.mxu0 %v2196
      %v2444 = vpop.f32.mrf.mxu0
      %v2445 = vadd.f32 %v2356, %v2444
      %v2446 = vpop.f32.mrf.mxu0
      %v2447 = vadd.f32 %v2358, %v2446
      %2448 = vmatmul.bf16.gmra.mxu0 %v2199
      %v2449 = vpop.f32.mrf.mxu0
      %v2450 = vadd.f32 %v2361, %v2449
      %v2451 = vpop.f32.mrf.mxu0
      %v2452 = vadd.f32 %v2363, %v2451
      %2453 = vmatmul.bf16.gmra.mxu0 %v2202
      %v2454 = vpop.f32.mrf.mxu0
      %v2455 = vadd.f32 %v2366, %v2454
      %v2456 = vpop.f32.mrf.mxu0
      %v2457 = vadd.f32 %v2368, %v2456
      %2458 = vmatmul.bf16.gmra.mxu0 %v2205
      %v2459 = vpop.f32.mrf.mxu0
      %v2460 = vadd.f32 %v2371, %v2459
      %v2461 = vpop.f32.mrf.mxu0
      %v2462 = vadd.f32 %v2373, %v2461
      %2463 = vmatmul.bf16.gmra.mxu0 %v2208
      %v2464 = vpop.f32.mrf.mxu0
      %v2465 = vadd.f32 %v2376, %v2464
      %v2466 = vpop.f32.mrf.mxu0
      %v2467 = vadd.f32 %v2378, %v2466
      %2468 = vmatmul.bf16.gmra.mxu0 %v2211
      %v2469 = vpop.f32.mrf.mxu0
      %v2470 = vadd.f32 %v2381, %v2469
      %v2471 = vpop.f32.mrf.mxu0
      %v2472 = vadd.f32 %v2383, %v2471
      %2473 = vmatmul.bf16.gmra.mxu0 %v2214
      %v2474 = vpop.f32.mrf.mxu0
      %v2475 = vadd.f32 %v2386, %v2474
      %v2476 = vpop.f32.mrf.mxu0
      %v2477 = vadd.f32 %v2388, %v2476
      %2478 = vmatmul.bf16.gmra.mxu0 %v2217
      %v2479 = vpop.f32.mrf.mxu0
      %v2480 = vadd.f32 %v2391, %v2479
      %v2481 = vpop.f32.mrf.mxu0
      %v2482 = vadd.f32 %v2393, %v2481
      %2483 = vmatmul.bf16.gmra.mxu0 %v2220
      %v2484 = vpop.f32.mrf.mxu0
      %v2485 = vadd.f32 %v2396, %v2484
      %v2486 = vpop.f32.mrf.mxu0
      %v2487 = vadd.f32 %v2398, %v2486
      %2488 = vdwg.mxu0
      %2489 = vxpose.xlu0.b32.start [1/16] %v2410, 128
      %2490 = vxpose.xlu0.b32.cont [2/16] %v2412, 128
      %2491 = vxpose.xlu0.b32.cont [3/16] %v2415, 128
      %2492 = vxpose.xlu0.b32.cont [4/16] %v2417, 128
      %2493 = vxpose.xlu0.b32.cont [5/16] %v2420, 128
      %2494 = vxpose.xlu0.b32.cont [6/16] %v2422, 128
      %2495 = vxpose.xlu0.b32.cont [7/16] %v2425, 128
      %2496 = vxpose.xlu0.b32.cont [8/16] %v2427, 128
      %2497 = vxpose.xlu0.b32.cont [9/16] %v2430, 128
      %2498 = vxpose.xlu0.b32.cont [10/16] %v2432, 128
      %2499 = vxpose.xlu0.b32.cont [11/16] %v2435, 128
      %2500 = vxpose.xlu0.b32.cont [12/16] %v2437, 128
      %2501 = vxpose.xlu0.b32.cont [13/16] %v2440, 128
      %2502 = vxpose.xlu0.b32.cont [14/16] %v2442, 128
      %2503 = vxpose.xlu0.b32.cont [15/16] %v2445, 128
      %2504 = vxpose.xlu0.b32.end [16/16] %v2447, 128
      %v2505 = vpop.trf.xlu0
      %v2506 = vpop.trf.xlu0
      %v2507 = vpop.trf.xlu0
      %v2508 = vpop.trf.xlu0
      %v2509 = vpop.trf.xlu0
      %v2510 = vpop.trf.xlu0
      %v2511 = vpop.trf.xlu0
      %v2512 = vpop.trf.xlu0
      %v2513 = vpop.trf.xlu0
      %v2514 = vpop.trf.xlu0
      %v2515 = vpop.trf.xlu0
      %v2516 = vpop.trf.xlu0
      %v2517 = vpop.trf.xlu0
      %v2518 = vpop.trf.xlu0
      %v2519 = vpop.trf.xlu0
      %v2520 = vpop.trf.xlu0
      %2521 = vxpose.xlu0.b32.start [1/16] %v2450, 128
      %2522 = vxpose.xlu0.b32.cont [2/16] %v2452, 128
      %2523 = vxpose.xlu0.b32.cont [3/16] %v2455, 128
      %2524 = vxpose.xlu0.b32.cont [4/16] %v2457, 128
      %2525 = vxpose.xlu0.b32.cont [5/16] %v2460, 128
      %2526 = vxpose.xlu0.b32.cont [6/16] %v2462, 128
      %2527 = vxpose.xlu0.b32.cont [7/16] %v2465, 128
      %2528 = vxpose.xlu0.b32.cont [8/16] %v2467, 128
      %2529 = vxpose.xlu0.b32.cont [9/16] %v2470, 128
      %2530 = vxpose.xlu0.b32.cont [10/16] %v2472, 128
      %2531 = vxpose.xlu0.b32.cont [11/16] %v2475, 128
      %2532 = vxpose.xlu0.b32.cont [12/16] %v2477, 128
      %2533 = vxpose.xlu0.b32.cont [13/16] %v2480, 128
      %2534 = vxpose.xlu0.b32.cont [14/16] %v2482, 128
      %2535 = vxpose.xlu0.b32.cont [15/16] %v2485, 128
      %2536 = vxpose.xlu0.b32.end [16/16] %v2487, 128
      %v2537 = vpop.trf.xlu0
      %v2538 = vpop.trf.xlu0
      %v2539 = vpop.trf.xlu0
      %v2540 = vpop.trf.xlu0
      %v2541 = vpop.trf.xlu0
      %v2542 = vpop.trf.xlu0
      %v2543 = vpop.trf.xlu0
      %v2544 = vpop.trf.xlu0
      %v2545 = vpop.trf.xlu0
      %v2546 = vpop.trf.xlu0
      %v2547 = vpop.trf.xlu0
      %v2548 = vpop.trf.xlu0
      %v2549 = vpop.trf.xlu0
      %v2550 = vpop.trf.xlu0
      %v2551 = vpop.trf.xlu0
      %v2552 = vpop.trf.xlu0
      %v2555 = vrot.slane %v2537, 4
      %vm2556 = vcmask 1043456
      %v2557 = vsel %vm2556, %v2505, %v2555
      %2559 = vst [vmem:[%s170] sm:$0x77] %v2557
      %p2560 = scmp.lt.s32.totalorder %s14, 1
      %s2561 = scalar_select %p2560, %s14, 1
      %s2562 = smul.addr %s2561, 2
      %s2563 = smul.addr %s2562, 4
      %s2564 = scalar_lea.vmem %s3, %s2563
      // Predicated region
      $region33: #{xyj_forward.11} parent=31 // pred_check
        %p2565 = pneg %p100
      $region34: #{xyj_forward.11} parent=31 // pred_check_branch
        %2567 = sbr.rel (%p2565) target = $region36
      $region35: #{xyj_forward.11} parent=31 // pred_region
        _
      $region36: #{xyj_forward.11} parent=31 // pred_fallthru
        _
    $region32: #{xyj_forward.11} parent=5 // pred_fallthru
      _
    %p2568 = scmp.le.s32.totalorder 2, %s9
    // Predicated region
    $region37: #{xyj_forward.11} parent=5 // pred_check
      %p2569 = pneg %p2568
    $region38: #{xyj_forward.11} parent=5 // pred_check_branch
      %2571 = sbr.rel (%p2569) target = $region40
    $region39: #{xyj_forward.11} parent=5 // pred_region
      %s2572 = ssub.s32 %s9, 2
      // Predicated region
      $region41: #{xyj_forward.11} parent=39 // pred_check
        %p2573 = pneg %p106
      $region42: #{xyj_forward.11} parent=39 // pred_check_branch
        %2575 = sbr.rel (%p2573) target = $region44
      $region43: #{xyj_forward.11} parent=39 // pred_region
        %p2576 = scmp.lt.s32.totalorder %s15, 1
        %s2577 = scalar_select %p2576, %s15, 1
        %s2578 = smul.addr %s2577, 2
        %s2579 = smul.addr %s2578, 4
        %s2580 = scalar_lea.vmem %s3, %s2579
      $region44: #{xyj_forward.11} parent=39 // pred_fallthru
        _
    $region40: #{xyj_forward.11} parent=5 // pred_fallthru
      _
  $region6: #{xyj_forward.11} parent=0 // loop_footer
    %s13 = sadd.s32 1, %s9
  $region7: #{xyj_forward.11} parent=0 // loop_footer_branch
    %8 = sbr.rel target = $region3
  $region8: #{xyj_forward.11} parent=0 // loop_exit
    _

// kernel: xyj_forward.7
$region0: #{xyj_forward.7}
  #allocation0 [shape = 'u32[]', space=smem, size = 0x4, offset = 0x4, fixed_abs, tag = 'smem constant byte address 0x4 - core index']
  #allocation1 [shape = 'u32[72,128]{1,0:T(1,128)}', space=vmem, size = 0x9000, scoped, tag = 'internal scratch']
  #allocation2 [shape = 'f32[10,17,32]{2,1,0:T(8,128)}', space=vmem, size = 0x1e000, scoped, tag = 'scratch operand']
  %s0 = inlined_call_operand.vmem [shape: f32[2,8,8,32], index: 0, kind: input, shape index: {}]
  %s1 = inlined_call_operand.vmem [shape: f32[8,9,32], index: 1, kind: input, shape index: {}]
  %s2 = inlined_call_operand.vmem [shape: f32[8,1,32], index: 2, kind: input, shape index: {}]
  %s3 = inlined_call_operand.vmem [shape: bf16[8,32,32], index: 3, kind: input, shape index: {}]
  %s4 = inlined_call_operand.vmem [shape: f32[8,1,32], index: 4, kind: input, shape index: {}]
  %s5 = inlined_call_operand.vmem [shape: bf16[288,32], index: 5, kind: input, shape index: {}]
  %s6 = inlined_call_operand.vmem [shape: f32[1,32], index: 6, kind: input, shape index: {}]
  %s7 = inlined_call_operand.vmem [shape: f32[2,8,8,32], index: 7, kind: output, shape index: {}]
  %s8 = sld [smem:[#allocation0]]
  $region61: #{xyj_forward.7} parent=0
    _
  %s10 = ssub.s32 1, %s8
  %s11 = scalar_select 0, %s10, %s8
  loop: start=0, step=1, limit=4
  $region2: #{xyj_forward.7} parent=0 // loop_pre_header
    _
  $region3: #{xyj_forward.7} parent=0 // loop_header
    %s13 = sphi 0, %s17
    %p14 = scmp.ge.s32.totalorder %s13, 4
    %s23 = sphi 0, %s25
    %s26 = sphi 0, %s23
    %s27 = sphi 0, %s26
    %s43 = sphi 0, %s27
    %s47 = sphi 0, %s47
    %s49 = sphi 0, %s47
    %s50 = sphi 0, %s49
    %s64 = sphi 0, %s50
    %s68 = sphi 0, %s68
    %s70 = sphi 0, %s68
    %s71 = sphi 0, %s70
    %s85 = sphi 0, %s71
    %s89 = sphi 0, %s89
    %s91 = sphi 0, %s89
    %s92 = sphi 0, %s91
    %s106 = sphi 0, %s92
    %s110 = sphi 0, %s110
    %s112 = sphi 0, %s110
    %s113 = sphi 0, %s112
    %s127 = sphi 0, %s113
    %s131 = sphi 0, %s131
    %s133 = sphi 0, %s131
    %s134 = sphi 0, %s133
    %s148 = sphi 0, %s134
    %s152 = sphi 0, %s152
    %s154 = sphi 0, %s152
    %s155 = sphi 0, %s154
    %s169 = sphi 0, %s155
    %s175 = sphi 0, %s177
    %s178 = sphi 0, %s175
    %s179 = sphi 0, %s178
    %s195 = sphi 0, %s179
  $region4: #{xyj_forward.7} parent=0 // loop_header_branch
    %16 = sbr.rel (%p14) target = $region8
  $region5: #{xyj_forward.7} parent=0 // loop_body
    %s18 = ssub.s32 %s13, 1
    %s19 = ssub.s32 %s13, 2
    %s20 = sadd.s32 %s13, 1
    %s21 = ssub.s32 %s13, %s20
    %p22 = scmp.eq.s32.totalorder %s21, 0
    %s24 = sadd.s32 %s23, 1
    %s25 = scalar_select %p22, %s23, %s24
    %p28 = pneg %p22
    %p29 = scmp.eq.s32.totalorder %s13, 1
    %p30 = por %p28, %p29
    %p31 = scmp.ne.s32.totalorder %s23, %s26
    %p32 = scmp.eq.s32.totalorder %s13, 0
    %p33 = por %p31, %p32
    %p34 = scmp.ne.s32.totalorder %s23, %s26
    %p35 = scmp.eq.s32.totalorder %s18, 1
    %p36 = por %p34, %p35
    %p37 = scmp.ne.s32.totalorder %s26, %s27
    %p38 = scmp.eq.s32.totalorder %s18, 0
    %p39 = por %p37, %p38
    %p40 = scmp.ne.s32.totalorder %s26, %s27
    %p41 = scmp.eq.s32.totalorder %s19, 1
    %p42 = por %p40, %p41
    %p44 = scmp.ne.s32.totalorder %s27, %s43
    %p45 = scmp.eq.s32.totalorder %s19, 0
    %p46 = por %p44, %p45
    %s48 = sadd.s32 %s47, 1
    %p51 = scmp.eq.s32.totalorder %s13, 1
    %p52 = scmp.ne.s32.totalorder %s47, %s49
    %p53 = scmp.eq.s32.totalorder %s13, 0
    %p54 = por %p52, %p53
    %p55 = scmp.ne.s32.totalorder %s47, %s49
    %p56 = scmp.eq.s32.totalorder %s18, 1
    %p57 = por %p55, %p56
    %p58 = scmp.ne.s32.totalorder %s49, %s50
    %p59 = scmp.eq.s32.totalorder %s18, 0
    %p60 = por %p58, %p59
    %p61 = scmp.ne.s32.totalorder %s49, %s50
    %p62 = scmp.eq.s32.totalorder %s19, 1
    %p63 = por %p61, %p62
    %p65 = scmp.ne.s32.totalorder %s50, %s64
    %p66 = scmp.eq.s32.totalorder %s19, 0
    %p67 = por %p65, %p66
    %s69 = sadd.s32 %s68, 1
    %p72 = scmp.eq.s32.totalorder %s13, 1
    %p73 = scmp.ne.s32.totalorder %s68, %s70
    %p74 = scmp.eq.s32.totalorder %s13, 0
    %p75 = por %p73, %p74
    %p76 = scmp.ne.s32.totalorder %s68, %s70
    %p77 = scmp.eq.s32.totalorder %s18, 1
    %p78 = por %p76, %p77
    %p79 = scmp.ne.s32.totalorder %s70, %s71
    %p80 = scmp.eq.s32.totalorder %s18, 0
    %p81 = por %p79, %p80
    %p82 = scmp.ne.s32.totalorder %s70, %s71
    %p83 = scmp.eq.s32.totalorder %s19, 1
    %p84 = por %p82, %p83
    %p86 = scmp.ne.s32.totalorder %s71, %s85
    %p87 = scmp.eq.s32.totalorder %s19, 0
    %p88 = por %p86, %p87
    %s90 = sadd.s32 %s89, 1
    %p93 = scmp.eq.s32.totalorder %s13, 1
    %p94 = scmp.ne.s32.totalorder %s89, %s91
    %p95 = scmp.eq.s32.totalorder %s13, 0
    %p96 = por %p94, %p95
    %p97 = scmp.ne.s32.totalorder %s89, %s91
    %p98 = scmp.eq.s32.totalorder %s18, 1
    %p99 = por %p97, %p98
    %p100 = scmp.ne.s32.totalorder %s91, %s92
    %p101 = scmp.eq.s32.totalorder %s18, 0
    %p102 = por %p100, %p101
    %p103 = scmp.ne.s32.totalorder %s91, %s92
    %p104 = scmp.eq.s32.totalorder %s19, 1
    %p105 = por %p103, %p104
    %p107 = scmp.ne.s32.totalorder %s92, %s106
    %p108 = scmp.eq.s32.totalorder %s19, 0
    %p109 = por %p107, %p108
    %s111 = sadd.s32 %s110, 1
    %p114 = scmp.eq.s32.totalorder %s13, 1
    %p115 = scmp.ne.s32.totalorder %s110, %s112
    %p116 = scmp.eq.s32.totalorder %s13, 0
    %p117 = por %p115, %p116
    %p118 = scmp.ne.s32.totalorder %s110, %s112
    %p119 = scmp.eq.s32.totalorder %s18, 1
    %p120 = por %p118, %p119
    %p121 = scmp.ne.s32.totalorder %s112, %s113
    %p122 = scmp.eq.s32.totalorder %s18, 0
    %p123 = por %p121, %p122
    %p124 = scmp.ne.s32.totalorder %s112, %s113
    %p125 = scmp.eq.s32.totalorder %s19, 1
    %p126 = por %p124, %p125
    %p128 = scmp.ne.s32.totalorder %s113, %s127
    %p129 = scmp.eq.s32.totalorder %s19, 0
    %p130 = por %p128, %p129
    %s132 = sadd.s32 %s131, 1
    %p135 = scmp.eq.s32.totalorder %s13, 1
    %p136 = scmp.ne.s32.totalorder %s131, %s133
    %p137 = scmp.eq.s32.totalorder %s13, 0
    %p138 = por %p136, %p137
    %p139 = scmp.ne.s32.totalorder %s131, %s133
    %p140 = scmp.eq.s32.totalorder %s18, 1
    %p141 = por %p139, %p140
    %p142 = scmp.ne.s32.totalorder %s133, %s134
    %p143 = scmp.eq.s32.totalorder %s18, 0
    %p144 = por %p142, %p143
    %p145 = scmp.ne.s32.totalorder %s133, %s134
    %p146 = scmp.eq.s32.totalorder %s19, 1
    %p147 = por %p145, %p146
    %p149 = scmp.ne.s32.totalorder %s134, %s148
    %p150 = scmp.eq.s32.totalorder %s19, 0
    %p151 = por %p149, %p150
    %s153 = sadd.s32 %s152, 1
    %p156 = scmp.eq.s32.totalorder %s13, 1
    %p157 = scmp.ne.s32.totalorder %s152, %s154
    %p158 = scmp.eq.s32.totalorder %s13, 0
    %p159 = por %p157, %p158
    %p160 = scmp.ne.s32.totalorder %s152, %s154
    %p161 = scmp.eq.s32.totalorder %s18, 1
    %p162 = por %p160, %p161
    %p163 = scmp.ne.s32.totalorder %s154, %s155
    %p164 = scmp.eq.s32.totalorder %s18, 0
    %p165 = por %p163, %p164
    %p166 = scmp.ne.s32.totalorder %s154, %s155
    %p167 = scmp.eq.s32.totalorder %s19, 1
    %p168 = por %p166, %p167
    %p170 = scmp.ne.s32.totalorder %s155, %s169
    %p171 = scmp.eq.s32.totalorder %s19, 0
    %p172 = por %p170, %p171
    %s173 = ssub.s32 %s13, %s20
    %p174 = scmp.eq.s32.totalorder %s173, 0
    %s176 = sadd.s32 %s175, 1
    %s177 = scalar_select %p174, %s175, %s176
    %p180 = pneg %p174
    %p181 = scmp.eq.s32.totalorder %s13, 1
    %p182 = por %p180, %p181
    %p183 = scmp.ne.s32.totalorder %s175, %s178
    %p184 = scmp.eq.s32.totalorder %s13, 0
    %p185 = por %p183, %p184
    %p186 = scmp.ne.s32.totalorder %s175, %s178
    %p187 = scmp.eq.s32.totalorder %s18, 1
    %p188 = por %p186, %p187
    %p189 = scmp.ne.s32.totalorder %s178, %s179
    %p190 = scmp.eq.s32.totalorder %s18, 0
    %p191 = por %p189, %p190
    %p192 = scmp.ne.s32.totalorder %s178, %s179
    %p193 = scmp.eq.s32.totalorder %s19, 1
    %p194 = por %p192, %p193
    %p196 = scmp.ne.s32.totalorder %s179, %s195
    %p197 = scmp.eq.s32.totalorder %s19, 0
    %p198 = por %p196, %p197
    %p199 = scmp.le.s32.totalorder 1, %s13
    %p200 = scmp.lt.s32.totalorder %s13, 3
    %p201 = pnand %p199, %p200
    %p202 = pneg %p201
    // Predicated region
    $region9: #{xyj_forward.7} parent=5 // pred_check
      _
    $region10: #{xyj_forward.7} parent=5 // pred_check_branch
      %204 = sbr.rel (%p201) target = $region12
    $region11: #{xyj_forward.7} parent=5 // pred_region
      %s205 = ssub.s32 %s13, 1
      // Predicated region
      $region13: #{xyj_forward.7} parent=11 // pred_check
        %p206 = pneg %p60
      $region14: #{xyj_forward.7} parent=11 // pred_check_branch
        %208 = sbr.rel (%p206) target = $region16
      $region15: #{xyj_forward.7} parent=11 // pred_region
        _
      $region16: #{xyj_forward.7} parent=11 // pred_fallthru
        _
      // Predicated region
      $region17: #{xyj_forward.7} parent=11 // pred_check
        %p209 = pneg %p81
      $region18: #{xyj_forward.7} parent=11 // pred_check_branch
        %211 = sbr.rel (%p209) target = $region20
      $region19: #{xyj_forward.7} parent=11 // pred_region
        _
      $region20: #{xyj_forward.7} parent=11 // pred_fallthru
        _
      // Predicated region
      $region21: #{xyj_forward.7} parent=11 // pred_check
        %p212 = pneg %p102
      $region22: #{xyj_forward.7} parent=11 // pred_check_branch
        %214 = sbr.rel (%p212) target = $region24
      $region23: #{xyj_forward.7} parent=11 // pred_region
        _
      $region24: #{xyj_forward.7} parent=11 // pred_fallthru
        _
      // Predicated region
      $region25: #{xyj_forward.7} parent=11 // pred_check
        %p215 = pneg %p123
      $region26: #{xyj_forward.7} parent=11 // pred_check_branch
        %217 = sbr.rel (%p215) target = $region28
      $region27: #{xyj_forward.7} parent=11 // pred_region
        _
      $region28: #{xyj_forward.7} parent=11 // pred_fallthru
        _
      // Predicated region
      $region29: #{xyj_forward.7} parent=11 // pred_check
        %p218 = pneg %p144
      $region30: #{xyj_forward.7} parent=11 // pred_check_branch
        %220 = sbr.rel (%p218) target = $region32
      $region31: #{xyj_forward.7} parent=11 // pred_region
        _
      $region32: #{xyj_forward.7} parent=11 // pred_fallthru
        _
      // Predicated region
      $region33: #{xyj_forward.7} parent=11 // pred_check
        %p221 = pneg %p165
      $region34: #{xyj_forward.7} parent=11 // pred_check_branch
        %223 = sbr.rel (%p221) target = $region36
      $region35: #{xyj_forward.7} parent=11 // pred_region
        _
      $region36: #{xyj_forward.7} parent=11 // pred_fallthru
        _
    $region12: #{xyj_forward.7} parent=5 // pred_fallthru
      _
    %p224 = scmp.lt.s32.totalorder %s13, 2
    // Predicated region
    $region37: #{xyj_forward.7} parent=5 // pred_check
      %p225 = pneg %p224
    $region38: #{xyj_forward.7} parent=5 // pred_check_branch
      %227 = sbr.rel (%p225) target = $region40
    $region39: #{xyj_forward.7} parent=5 // pred_region
      // Predicated region
      $region41: #{xyj_forward.7} parent=39 // pred_check
        %p228 = pneg %p33
      $region42: #{xyj_forward.7} parent=39 // pred_check_branch
        %230 = sbr.rel (%p228) target = $region44
      $region43: #{xyj_forward.7} parent=39 // pred_region
        %p231 = scmp.lt.s32.totalorder %s13, 1
        %s232 = scalar_select %p231, %s13, 1
        %s233 = smul.addr %s232, 8
        %s234 = smul.addr %s233, 8
        %s235 = scalar_lea.vmem %s0, %s234
      $region44: #{xyj_forward.7} parent=39 // pred_fallthru
        _
    $region40: #{xyj_forward.7} parent=5 // pred_fallthru
      _
    %p236 = scmp.le.s32.totalorder 1, %s13
    %p237 = scmp.lt.s32.totalorder %s13, 3
    %p238 = pnand %p236, %p237
    %p239 = pneg %p238
    // Predicated region
    $region45: #{xyj_forward.7} parent=5 // pred_check
      _
    $region46: #{xyj_forward.7} parent=5 // pred_check_branch
      %241 = sbr.rel (%p238) target = $region48
    $region47: #{xyj_forward.7} parent=5 // pred_region
      %s242 = ssub.s32 %s13, 1
      %p243 = scmp.lt.s32.totalorder %s18, 1
      %s244 = scalar_select %p243, %s18, 1
      %s245 = smul.addr %s244, 8
      %s246 = smul.addr %s245, 8
      %s247 = scalar_lea.vmem %s0, %s246
      %p248 = pneg %p39
      %p249 = pneg %p36
      %p250 = pneg %p60
      %p251 = pneg %p57
      %p252 = pneg %p81
      %p253 = pneg %p78
      %p254 = pneg %p102
      %p255 = pneg %p99
      %p256 = pneg %p123
      %p257 = pneg %p120
      %p258 = pneg %p144
      %p259 = pneg %p141
      %p260 = pneg %p165
      %p261 = pneg %p162
      %p262 = pneg %p191
      %p263 = pneg %p188
      %p264 = scmp.lt.s32.totalorder %s18, 1
      %s265 = scalar_select %p264, %s18, 1
      %s266 = smul.addr %s265, 8
      %s267 = smul.addr %s266, 8
      %s268 = scalar_lea.vmem %s7, %s267
      %p269 = scmp.lt.s32.totalorder %s18, 1
      %s270 = scalar_select %p269, %s18, 1
      %s271 = smul.addr %s270, 8
      %s272 = smul.addr %s271, 8
      %s273 = scalar_lea.vmem %s0, %s272
      %p274 = scmp.lt.s32.totalorder %s18, 1
      %s275 = scalar_select %p274, %s18, 1
      %s276 = smul.addr %s275, 8
      %s277 = smul.addr %s276, 8
      %s278 = scalar_lea.vmem %s7, %s277
      %vm280 = vcmask 261120
      %281 = vst.msk [vmem:[#allocation2 + $0x7] sm:$0xff] %vm280, 0.0
      %vm282 = vcmask 254976
      %283 = vst.msk [vmem:[#allocation2 + $0xf] sm:$0x3] %vm282, 0.0
      %s284 = scalar_lea.vmem [#allocation2], 216
      %285 = vst.msk [vmem:[%s284 + $0x7] sm:$0xff] %vm280, 0.0
      %286 = vst.msk [vmem:[%s284 + $0xf] sm:$0x3] %vm282, 0.0
      %s287 = scalar_lea.vmem [#allocation2], 24
      %vm288 = vcmask 253952
      %289 = vst.msk [vmem:[%s287 + $0x7] sm:$0x1] %vm288, 0.0
      %290 = vst.msk [vmem:[%s287 + $0x1f] sm:$0x1] %vm288, 0.0
      %291 = vst.msk [vmem:[%s287 + $0x37] sm:$0x1] %vm288, 0.0
      %292 = vst.msk [vmem:[%s287 + $0x4f] sm:$0x1] %vm288, 0.0
      %293 = vst.msk [vmem:[%s287 + $0x67] sm:$0x1] %vm288, 0.0
      %294 = vst.msk [vmem:[%s287 + $0x7f] sm:$0x1] %vm288, 0.0
      %295 = vst.msk [vmem:[%s287 + $0x97] sm:$0x1] %vm288, 0.0
      %296 = vst.msk [vmem:[%s287 + $0xaf] sm:$0x1] %vm288, 0.0
      %297 = vst.msk [vmem:[%s287 + $0x10] sm:$0x1] %vm288, 0.0
      %298 = vst.msk [vmem:[%s287 + $0x28] sm:$0x1] %vm288, 0.0
      %299 = vst.msk [vmem:[%s287 + $0x40] sm:$0x1] %vm288, 0.0
      %300 = vst.msk [vmem:[%s287 + $0x58] sm:$0x1] %vm288, 0.0
      %301 = vst.msk [vmem:[%s287 + $0x70] sm:$0x1] %vm288, 0.0
      %302 = vst.msk [vmem:[%s287 + $0x88] sm:$0x1] %vm288, 0.0
      %303 = vst.msk [vmem:[%s287 + $0xa0] sm:$0x1] %vm288, 0.0
      %304 = vst.msk [vmem:[%s287 + $0xb8] sm:$0x1] %vm288, 0.0
      %v305 = vld [vmem:[%s273] sm:$0xff]
      %v306 = vld [vmem:[%s273 + $0x8] sm:$0xff]
      %v307 = vld [vmem:[%s273 + $0x10] sm:$0xff]
      %v308 = vld [vmem:[%s273 + $0x18] sm:$0xff]
      %v309 = vld [vmem:[%s273 + $0x20] sm:$0xff]
      %v310 = vld [vmem:[%s273 + $0x28] sm:$0xff]
      %v311 = vld [vmem:[%s273 + $0x30] sm:$0xff]
      %v312 = vld [vmem:[%s273 + $0x38] sm:$0xff]
      %313 = vst.msk [vmem:[%s287 + $0x8] sm:$0xff] %vm280, %v305
      %314 = vst.msk [vmem:[%s287 + $0x20] sm:$0xff] %vm280, %v306
      %315 = vst.msk [vmem:[%s287 + $0x38] sm:$0xff] %vm280, %v307
      %316 = vst.msk [vmem:[%s287 + $0x50] sm:$0xff] %vm280, %v308
      %317 = vst.msk [vmem:[%s287 + $0x68] sm:$0xff] %vm280, %v309
      %318 = vst.msk [vmem:[%s287 + $0x80] sm:$0xff] %vm280, %v310
      %319 = vst.msk [vmem:[%s287 + $0x98] sm:$0xff] %vm280, %v311
      %320 = vst.msk [vmem:[%s287 + $0xb0] sm:$0xff] %vm280, %v312
      %v321 = vld [vmem:[#allocation2 + $0x7] sm:$0xff]
      %v322 = vld [vmem:[#allocation2 + $0x1f] sm:$0xff]
      %v323 = vld [vmem:[#allocation2 + $0x37] sm:$0xff]
      %v324 = vld [vmem:[#allocation2 + $0x4f] sm:$0xff]
      %v325 = vld [vmem:[#allocation2 + $0x67] sm:$0xff]
      %v326 = vld [vmem:[#allocation2 + $0x7f] sm:$0xff]
      %v327 = vld [vmem:[#allocation2 + $0x97] sm:$0xff]
      %v328 = vld [vmem:[#allocation2 + $0xaf] sm:$0xff]
      %v329 = vld [vmem:[#allocation2 + $0x8] sm:$0xff]
      %v330 = vld [vmem:[#allocation2 + $0x20] sm:$0xff]
      %v331 = vld [vmem:[#allocation2 + $0x38] sm:$0xff]
      %v332 = vld [vmem:[#allocation2 + $0x50] sm:$0xff]
      %v333 = vld [vmem:[#allocation2 + $0x68] sm:$0xff]
      %v334 = vld [vmem:[#allocation2 + $0x80] sm:$0xff]
      %v335 = vld [vmem:[#allocation2 + $0x98] sm:$0xff]
      %v336 = vld [vmem:[#allocation2 + $0xb0] sm:$0xff]
      %v337 = vld [vmem:[#allocation2 + $0x9] sm:$0xff]
      %v338 = vld [vmem:[#allocation2 + $0x21] sm:$0xff]
      %v339 = vld [vmem:[#allocation2 + $0x39] sm:$0xff]
      %v340 = vld [vmem:[#allocation2 + $0x51] sm:$0xff]
      %v341 = vld [vmem:[#allocation2 + $0x69] sm:$0xff]
      %v342 = vld [vmem:[#allocation2 + $0x81] sm:$0xff]
      %v343 = vld [vmem:[#allocation2 + $0x99] sm:$0xff]
      %v344 = vld [vmem:[#allocation2 + $0xb1] sm:$0xff]
      %v345 = vld [vmem:[%s287 + $0x7] sm:$0xff]
      %v346 = vld [vmem:[%s287 + $0x1f] sm:$0xff]
      %v347 = vld [vmem:[%s287 + $0x37] sm:$0xff]
      %v348 = vld [vmem:[%s287 + $0x4f] sm:$0xff]
      %v349 = vld [vmem:[%s287 + $0x67] sm:$0xff]
      %v350 = vld [vmem:[%s287 + $0x7f] sm:$0xff]
      %v351 = vld [vmem:[%s287 + $0x97] sm:$0xff]
      %v352 = vld [vmem:[%s287 + $0xaf] sm:$0xff]
      %v353 = vld [vmem:[%s287 + $0x8] sm:$0xff]
      %v354 = vld [vmem:[%s287 + $0x20] sm:$0xff]
      %v355 = vld [vmem:[%s287 + $0x38] sm:$0xff]
      %v356 = vld [vmem:[%s287 + $0x50] sm:$0xff]
      %v357 = vld [vmem:[%s287 + $0x68] sm:$0xff]
      %v358 = vld [vmem:[%s287 + $0x80] sm:$0xff]
      %v359 = vld [vmem:[%s287 + $0x98] sm:$0xff]
      %v360 = vld [vmem:[%s287 + $0xb0] sm:$0xff]
      %v361 = vld [vmem:[%s287 + $0x9] sm:$0xff]
      %v362 = vld [vmem:[%s287 + $0x21] sm:$0xff]
      %v363 = vld [vmem:[%s287 + $0x39] sm:$0xff]
      %v364 = vld [vmem:[%s287 + $0x51] sm:$0xff]
      %v365 = vld [vmem:[%s287 + $0x69] sm:$0xff]
      %v366 = vld [vmem:[%s287 + $0x81] sm:$0xff]
      %v367 = vld [vmem:[%s287 + $0x99] sm:$0xff]
      %v368 = vld [vmem:[%s287 + $0xb1] sm:$0xff]
      %s369 = scalar_lea.vmem [#allocation2], 48
      %v370 = vld [vmem:[%s369 + $0x7] sm:$0xff]
      %v371 = vld [vmem:[%s369 + $0x1f] sm:$0xff]
      %v372 = vld [vmem:[%s369 + $0x37] sm:$0xff]
      %v373 = vld [vmem:[%s369 + $0x4f] sm:$0xff]
      %v374 = vld [vmem:[%s369 + $0x67] sm:$0xff]
      %v375 = vld [vmem:[%s369 + $0x7f] sm:$0xff]
      %v376 = vld [vmem:[%s369 + $0x97] sm:$0xff]
      %v377 = vld [vmem:[%s369 + $0xaf] sm:$0xff]
      %v378 = vld [vmem:[%s369 + $0x8] sm:$0xff]
      %v379 = vld [vmem:[%s369 + $0x20] sm:$0xff]
      %v380 = vld [vmem:[%s369 + $0x38] sm:$0xff]
      %v381 = vld [vmem:[%s369 + $0x50] sm:$0xff]
      %v382 = vld [vmem:[%s369 + $0x68] sm:$0xff]
      %v383 = vld [vmem:[%s369 + $0x80] sm:$0xff]
      %v384 = vld [vmem:[%s369 + $0x98] sm:$0xff]
      %v385 = vld [vmem:[%s369 + $0xb0] sm:$0xff]
      %v386 = vld [vmem:[%s369 + $0x9] sm:$0xff]
      %v387 = vld [vmem:[%s369 + $0x21] sm:$0xff]
      %v388 = vld [vmem:[%s369 + $0x39] sm:$0xff]
      %v389 = vld [vmem:[%s369 + $0x51] sm:$0xff]
      %v390 = vld [vmem:[%s369 + $0x69] sm:$0xff]
      %v391 = vld [vmem:[%s369 + $0x81] sm:$0xff]
      %v392 = vld [vmem:[%s369 + $0x99] sm:$0xff]
      %v393 = vld [vmem:[%s369 + $0xb1] sm:$0xff]
      %v394 = vld [vmem:[%s1] sm:$0xff]
      %v395 = vld [vmem:[%s1 + $0x8] sm:$0x1]
      %v396 = vld [vmem:[%s2] sm:$0x1]
      %v397 = vperm.slane %v394, 0
      %v398 = vmul.f32 %v321, %v397
      %v399 = vmul.f32 %v322, %v397
      %v400 = vmul.f32 %v323, %v397
      %v401 = vmul.f32 %v324, %v397
      %v402 = vmul.f32 %v325, %v397
      %v403 = vmul.f32 %v326, %v397
      %v404 = vmul.f32 %v327, %v397
      %v405 = vmul.f32 %v328, %v397
      %v406 = vperm.slane %v394, 1
      %v407 = vmul.f32 %v329, %v406
      %v408 = vmul.f32 %v330, %v406
      %v409 = vmul.f32 %v331, %v406
      %v410 = vmul.f32 %v332, %v406
      %v411 = vmul.f32 %v333, %v406
      %v412 = vmul.f32 %v334, %v406
      %v413 = vmul.f32 %v335, %v406
      %v414 = vmul.f32 %v336, %v406
      %v415 = vadd.f32 %v398, %v407
      %v416 = vadd.f32 %v399, %v408
      %v417 = vadd.f32 %v400, %v409
      %v418 = vadd.f32 %v401, %v410
      %v419 = vadd.f32 %v402, %v411
      %v420 = vadd.f32 %v403, %v412
      %v421 = vadd.f32 %v404, %v413
      %v422 = vadd.f32 %v405, %v414
      %v423 = vperm.slane %v394, 2
      %v424 = vmul.f32 %v337, %v423
      %v425 = vmul.f32 %v338, %v423
      %v426 = vmul.f32 %v339, %v423
      %v427 = vmul.f32 %v340, %v423
      %v428 = vmul.f32 %v341, %v423
      %v429 = vmul.f32 %v342, %v423
      %v430 = vmul.f32 %v343, %v423
      %v431 = vmul.f32 %v344, %v423
      %v432 = vadd.f32 %v415, %v424
      %v433 = vadd.f32 %v416, %v425
      %v434 = vadd.f32 %v417, %v426
      %v435 = vadd.f32 %v418, %v427
      %v436 = vadd.f32 %v419, %v428
      %v437 = vadd.f32 %v420, %v429
      %v438 = vadd.f32 %v421, %v430
      %v439 = vadd.f32 %v422, %v431
      %v440 = vperm.slane %v394, 3
      %v441 = vmul.f32 %v345, %v440
      %v442 = vmul.f32 %v346, %v440
      %v443 = vmul.f32 %v347, %v440
      %v444 = vmul.f32 %v348, %v440
      %v445 = vmul.f32 %v349, %v440
      %v446 = vmul.f32 %v350, %v440
      %v447 = vmul.f32 %v351, %v440
      %v448 = vmul.f32 %v352, %v440
      %v449 = vadd.f32 %v432, %v441
      %v450 = vadd.f32 %v433, %v442
      %v451 = vadd.f32 %v434, %v443
      %v452 = vadd.f32 %v435, %v444
      %v453 = vadd.f32 %v436, %v445
      %v454 = vadd.f32 %v437, %v446
      %v455 = vadd.f32 %v438, %v447
      %v456 = vadd.f32 %v439, %v448
      %v457 = vperm.slane %v394, 4
      %v458 = vmul.f32 %v353, %v457
      %v459 = vmul.f32 %v354, %v457
      %v460 = vmul.f32 %v355, %v457
      %v461 = vmul.f32 %v356, %v457
      %v462 = vmul.f32 %v357, %v457
      %v463 = vmul.f32 %v358, %v457
      %v464 = vmul.f32 %v359, %v457
      %v465 = vmul.f32 %v360, %v457
      %v466 = vadd.f32 %v449, %v458
      %v467 = vadd.f32 %v450, %v459
      %v468 = vadd.f32 %v451, %v460
      %v469 = vadd.f32 %v452, %v461
      %v470 = vadd.f32 %v453, %v462
      %v471 = vadd.f32 %v454, %v463
      %v472 = vadd.f32 %v455, %v464
      %v473 = vadd.f32 %v456, %v465
      %v474 = vperm.slane %v394, 5
      %v475 = vmul.f32 %v361, %v474
      %v476 = vmul.f32 %v362, %v474
      %v477 = vmul.f32 %v363, %v474
      %v478 = vmul.f32 %v364, %v474
      %v479 = vmul.f32 %v365, %v474
      %v480 = vmul.f32 %v366, %v474
      %v481 = vmul.f32 %v367, %v474
      %v482 = vmul.f32 %v368, %v474
      %v483 = vadd.f32 %v466, %v475
      %v484 = vadd.f32 %v467, %v476
      %v485 = vadd.f32 %v468, %v477
      %v486 = vadd.f32 %v469, %v478
      %v487 = vadd.f32 %v470, %v479
      %v488 = vadd.f32 %v471, %v480
      %v489 = vadd.f32 %v472, %v481
      %v490 = vadd.f32 %v473, %v482
      %v491 = vperm.slane %v394, 6
      %v492 = vmul.f32 %v370, %v491
      %v493 = vmul.f32 %v371, %v491
      %v494 = vmul.f32 %v372, %v491
      %v495 = vmul.f32 %v373, %v491
      %v496 = vmul.f32 %v374, %v491
      %v497 = vmul.f32 %v375, %v491
      %v498 = vmul.f32 %v376, %v491
      %v499 = vmul.f32 %v377, %v491
      %v500 = vadd.f32 %v483, %v492
      %v501 = vadd.f32 %v484, %v493
      %v502 = vadd.f32 %v485, %v494
      %v503 = vadd.f32 %v486, %v495
      %v504 = vadd.f32 %v487, %v496
      %v505 = vadd.f32 %v488, %v497
      %v506 = vadd.f32 %v489, %v498
      %v507 = vadd.f32 %v490, %v499
      %v508 = vperm.slane %v394, 7
      %v509 = vmul.f32 %v378, %v508
      %v510 = vmul.f32 %v379, %v508
      %v511 = vmul.f32 %v380, %v508
      %v512 = vmul.f32 %v381, %v508
      %v513 = vmul.f32 %v382, %v508
      %v514 = vmul.f32 %v383, %v508
      %v515 = vmul.f32 %v384, %v508
      %v516 = vmul.f32 %v385, %v508
      %v517 = vadd.f32 %v500, %v509
      %v518 = vadd.f32 %v501, %v510
      %v519 = vadd.f32 %v502, %v511
      %v520 = vadd.f32 %v503, %v512
      %v521 = vadd.f32 %v504, %v513
      %v522 = vadd.f32 %v505, %v514
      %v523 = vadd.f32 %v506, %v515
      %v524 = vadd.f32 %v507, %v516
      %v525 = vperm.slane %v395, 0
      %v526 = vmul.f32 %v386, %v525
      %v527 = vmul.f32 %v387, %v525
      %v528 = vmul.f32 %v388, %v525
      %v529 = vmul.f32 %v389, %v525
      %v530 = vmul.f32 %v390, %v525
      %v531 = vmul.f32 %v391, %v525
      %v532 = vmul.f32 %v392, %v525
      %v533 = vmul.f32 %v393, %v525
      %v534 = vadd.f32 %v517, %v526
      %v535 = vadd.f32 %v518, %v527
      %v536 = vadd.f32 %v519, %v528
      %v537 = vadd.f32 %v520, %v529
      %v538 = vadd.f32 %v521, %v530
      %v539 = vadd.f32 %v522, %v531
      %v540 = vadd.f32 %v523, %v532
      %v541 = vadd.f32 %v524, %v533
      %v543 = vperm.slane %v396, 0
      %v545 = vadd.f32 %v534, %v543
      %v546 = vadd.f32 %v535, %v543
      %v547 = vadd.f32 %v536, %v543
      %v548 = vadd.f32 %v537, %v543
      %v549 = vadd.f32 %v538, %v543
      %v550 = vadd.f32 %v539, %v543
      %v551 = vadd.f32 %v540, %v543
      %v552 = vadd.f32 %v541, %v543
      %v553 = vpack.c.bf16 %v546, %v545
      %v554 = vpack.c.bf16 %v548, %v547
      %v555 = vpack.c.bf16 %v550, %v549
      %v556 = vpack.c.bf16 %v552, %v551
      %v557 = vld [vmem:[%s3] sm:$0xf]
      %v558 = vld [vmem:[%s3 + $0x4] sm:$0xf]
      %v559 = vld [vmem:[%s3 + $0x8] sm:$0xf]
      %v560 = vld [vmem:[%s3 + $0xc] sm:$0xf]
      %v561 = vld [vmem:[%s4] sm:$0x1]
      %v563 = vperm.slane %v561, 0
      %v569 = vunpack.c.l.b16 %v557
      %v570 = vunpack.c.l.b16 %v558
      %v571 = vunpack.c.l.b16 %v559
      %v572 = vunpack.c.l.b16 %v560
      %v573 = vpack.c.b16 %v570, %v569
      %v574 = vpack.c.b16 %v572, %v571
      %v578 = vsel %vm280, %v553, 0
      %v581 = vsel %vm280, %v554, 0
      %v584 = vsel %vm280, %v555, 0
      %v587 = vsel %vm280, %v556, 0
      %589 = vmatpush.bf16.msra.mxu0 0
      %590 = vmatpush.bf16.msra.mxu0 0
      %591 = vmatpush.bf16.msra.mxu0 0
      %592 = vmatpush.bf16.msra.mxu0 0
      %593 = vmatpush.bf16.msra.mxu0 0
      %594 = vmatpush.bf16.msra.mxu0 0
      %595 = vmatpush.bf16.msra.mxu0 %v574
      %596 = vmatpush.bf16.msra.mxu0 %v573
      %597 = vmatmul.bf16.gmra.mxu0 %v578
      %v598 = vpop.f32.mrf.mxu0
      %v599 = vadd.f32 %v563, %v598
      %v600 = vpop.f32.mrf.mxu0
      %v601 = vadd.f32 %v563, %v600
      %602 = vmatmul.bf16.gmra.mxu0 %v581
      %v603 = vpop.f32.mrf.mxu0
      %v604 = vadd.f32 %v563, %v603
      %v605 = vpop.f32.mrf.mxu0
      %v606 = vadd.f32 %v563, %v605
      %607 = vmatmul.bf16.gmra.mxu0 %v584
      %v608 = vpop.f32.mrf.mxu0
      %v609 = vadd.f32 %v563, %v608
      %v610 = vpop.f32.mrf.mxu0
      %v611 = vadd.f32 %v563, %v610
      %612 = vmatmul.bf16.gmra.mxu0 %v587
      %v613 = vpop.f32.mrf.mxu0
      %v614 = vadd.f32 %v563, %v613
      %v615 = vpop.f32.mrf.mxu0
      %v616 = vadd.f32 %v563, %v615
      %617 = vdwg.mxu0
      %v618 = vmax.f32 %v599, 0.0
      %v619 = vmax.f32 %v601, 0.0
      %v620 = vmax.f32 %v604, 0.0
      %v621 = vmax.f32 %v606, 0.0
      %v622 = vmax.f32 %v609, 0.0
      %v623 = vmax.f32 %v611, 0.0
      %v624 = vmax.f32 %v614, 0.0
      %v625 = vmax.f32 %v616, 0.0
      %626 = vst.msk [vmem:[%s287 + $0x8] sm:$0xff] %vm280, %v618
      %627 = vst.msk [vmem:[%s287 + $0x20] sm:$0xff] %vm280, %v619
      %628 = vst.msk [vmem:[%s287 + $0x38] sm:$0xff] %vm280, %v620
      %629 = vst.msk [vmem:[%s287 + $0x50] sm:$0xff] %vm280, %v621
      %630 = vst.msk [vmem:[%s287 + $0x68] sm:$0xff] %vm280, %v622
      %631 = vst.msk [vmem:[%s287 + $0x80] sm:$0xff] %vm280, %v623
      %632 = vst.msk [vmem:[%s287 + $0x98] sm:$0xff] %vm280, %v624
      %633 = vst.msk [vmem:[%s287 + $0xb0] sm:$0xff] %vm280, %v625
      %v634 = vld [vmem:[#allocation2 + $0x7] sm:$0xff]
      %v635 = vld [vmem:[#allocation2 + $0x1f] sm:$0xff]
      %v636 = vld [vmem:[#allocation2 + $0x37] sm:$0xff]
      %v637 = vld [vmem:[#allocation2 + $0x4f] sm:$0xff]
      %v638 = vld [vmem:[#allocation2 + $0x67] sm:$0xff]
      %v639 = vld [vmem:[#allocation2 + $0x7f] sm:$0xff]
      %v640 = vld [vmem:[#allocation2 + $0x97] sm:$0xff]
      %v641 = vld [vmem:[#allocation2 + $0xaf] sm:$0xff]
      %v642 = vld [vmem:[#allocation2 + $0x8] sm:$0xff]
      %v643 = vld [vmem:[#allocation2 + $0x20] sm:$0xff]
      %v644 = vld [vmem:[#allocation2 + $0x38] sm:$0xff]
      %v645 = vld [vmem:[#allocation2 + $0x50] sm:$0xff]
      %v646 = vld [vmem:[#allocation2 + $0x68] sm:$0xff]
      %v647 = vld [vmem:[#allocation2 + $0x80] sm:$0xff]
      %v648 = vld [vmem:[#allocation2 + $0x98] sm:$0xff]
      %v649 = vld [vmem:[#allocation2 + $0xb0] sm:$0xff]
      %v650 = vld [vmem:[#allocation2 + $0x9] sm:$0xff]
      %v651 = vld [vmem:[#allocation2 + $0x21] sm:$0xff]
      %v652 = vld [vmem:[#allocation2 + $0x39] sm:$0xff]
      %v653 = vld [vmem:[#allocation2 + $0x51] sm:$0xff]
      %v654 = vld [vmem:[#allocation2 + $0x69] sm:$0xff]
      %v655 = vld [vmem:[#allocation2 + $0x81] sm:$0xff]
      %v656 = vld [vmem:[#allocation2 + $0x99] sm:$0xff]
      %v657 = vld [vmem:[#allocation2 + $0xb1] sm:$0xff]
      %v658 = vld [vmem:[%s287 + $0x7] sm:$0xff]
      %v659 = vld [vmem:[%s287 + $0x1f] sm:$0xff]
      %v660 = vld [vmem:[%s287 + $0x37] sm:$0xff]
      %v661 = vld [vmem:[%s287 + $0x4f] sm:$0xff]
      %v662 = vld [vmem:[%s287 + $0x67] sm:$0xff]
      %v663 = vld [vmem:[%s287 + $0x7f] sm:$0xff]
      %v664 = vld [vmem:[%s287 + $0x97] sm:$0xff]
      %v665 = vld [vmem:[%s287 + $0xaf] sm:$0xff]
      %v666 = vld [vmem:[%s287 + $0x8] sm:$0xff]
      %v667 = vld [vmem:[%s287 + $0x20] sm:$0xff]
      %v668 = vld [vmem:[%s287 + $0x38] sm:$0xff]
      %v669 = vld [vmem:[%s287 + $0x50] sm:$0xff]
      %v670 = vld [vmem:[%s287 + $0x68] sm:$0xff]
      %v671 = vld [vmem:[%s287 + $0x80] sm:$0xff]
      %v672 = vld [vmem:[%s287 + $0x98] sm:$0xff]
      %v673 = vld [vmem:[%s287 + $0xb0] sm:$0xff]
      %v674 = vld [vmem:[%s287 + $0x9] sm:$0xff]
      %v675 = vld [vmem:[%s287 + $0x21] sm:$0xff]
      %v676 = vld [vmem:[%s287 + $0x39] sm:$0xff]
      %v677 = vld [vmem:[%s287 + $0x51] sm:$0xff]
      %v678 = vld [vmem:[%s287 + $0x69] sm:$0xff]
      %v679 = vld [vmem:[%s287 + $0x81] sm:$0xff]
      %v680 = vld [vmem:[%s287 + $0x99] sm:$0xff]
      %v681 = vld [vmem:[%s287 + $0xb1] sm:$0xff]
      %v682 = vld [vmem:[%s369 + $0x7] sm:$0xff]
      %v683 = vld [vmem:[%s369 + $0x1f] sm:$0xff]
      %v684 = vld [vmem:[%s369 + $0x37] sm:$0xff]
      %v685 = vld [vmem:[%s369 + $0x4f] sm:$0xff]
      %v686 = vld [vmem:[%s369 + $0x67] sm:$0xff]
      %v687 = vld [vmem:[%s369 + $0x7f] sm:$0xff]
      %v688 = vld [vmem:[%s369 + $0x97] sm:$0xff]
      %v689 = vld [vmem:[%s369 + $0xaf] sm:$0xff]
      %v690 = vld [vmem:[%s369 + $0x8] sm:$0xff]
      %v691 = vld [vmem:[%s369 + $0x20] sm:$0xff]
      %v692 = vld [vmem:[%s369 + $0x38] sm:$0xff]
      %v693 = vld [vmem:[%s369 + $0x50] sm:$0xff]
      %v694 = vld [vmem:[%s369 + $0x68] sm:$0xff]
      %v695 = vld [vmem:[%s369 + $0x80] sm:$0xff]
      %v696 = vld [vmem:[%s369 + $0x98] sm:$0xff]
      %v697 = vld [vmem:[%s369 + $0xb0] sm:$0xff]
      %v698 = vld [vmem:[%s369 + $0x9] sm:$0xff]
      %v699 = vld [vmem:[%s369 + $0x21] sm:$0xff]
      %v700 = vld [vmem:[%s369 + $0x39] sm:$0xff]
      %v701 = vld [vmem:[%s369 + $0x51] sm:$0xff]
      %v702 = vld [vmem:[%s369 + $0x69] sm:$0xff]
      %v703 = vld [vmem:[%s369 + $0x81] sm:$0xff]
      %v704 = vld [vmem:[%s369 + $0x99] sm:$0xff]
      %v705 = vld [vmem:[%s369 + $0xb1] sm:$0xff]
      %s706 = scalar_lea.vmem %s1, 16
      %v707 = vld [vmem:[%s706] sm:$0xff]
      %v708 = vld [vmem:[%s706 + $0x8] sm:$0x1]
      %s709 = scalar_lea.vmem %s2, 1
      %v710 = vld [vmem:[%s709] sm:$0x1]
      %v711 = vperm.slane %v707, 0
      %v712 = vmul.f32 %v634, %v711
      %v713 = vmul.f32 %v635, %v711
      %v714 = vmul.f32 %v636, %v711
      %v715 = vmul.f32 %v637, %v711
      %v716 = vmul.f32 %v638, %v711
      %v717 = vmul.f32 %v639, %v711
      %v718 = vmul.f32 %v640, %v711
      %v719 = vmul.f32 %v641, %v711
      %v720 = vperm.slane %v707, 1
      %v721 = vmul.f32 %v642, %v720
      %v722 = vmul.f32 %v643, %v720
      %v723 = vmul.f32 %v644, %v720
      %v724 = vmul.f32 %v645, %v720
      %v725 = vmul.f32 %v646, %v720
      %v726 = vmul.f32 %v647, %v720
      %v727 = vmul.f32 %v648, %v720
      %v728 = vmul.f32 %v649, %v720
      %v729 = vadd.f32 %v712, %v721
      %v730 = vadd.f32 %v713, %v722
      %v731 = vadd.f32 %v714, %v723
      %v732 = vadd.f32 %v715, %v724
      %v733 = vadd.f32 %v716, %v725
      %v734 = vadd.f32 %v717, %v726
      %v735 = vadd.f32 %v718, %v727
      %v736 = vadd.f32 %v719, %v728
      %v737 = vperm.slane %v707, 2
      %v738 = vmul.f32 %v650, %v737
      %v739 = vmul.f32 %v651, %v737
      %v740 = vmul.f32 %v652, %v737
      %v741 = vmul.f32 %v653, %v737
      %v742 = vmul.f32 %v654, %v737
      %v743 = vmul.f32 %v655, %v737
      %v744 = vmul.f32 %v656, %v737
      %v745 = vmul.f32 %v657, %v737
      %v746 = vadd.f32 %v729, %v738
      %v747 = vadd.f32 %v730, %v739
      %v748 = vadd.f32 %v731, %v740
      %v749 = vadd.f32 %v732, %v741
      %v750 = vadd.f32 %v733, %v742
      %v751 = vadd.f32 %v734, %v743
      %v752 = vadd.f32 %v735, %v744
      %v753 = vadd.f32 %v736, %v745
      %v754 = vperm.slane %v707, 3
      %v755 = vmul.f32 %v658, %v754
      %v756 = vmul.f32 %v659, %v754
      %v757 = vmul.f32 %v660, %v754
      %v758 = vmul.f32 %v661, %v754
      %v759 = vmul.f32 %v662, %v754
      %v760 = vmul.f32 %v663, %v754
      %v761 = vmul.f32 %v664, %v754
      %v762 = vmul.f32 %v665, %v754
      %v763 = vadd.f32 %v746, %v755
      %v764 = vadd.f32 %v747, %v756
      %v765 = vadd.f32 %v748, %v757
      %v766 = vadd.f32 %v749, %v758
      %v767 = vadd.f32 %v750, %v759
      %v768 = vadd.f32 %v751, %v760
      %v769 = vadd.f32 %v752, %v761
      %v770 = vadd.f32 %v753, %v762
      %v771 = vperm.slane %v707, 4
      %v772 = vmul.f32 %v666, %v771
      %v773 = vmul.f32 %v667, %v771
      %v774 = vmul.f32 %v668, %v771
      %v775 = vmul.f32 %v669, %v771
      %v776 = vmul.f32 %v670, %v771
      %v777 = vmul.f32 %v671, %v771
      %v778 = vmul.f32 %v672, %v771
      %v779 = vmul.f32 %v673, %v771
      %v780 = vadd.f32 %v763, %v772
      %v781 = vadd.f32 %v764, %v773
      %v782 = vadd.f32 %v765, %v774
      %v783 = vadd.f32 %v766, %v775
      %v784 = vadd.f32 %v767, %v776
      %v785 = vadd.f32 %v768, %v777
      %v786 = vadd.f32 %v769, %v778
      %v787 = vadd.f32 %v770, %v779
      %v788 = vperm.slane %v707, 5
      %v789 = vmul.f32 %v674, %v788
      %v790 = vmul.f32 %v675, %v788
      %v791 = vmul.f32 %v676, %v788
      %v792 = vmul.f32 %v677, %v788
      %v793 = vmul.f32 %v678, %v788
      %v794 = vmul.f32 %v679, %v788
      %v795 = vmul.f32 %v680, %v788
      %v796 = vmul.f32 %v681, %v788
      %v797 = vadd.f32 %v780, %v789
      %v798 = vadd.f32 %v781, %v790
      %v799 = vadd.f32 %v782, %v791
      %v800 = vadd.f32 %v783, %v792
      %v801 = vadd.f32 %v784, %v793
      %v802 = vadd.f32 %v785, %v794
      %v803 = vadd.f32 %v786, %v795
      %v804 = vadd.f32 %v787, %v796
      %v805 = vperm.slane %v707, 6
      %v806 = vmul.f32 %v682, %v805
      %v807 = vmul.f32 %v683, %v805
      %v808 = vmul.f32 %v684, %v805
      %v809 = vmul.f32 %v685, %v805
      %v810 = vmul.f32 %v686, %v805
      %v811 = vmul.f32 %v687, %v805
      %v812 = vmul.f32 %v688, %v805
      %v813 = vmul.f32 %v689, %v805
      %v814 = vadd.f32 %v797, %v806
      %v815 = vadd.f32 %v798, %v807
      %v816 = vadd.f32 %v799, %v808
      %v817 = vadd.f32 %v800, %v809
      %v818 = vadd.f32 %v801, %v810
      %v819 = vadd.f32 %v802, %v811
      %v820 = vadd.f32 %v803, %v812
      %v821 = vadd.f32 %v804, %v813
      %v822 = vperm.slane %v707, 7
      %v823 = vmul.f32 %v690, %v822
      %v824 = vmul.f32 %v691, %v822
      %v825 = vmul.f32 %v692, %v822
      %v826 = vmul.f32 %v693, %v822
      %v827 = vmul.f32 %v694, %v822
      %v828 = vmul.f32 %v695, %v822
      %v829 = vmul.f32 %v696, %v822
      %v830 = vmul.f32 %v697, %v822
      %v831 = vadd.f32 %v814, %v823
      %v832 = vadd.f32 %v815, %v824
      %v833 = vadd.f32 %v816, %v825
      %v834 = vadd.f32 %v817, %v826
      %v835 = vadd.f32 %v818, %v827
      %v836 = vadd.f32 %v819, %v828
      %v837 = vadd.f32 %v820, %v829
      %v838 = vadd.f32 %v821, %v830
      %v839 = vperm.slane %v708, 0
      %v840 = vmul.f32 %v698, %v839
      %v841 = vmul.f32 %v699, %v839
      %v842 = vmul.f32 %v700, %v839
      %v843 = vmul.f32 %v701, %v839
      %v844 = vmul.f32 %v702, %v839
      %v845 = vmul.f32 %v703, %v839
      %v846 = vmul.f32 %v704, %v839
      %v847 = vmul.f32 %v705, %v839
      %v848 = vadd.f32 %v831, %v840
      %v849 = vadd.f32 %v832, %v841
      %v850 = vadd.f32 %v833, %v842
      %v851 = vadd.f32 %v834, %v843
      %v852 = vadd.f32 %v835, %v844
      %v853 = vadd.f32 %v836, %v845
      %v854 = vadd.f32 %v837, %v846
      %v855 = vadd.f32 %v838, %v847
      %v857 = vperm.slane %v710, 0
      %v859 = vadd.f32 %v848, %v857
      %v860 = vadd.f32 %v849, %v857
      %v861 = vadd.f32 %v850, %v857
      %v862 = vadd.f32 %v851, %v857
      %v863 = vadd.f32 %v852, %v857
      %v864 = vadd.f32 %v853, %v857
      %v865 = vadd.f32 %v854, %v857
      %v866 = vadd.f32 %v855, %v857
      %v867 = vpack.c.bf16 %v860, %v859
      %v868 = vpack.c.bf16 %v862, %v861
      %v869 = vpack.c.bf16 %v864, %v863
      %v870 = vpack.c.bf16 %v866, %v865
      %s871 = scalar_lea.vmem %s3, 16
      %v872 = vld [vmem:[%s871] sm:$0xf]
      %v873 = vld [vmem:[%s871 + $0x4] sm:$0xf]
      %v874 = vld [vmem:[%s871 + $0x8] sm:$0xf]
      %v875 = vld [vmem:[%s871 + $0xc] sm:$0xf]
      %s876 = scalar_lea.vmem %s4, 1
      %v877 = vld [vmem:[%s876] sm:$0x1]
      %v879 = vperm.slane %v877, 0
      %v885 = vunpack.c.l.b16 %v872
      %v886 = vunpack.c.l.b16 %v873
      %v887 = vunpack.c.l.b16 %v874
      %v888 = vunpack.c.l.b16 %v875
      %v889 = vpack.c.b16 %v886, %v885
      %v890 = vpack.c.b16 %v888, %v887
      %v894 = vsel %vm280, %v867, 0
      %v897 = vsel %vm280, %v868, 0
      %v900 = vsel %vm280, %v869, 0
      %v903 = vsel %vm280, %v870, 0
      %905 = vmatpush.bf16.msra.mxu0 0
      %906 = vmatpush.bf16.msra.mxu0 0
      %907 = vmatpush.bf16.msra.mxu0 0
      %908 = vmatpush.bf16.msra.mxu0 0
      %909 = vmatpush.bf16.msra.mxu0 0
      %910 = vmatpush.bf16.msra.mxu0 0
      %911 = vmatpush.bf16.msra.mxu0 %v890
      %912 = vmatpush.bf16.msra.mxu0 %v889
      %913 = vmatmul.bf16.gmra.mxu0 %v894
      %v914 = vpop.f32.mrf.mxu0
      %v915 = vadd.f32 %v879, %v914
      %v916 = vpop.f32.mrf.mxu0
      %v917 = vadd.f32 %v879, %v916
      %918 = vmatmul.bf16.gmra.mxu0 %v897
      %v919 = vpop.f32.mrf.mxu0
      %v920 = vadd.f32 %v879, %v919
      %v921 = vpop.f32.mrf.mxu0
      %v922 = vadd.f32 %v879, %v921
      %923 = vmatmul.bf16.gmra.mxu0 %v900
      %v924 = vpop.f32.mrf.mxu0
      %v925 = vadd.f32 %v879, %v924
      %v926 = vpop.f32.mrf.mxu0
      %v927 = vadd.f32 %v879, %v926
      %928 = vmatmul.bf16.gmra.mxu0 %v903
      %v929 = vpop.f32.mrf.mxu0
      %v930 = vadd.f32 %v879, %v929
      %v931 = vpop.f32.mrf.mxu0
      %v932 = vadd.f32 %v879, %v931
      %933 = vdwg.mxu0
      %v934 = vadd.f32 %v305, %v915
      %v935 = vadd.f32 %v306, %v917
      %v936 = vadd.f32 %v307, %v920
      %v937 = vadd.f32 %v308, %v922
      %v938 = vadd.f32 %v309, %v925
      %v939 = vadd.f32 %v310, %v927
      %v940 = vadd.f32 %v311, %v930
      %v941 = vadd.f32 %v312, %v932
      %942 = vst.msk [vmem:[%s287 + $0x8] sm:$0xff] %vm280, %v934
      %943 = vst.msk [vmem:[%s287 + $0x20] sm:$0xff] %vm280, %v935
      %944 = vst.msk [vmem:[%s287 + $0x38] sm:$0xff] %vm280, %v936
      %945 = vst.msk [vmem:[%s287 + $0x50] sm:$0xff] %vm280, %v937
      %946 = vst.msk [vmem:[%s287 + $0x68] sm:$0xff] %vm280, %v938
      %947 = vst.msk [vmem:[%s287 + $0x80] sm:$0xff] %vm280, %v939
      %948 = vst.msk [vmem:[%s287 + $0x98] sm:$0xff] %vm280, %v940
      %949 = vst.msk [vmem:[%s287 + $0xb0] sm:$0xff] %vm280, %v941
      %v950 = vld [vmem:[#allocation2 + $0x7] sm:$0xff]
      %v951 = vld [vmem:[#allocation2 + $0x1f] sm:$0xff]
      %v952 = vld [vmem:[#allocation2 + $0x37] sm:$0xff]
      %v953 = vld [vmem:[#allocation2 + $0x4f] sm:$0xff]
      %v954 = vld [vmem:[#allocation2 + $0x67] sm:$0xff]
      %v955 = vld [vmem:[#allocation2 + $0x7f] sm:$0xff]
      %v956 = vld [vmem:[#allocation2 + $0x97] sm:$0xff]
      %v957 = vld [vmem:[#allocation2 + $0xaf] sm:$0xff]
      %v958 = vld [vmem:[#allocation2 + $0x8] sm:$0xff]
      %v959 = vld [vmem:[#allocation2 + $0x20] sm:$0xff]
      %v960 = vld [vmem:[#allocation2 + $0x38] sm:$0xff]
      %v961 = vld [vmem:[#allocation2 + $0x50] sm:$0xff]
      %v962 = vld [vmem:[#allocation2 + $0x68] sm:$0xff]
      %v963 = vld [vmem:[#allocation2 + $0x80] sm:$0xff]
      %v964 = vld [vmem:[#allocation2 + $0x98] sm:$0xff]
      %v965 = vld [vmem:[#allocation2 + $0xb0] sm:$0xff]
      %v966 = vld [vmem:[#allocation2 + $0x9] sm:$0xff]
      %v967 = vld [vmem:[#allocation2 + $0x21] sm:$0xff]
      %v968 = vld [vmem:[#allocation2 + $0x39] sm:$0xff]
      %v969 = vld [vmem:[#allocation2 + $0x51] sm:$0xff]
      %v970 = vld [vmem:[#allocation2 + $0x69] sm:$0xff]
      %v971 = vld [vmem:[#allocation2 + $0x81] sm:$0xff]
      %v972 = vld [vmem:[#allocation2 + $0x99] sm:$0xff]
      %v973 = vld [vmem:[#allocation2 + $0xb1] sm:$0xff]
      %v974 = vld [vmem:[%s287 + $0x7] sm:$0xff]
      %v975 = vld [vmem:[%s287 + $0x1f] sm:$0xff]
      %v976 = vld [vmem:[%s287 + $0x37] sm:$0xff]
      %v977 = vld [vmem:[%s287 + $0x4f] sm:$0xff]
      %v978 = vld [vmem:[%s287 + $0x67] sm:$0xff]
      %v979 = vld [vmem:[%s287 + $0x7f] sm:$0xff]
      %v980 = vld [vmem:[%s287 + $0x97] sm:$0xff]
      %v981 = vld [vmem:[%s287 + $0xaf] sm:$0xff]
      %v982 = vld [vmem:[%s287 + $0x8] sm:$0xff]
      %v983 = vld [vmem:[%s287 + $0x20] sm:$0xff]
      %v984 = vld [vmem:[%s287 + $0x38] sm:$0xff]
      %v985 = vld [vmem:[%s287 + $0x50] sm:$0xff]
      %v986 = vld [vmem:[%s287 + $0x68] sm:$0xff]
      %v987 = vld [vmem:[%s287 + $0x80] sm:$0xff]
      %v988 = vld [vmem:[%s287 + $0x98] sm:$0xff]
      %v989 = vld [vmem:[%s287 + $0xb0] sm:$0xff]
      %v990 = vld [vmem:[%s287 + $0x9] sm:$0xff]
      %v991 = vld [vmem:[%s287 + $0x21] sm:$0xff]
      %v992 = vld [vmem:[%s287 + $0x39] sm:$0xff]
      %v993 = vld [vmem:[%s287 + $0x51] sm:$0xff]
      %v994 = vld [vmem:[%s287 + $0x69] sm:$0xff]
      %v995 = vld [vmem:[%s287 + $0x81] sm:$0xff]
      %v996 = vld [vmem:[%s287 + $0x99] sm:$0xff]
      %v997 = vld [vmem:[%s287 + $0xb1] sm:$0xff]
      %v998 = vld [vmem:[%s369 + $0x7] sm:$0xff]
      %v999 = vld [vmem:[%s369 + $0x1f] sm:$0xff]
      %v1000 = vld [vmem:[%s369 + $0x37] sm:$0xff]
      %v1001 = vld [vmem:[%s369 + $0x4f] sm:$0xff]
      %v1002 = vld [vmem:[%s369 + $0x67] sm:$0xff]
      %v1003 = vld [vmem:[%s369 + $0x7f] sm:$0xff]
      %v1004 = vld [vmem:[%s369 + $0x97] sm:$0xff]
      %v1005 = vld [vmem:[%s369 + $0xaf] sm:$0xff]
      %v1006 = vld [vmem:[%s369 + $0x8] sm:$0xff]
      %v1007 = vld [vmem:[%s369 + $0x20] sm:$0xff]
      %v1008 = vld [vmem:[%s369 + $0x38] sm:$0xff]
      %v1009 = vld [vmem:[%s369 + $0x50] sm:$0xff]
      %v1010 = vld [vmem:[%s369 + $0x68] sm:$0xff]
      %v1011 = vld [vmem:[%s369 + $0x80] sm:$0xff]
      %v1012 = vld [vmem:[%s369 + $0x98] sm:$0xff]
      %v1013 = vld [vmem:[%s369 + $0xb0] sm:$0xff]
      %v1014 = vld [vmem:[%s369 + $0x9] sm:$0xff]
      %v1015 = vld [vmem:[%s369 + $0x21] sm:$0xff]
      %v1016 = vld [vmem:[%s369 + $0x39] sm:$0xff]
      %v1017 = vld [vmem:[%s369 + $0x51] sm:$0xff]
      %v1018 = vld [vmem:[%s369 + $0x69] sm:$0xff]
      %v1019 = vld [vmem:[%s369 + $0x81] sm:$0xff]
      %v1020 = vld [vmem:[%s369 + $0x99] sm:$0xff]
      %v1021 = vld [vmem:[%s369 + $0xb1] sm:$0xff]
      %s1022 = scalar_lea.vmem %s1, 32
      %v1023 = vld [vmem:[%s1022] sm:$0xff]
      %v1024 = vld [vmem:[%s1022 + $0x8] sm:$0x1]
      %s1025 = scalar_lea.vmem %s2, 2
      %v1026 = vld [vmem:[%s1025] sm:$0x1]
      %v1027 = vperm.slane %v1023, 0
      %v1028 = vmul.f32 %v950, %v1027
      %v1029 = vmul.f32 %v951, %v1027
      %v1030 = vmul.f32 %v952, %v1027
      %v1031 = vmul.f32 %v953, %v1027
      %v1032 = vmul.f32 %v954, %v1027
      %v1033 = vmul.f32 %v955, %v1027
      %v1034 = vmul.f32 %v956, %v1027
      %v1035 = vmul.f32 %v957, %v1027
      %v1036 = vperm.slane %v1023, 1
      %v1037 = vmul.f32 %v958, %v1036
      %v1038 = vmul.f32 %v959, %v1036
      %v1039 = vmul.f32 %v960, %v1036
      %v1040 = vmul.f32 %v961, %v1036
      %v1041 = vmul.f32 %v962, %v1036
      %v1042 = vmul.f32 %v963, %v1036
      %v1043 = vmul.f32 %v964, %v1036
      %v1044 = vmul.f32 %v965, %v1036
      %v1045 = vadd.f32 %v1028, %v1037
      %v1046 = vadd.f32 %v1029, %v1038
      %v1047 = vadd.f32 %v1030, %v1039
      %v1048 = vadd.f32 %v1031, %v1040
      %v1049 = vadd.f32 %v1032, %v1041
      %v1050 = vadd.f32 %v1033, %v1042
      %v1051 = vadd.f32 %v1034, %v1043
      %v1052 = vadd.f32 %v1035, %v1044
      %v1053 = vperm.slane %v1023, 2
      %v1054 = vmul.f32 %v966, %v1053
      %v1055 = vmul.f32 %v967, %v1053
      %v1056 = vmul.f32 %v968, %v1053
      %v1057 = vmul.f32 %v969, %v1053
      %v1058 = vmul.f32 %v970, %v1053
      %v1059 = vmul.f32 %v971, %v1053
      %v1060 = vmul.f32 %v972, %v1053
      %v1061 = vmul.f32 %v973, %v1053
      %v1062 = vadd.f32 %v1045, %v1054
      %v1063 = vadd.f32 %v1046, %v1055
      %v1064 = vadd.f32 %v1047, %v1056
      %v1065 = vadd.f32 %v1048, %v1057
      %v1066 = vadd.f32 %v1049, %v1058
      %v1067 = vadd.f32 %v1050, %v1059
      %v1068 = vadd.f32 %v1051, %v1060
      %v1069 = vadd.f32 %v1052, %v1061
      %v1070 = vperm.slane %v1023, 3
      %v1071 = vmul.f32 %v974, %v1070
      %v1072 = vmul.f32 %v975, %v1070
      %v1073 = vmul.f32 %v976, %v1070
      %v1074 = vmul.f32 %v977, %v1070
      %v1075 = vmul.f32 %v978, %v1070
      %v1076 = vmul.f32 %v979, %v1070
      %v1077 = vmul.f32 %v980, %v1070
      %v1078 = vmul.f32 %v981, %v1070
      %v1079 = vadd.f32 %v1062, %v1071
      %v1080 = vadd.f32 %v1063, %v1072
      %v1081 = vadd.f32 %v1064, %v1073
      %v1082 = vadd.f32 %v1065, %v1074
      %v1083 = vadd.f32 %v1066, %v1075
      %v1084 = vadd.f32 %v1067, %v1076
      %v1085 = vadd.f32 %v1068, %v1077
      %v1086 = vadd.f32 %v1069, %v1078
      %v1087 = vperm.slane %v1023, 4
      %v1088 = vmul.f32 %v982, %v1087
      %v1089 = vmul.f32 %v983, %v1087
      %v1090 = vmul.f32 %v984, %v1087
      %v1091 = vmul.f32 %v985, %v1087
      %v1092 = vmul.f32 %v986, %v1087
      %v1093 = vmul.f32 %v987, %v1087
      %v1094 = vmul.f32 %v988, %v1087
      %v1095 = vmul.f32 %v989, %v1087
      %v1096 = vadd.f32 %v1079, %v1088
      %v1097 = vadd.f32 %v1080, %v1089
      %v1098 = vadd.f32 %v1081, %v1090
      %v1099 = vadd.f32 %v1082, %v1091
      %v1100 = vadd.f32 %v1083, %v1092
      %v1101 = vadd.f32 %v1084, %v1093
      %v1102 = vadd.f32 %v1085, %v1094
      %v1103 = vadd.f32 %v1086, %v1095
      %v1104 = vperm.slane %v1023, 5
      %v1105 = vmul.f32 %v990, %v1104
      %v1106 = vmul.f32 %v991, %v1104
      %v1107 = vmul.f32 %v992, %v1104
      %v1108 = vmul.f32 %v993, %v1104
      %v1109 = vmul.f32 %v994, %v1104
      %v1110 = vmul.f32 %v995, %v1104
      %v1111 = vmul.f32 %v996, %v1104
      %v1112 = vmul.f32 %v997, %v1104
      %v1113 = vadd.f32 %v1096, %v1105
      %v1114 = vadd.f32 %v1097, %v1106
      %v1115 = vadd.f32 %v1098, %v1107
      %v1116 = vadd.f32 %v1099, %v1108
      %v1117 = vadd.f32 %v1100, %v1109
      %v1118 = vadd.f32 %v1101, %v1110
      %v1119 = vadd.f32 %v1102, %v1111
      %v1120 = vadd.f32 %v1103, %v1112
      %v1121 = vperm.slane %v1023, 6
      %v1122 = vmul.f32 %v998, %v1121
      %v1123 = vmul.f32 %v999, %v1121
      %v1124 = vmul.f32 %v1000, %v1121
      %v1125 = vmul.f32 %v1001, %v1121
      %v1126 = vmul.f32 %v1002, %v1121
      %v1127 = vmul.f32 %v1003, %v1121
      %v1128 = vmul.f32 %v1004, %v1121
      %v1129 = vmul.f32 %v1005, %v1121
      %v1130 = vadd.f32 %v1113, %v1122
      %v1131 = vadd.f32 %v1114, %v1123
      %v1132 = vadd.f32 %v1115, %v1124
      %v1133 = vadd.f32 %v1116, %v1125
      %v1134 = vadd.f32 %v1117, %v1126
      %v1135 = vadd.f32 %v1118, %v1127
      %v1136 = vadd.f32 %v1119, %v1128
      %v1137 = vadd.f32 %v1120, %v1129
      %v1138 = vperm.slane %v1023, 7
      %v1139 = vmul.f32 %v1006, %v1138
      %v1140 = vmul.f32 %v1007, %v1138
      %v1141 = vmul.f32 %v1008, %v1138
      %v1142 = vmul.f32 %v1009, %v1138
      %v1143 = vmul.f32 %v1010, %v1138
      %v1144 = vmul.f32 %v1011, %v1138
      %v1145 = vmul.f32 %v1012, %v1138
      %v1146 = vmul.f32 %v1013, %v1138
      %v1147 = vadd.f32 %v1130, %v1139
      %v1148 = vadd.f32 %v1131, %v1140
      %v1149 = vadd.f32 %v1132, %v1141
      %v1150 = vadd.f32 %v1133, %v1142
      %v1151 = vadd.f32 %v1134, %v1143
      %v1152 = vadd.f32 %v1135, %v1144
      %v1153 = vadd.f32 %v1136, %v1145
      %v1154 = vadd.f32 %v1137, %v1146
      %v1155 = vperm.slane %v1024, 0
      %v1156 = vmul.f32 %v1014, %v1155
      %v1157 = vmul.f32 %v1015, %v1155
      %v1158 = vmul.f32 %v1016, %v1155
      %v1159 = vmul.f32 %v1017, %v1155
      %v1160 = vmul.f32 %v1018, %v1155
      %v1161 = vmul.f32 %v1019, %v1155
      %v1162 = vmul.f32 %v1020, %v1155
      %v1163 = vmul.f32 %v1021, %v1155
      %v1164 = vadd.f32 %v1147, %v1156
      %v1165 = vadd.f32 %v1148, %v1157
      %v1166 = vadd.f32 %v1149, %v1158
      %v1167 = vadd.f32 %v1150, %v1159
      %v1168 = vadd.f32 %v1151, %v1160
      %v1169 = vadd.f32 %v1152, %v1161
      %v1170 = vadd.f32 %v1153, %v1162
      %v1171 = vadd.f32 %v1154, %v1163
      %v1173 = vperm.slane %v1026, 0
      %v1175 = vadd.f32 %v1164, %v1173
      %v1176 = vadd.f32 %v1165, %v1173
      %v1177 = vadd.f32 %v1166, %v1173
      %v1178 = vadd.f32 %v1167, %v1173
      %v1179 = vadd.f32 %v1168, %v1173
      %v1180 = vadd.f32 %v1169, %v1173
      %v1181 = vadd.f32 %v1170, %v1173
      %v1182 = vadd.f32 %v1171, %v1173
      %v1183 = vpack.c.bf16 %v1176, %v1175
      %v1184 = vpack.c.bf16 %v1178, %v1177
      %v1185 = vpack.c.bf16 %v1180, %v1179
      %v1186 = vpack.c.bf16 %v1182, %v1181
      %s1187 = scalar_lea.vmem %s3, 32
      %v1188 = vld [vmem:[%s1187] sm:$0xf]
      %v1189 = vld [vmem:[%s1187 + $0x4] sm:$0xf]
      %v1190 = vld [vmem:[%s1187 + $0x8] sm:$0xf]
      %v1191 = vld [vmem:[%s1187 + $0xc] sm:$0xf]
      %s1192 = scalar_lea.vmem %s4, 2
      %v1193 = vld [vmem:[%s1192] sm:$0x1]
      %v1195 = vperm.slane %v1193, 0
      %v1201 = vunpack.c.l.b16 %v1188
      %v1202 = vunpack.c.l.b16 %v1189
      %v1203 = vunpack.c.l.b16 %v1190
      %v1204 = vunpack.c.l.b16 %v1191
      %v1205 = vpack.c.b16 %v1202, %v1201
      %v1206 = vpack.c.b16 %v1204, %v1203
      %v1210 = vsel %vm280, %v1183, 0
      %v1213 = vsel %vm280, %v1184, 0
      %v1216 = vsel %vm280, %v1185, 0
      %v1219 = vsel %vm280, %v1186, 0
      %1221 = vmatpush.bf16.msra.mxu0 0
      %1222 = vmatpush.bf16.msra.mxu0 0
      %1223 = vmatpush.bf16.msra.mxu0 0
      %1224 = vmatpush.bf16.msra.mxu0 0
      %1225 = vmatpush.bf16.msra.mxu0 0
      %1226 = vmatpush.bf16.msra.mxu0 0
      %1227 = vmatpush.bf16.msra.mxu0 %v1206
      %1228 = vmatpush.bf16.msra.mxu0 %v1205
      %1229 = vmatmul.bf16.gmra.mxu0 %v1210
      %v1230 = vpop.f32.mrf.mxu0
      %v1231 = vadd.f32 %v1195, %v1230
      %v1232 = vpop.f32.mrf.mxu0
      %v1233 = vadd.f32 %v1195, %v1232
      %1234 = vmatmul.bf16.gmra.mxu0 %v1213
      %v1235 = vpop.f32.mrf.mxu0
      %v1236 = vadd.f32 %v1195, %v1235
      %v1237 = vpop.f32.mrf.mxu0
      %v1238 = vadd.f32 %v1195, %v1237
      %1239 = vmatmul.bf16.gmra.mxu0 %v1216
      %v1240 = vpop.f32.mrf.mxu0
      %v1241 = vadd.f32 %v1195, %v1240
      %v1242 = vpop.f32.mrf.mxu0
      %v1243 = vadd.f32 %v1195, %v1242
      %1244 = vmatmul.bf16.gmra.mxu0 %v1219
      %v1245 = vpop.f32.mrf.mxu0
      %v1246 = vadd.f32 %v1195, %v1245
      %v1247 = vpop.f32.mrf.mxu0
      %v1248 = vadd.f32 %v1195, %v1247
      %1249 = vdwg.mxu0
      %v1250 = vmax.f32 %v1231, 0.0
      %v1251 = vmax.f32 %v1233, 0.0
      %v1252 = vmax.f32 %v1236, 0.0
      %v1253 = vmax.f32 %v1238, 0.0
      %v1254 = vmax.f32 %v1241, 0.0
      %v1255 = vmax.f32 %v1243, 0.0
      %v1256 = vmax.f32 %v1246, 0.0
      %v1257 = vmax.f32 %v1248, 0.0
      %1258 = vst.msk [vmem:[%s287 + $0x8] sm:$0xff] %vm280, %v1250
      %1259 = vst.msk [vmem:[%s287 + $0x20] sm:$0xff] %vm280, %v1251
      %1260 = vst.msk [vmem:[%s287 + $0x38] sm:$0xff] %vm280, %v1252
      %1261 = vst.msk [vmem:[%s287 + $0x50] sm:$0xff] %vm280, %v1253
      %1262 = vst.msk [vmem:[%s287 + $0x68] sm:$0xff] %vm280, %v1254
      %1263 = vst.msk [vmem:[%s287 + $0x80] sm:$0xff] %vm280, %v1255
      %1264 = vst.msk [vmem:[%s287 + $0x98] sm:$0xff] %vm280, %v1256
      %1265 = vst.msk [vmem:[%s287 + $0xb0] sm:$0xff] %vm280, %v1257
      %v1266 = vld [vmem:[#allocation2 + $0x7] sm:$0xff]
      %v1267 = vld [vmem:[#allocation2 + $0x1f] sm:$0xff]
      %v1268 = vld [vmem:[#allocation2 + $0x37] sm:$0xff]
      %v1269 = vld [vmem:[#allocation2 + $0x4f] sm:$0xff]
      %v1270 = vld [vmem:[#allocation2 + $0x67] sm:$0xff]
      %v1271 = vld [vmem:[#allocation2 + $0x7f] sm:$0xff]
      %v1272 = vld [vmem:[#allocation2 + $0x97] sm:$0xff]
      %v1273 = vld [vmem:[#allocation2 + $0xaf] sm:$0xff]
      %v1274 = vld [vmem:[#allocation2 + $0x8] sm:$0xff]
      %v1275 = vld [vmem:[#allocation2 + $0x20] sm:$0xff]
      %v1276 = vld [vmem:[#allocation2 + $0x38] sm:$0xff]
      %v1277 = vld [vmem:[#allocation2 + $0x50] sm:$0xff]
      %v1278 = vld [vmem:[#allocation2 + $0x68] sm:$0xff]
      %v1279 = vld [vmem:[#allocation2 + $0x80] sm:$0xff]
      %v1280 = vld [vmem:[#allocation2 + $0x98] sm:$0xff]
      %v1281 = vld [vmem:[#allocation2 + $0xb0] sm:$0xff]
      %v1282 = vld [vmem:[#allocation2 + $0x9] sm:$0xff]
      %v1283 = vld [vmem:[#allocation2 + $0x21] sm:$0xff]
      %v1284 = vld [vmem:[#allocation2 + $0x39] sm:$0xff]
      %v1285 = vld [vmem:[#allocation2 + $0x51] sm:$0xff]
      %v1286 = vld [vmem:[#allocation2 + $0x69] sm:$0xff]
      %v1287 = vld [vmem:[#allocation2 + $0x81] sm:$0xff]
      %v1288 = vld [vmem:[#allocation2 + $0x99] sm:$0xff]
      %v1289 = vld [vmem:[#allocation2 + $0xb1] sm:$0xff]
      %v1290 = vld [vmem:[%s287 + $0x7] sm:$0xff]
      %v1291 = vld [vmem:[%s287 + $0x1f] sm:$0xff]
      %v1292 = vld [vmem:[%s287 + $0x37] sm:$0xff]
      %v1293 = vld [vmem:[%s287 + $0x4f] sm:$0xff]
      %v1294 = vld [vmem:[%s287 + $0x67] sm:$0xff]
      %v1295 = vld [vmem:[%s287 + $0x7f] sm:$0xff]
      %v1296 = vld [vmem:[%s287 + $0x97] sm:$0xff]
      %v1297 = vld [vmem:[%s287 + $0xaf] sm:$0xff]
      %v1298 = vld [vmem:[%s287 + $0x8] sm:$0xff]
      %v1299 = vld [vmem:[%s287 + $0x20] sm:$0xff]
      %v1300 = vld [vmem:[%s287 + $0x38] sm:$0xff]
      %v1301 = vld [vmem:[%s287 + $0x50] sm:$0xff]
      %v1302 = vld [vmem:[%s287 + $0x68] sm:$0xff]
      %v1303 = vld [vmem:[%s287 + $0x80] sm:$0xff]
      %v1304 = vld [vmem:[%s287 + $0x98] sm:$0xff]
      %v1305 = vld [vmem:[%s287 + $0xb0] sm:$0xff]
      %v1306 = vld [vmem:[%s287 + $0x9] sm:$0xff]
      %v1307 = vld [vmem:[%s287 + $0x21] sm:$0xff]
      %v1308 = vld [vmem:[%s287 + $0x39] sm:$0xff]
      %v1309 = vld [vmem:[%s287 + $0x51] sm:$0xff]
      %v1310 = vld [vmem:[%s287 + $0x69] sm:$0xff]
      %v1311 = vld [vmem:[%s287 + $0x81] sm:$0xff]
      %v1312 = vld [vmem:[%s287 + $0x99] sm:$0xff]
      %v1313 = vld [vmem:[%s287 + $0xb1] sm:$0xff]
      %v1314 = vld [vmem:[%s369 + $0x7] sm:$0xff]
      %v1315 = vld [vmem:[%s369 + $0x1f] sm:$0xff]
      %v1316 = vld [vmem:[%s369 + $0x37] sm:$0xff]
      %v1317 = vld [vmem:[%s369 + $0x4f] sm:$0xff]
      %v1318 = vld [vmem:[%s369 + $0x67] sm:$0xff]
      %v1319 = vld [vmem:[%s369 + $0x7f] sm:$0xff]
      %v1320 = vld [vmem:[%s369 + $0x97] sm:$0xff]
      %v1321 = vld [vmem:[%s369 + $0xaf] sm:$0xff]
      %v1322 = vld [vmem:[%s369 + $0x8] sm:$0xff]
      %v1323 = vld [vmem:[%s369 + $0x20] sm:$0xff]
      %v1324 = vld [vmem:[%s369 + $0x38] sm:$0xff]
      %v1325 = vld [vmem:[%s369 + $0x50] sm:$0xff]
      %v1326 = vld [vmem:[%s369 + $0x68] sm:$0xff]
      %v1327 = vld [vmem:[%s369 + $0x80] sm:$0xff]
      %v1328 = vld [vmem:[%s369 + $0x98] sm:$0xff]
      %v1329 = vld [vmem:[%s369 + $0xb0] sm:$0xff]
      %v1330 = vld [vmem:[%s369 + $0x9] sm:$0xff]
      %v1331 = vld [vmem:[%s369 + $0x21] sm:$0xff]
      %v1332 = vld [vmem:[%s369 + $0x39] sm:$0xff]
      %v1333 = vld [vmem:[%s369 + $0x51] sm:$0xff]
      %v1334 = vld [vmem:[%s369 + $0x69] sm:$0xff]
      %v1335 = vld [vmem:[%s369 + $0x81] sm:$0xff]
      %v1336 = vld [vmem:[%s369 + $0x99] sm:$0xff]
      %v1337 = vld [vmem:[%s369 + $0xb1] sm:$0xff]
      %s1338 = scalar_lea.vmem %s1, 48
      %v1339 = vld [vmem:[%s1338] sm:$0xff]
      %v1340 = vld [vmem:[%s1338 + $0x8] sm:$0x1]
      %s1341 = scalar_lea.vmem %s2, 3
      %v1342 = vld [vmem:[%s1341] sm:$0x1]
      %v1343 = vperm.slane %v1339, 0
      %v1344 = vmul.f32 %v1266, %v1343
      %v1345 = vmul.f32 %v1267, %v1343
      %v1346 = vmul.f32 %v1268, %v1343
      %v1347 = vmul.f32 %v1269, %v1343
      %v1348 = vmul.f32 %v1270, %v1343
      %v1349 = vmul.f32 %v1271, %v1343
      %v1350 = vmul.f32 %v1272, %v1343
      %v1351 = vmul.f32 %v1273, %v1343
      %v1352 = vperm.slane %v1339, 1
      %v1353 = vmul.f32 %v1274, %v1352
      %v1354 = vmul.f32 %v1275, %v1352
      %v1355 = vmul.f32 %v1276, %v1352
      %v1356 = vmul.f32 %v1277, %v1352
      %v1357 = vmul.f32 %v1278, %v1352
      %v1358 = vmul.f32 %v1279, %v1352
      %v1359 = vmul.f32 %v1280, %v1352
      %v1360 = vmul.f32 %v1281, %v1352
      %v1361 = vadd.f32 %v1344, %v1353
      %v1362 = vadd.f32 %v1345, %v1354
      %v1363 = vadd.f32 %v1346, %v1355
      %v1364 = vadd.f32 %v1347, %v1356
      %v1365 = vadd.f32 %v1348, %v1357
      %v1366 = vadd.f32 %v1349, %v1358
      %v1367 = vadd.f32 %v1350, %v1359
      %v1368 = vadd.f32 %v1351, %v1360
      %v1369 = vperm.slane %v1339, 2
      %v1370 = vmul.f32 %v1282, %v1369
      %v1371 = vmul.f32 %v1283, %v1369
      %v1372 = vmul.f32 %v1284, %v1369
      %v1373 = vmul.f32 %v1285, %v1369
      %v1374 = vmul.f32 %v1286, %v1369
      %v1375 = vmul.f32 %v1287, %v1369
      %v1376 = vmul.f32 %v1288, %v1369
      %v1377 = vmul.f32 %v1289, %v1369
      %v1378 = vadd.f32 %v1361, %v1370
      %v1379 = vadd.f32 %v1362, %v1371
      %v1380 = vadd.f32 %v1363, %v1372
      %v1381 = vadd.f32 %v1364, %v1373
      %v1382 = vadd.f32 %v1365, %v1374
      %v1383 = vadd.f32 %v1366, %v1375
      %v1384 = vadd.f32 %v1367, %v1376
      %v1385 = vadd.f32 %v1368, %v1377
      %v1386 = vperm.slane %v1339, 3
      %v1387 = vmul.f32 %v1290, %v1386
      %v1388 = vmul.f32 %v1291, %v1386
      %v1389 = vmul.f32 %v1292, %v1386
      %v1390 = vmul.f32 %v1293, %v1386
      %v1391 = vmul.f32 %v1294, %v1386
      %v1392 = vmul.f32 %v1295, %v1386
      %v1393 = vmul.f32 %v1296, %v1386
      %v1394 = vmul.f32 %v1297, %v1386
      %v1395 = vadd.f32 %v1378, %v1387
      %v1396 = vadd.f32 %v1379, %v1388
      %v1397 = vadd.f32 %v1380, %v1389
      %v1398 = vadd.f32 %v1381, %v1390
      %v1399 = vadd.f32 %v1382, %v1391
      %v1400 = vadd.f32 %v1383, %v1392
      %v1401 = vadd.f32 %v1384, %v1393
      %v1402 = vadd.f32 %v1385, %v1394
      %v1403 = vperm.slane %v1339, 4
      %v1404 = vmul.f32 %v1298, %v1403
      %v1405 = vmul.f32 %v1299, %v1403
      %v1406 = vmul.f32 %v1300, %v1403
      %v1407 = vmul.f32 %v1301, %v1403
      %v1408 = vmul.f32 %v1302, %v1403
      %v1409 = vmul.f32 %v1303, %v1403
      %v1410 = vmul.f32 %v1304, %v1403
      %v1411 = vmul.f32 %v1305, %v1403
      %v1412 = vadd.f32 %v1395, %v1404
      %v1413 = vadd.f32 %v1396, %v1405
      %v1414 = vadd.f32 %v1397, %v1406
      %v1415 = vadd.f32 %v1398, %v1407
      %v1416 = vadd.f32 %v1399, %v1408
      %v1417 = vadd.f32 %v1400, %v1409
      %v1418 = vadd.f32 %v1401, %v1410
      %v1419 = vadd.f32 %v1402, %v1411
      %v1420 = vperm.slane %v1339, 5
      %v1421 = vmul.f32 %v1306, %v1420
      %v1422 = vmul.f32 %v1307, %v1420
      %v1423 = vmul.f32 %v1308, %v1420
      %v1424 = vmul.f32 %v1309, %v1420
      %v1425 = vmul.f32 %v1310, %v1420
      %v1426 = vmul.f32 %v1311, %v1420
      %v1427 = vmul.f32 %v1312, %v1420
      %v1428 = vmul.f32 %v1313, %v1420
      %v1429 = vadd.f32 %v1412, %v1421
      %v1430 = vadd.f32 %v1413, %v1422
      %v1431 = vadd.f32 %v1414, %v1423
      %v1432 = vadd.f32 %v1415, %v1424
      %v1433 = vadd.f32 %v1416, %v1425
      %v1434 = vadd.f32 %v1417, %v1426
      %v1435 = vadd.f32 %v1418, %v1427
      %v1436 = vadd.f32 %v1419, %v1428
      %v1437 = vperm.slane %v1339, 6
      %v1438 = vmul.f32 %v1314, %v1437
      %v1439 = vmul.f32 %v1315, %v1437
      %v1440 = vmul.f32 %v1316, %v1437
      %v1441 = vmul.f32 %v1317, %v1437
      %v1442 = vmul.f32 %v1318, %v1437
      %v1443 = vmul.f32 %v1319, %v1437
      %v1444 = vmul.f32 %v1320, %v1437
      %v1445 = vmul.f32 %v1321, %v1437
      %v1446 = vadd.f32 %v1429, %v1438
      %v1447 = vadd.f32 %v1430, %v1439
      %v1448 = vadd.f32 %v1431, %v1440
      %v1449 = vadd.f32 %v1432, %v1441
      %v1450 = vadd.f32 %v1433, %v1442
      %v1451 = vadd.f32 %v1434, %v1443
      %v1452 = vadd.f32 %v1435, %v1444
      %v1453 = vadd.f32 %v1436, %v1445
      %v1454 = vperm.slane %v1339, 7
      %v1455 = vmul.f32 %v1322, %v1454
      %v1456 = vmul.f32 %v1323, %v1454
      %v1457 = vmul.f32 %v1324, %v1454
      %v1458 = vmul.f32 %v1325, %v1454
      %v1459 = vmul.f32 %v1326, %v1454
      %v1460 = vmul.f32 %v1327, %v1454
      %v1461 = vmul.f32 %v1328, %v1454
      %v1462 = vmul.f32 %v1329, %v1454
      %v1463 = vadd.f32 %v1446, %v1455
      %v1464 = vadd.f32 %v1447, %v1456
      %v1465 = vadd.f32 %v1448, %v1457
      %v1466 = vadd.f32 %v1449, %v1458
      %v1467 = vadd.f32 %v1450, %v1459
      %v1468 = vadd.f32 %v1451, %v1460
      %v1469 = vadd.f32 %v1452, %v1461
      %v1470 = vadd.f32 %v1453, %v1462
      %v1471 = vperm.slane %v1340, 0
      %v1472 = vmul.f32 %v1330, %v1471
      %v1473 = vmul.f32 %v1331, %v1471
      %v1474 = vmul.f32 %v1332, %v1471
      %v1475 = vmul.f32 %v1333, %v1471
      %v1476 = vmul.f32 %v1334, %v1471
      %v1477 = vmul.f32 %v1335, %v1471
      %v1478 = vmul.f32 %v1336, %v1471
      %v1479 = vmul.f32 %v1337, %v1471
      %v1480 = vadd.f32 %v1463, %v1472
      %v1481 = vadd.f32 %v1464, %v1473
      %v1482 = vadd.f32 %v1465, %v1474
      %v1483 = vadd.f32 %v1466, %v1475
      %v1484 = vadd.f32 %v1467, %v1476
      %v1485 = vadd.f32 %v1468, %v1477
      %v1486 = vadd.f32 %v1469, %v1478
      %v1487 = vadd.f32 %v1470, %v1479
      %v1489 = vperm.slane %v1342, 0
      %v1491 = vadd.f32 %v1480, %v1489
      %v1492 = vadd.f32 %v1481, %v1489
      %v1493 = vadd.f32 %v1482, %v1489
      %v1494 = vadd.f32 %v1483, %v1489
      %v1495 = vadd.f32 %v1484, %v1489
      %v1496 = vadd.f32 %v1485, %v1489
      %v1497 = vadd.f32 %v1486, %v1489
      %v1498 = vadd.f32 %v1487, %v1489
      %v1499 = vpack.c.bf16 %v1492, %v1491
      %v1500 = vpack.c.bf16 %v1494, %v1493
      %v1501 = vpack.c.bf16 %v1496, %v1495
      %v1502 = vpack.c.bf16 %v1498, %v1497
      %s1503 = scalar_lea.vmem %s3, 48
      %v1504 = vld [vmem:[%s1503] sm:$0xf]
      %v1505 = vld [vmem:[%s1503 + $0x4] sm:$0xf]
      %v1506 = vld [vmem:[%s1503 + $0x8] sm:$0xf]
      %v1507 = vld [vmem:[%s1503 + $0xc] sm:$0xf]
      %s1508 = scalar_lea.vmem %s4, 3
      %v1509 = vld [vmem:[%s1508] sm:$0x1]
      %v1511 = vperm.slane %v1509, 0
      %v1517 = vunpack.c.l.b16 %v1504
      %v1518 = vunpack.c.l.b16 %v1505
      %v1519 = vunpack.c.l.b16 %v1506
      %v1520 = vunpack.c.l.b16 %v1507
      %v1521 = vpack.c.b16 %v1518, %v1517
      %v1522 = vpack.c.b16 %v1520, %v1519
      %v1526 = vsel %vm280, %v1499, 0
      %v1529 = vsel %vm280, %v1500, 0
      %v1532 = vsel %vm280, %v1501, 0
      %v1535 = vsel %vm280, %v1502, 0
      %1537 = vmatpush.bf16.msra.mxu0 0
      %1538 = vmatpush.bf16.msra.mxu0 0
      %1539 = vmatpush.bf16.msra.mxu0 0
      %1540 = vmatpush.bf16.msra.mxu0 0
      %1541 = vmatpush.bf16.msra.mxu0 0
      %1542 = vmatpush.bf16.msra.mxu0 0
      %1543 = vmatpush.bf16.msra.mxu0 %v1522
      %1544 = vmatpush.bf16.msra.mxu0 %v1521
      %1545 = vmatmul.bf16.gmra.mxu0 %v1526
      %v1546 = vpop.f32.mrf.mxu0
      %v1547 = vadd.f32 %v1511, %v1546
      %v1548 = vpop.f32.mrf.mxu0
      %v1549 = vadd.f32 %v1511, %v1548
      %1550 = vmatmul.bf16.gmra.mxu0 %v1529
      %v1551 = vpop.f32.mrf.mxu0
      %v1552 = vadd.f32 %v1511, %v1551
      %v1553 = vpop.f32.mrf.mxu0
      %v1554 = vadd.f32 %v1511, %v1553
      %1555 = vmatmul.bf16.gmra.mxu0 %v1532
      %v1556 = vpop.f32.mrf.mxu0
      %v1557 = vadd.f32 %v1511, %v1556
      %v1558 = vpop.f32.mrf.mxu0
      %v1559 = vadd.f32 %v1511, %v1558
      %1560 = vmatmul.bf16.gmra.mxu0 %v1535
      %v1561 = vpop.f32.mrf.mxu0
      %v1562 = vadd.f32 %v1511, %v1561
      %v1563 = vpop.f32.mrf.mxu0
      %v1564 = vadd.f32 %v1511, %v1563
      %1565 = vdwg.mxu0
      %v1566 = vadd.f32 %v915, %v1547
      %v1567 = vadd.f32 %v917, %v1549
      %v1568 = vadd.f32 %v920, %v1552
      %v1569 = vadd.f32 %v922, %v1554
      %v1570 = vadd.f32 %v925, %v1557
      %v1571 = vadd.f32 %v927, %v1559
      %v1572 = vadd.f32 %v930, %v1562
      %v1573 = vadd.f32 %v932, %v1564
      %v1574 = vmul.f32 %v1566, 0.5
      %v1575 = vmul.f32 %v1567, 0.5
      %v1576 = vmul.f32 %v1568, 0.5
      %v1577 = vmul.f32 %v1569, 0.5
      %v1578 = vmul.f32 %v1570, 0.5
      %v1579 = vmul.f32 %v1571, 0.5
      %v1580 = vmul.f32 %v1572, 0.5
      %v1581 = vmul.f32 %v1573, 0.5
      %v1582 = vadd.f32 %v934, %v1574
      %v1583 = vadd.f32 %v935, %v1575
      %v1584 = vadd.f32 %v936, %v1576
      %v1585 = vadd.f32 %v937, %v1577
      %v1586 = vadd.f32 %v938, %v1578
      %v1587 = vadd.f32 %v939, %v1579
      %v1588 = vadd.f32 %v940, %v1580
      %v1589 = vadd.f32 %v941, %v1581
      %1590 = vst.msk [vmem:[%s287 + $0x8] sm:$0xff] %vm280, %v1582
      %1591 = vst.msk [vmem:[%s287 + $0x20] sm:$0xff] %vm280, %v1583
      %1592 = vst.msk [vmem:[%s287 + $0x38] sm:$0xff] %vm280, %v1584
      %1593 = vst.msk [vmem:[%s287 + $0x50] sm:$0xff] %vm280, %v1585
      %1594 = vst.msk [vmem:[%s287 + $0x68] sm:$0xff] %vm280, %v1586
      %1595 = vst.msk [vmem:[%s287 + $0x80] sm:$0xff] %vm280, %v1587
      %1596 = vst.msk [vmem:[%s287 + $0x98] sm:$0xff] %vm280, %v1588
      %1597 = vst.msk [vmem:[%s287 + $0xb0] sm:$0xff] %vm280, %v1589
      %v1598 = vld [vmem:[#allocation2 + $0x7] sm:$0xff]
      %v1599 = vld [vmem:[#allocation2 + $0x1f] sm:$0xff]
      %v1600 = vld [vmem:[#allocation2 + $0x37] sm:$0xff]
      %v1601 = vld [vmem:[#allocation2 + $0x4f] sm:$0xff]
      %v1602 = vld [vmem:[#allocation2 + $0x67] sm:$0xff]
      %v1603 = vld [vmem:[#allocation2 + $0x7f] sm:$0xff]
      %v1604 = vld [vmem:[#allocation2 + $0x97] sm:$0xff]
      %v1605 = vld [vmem:[#allocation2 + $0xaf] sm:$0xff]
      %v1606 = vld [vmem:[#allocation2 + $0x8] sm:$0xff]
      %v1607 = vld [vmem:[#allocation2 + $0x20] sm:$0xff]
      %v1608 = vld [vmem:[#allocation2 + $0x38] sm:$0xff]
      %v1609 = vld [vmem:[#allocation2 + $0x50] sm:$0xff]
      %v1610 = vld [vmem:[#allocation2 + $0x68] sm:$0xff]
      %v1611 = vld [vmem:[#allocation2 + $0x80] sm:$0xff]
      %v1612 = vld [vmem:[#allocation2 + $0x98] sm:$0xff]
      %v1613 = vld [vmem:[#allocation2 + $0xb0] sm:$0xff]
      %v1614 = vld [vmem:[#allocation2 + $0x9] sm:$0xff]
      %v1615 = vld [vmem:[#allocation2 + $0x21] sm:$0xff]
      %v1616 = vld [vmem:[#allocation2 + $0x39] sm:$0xff]
      %v1617 = vld [vmem:[#allocation2 + $0x51] sm:$0xff]
      %v1618 = vld [vmem:[#allocation2 + $0x69] sm:$0xff]
      %v1619 = vld [vmem:[#allocation2 + $0x81] sm:$0xff]
      %v1620 = vld [vmem:[#allocation2 + $0x99] sm:$0xff]
      %v1621 = vld [vmem:[#allocation2 + $0xb1] sm:$0xff]
      %v1622 = vld [vmem:[%s287 + $0x7] sm:$0xff]
      %v1623 = vld [vmem:[%s287 + $0x1f] sm:$0xff]
      %v1624 = vld [vmem:[%s287 + $0x37] sm:$0xff]
      %v1625 = vld [vmem:[%s287 + $0x4f] sm:$0xff]
      %v1626 = vld [vmem:[%s287 + $0x67] sm:$0xff]
      %v1627 = vld [vmem:[%s287 + $0x7f] sm:$0xff]
      %v1628 = vld [vmem:[%s287 + $0x97] sm:$0xff]
      %v1629 = vld [vmem:[%s287 + $0xaf] sm:$0xff]
      %v1630 = vld [vmem:[%s287 + $0x8] sm:$0xff]
      %v1631 = vld [vmem:[%s287 + $0x20] sm:$0xff]
      %v1632 = vld [vmem:[%s287 + $0x38] sm:$0xff]
      %v1633 = vld [vmem:[%s287 + $0x50] sm:$0xff]
      %v1634 = vld [vmem:[%s287 + $0x68] sm:$0xff]
      %v1635 = vld [vmem:[%s287 + $0x80] sm:$0xff]
      %v1636 = vld [vmem:[%s287 + $0x98] sm:$0xff]
      %v1637 = vld [vmem:[%s287 + $0xb0] sm:$0xff]
      %v1638 = vld [vmem:[%s287 + $0x9] sm:$0xff]
      %v1639 = vld [vmem:[%s287 + $0x21] sm:$0xff]
      %v1640 = vld [vmem:[%s287 + $0x39] sm:$0xff]
      %v1641 = vld [vmem:[%s287 + $0x51] sm:$0xff]
      %v1642 = vld [vmem:[%s287 + $0x69] sm:$0xff]
      %v1643 = vld [vmem:[%s287 + $0x81] sm:$0xff]
      %v1644 = vld [vmem:[%s287 + $0x99] sm:$0xff]
      %v1645 = vld [vmem:[%s287 + $0xb1] sm:$0xff]
      %v1646 = vld [vmem:[%s369 + $0x7] sm:$0xff]
      %v1647 = vld [vmem:[%s369 + $0x1f] sm:$0xff]
      %v1648 = vld [vmem:[%s369 + $0x37] sm:$0xff]
      %v1649 = vld [vmem:[%s369 + $0x4f] sm:$0xff]
      %v1650 = vld [vmem:[%s369 + $0x67] sm:$0xff]
      %v1651 = vld [vmem:[%s369 + $0x7f] sm:$0xff]
      %v1652 = vld [vmem:[%s369 + $0x97] sm:$0xff]
      %v1653 = vld [vmem:[%s369 + $0xaf] sm:$0xff]
      %v1654 = vld [vmem:[%s369 + $0x8] sm:$0xff]
      %v1655 = vld [vmem:[%s369 + $0x20] sm:$0xff]
      %v1656 = vld [vmem:[%s369 + $0x38] sm:$0xff]
      %v1657 = vld [vmem:[%s369 + $0x50] sm:$0xff]
      %v1658 = vld [vmem:[%s369 + $0x68] sm:$0xff]
      %v1659 = vld [vmem:[%s369 + $0x80] sm:$0xff]
      %v1660 = vld [vmem:[%s369 + $0x98] sm:$0xff]
      %v1661 = vld [vmem:[%s369 + $0xb0] sm:$0xff]
      %v1662 = vld [vmem:[%s369 + $0x9] sm:$0xff]
      %v1663 = vld [vmem:[%s369 + $0x21] sm:$0xff]
      %v1664 = vld [vmem:[%s369 + $0x39] sm:$0xff]
      %v1665 = vld [vmem:[%s369 + $0x51] sm:$0xff]
      %v1666 = vld [vmem:[%s369 + $0x69] sm:$0xff]
      %v1667 = vld [vmem:[%s369 + $0x81] sm:$0xff]
      %v1668 = vld [vmem:[%s369 + $0x99] sm:$0xff]
      %v1669 = vld [vmem:[%s369 + $0xb1] sm:$0xff]
      %s1670 = scalar_lea.vmem %s1, 64
      %v1671 = vld [vmem:[%s1670] sm:$0xff]
      %v1672 = vld [vmem:[%s1670 + $0x8] sm:$0x1]
      %s1673 = scalar_lea.vmem %s2, 4
      %v1674 = vld [vmem:[%s1673] sm:$0x1]
      %v1675 = vperm.slane %v1671, 0
      %v1676 = vmul.f32 %v1598, %v1675
      %v1677 = vmul.f32 %v1599, %v1675
      %v1678 = vmul.f32 %v1600, %v1675
      %v1679 = vmul.f32 %v1601, %v1675
      %v1680 = vmul.f32 %v1602, %v1675
      %v1681 = vmul.f32 %v1603, %v1675
      %v1682 = vmul.f32 %v1604, %v1675
      %v1683 = vmul.f32 %v1605, %v1675
      %v1684 = vperm.slane %v1671, 1
      %v1685 = vmul.f32 %v1606, %v1684
      %v1686 = vmul.f32 %v1607, %v1684
      %v1687 = vmul.f32 %v1608, %v1684
      %v1688 = vmul.f32 %v1609, %v1684
      %v1689 = vmul.f32 %v1610, %v1684
      %v1690 = vmul.f32 %v1611, %v1684
      %v1691 = vmul.f32 %v1612, %v1684
      %v1692 = vmul.f32 %v1613, %v1684
      %v1693 = vadd.f32 %v1676, %v1685
      %v1694 = vadd.f32 %v1677, %v1686
      %v1695 = vadd.f32 %v1678, %v1687
      %v1696 = vadd.f32 %v1679, %v1688
      %v1697 = vadd.f32 %v1680, %v1689
      %v1698 = vadd.f32 %v1681, %v1690
      %v1699 = vadd.f32 %v1682, %v1691
      %v1700 = vadd.f32 %v1683, %v1692
      %v1701 = vperm.slane %v1671, 2
      %v1702 = vmul.f32 %v1614, %v1701
      %v1703 = vmul.f32 %v1615, %v1701
      %v1704 = vmul.f32 %v1616, %v1701
      %v1705 = vmul.f32 %v1617, %v1701
      %v1706 = vmul.f32 %v1618, %v1701
      %v1707 = vmul.f32 %v1619, %v1701
      %v1708 = vmul.f32 %v1620, %v1701
      %v1709 = vmul.f32 %v1621, %v1701
      %v1710 = vadd.f32 %v1693, %v1702
      %v1711 = vadd.f32 %v1694, %v1703
      %v1712 = vadd.f32 %v1695, %v1704
      %v1713 = vadd.f32 %v1696, %v1705
      %v1714 = vadd.f32 %v1697, %v1706
      %v1715 = vadd.f32 %v1698, %v1707
      %v1716 = vadd.f32 %v1699, %v1708
      %v1717 = vadd.f32 %v1700, %v1709
      %v1718 = vperm.slane %v1671, 3
      %v1719 = vmul.f32 %v1622, %v1718
      %v1720 = vmul.f32 %v1623, %v1718
      %v1721 = vmul.f32 %v1624, %v1718
      %v1722 = vmul.f32 %v1625, %v1718
      %v1723 = vmul.f32 %v1626, %v1718
      %v1724 = vmul.f32 %v1627, %v1718
      %v1725 = vmul.f32 %v1628, %v1718
      %v1726 = vmul.f32 %v1629, %v1718
      %v1727 = vadd.f32 %v1710, %v1719
      %v1728 = vadd.f32 %v1711, %v1720
      %v1729 = vadd.f32 %v1712, %v1721
      %v1730 = vadd.f32 %v1713, %v1722
      %v1731 = vadd.f32 %v1714, %v1723
      %v1732 = vadd.f32 %v1715, %v1724
      %v1733 = vadd.f32 %v1716, %v1725
      %v1734 = vadd.f32 %v1717, %v1726
      %v1735 = vperm.slane %v1671, 4
      %v1736 = vmul.f32 %v1630, %v1735
      %v1737 = vmul.f32 %v1631, %v1735
      %v1738 = vmul.f32 %v1632, %v1735
      %v1739 = vmul.f32 %v1633, %v1735
      %v1740 = vmul.f32 %v1634, %v1735
      %v1741 = vmul.f32 %v1635, %v1735
      %v1742 = vmul.f32 %v1636, %v1735
      %v1743 = vmul.f32 %v1637, %v1735
      %v1744 = vadd.f32 %v1727, %v1736
      %v1745 = vadd.f32 %v1728, %v1737
      %v1746 = vadd.f32 %v1729, %v1738
      %v1747 = vadd.f32 %v1730, %v1739
      %v1748 = vadd.f32 %v1731, %v1740
      %v1749 = vadd.f32 %v1732, %v1741
      %v1750 = vadd.f32 %v1733, %v1742
      %v1751 = vadd.f32 %v1734, %v1743
      %v1752 = vperm.slane %v1671, 5
      %v1753 = vmul.f32 %v1638, %v1752
      %v1754 = vmul.f32 %v1639, %v1752
      %v1755 = vmul.f32 %v1640, %v1752
      %v1756 = vmul.f32 %v1641, %v1752
      %v1757 = vmul.f32 %v1642, %v1752
      %v1758 = vmul.f32 %v1643, %v1752
      %v1759 = vmul.f32 %v1644, %v1752
      %v1760 = vmul.f32 %v1645, %v1752
      %v1761 = vadd.f32 %v1744, %v1753
      %v1762 = vadd.f32 %v1745, %v1754
      %v1763 = vadd.f32 %v1746, %v1755
      %v1764 = vadd.f32 %v1747, %v1756
      %v1765 = vadd.f32 %v1748, %v1757
      %v1766 = vadd.f32 %v1749, %v1758
      %v1767 = vadd.f32 %v1750, %v1759
      %v1768 = vadd.f32 %v1751, %v1760
      %v1769 = vperm.slane %v1671, 6
      %v1770 = vmul.f32 %v1646, %v1769
      %v1771 = vmul.f32 %v1647, %v1769
      %v1772 = vmul.f32 %v1648, %v1769
      %v1773 = vmul.f32 %v1649, %v1769
      %v1774 = vmul.f32 %v1650, %v1769
      %v1775 = vmul.f32 %v1651, %v1769
      %v1776 = vmul.f32 %v1652, %v1769
      %v1777 = vmul.f32 %v1653, %v1769
      %v1778 = vadd.f32 %v1761, %v1770
      %v1779 = vadd.f32 %v1762, %v1771
      %v1780 = vadd.f32 %v1763, %v1772
      %v1781 = vadd.f32 %v1764, %v1773
      %v1782 = vadd.f32 %v1765, %v1774
      %v1783 = vadd.f32 %v1766, %v1775
      %v1784 = vadd.f32 %v1767, %v1776
      %v1785 = vadd.f32 %v1768, %v1777
      %v1786 = vperm.slane %v1671, 7
      %v1787 = vmul.f32 %v1654, %v1786
      %v1788 = vmul.f32 %v1655, %v1786
      %v1789 = vmul.f32 %v1656, %v1786
      %v1790 = vmul.f32 %v1657, %v1786
      %v1791 = vmul.f32 %v1658, %v1786
      %v1792 = vmul.f32 %v1659, %v1786
      %v1793 = vmul.f32 %v1660, %v1786
      %v1794 = vmul.f32 %v1661, %v1786
      %v1795 = vadd.f32 %v1778, %v1787
      %v1796 = vadd.f32 %v1779, %v1788
      %v1797 = vadd.f32 %v1780, %v1789
      %v1798 = vadd.f32 %v1781, %v1790
      %v1799 = vadd.f32 %v1782, %v1791
      %v1800 = vadd.f32 %v1783, %v1792
      %v1801 = vadd.f32 %v1784, %v1793
      %v1802 = vadd.f32 %v1785, %v1794
      %v1803 = vperm.slane %v1672, 0
      %v1804 = vmul.f32 %v1662, %v1803
      %v1805 = vmul.f32 %v1663, %v1803
      %v1806 = vmul.f32 %v1664, %v1803
      %v1807 = vmul.f32 %v1665, %v1803
      %v1808 = vmul.f32 %v1666, %v1803
      %v1809 = vmul.f32 %v1667, %v1803
      %v1810 = vmul.f32 %v1668, %v1803
      %v1811 = vmul.f32 %v1669, %v1803
      %v1812 = vadd.f32 %v1795, %v1804
      %v1813 = vadd.f32 %v1796, %v1805
      %v1814 = vadd.f32 %v1797, %v1806
      %v1815 = vadd.f32 %v1798, %v1807
      %v1816 = vadd.f32 %v1799, %v1808
      %v1817 = vadd.f32 %v1800, %v1809
      %v1818 = vadd.f32 %v1801, %v1810
      %v1819 = vadd.f32 %v1802, %v1811
      %v1821 = vperm.slane %v1674, 0
      %v1823 = vadd.f32 %v1812, %v1821
      %v1824 = vadd.f32 %v1813, %v1821
      %v1825 = vadd.f32 %v1814, %v1821
      %v1826 = vadd.f32 %v1815, %v1821
      %v1827 = vadd.f32 %v1816, %v1821
      %v1828 = vadd.f32 %v1817, %v1821
      %v1829 = vadd.f32 %v1818, %v1821
      %v1830 = vadd.f32 %v1819, %v1821
      %v1831 = vpack.c.bf16 %v1824, %v1823
      %v1832 = vpack.c.bf16 %v1826, %v1825
      %v1833 = vpack.c.bf16 %v1828, %v1827
      %v1834 = vpack.c.bf16 %v1830, %v1829
      %s1835 = scalar_lea.vmem %s3, 64
      %v1836 = vld [vmem:[%s1835] sm:$0xf]
      %v1837 = vld [vmem:[%s1835 + $0x4] sm:$0xf]
      %v1838 = vld [vmem:[%s1835 + $0x8] sm:$0xf]
      %v1839 = vld [vmem:[%s1835 + $0xc] sm:$0xf]
      %s1840 = scalar_lea.vmem %s4, 4
      %v1841 = vld [vmem:[%s1840] sm:$0x1]
      %v1843 = vperm.slane %v1841, 0
      %v1849 = vunpack.c.l.b16 %v1836
      %v1850 = vunpack.c.l.b16 %v1837
      %v1851 = vunpack.c.l.b16 %v1838
      %v1852 = vunpack.c.l.b16 %v1839
      %v1853 = vpack.c.b16 %v1850, %v1849
      %v1854 = vpack.c.b16 %v1852, %v1851
      %v1858 = vsel %vm280, %v1831, 0
      %v1861 = vsel %vm280, %v1832, 0
      %v1864 = vsel %vm280, %v1833, 0
      %v1867 = vsel %vm280, %v1834, 0
      %1869 = vmatpush.bf16.msra.mxu0 0
      %1870 = vmatpush.bf16.msra.mxu0 0
      %1871 = vmatpush.bf16.msra.mxu0 0
      %1872 = vmatpush.bf16.msra.mxu0 0
      %1873 = vmatpush.bf16.msra.mxu0 0
      %1874 = vmatpush.bf16.msra.mxu0 0
      %1875 = vmatpush.bf16.msra.mxu0 %v1854
      %1876 = vmatpush.bf16.msra.mxu0 %v1853
      %1877 = vmatmul.bf16.gmra.mxu0 %v1858
      %v1878 = vpop.f32.mrf.mxu0
      %v1879 = vadd.f32 %v1843, %v1878
      %v1880 = vpop.f32.mrf.mxu0
      %v1881 = vadd.f32 %v1843, %v1880
      %1882 = vmatmul.bf16.gmra.mxu0 %v1861
      %v1883 = vpop.f32.mrf.mxu0
      %v1884 = vadd.f32 %v1843, %v1883
      %v1885 = vpop.f32.mrf.mxu0
      %v1886 = vadd.f32 %v1843, %v1885
      %1887 = vmatmul.bf16.gmra.mxu0 %v1864
      %v1888 = vpop.f32.mrf.mxu0
      %v1889 = vadd.f32 %v1843, %v1888
      %v1890 = vpop.f32.mrf.mxu0
      %v1891 = vadd.f32 %v1843, %v1890
      %1892 = vmatmul.bf16.gmra.mxu0 %v1867
      %v1893 = vpop.f32.mrf.mxu0
      %v1894 = vadd.f32 %v1843, %v1893
      %v1895 = vpop.f32.mrf.mxu0
      %v1896 = vadd.f32 %v1843, %v1895
      %1897 = vdwg.mxu0
      %v1898 = vmax.f32 %v1879, 0.0
      %v1899 = vmax.f32 %v1881, 0.0
      %v1900 = vmax.f32 %v1884, 0.0
      %v1901 = vmax.f32 %v1886, 0.0
      %v1902 = vmax.f32 %v1889, 0.0
      %v1903 = vmax.f32 %v1891, 0.0
      %v1904 = vmax.f32 %v1894, 0.0
      %v1905 = vmax.f32 %v1896, 0.0
      %1906 = vst.msk [vmem:[%s287 + $0x8] sm:$0xff] %vm280, %v1898
      %1907 = vst.msk [vmem:[%s287 + $0x20] sm:$0xff] %vm280, %v1899
      %1908 = vst.msk [vmem:[%s287 + $0x38] sm:$0xff] %vm280, %v1900
      %1909 = vst.msk [vmem:[%s287 + $0x50] sm:$0xff] %vm280, %v1901
      %1910 = vst.msk [vmem:[%s287 + $0x68] sm:$0xff] %vm280, %v1902
      %1911 = vst.msk [vmem:[%s287 + $0x80] sm:$0xff] %vm280, %v1903
      %1912 = vst.msk [vmem:[%s287 + $0x98] sm:$0xff] %vm280, %v1904
      %1913 = vst.msk [vmem:[%s287 + $0xb0] sm:$0xff] %vm280, %v1905
      %v1914 = vld [vmem:[#allocation2 + $0x7] sm:$0xff]
      %v1915 = vld [vmem:[#allocation2 + $0x1f] sm:$0xff]
      %v1916 = vld [vmem:[#allocation2 + $0x37] sm:$0xff]
      %v1917 = vld [vmem:[#allocation2 + $0x4f] sm:$0xff]
      %v1918 = vld [vmem:[#allocation2 + $0x67] sm:$0xff]
      %v1919 = vld [vmem:[#allocation2 + $0x7f] sm:$0xff]
      %v1920 = vld [vmem:[#allocation2 + $0x97] sm:$0xff]
      %v1921 = vld [vmem:[#allocation2 + $0xaf] sm:$0xff]
      %v1922 = vld [vmem:[#allocation2 + $0x8] sm:$0xff]
      %v1923 = vld [vmem:[#allocation2 + $0x20] sm:$0xff]
      %v1924 = vld [vmem:[#allocation2 + $0x38] sm:$0xff]
      %v1925 = vld [vmem:[#allocation2 + $0x50] sm:$0xff]
      %v1926 = vld [vmem:[#allocation2 + $0x68] sm:$0xff]
      %v1927 = vld [vmem:[#allocation2 + $0x80] sm:$0xff]
      %v1928 = vld [vmem:[#allocation2 + $0x98] sm:$0xff]
      %v1929 = vld [vmem:[#allocation2 + $0xb0] sm:$0xff]
      %v1930 = vld [vmem:[#allocation2 + $0x9] sm:$0xff]
      %v1931 = vld [vmem:[#allocation2 + $0x21] sm:$0xff]
      %v1932 = vld [vmem:[#allocation2 + $0x39] sm:$0xff]
      %v1933 = vld [vmem:[#allocation2 + $0x51] sm:$0xff]
      %v1934 = vld [vmem:[#allocation2 + $0x69] sm:$0xff]
      %v1935 = vld [vmem:[#allocation2 + $0x81] sm:$0xff]
      %v1936 = vld [vmem:[#allocation2 + $0x99] sm:$0xff]
      %v1937 = vld [vmem:[#allocation2 + $0xb1] sm:$0xff]
      %v1938 = vld [vmem:[%s287 + $0x7] sm:$0xff]
      %v1939 = vld [vmem:[%s287 + $0x1f] sm:$0xff]
      %v1940 = vld [vmem:[%s287 + $0x37] sm:$0xff]
      %v1941 = vld [vmem:[%s287 + $0x4f] sm:$0xff]
      %v1942 = vld [vmem:[%s287 + $0x67] sm:$0xff]
      %v1943 = vld [vmem:[%s287 + $0x7f] sm:$0xff]
      %v1944 = vld [vmem:[%s287 + $0x97] sm:$0xff]
      %v1945 = vld [vmem:[%s287 + $0xaf] sm:$0xff]
      %v1946 = vld [vmem:[%s287 + $0x8] sm:$0xff]
      %v1947 = vld [vmem:[%s287 + $0x20] sm:$0xff]
      %v1948 = vld [vmem:[%s287 + $0x38] sm:$0xff]
      %v1949 = vld [vmem:[%s287 + $0x50] sm:$0xff]
      %v1950 = vld [vmem:[%s287 + $0x68] sm:$0xff]
      %v1951 = vld [vmem:[%s287 + $0x80] sm:$0xff]
      %v1952 = vld [vmem:[%s287 + $0x98] sm:$0xff]
      %v1953 = vld [vmem:[%s287 + $0xb0] sm:$0xff]
      %v1954 = vld [vmem:[%s287 + $0x9] sm:$0xff]
      %v1955 = vld [vmem:[%s287 + $0x21] sm:$0xff]
      %v1956 = vld [vmem:[%s287 + $0x39] sm:$0xff]
      %v1957 = vld [vmem:[%s287 + $0x51] sm:$0xff]
      %v1958 = vld [vmem:[%s287 + $0x69] sm:$0xff]
      %v1959 = vld [vmem:[%s287 + $0x81] sm:$0xff]
      %v1960 = vld [vmem:[%s287 + $0x99] sm:$0xff]
      %v1961 = vld [vmem:[%s287 + $0xb1] sm:$0xff]
      %v1962 = vld [vmem:[%s369 + $0x7] sm:$0xff]
      %v1963 = vld [vmem:[%s369 + $0x1f] sm:$0xff]
      %v1964 = vld [vmem:[%s369 + $0x37] sm:$0xff]
      %v1965 = vld [vmem:[%s369 + $0x4f] sm:$0xff]
      %v1966 = vld [vmem:[%s369 + $0x67] sm:$0xff]
      %v1967 = vld [vmem:[%s369 + $0x7f] sm:$0xff]
      %v1968 = vld [vmem:[%s369 + $0x97] sm:$0xff]
      %v1969 = vld [vmem:[%s369 + $0xaf] sm:$0xff]
      %v1970 = vld [vmem:[%s369 + $0x8] sm:$0xff]
      %v1971 = vld [vmem:[%s369 + $0x20] sm:$0xff]
      %v1972 = vld [vmem:[%s369 + $0x38] sm:$0xff]
      %v1973 = vld [vmem:[%s369 + $0x50] sm:$0xff]
      %v1974 = vld [vmem:[%s369 + $0x68] sm:$0xff]
      %v1975 = vld [vmem:[%s369 + $0x80] sm:$0xff]
      %v1976 = vld [vmem:[%s369 + $0x98] sm:$0xff]
      %v1977 = vld [vmem:[%s369 + $0xb0] sm:$0xff]
      %v1978 = vld [vmem:[%s369 + $0x9] sm:$0xff]
      %v1979 = vld [vmem:[%s369 + $0x21] sm:$0xff]
      %v1980 = vld [vmem:[%s369 + $0x39] sm:$0xff]
      %v1981 = vld [vmem:[%s369 + $0x51] sm:$0xff]
      %v1982 = vld [vmem:[%s369 + $0x69] sm:$0xff]
      %v1983 = vld [vmem:[%s369 + $0x81] sm:$0xff]
      %v1984 = vld [vmem:[%s369 + $0x99] sm:$0xff]
      %v1985 = vld [vmem:[%s369 + $0xb1] sm:$0xff]
      %s1986 = scalar_lea.vmem %s1, 80
      %v1987 = vld [vmem:[%s1986] sm:$0xff]
      %v1988 = vld [vmem:[%s1986 + $0x8] sm:$0x1]
      %s1989 = scalar_lea.vmem %s2, 5
      %v1990 = vld [vmem:[%s1989] sm:$0x1]
      %v1991 = vperm.slane %v1987, 0
      %v1992 = vmul.f32 %v1914, %v1991
      %v1993 = vmul.f32 %v1915, %v1991
      %v1994 = vmul.f32 %v1916, %v1991
      %v1995 = vmul.f32 %v1917, %v1991
      %v1996 = vmul.f32 %v1918, %v1991
      %v1997 = vmul.f32 %v1919, %v1991
      %v1998 = vmul.f32 %v1920, %v1991
      %v1999 = vmul.f32 %v1921, %v1991
      %v2000 = vperm.slane %v1987, 1
      %v2001 = vmul.f32 %v1922, %v2000
      %v2002 = vmul.f32 %v1923, %v2000
      %v2003 = vmul.f32 %v1924, %v2000
      %v2004 = vmul.f32 %v1925, %v2000
      %v2005 = vmul.f32 %v1926, %v2000
      %v2006 = vmul.f32 %v1927, %v2000
      %v2007 = vmul.f32 %v1928, %v2000
      %v2008 = vmul.f32 %v1929, %v2000
      %v2009 = vadd.f32 %v1992, %v2001
      %v2010 = vadd.f32 %v1993, %v2002
      %v2011 = vadd.f32 %v1994, %v2003
      %v2012 = vadd.f32 %v1995, %v2004
      %v2013 = vadd.f32 %v1996, %v2005
      %v2014 = vadd.f32 %v1997, %v2006
      %v2015 = vadd.f32 %v1998, %v2007
      %v2016 = vadd.f32 %v1999, %v2008
      %v2017 = vperm.slane %v1987, 2
      %v2018 = vmul.f32 %v1930, %v2017
      %v2019 = vmul.f32 %v1931, %v2017
      %v2020 = vmul.f32 %v1932, %v2017
      %v2021 = vmul.f32 %v1933, %v2017
      %v2022 = vmul.f32 %v1934, %v2017
      %v2023 = vmul.f32 %v1935, %v2017
      %v2024 = vmul.f32 %v1936, %v2017
      %v2025 = vmul.f32 %v1937, %v2017
      %v2026 = vadd.f32 %v2009, %v2018
      %v2027 = vadd.f32 %v2010, %v2019
      %v2028 = vadd.f32 %v2011, %v2020
      %v2029 = vadd.f32 %v2012, %v2021
      %v2030 = vadd.f32 %v2013, %v2022
      %v2031 = vadd.f32 %v2014, %v2023
      %v2032 = vadd.f32 %v2015, %v2024
      %v2033 = vadd.f32 %v2016, %v2025
      %v2034 = vperm.slane %v1987, 3
      %v2035 = vmul.f32 %v1938, %v2034
      %v2036 = vmul.f32 %v1939, %v2034
      %v2037 = vmul.f32 %v1940, %v2034
      %v2038 = vmul.f32 %v1941, %v2034
      %v2039 = vmul.f32 %v1942, %v2034
      %v2040 = vmul.f32 %v1943, %v2034
      %v2041 = vmul.f32 %v1944, %v2034
      %v2042 = vmul.f32 %v1945, %v2034
      %v2043 = vadd.f32 %v2026, %v2035
      %v2044 = vadd.f32 %v2027, %v2036
      %v2045 = vadd.f32 %v2028, %v2037
      %v2046 = vadd.f32 %v2029, %v2038
      %v2047 = vadd.f32 %v2030, %v2039
      %v2048 = vadd.f32 %v2031, %v2040
      %v2049 = vadd.f32 %v2032, %v2041
      %v2050 = vadd.f32 %v2033, %v2042
      %v2051 = vperm.slane %v1987, 4
      %v2052 = vmul.f32 %v1946, %v2051
      %v2053 = vmul.f32 %v1947, %v2051
      %v2054 = vmul.f32 %v1948, %v2051
      %v2055 = vmul.f32 %v1949, %v2051
      %v2056 = vmul.f32 %v1950, %v2051
      %v2057 = vmul.f32 %v1951, %v2051
      %v2058 = vmul.f32 %v1952, %v2051
      %v2059 = vmul.f32 %v1953, %v2051
      %v2060 = vadd.f32 %v2043, %v2052
      %v2061 = vadd.f32 %v2044, %v2053
      %v2062 = vadd.f32 %v2045, %v2054
      %v2063 = vadd.f32 %v2046, %v2055
      %v2064 = vadd.f32 %v2047, %v2056
      %v2065 = vadd.f32 %v2048, %v2057
      %v2066 = vadd.f32 %v2049, %v2058
      %v2067 = vadd.f32 %v2050, %v2059
      %v2068 = vperm.slane %v1987, 5
      %v2069 = vmul.f32 %v1954, %v2068
      %v2070 = vmul.f32 %v1955, %v2068
      %v2071 = vmul.f32 %v1956, %v2068
      %v2072 = vmul.f32 %v1957, %v2068
      %v2073 = vmul.f32 %v1958, %v2068
      %v2074 = vmul.f32 %v1959, %v2068
      %v2075 = vmul.f32 %v1960, %v2068
      %v2076 = vmul.f32 %v1961, %v2068
      %v2077 = vadd.f32 %v2060, %v2069
      %v2078 = vadd.f32 %v2061, %v2070
      %v2079 = vadd.f32 %v2062, %v2071
      %v2080 = vadd.f32 %v2063, %v2072
      %v2081 = vadd.f32 %v2064, %v2073
      %v2082 = vadd.f32 %v2065, %v2074
      %v2083 = vadd.f32 %v2066, %v2075
      %v2084 = vadd.f32 %v2067, %v2076
      %v2085 = vperm.slane %v1987, 6
      %v2086 = vmul.f32 %v1962, %v2085
      %v2087 = vmul.f32 %v1963, %v2085
      %v2088 = vmul.f32 %v1964, %v2085
      %v2089 = vmul.f32 %v1965, %v2085
      %v2090 = vmul.f32 %v1966, %v2085
      %v2091 = vmul.f32 %v1967, %v2085
      %v2092 = vmul.f32 %v1968, %v2085
      %v2093 = vmul.f32 %v1969, %v2085
      %v2094 = vadd.f32 %v2077, %v2086
      %v2095 = vadd.f32 %v2078, %v2087
      %v2096 = vadd.f32 %v2079, %v2088
      %v2097 = vadd.f32 %v2080, %v2089
      %v2098 = vadd.f32 %v2081, %v2090
      %v2099 = vadd.f32 %v2082, %v2091
      %v2100 = vadd.f32 %v2083, %v2092
      %v2101 = vadd.f32 %v2084, %v2093
      %v2102 = vperm.slane %v1987, 7
      %v2103 = vmul.f32 %v1970, %v2102
      %v2104 = vmul.f32 %v1971, %v2102
      %v2105 = vmul.f32 %v1972, %v2102
      %v2106 = vmul.f32 %v1973, %v2102
      %v2107 = vmul.f32 %v1974, %v2102
      %v2108 = vmul.f32 %v1975, %v2102
      %v2109 = vmul.f32 %v1976, %v2102
      %v2110 = vmul.f32 %v1977, %v2102
      %v2111 = vadd.f32 %v2094, %v2103
      %v2112 = vadd.f32 %v2095, %v2104
      %v2113 = vadd.f32 %v2096, %v2105
      %v2114 = vadd.f32 %v2097, %v2106
      %v2115 = vadd.f32 %v2098, %v2107
      %v2116 = vadd.f32 %v2099, %v2108
      %v2117 = vadd.f32 %v2100, %v2109
      %v2118 = vadd.f32 %v2101, %v2110
      %v2119 = vperm.slane %v1988, 0
      %v2120 = vmul.f32 %v1978, %v2119
      %v2121 = vmul.f32 %v1979, %v2119
      %v2122 = vmul.f32 %v1980, %v2119
      %v2123 = vmul.f32 %v1981, %v2119
      %v2124 = vmul.f32 %v1982, %v2119
      %v2125 = vmul.f32 %v1983, %v2119
      %v2126 = vmul.f32 %v1984, %v2119
      %v2127 = vmul.f32 %v1985, %v2119
      %v2128 = vadd.f32 %v2111, %v2120
      %v2129 = vadd.f32 %v2112, %v2121
      %v2130 = vadd.f32 %v2113, %v2122
      %v2131 = vadd.f32 %v2114, %v2123
      %v2132 = vadd.f32 %v2115, %v2124
      %v2133 = vadd.f32 %v2116, %v2125
      %v2134 = vadd.f32 %v2117, %v2126
      %v2135 = vadd.f32 %v2118, %v2127
      %v2137 = vperm.slane %v1990, 0
      %v2139 = vadd.f32 %v2128, %v2137
      %v2140 = vadd.f32 %v2129, %v2137
      %v2141 = vadd.f32 %v2130, %v2137
      %v2142 = vadd.f32 %v2131, %v2137
      %v2143 = vadd.f32 %v2132, %v2137
      %v2144 = vadd.f32 %v2133, %v2137
      %v2145 = vadd.f32 %v2134, %v2137
      %v2146 = vadd.f32 %v2135, %v2137
      %v2147 = vpack.c.bf16 %v2140, %v2139
      %v2148 = vpack.c.bf16 %v2142, %v2141
      %v2149 = vpack.c.bf16 %v2144, %v2143
      %v2150 = vpack.c.bf16 %v2146, %v2145
      %s2151 = scalar_lea.vmem %s3, 80
      %v2152 = vld [vmem:[%s2151] sm:$0xf]
      %v2153 = vld [vmem:[%s2151 + $0x4] sm:$0xf]
      %v2154 = vld [vmem:[%s2151 + $0x8] sm:$0xf]
      %v2155 = vld [vmem:[%s2151 + $0xc] sm:$0xf]
      %s2156 = scalar_lea.vmem %s4, 5
      %v2157 = vld [vmem:[%s2156] sm:$0x1]
      %v2159 = vperm.slane %v2157, 0
      %v2165 = vunpack.c.l.b16 %v2152
      %v2166 = vunpack.c.l.b16 %v2153
      %v2167 = vunpack.c.l.b16 %v2154
      %v2168 = vunpack.c.l.b16 %v2155
      %v2169 = vpack.c.b16 %v2166, %v2165
      %v2170 = vpack.c.b16 %v2168, %v2167
      %v2174 = vsel %vm280, %v2147, 0
      %v2177 = vsel %vm280, %v2148, 0
      %v2180 = vsel %vm280, %v2149, 0
      %v2183 = vsel %vm280, %v2150, 0
      %2185 = vmatpush.bf16.msra.mxu0 0
      %2186 = vmatpush.bf16.msra.mxu0 0
      %2187 = vmatpush.bf16.msra.mxu0 0
      %2188 = vmatpush.bf16.msra.mxu0 0
      %2189 = vmatpush.bf16.msra.mxu0 0
      %2190 = vmatpush.bf16.msra.mxu0 0
      %2191 = vmatpush.bf16.msra.mxu0 %v2170
      %2192 = vmatpush.bf16.msra.mxu0 %v2169
      %2193 = vmatmul.bf16.gmra.mxu0 %v2174
      %v2194 = vpop.f32.mrf.mxu0
      %v2195 = vadd.f32 %v2159, %v2194
      %v2196 = vpop.f32.mrf.mxu0
      %v2197 = vadd.f32 %v2159, %v2196
      %2198 = vmatmul.bf16.gmra.mxu0 %v2177
      %v2199 = vpop.f32.mrf.mxu0
      %v2200 = vadd.f32 %v2159, %v2199
      %v2201 = vpop.f32.mrf.mxu0
      %v2202 = vadd.f32 %v2159, %v2201
      %2203 = vmatmul.bf16.gmra.mxu0 %v2180
      %v2204 = vpop.f32.mrf.mxu0
      %v2205 = vadd.f32 %v2159, %v2204
      %v2206 = vpop.f32.mrf.mxu0
      %v2207 = vadd.f32 %v2159, %v2206
      %2208 = vmatmul.bf16.gmra.mxu0 %v2183
      %v2209 = vpop.f32.mrf.mxu0
      %v2210 = vadd.f32 %v2159, %v2209
      %v2211 = vpop.f32.mrf.mxu0
      %v2212 = vadd.f32 %v2159, %v2211
      %2213 = vdwg.mxu0
      %v2214 = vadd.f32 %v1582, %v2195
      %v2215 = vadd.f32 %v1583, %v2197
      %v2216 = vadd.f32 %v1584, %v2200
      %v2217 = vadd.f32 %v1585, %v2202
      %v2218 = vadd.f32 %v1586, %v2205
      %v2219 = vadd.f32 %v1587, %v2207
      %v2220 = vadd.f32 %v1588, %v2210
      %v2221 = vadd.f32 %v1589, %v2212
      %2222 = vst.msk [vmem:[%s287 + $0x8] sm:$0xff] %vm280, %v2214
      %2223 = vst.msk [vmem:[%s287 + $0x20] sm:$0xff] %vm280, %v2215
      %2224 = vst.msk [vmem:[%s287 + $0x38] sm:$0xff] %vm280, %v2216
      %2225 = vst.msk [vmem:[%s287 + $0x50] sm:$0xff] %vm280, %v2217
      %2226 = vst.msk [vmem:[%s287 + $0x68] sm:$0xff] %vm280, %v2218
      %2227 = vst.msk [vmem:[%s287 + $0x80] sm:$0xff] %vm280, %v2219
      %2228 = vst.msk [vmem:[%s287 + $0x98] sm:$0xff] %vm280, %v2220
      %2229 = vst.msk [vmem:[%s287 + $0xb0] sm:$0xff] %vm280, %v2221
      %v2230 = vld [vmem:[#allocation2 + $0x7] sm:$0xff]
      %v2231 = vld [vmem:[#allocation2 + $0x1f] sm:$0xff]
      %v2232 = vld [vmem:[#allocation2 + $0x37] sm:$0xff]
      %v2233 = vld [vmem:[#allocation2 + $0x4f] sm:$0xff]
      %v2234 = vld [vmem:[#allocation2 + $0x67] sm:$0xff]
      %v2235 = vld [vmem:[#allocation2 + $0x7f] sm:$0xff]
      %v2236 = vld [vmem:[#allocation2 + $0x97] sm:$0xff]
      %v2237 = vld [vmem:[#allocation2 + $0xaf] sm:$0xff]
      %v2238 = vld [vmem:[#allocation2 + $0x8] sm:$0xff]
      %v2239 = vld [vmem:[#allocation2 + $0x20] sm:$0xff]
      %v2240 = vld [vmem:[#allocation2 + $0x38] sm:$0xff]
      %v2241 = vld [vmem:[#allocation2 + $0x50] sm:$0xff]
      %v2242 = vld [vmem:[#allocation2 + $0x68] sm:$0xff]
      %v2243 = vld [vmem:[#allocation2 + $0x80] sm:$0xff]
      %v2244 = vld [vmem:[#allocation2 + $0x98] sm:$0xff]
      %v2245 = vld [vmem:[#allocation2 + $0xb0] sm:$0xff]
      %v2246 = vld [vmem:[#allocation2 + $0x9] sm:$0xff]
      %v2247 = vld [vmem:[#allocation2 + $0x21] sm:$0xff]
      %v2248 = vld [vmem:[#allocation2 + $0x39] sm:$0xff]
      %v2249 = vld [vmem:[#allocation2 + $0x51] sm:$0xff]
      %v2250 = vld [vmem:[#allocation2 + $0x69] sm:$0xff]
      %v2251 = vld [vmem:[#allocation2 + $0x81] sm:$0xff]
      %v2252 = vld [vmem:[#allocation2 + $0x99] sm:$0xff]
      %v2253 = vld [vmem:[#allocation2 + $0xb1] sm:$0xff]
      %v2254 = vld [vmem:[%s287 + $0x7] sm:$0xff]
      %v2255 = vld [vmem:[%s287 + $0x1f] sm:$0xff]
      %v2256 = vld [vmem:[%s287 + $0x37] sm:$0xff]
      %v2257 = vld [vmem:[%s287 + $0x4f] sm:$0xff]
      %v2258 = vld [vmem:[%s287 + $0x67] sm:$0xff]
      %v2259 = vld [vmem:[%s287 + $0x7f] sm:$0xff]
      %v2260 = vld [vmem:[%s287 + $0x97] sm:$0xff]
      %v2261 = vld [vmem:[%s287 + $0xaf] sm:$0xff]
      %v2262 = vld [vmem:[%s287 + $0x8] sm:$0xff]
      %v2263 = vld [vmem:[%s287 + $0x20] sm:$0xff]
      %v2264 = vld [vmem:[%s287 + $0x38] sm:$0xff]
      %v2265 = vld [vmem:[%s287 + $0x50] sm:$0xff]
      %v2266 = vld [vmem:[%s287 + $0x68] sm:$0xff]
      %v2267 = vld [vmem:[%s287 + $0x80] sm:$0xff]
      %v2268 = vld [vmem:[%s287 + $0x98] sm:$0xff]
      %v2269 = vld [vmem:[%s287 + $0xb0] sm:$0xff]
      %v2270 = vld [vmem:[%s287 + $0x9] sm:$0xff]
      %v2271 = vld [vmem:[%s287 + $0x21] sm:$0xff]
      %v2272 = vld [vmem:[%s287 + $0x39] sm:$0xff]
      %v2273 = vld [vmem:[%s287 + $0x51] sm:$0xff]
      %v2274 = vld [vmem:[%s287 + $0x69] sm:$0xff]
      %v2275 = vld [vmem:[%s287 + $0x81] sm:$0xff]
      %v2276 = vld [vmem:[%s287 + $0x99] sm:$0xff]
      %v2277 = vld [vmem:[%s287 + $0xb1] sm:$0xff]
      %v2278 = vld [vmem:[%s369 + $0x7] sm:$0xff]
      %v2279 = vld [vmem:[%s369 + $0x1f] sm:$0xff]
      %v2280 = vld [vmem:[%s369 + $0x37] sm:$0xff]
      %v2281 = vld [vmem:[%s369 + $0x4f] sm:$0xff]
      %v2282 = vld [vmem:[%s369 + $0x67] sm:$0xff]
      %v2283 = vld [vmem:[%s369 + $0x7f] sm:$0xff]
      %v2284 = vld [vmem:[%s369 + $0x97] sm:$0xff]
      %v2285 = vld [vmem:[%s369 + $0xaf] sm:$0xff]
      %v2286 = vld [vmem:[%s369 + $0x8] sm:$0xff]
      %v2287 = vld [vmem:[%s369 + $0x20] sm:$0xff]
      %v2288 = vld [vmem:[%s369 + $0x38] sm:$0xff]
      %v2289 = vld [vmem:[%s369 + $0x50] sm:$0xff]
      %v2290 = vld [vmem:[%s369 + $0x68] sm:$0xff]
      %v2291 = vld [vmem:[%s369 + $0x80] sm:$0xff]
      %v2292 = vld [vmem:[%s369 + $0x98] sm:$0xff]
      %v2293 = vld [vmem:[%s369 + $0xb0] sm:$0xff]
      %v2294 = vld [vmem:[%s369 + $0x9] sm:$0xff]
      %v2295 = vld [vmem:[%s369 + $0x21] sm:$0xff]
      %v2296 = vld [vmem:[%s369 + $0x39] sm:$0xff]
      %v2297 = vld [vmem:[%s369 + $0x51] sm:$0xff]
      %v2298 = vld [vmem:[%s369 + $0x69] sm:$0xff]
      %v2299 = vld [vmem:[%s369 + $0x81] sm:$0xff]
      %v2300 = vld [vmem:[%s369 + $0x99] sm:$0xff]
      %v2301 = vld [vmem:[%s369 + $0xb1] sm:$0xff]
      %s2302 = scalar_lea.vmem %s1, 96
      %v2303 = vld [vmem:[%s2302] sm:$0xff]
      %v2304 = vld [vmem:[%s2302 + $0x8] sm:$0x1]
      %s2305 = scalar_lea.vmem %s2, 6
      %v2306 = vld [vmem:[%s2305] sm:$0x1]
      %v2307 = vperm.slane %v2303, 0
      %v2308 = vmul.f32 %v2230, %v2307
      %v2309 = vmul.f32 %v2231, %v2307
      %v2310 = vmul.f32 %v2232, %v2307
      %v2311 = vmul.f32 %v2233, %v2307
      %v2312 = vmul.f32 %v2234, %v2307
      %v2313 = vmul.f32 %v2235, %v2307
      %v2314 = vmul.f32 %v2236, %v2307
      %v2315 = vmul.f32 %v2237, %v2307
      %v2316 = vperm.slane %v2303, 1
      %v2317 = vmul.f32 %v2238, %v2316
      %v2318 = vmul.f32 %v2239, %v2316
      %v2319 = vmul.f32 %v2240, %v2316
      %v2320 = vmul.f32 %v2241, %v2316
      %v2321 = vmul.f32 %v2242, %v2316
      %v2322 = vmul.f32 %v2243, %v2316
      %v2323 = vmul.f32 %v2244, %v2316
      %v2324 = vmul.f32 %v2245, %v2316
      %v2325 = vadd.f32 %v2308, %v2317
      %v2326 = vadd.f32 %v2309, %v2318
      %v2327 = vadd.f32 %v2310, %v2319
      %v2328 = vadd.f32 %v2311, %v2320
      %v2329 = vadd.f32 %v2312, %v2321
      %v2330 = vadd.f32 %v2313, %v2322
      %v2331 = vadd.f32 %v2314, %v2323
      %v2332 = vadd.f32 %v2315, %v2324
      %v2333 = vperm.slane %v2303, 2
      %v2334 = vmul.f32 %v2246, %v2333
      %v2335 = vmul.f32 %v2247, %v2333
      %v2336 = vmul.f32 %v2248, %v2333
      %v2337 = vmul.f32 %v2249, %v2333
      %v2338 = vmul.f32 %v2250, %v2333
      %v2339 = vmul.f32 %v2251, %v2333
      %v2340 = vmul.f32 %v2252, %v2333
      %v2341 = vmul.f32 %v2253, %v2333
      %v2342 = vadd.f32 %v2325, %v2334
      %v2343 = vadd.f32 %v2326, %v2335
      %v2344 = vadd.f32 %v2327, %v2336
      %v2345 = vadd.f32 %v2328, %v2337
      %v2346 = vadd.f32 %v2329, %v2338
      %v2347 = vadd.f32 %v2330, %v2339
      %v2348 = vadd.f32 %v2331, %v2340
      %v2349 = vadd.f32 %v2332, %v2341
      %v2350 = vperm.slane %v2303, 3
      %v2351 = vmul.f32 %v2254, %v2350
      %v2352 = vmul.f32 %v2255, %v2350
      %v2353 = vmul.f32 %v2256, %v2350
      %v2354 = vmul.f32 %v2257, %v2350
      %v2355 = vmul.f32 %v2258, %v2350
      %v2356 = vmul.f32 %v2259, %v2350
      %v2357 = vmul.f32 %v2260, %v2350
      %v2358 = vmul.f32 %v2261, %v2350
      %v2359 = vadd.f32 %v2342, %v2351
      %v2360 = vadd.f32 %v2343, %v2352
      %v2361 = vadd.f32 %v2344, %v2353
      %v2362 = vadd.f32 %v2345, %v2354
      %v2363 = vadd.f32 %v2346, %v2355
      %v2364 = vadd.f32 %v2347, %v2356
      %v2365 = vadd.f32 %v2348, %v2357
      %v2366 = vadd.f32 %v2349, %v2358
      %v2367 = vperm.slane %v2303, 4
      %v2368 = vmul.f32 %v2262, %v2367
      %v2369 = vmul.f32 %v2263, %v2367
      %v2370 = vmul.f32 %v2264, %v2367
      %v2371 = vmul.f32 %v2265, %v2367
      %v2372 = vmul.f32 %v2266, %v2367
      %v2373 = vmul.f32 %v2267, %v2367
      %v2374 = vmul.f32 %v2268, %v2367
      %v2375 = vmul.f32 %v2269, %v2367
      %v2376 = vadd.f32 %v2359, %v2368
      %v2377 = vadd.f32 %v2360, %v2369
      %v2378 = vadd.f32 %v2361, %v2370
      %v2379 = vadd.f32 %v2362, %v2371
      %v2380 = vadd.f32 %v2363, %v2372
      %v2381 = vadd.f32 %v2364, %v2373
      %v2382 = vadd.f32 %v2365, %v2374
      %v2383 = vadd.f32 %v2366, %v2375
      %v2384 = vperm.slane %v2303, 5
      %v2385 = vmul.f32 %v2270, %v2384
      %v2386 = vmul.f32 %v2271, %v2384
      %v2387 = vmul.f32 %v2272, %v2384
      %v2388 = vmul.f32 %v2273, %v2384
      %v2389 = vmul.f32 %v2274, %v2384
      %v2390 = vmul.f32 %v2275, %v2384
      %v2391 = vmul.f32 %v2276, %v2384
      %v2392 = vmul.f32 %v2277, %v2384
      %v2393 = vadd.f32 %v2376, %v2385
      %v2394 = vadd.f32 %v2377, %v2386
      %v2395 = vadd.f32 %v2378, %v2387
      %v2396 = vadd.f32 %v2379, %v2388
      %v2397 = vadd.f32 %v2380, %v2389
      %v2398 = vadd.f32 %v2381, %v2390
      %v2399 = vadd.f32 %v2382, %v2391
      %v2400 = vadd.f32 %v2383, %v2392
      %v2401 = vperm.slane %v2303, 6
      %v2402 = vmul.f32 %v2278, %v2401
      %v2403 = vmul.f32 %v2279, %v2401
      %v2404 = vmul.f32 %v2280, %v2401
      %v2405 = vmul.f32 %v2281, %v2401
      %v2406 = vmul.f32 %v2282, %v2401
      %v2407 = vmul.f32 %v2283, %v2401
      %v2408 = vmul.f32 %v2284, %v2401
      %v2409 = vmul.f32 %v2285, %v2401
      %v2410 = vadd.f32 %v2393, %v2402
      %v2411 = vadd.f32 %v2394, %v2403
      %v2412 = vadd.f32 %v2395, %v2404
      %v2413 = vadd.f32 %v2396, %v2405
      %v2414 = vadd.f32 %v2397, %v2406
      %v2415 = vadd.f32 %v2398, %v2407
      %v2416 = vadd.f32 %v2399, %v2408
      %v2417 = vadd.f32 %v2400, %v2409
      %v2418 = vperm.slane %v2303, 7
      %v2419 = vmul.f32 %v2286, %v2418
      %v2420 = vmul.f32 %v2287, %v2418
      %v2421 = vmul.f32 %v2288, %v2418
      %v2422 = vmul.f32 %v2289, %v2418
      %v2423 = vmul.f32 %v2290, %v2418
      %v2424 = vmul.f32 %v2291, %v2418
      %v2425 = vmul.f32 %v2292, %v2418
      %v2426 = vmul.f32 %v2293, %v2418
      %v2427 = vadd.f32 %v2410, %v2419
      %v2428 = vadd.f32 %v2411, %v2420
      %v2429 = vadd.f32 %v2412, %v2421
      %v2430 = vadd.f32 %v2413, %v2422
      %v2431 = vadd.f32 %v2414, %v2423
      %v2432 = vadd.f32 %v2415, %v2424
      %v2433 = vadd.f32 %v2416, %v2425
      %v2434 = vadd.f32 %v2417, %v2426
      %v2435 = vperm.slane %v2304, 0
      %v2436 = vmul.f32 %v2294, %v2435
      %v2437 = vmul.f32 %v2295, %v2435
      %v2438 = vmul.f32 %v2296, %v2435
      %v2439 = vmul.f32 %v2297, %v2435
      %v2440 = vmul.f32 %v2298, %v2435
      %v2441 = vmul.f32 %v2299, %v2435
      %v2442 = vmul.f32 %v2300, %v2435
      %v2443 = vmul.f32 %v2301, %v2435
      %v2444 = vadd.f32 %v2427, %v2436
      %v2445 = vadd.f32 %v2428, %v2437
      %v2446 = vadd.f32 %v2429, %v2438
      %v2447 = vadd.f32 %v2430, %v2439
      %v2448 = vadd.f32 %v2431, %v2440
      %v2449 = vadd.f32 %v2432, %v2441
      %v2450 = vadd.f32 %v2433, %v2442
      %v2451 = vadd.f32 %v2434, %v2443
      %v2453 = vperm.slane %v2306, 0
      %v2455 = vadd.f32 %v2444, %v2453
      %v2456 = vadd.f32 %v2445, %v2453
      %v2457 = vadd.f32 %v2446, %v2453
      %v2458 = vadd.f32 %v2447, %v2453
      %v2459 = vadd.f32 %v2448, %v2453
      %v2460 = vadd.f32 %v2449, %v2453
      %v2461 = vadd.f32 %v2450, %v2453
      %v2462 = vadd.f32 %v2451, %v2453
      %v2463 = vpack.c.bf16 %v2456, %v2455
      %v2464 = vpack.c.bf16 %v2458, %v2457
      %v2465 = vpack.c.bf16 %v2460, %v2459
      %v2466 = vpack.c.bf16 %v2462, %v2461
      %s2467 = scalar_lea.vmem %s3, 96
      %v2468 = vld [vmem:[%s2467] sm:$0xf]
      %v2469 = vld [vmem:[%s2467 + $0x4] sm:$0xf]
      %v2470 = vld [vmem:[%s2467 + $0x8] sm:$0xf]
      %v2471 = vld [vmem:[%s2467 + $0xc] sm:$0xf]
      %s2472 = scalar_lea.vmem %s4, 6
      %v2473 = vld [vmem:[%s2472] sm:$0x1]
      %v2475 = vperm.slane %v2473, 0
      %v2481 = vunpack.c.l.b16 %v2468
      %v2482 = vunpack.c.l.b16 %v2469
      %v2483 = vunpack.c.l.b16 %v2470
      %v2484 = vunpack.c.l.b16 %v2471
      %v2485 = vpack.c.b16 %v2482, %v2481
      %v2486 = vpack.c.b16 %v2484, %v2483
      %v2490 = vsel %vm280, %v2463, 0
      %v2493 = vsel %vm280, %v2464, 0
      %v2496 = vsel %vm280, %v2465, 0
      %v2499 = vsel %vm280, %v2466, 0
      %2501 = vmatpush.bf16.msra.mxu0 0
      %2502 = vmatpush.bf16.msra.mxu0 0
      %2503 = vmatpush.bf16.msra.mxu0 0
      %2504 = vmatpush.bf16.msra.mxu0 0
      %2505 = vmatpush.bf16.msra.mxu0 0
      %2506 = vmatpush.bf16.msra.mxu0 0
      %2507 = vmatpush.bf16.msra.mxu0 %v2486
      %2508 = vmatpush.bf16.msra.mxu0 %v2485
      %2509 = vmatmul.bf16.gmra.mxu0 %v2490
      %v2510 = vpop.f32.mrf.mxu0
      %v2511 = vadd.f32 %v2475, %v2510
      %v2512 = vpop.f32.mrf.mxu0
      %v2513 = vadd.f32 %v2475, %v2512
      %2514 = vmatmul.bf16.gmra.mxu0 %v2493
      %v2515 = vpop.f32.mrf.mxu0
      %v2516 = vadd.f32 %v2475, %v2515
      %v2517 = vpop.f32.mrf.mxu0
      %v2518 = vadd.f32 %v2475, %v2517
      %2519 = vmatmul.bf16.gmra.mxu0 %v2496
      %v2520 = vpop.f32.mrf.mxu0
      %v2521 = vadd.f32 %v2475, %v2520
      %v2522 = vpop.f32.mrf.mxu0
      %v2523 = vadd.f32 %v2475, %v2522
      %2524 = vmatmul.bf16.gmra.mxu0 %v2499
      %v2525 = vpop.f32.mrf.mxu0
      %v2526 = vadd.f32 %v2475, %v2525
      %v2527 = vpop.f32.mrf.mxu0
      %v2528 = vadd.f32 %v2475, %v2527
      %2529 = vdwg.mxu0
      %v2530 = vmax.f32 %v2511, 0.0
      %v2531 = vmax.f32 %v2513, 0.0
      %v2532 = vmax.f32 %v2516, 0.0
      %v2533 = vmax.f32 %v2518, 0.0
      %v2534 = vmax.f32 %v2521, 0.0
      %v2535 = vmax.f32 %v2523, 0.0
      %v2536 = vmax.f32 %v2526, 0.0
      %v2537 = vmax.f32 %v2528, 0.0
      %2538 = vst.msk [vmem:[%s287 + $0x8] sm:$0xff] %vm280, %v2530
      %2539 = vst.msk [vmem:[%s287 + $0x20] sm:$0xff] %vm280, %v2531
      %2540 = vst.msk [vmem:[%s287 + $0x38] sm:$0xff] %vm280, %v2532
      %2541 = vst.msk [vmem:[%s287 + $0x50] sm:$0xff] %vm280, %v2533
      %2542 = vst.msk [vmem:[%s287 + $0x68] sm:$0xff] %vm280, %v2534
      %2543 = vst.msk [vmem:[%s287 + $0x80] sm:$0xff] %vm280, %v2535
      %2544 = vst.msk [vmem:[%s287 + $0x98] sm:$0xff] %vm280, %v2536
      %2545 = vst.msk [vmem:[%s287 + $0xb0] sm:$0xff] %vm280, %v2537
      %v2546 = vld [vmem:[#allocation2 + $0x7] sm:$0xff]
      %v2547 = vld [vmem:[#allocation2 + $0x1f] sm:$0xff]
      %v2548 = vld [vmem:[#allocation2 + $0x37] sm:$0xff]
      %v2549 = vld [vmem:[#allocation2 + $0x4f] sm:$0xff]
      %v2550 = vld [vmem:[#allocation2 + $0x67] sm:$0xff]
      %v2551 = vld [vmem:[#allocation2 + $0x7f] sm:$0xff]
      %v2552 = vld [vmem:[#allocation2 + $0x97] sm:$0xff]
      %v2553 = vld [vmem:[#allocation2 + $0xaf] sm:$0xff]
      %v2554 = vld [vmem:[#allocation2 + $0x8] sm:$0xff]
      %v2555 = vld [vmem:[#allocation2 + $0x20] sm:$0xff]
      %v2556 = vld [vmem:[#allocation2 + $0x38] sm:$0xff]
      %v2557 = vld [vmem:[#allocation2 + $0x50] sm:$0xff]
      %v2558 = vld [vmem:[#allocation2 + $0x68] sm:$0xff]
      %v2559 = vld [vmem:[#allocation2 + $0x80] sm:$0xff]
      %v2560 = vld [vmem:[#allocation2 + $0x98] sm:$0xff]
      %v2561 = vld [vmem:[#allocation2 + $0xb0] sm:$0xff]
      %v2562 = vld [vmem:[#allocation2 + $0x9] sm:$0xff]
      %v2563 = vld [vmem:[#allocation2 + $0x21] sm:$0xff]
      %v2564 = vld [vmem:[#allocation2 + $0x39] sm:$0xff]
      %v2565 = vld [vmem:[#allocation2 + $0x51] sm:$0xff]
      %v2566 = vld [vmem:[#allocation2 + $0x69] sm:$0xff]
      %v2567 = vld [vmem:[#allocation2 + $0x81] sm:$0xff]
      %v2568 = vld [vmem:[#allocation2 + $0x99] sm:$0xff]
      %v2569 = vld [vmem:[#allocation2 + $0xb1] sm:$0xff]
      %v2570 = vld [vmem:[%s287 + $0x7] sm:$0xff]
      %v2571 = vld [vmem:[%s287 + $0x1f] sm:$0xff]
      %v2572 = vld [vmem:[%s287 + $0x37] sm:$0xff]
      %v2573 = vld [vmem:[%s287 + $0x4f] sm:$0xff]
      %v2574 = vld [vmem:[%s287 + $0x67] sm:$0xff]
      %v2575 = vld [vmem:[%s287 + $0x7f] sm:$0xff]
      %v2576 = vld [vmem:[%s287 + $0x97] sm:$0xff]
      %v2577 = vld [vmem:[%s287 + $0xaf] sm:$0xff]
      %v2578 = vld [vmem:[%s287 + $0x8] sm:$0xff]
      %v2579 = vld [vmem:[%s287 + $0x20] sm:$0xff]
      %v2580 = vld [vmem:[%s287 + $0x38] sm:$0xff]
      %v2581 = vld [vmem:[%s287 + $0x50] sm:$0xff]
      %v2582 = vld [vmem:[%s287 + $0x68] sm:$0xff]
      %v2583 = vld [vmem:[%s287 + $0x80] sm:$0xff]
      %v2584 = vld [vmem:[%s287 + $0x98] sm:$0xff]
      %v2585 = vld [vmem:[%s287 + $0xb0] sm:$0xff]
      %v2586 = vld [vmem:[%s287 + $0x9] sm:$0xff]
      %v2587 = vld [vmem:[%s287 + $0x21] sm:$0xff]
      %v2588 = vld [vmem:[%s287 + $0x39] sm:$0xff]
      %v2589 = vld [vmem:[%s287 + $0x51] sm:$0xff]
      %v2590 = vld [vmem:[%s287 + $0x69] sm:$0xff]
      %v2591 = vld [vmem:[%s287 + $0x81] sm:$0xff]
      %v2592 = vld [vmem:[%s287 + $0x99] sm:$0xff]
      %v2593 = vld [vmem:[%s287 + $0xb1] sm:$0xff]
      %v2594 = vld [vmem:[%s369 + $0x7] sm:$0xff]
      %v2595 = vld [vmem:[%s369 + $0x1f] sm:$0xff]
      %v2596 = vld [vmem:[%s369 + $0x37] sm:$0xff]
      %v2597 = vld [vmem:[%s369 + $0x4f] sm:$0xff]
      %v2598 = vld [vmem:[%s369 + $0x67] sm:$0xff]
      %v2599 = vld [vmem:[%s369 + $0x7f] sm:$0xff]
      %v2600 = vld [vmem:[%s369 + $0x97] sm:$0xff]
      %v2601 = vld [vmem:[%s369 + $0xaf] sm:$0xff]
      %v2602 = vld [vmem:[%s369 + $0x8] sm:$0xff]
      %v2603 = vld [vmem:[%s369 + $0x20] sm:$0xff]
      %v2604 = vld [vmem:[%s369 + $0x38] sm:$0xff]
      %v2605 = vld [vmem:[%s369 + $0x50] sm:$0xff]
      %v2606 = vld [vmem:[%s369 + $0x68] sm:$0xff]
      %v2607 = vld [vmem:[%s369 + $0x80] sm:$0xff]
      %v2608 = vld [vmem:[%s369 + $0x98] sm:$0xff]
      %v2609 = vld [vmem:[%s369 + $0xb0] sm:$0xff]
      %v2610 = vld [vmem:[%s369 + $0x9] sm:$0xff]
      %v2611 = vld [vmem:[%s369 + $0x21] sm:$0xff]
      %v2612 = vld [vmem:[%s369 + $0x39] sm:$0xff]
      %v2613 = vld [vmem:[%s369 + $0x51] sm:$0xff]
      %v2614 = vld [vmem:[%s369 + $0x69] sm:$0xff]
      %v2615 = vld [vmem:[%s369 + $0x81] sm:$0xff]
      %v2616 = vld [vmem:[%s369 + $0x99] sm:$0xff]
      %v2617 = vld [vmem:[%s369 + $0xb1] sm:$0xff]
      %s2618 = scalar_lea.vmem %s1, 112
      %v2619 = vld [vmem:[%s2618] sm:$0xff]
      %v2620 = vld [vmem:[%s2618 + $0x8] sm:$0x1]
      %s2621 = scalar_lea.vmem %s2, 7
      %v2622 = vld [vmem:[%s2621] sm:$0x1]
      %v2623 = vperm.slane %v2619, 0
      %v2624 = vmul.f32 %v2546, %v2623
      %v2625 = vmul.f32 %v2547, %v2623
      %v2626 = vmul.f32 %v2548, %v2623
      %v2627 = vmul.f32 %v2549, %v2623
      %v2628 = vmul.f32 %v2550, %v2623
      %v2629 = vmul.f32 %v2551, %v2623
      %v2630 = vmul.f32 %v2552, %v2623
      %v2631 = vmul.f32 %v2553, %v2623
      %v2632 = vperm.slane %v2619, 1
      %v2633 = vmul.f32 %v2554, %v2632
      %v2634 = vmul.f32 %v2555, %v2632
      %v2635 = vmul.f32 %v2556, %v2632
      %v2636 = vmul.f32 %v2557, %v2632
      %v2637 = vmul.f32 %v2558, %v2632
      %v2638 = vmul.f32 %v2559, %v2632
      %v2639 = vmul.f32 %v2560, %v2632
      %v2640 = vmul.f32 %v2561, %v2632
      %v2641 = vadd.f32 %v2624, %v2633
      %v2642 = vadd.f32 %v2625, %v2634
      %v2643 = vadd.f32 %v2626, %v2635
      %v2644 = vadd.f32 %v2627, %v2636
      %v2645 = vadd.f32 %v2628, %v2637
      %v2646 = vadd.f32 %v2629, %v2638
      %v2647 = vadd.f32 %v2630, %v2639
      %v2648 = vadd.f32 %v2631, %v2640
      %v2649 = vperm.slane %v2619, 2
      %v2650 = vmul.f32 %v2562, %v2649
      %v2651 = vmul.f32 %v2563, %v2649
      %v2652 = vmul.f32 %v2564, %v2649
      %v2653 = vmul.f32 %v2565, %v2649
      %v2654 = vmul.f32 %v2566, %v2649
      %v2655 = vmul.f32 %v2567, %v2649
      %v2656 = vmul.f32 %v2568, %v2649
      %v2657 = vmul.f32 %v2569, %v2649
      %v2658 = vadd.f32 %v2641, %v2650
      %v2659 = vadd.f32 %v2642, %v2651
      %v2660 = vadd.f32 %v2643, %v2652
      %v2661 = vadd.f32 %v2644, %v2653
      %v2662 = vadd.f32 %v2645, %v2654
      %v2663 = vadd.f32 %v2646, %v2655
      %v2664 = vadd.f32 %v2647, %v2656
      %v2665 = vadd.f32 %v2648, %v2657
      %v2666 = vperm.slane %v2619, 3
      %v2667 = vmul.f32 %v2570, %v2666
      %v2668 = vmul.f32 %v2571, %v2666
      %v2669 = vmul.f32 %v2572, %v2666
      %v2670 = vmul.f32 %v2573, %v2666
      %v2671 = vmul.f32 %v2574, %v2666
      %v2672 = vmul.f32 %v2575, %v2666
      %v2673 = vmul.f32 %v2576, %v2666
      %v2674 = vmul.f32 %v2577, %v2666
      %v2675 = vadd.f32 %v2658, %v2667
      %v2676 = vadd.f32 %v2659, %v2668
      %v2677 = vadd.f32 %v2660, %v2669
      %v2678 = vadd.f32 %v2661, %v2670
      %v2679 = vadd.f32 %v2662, %v2671
      %v2680 = vadd.f32 %v2663, %v2672
      %v2681 = vadd.f32 %v2664, %v2673
      %v2682 = vadd.f32 %v2665, %v2674
      %v2683 = vperm.slane %v2619, 4
      %v2684 = vmul.f32 %v2578, %v2683
      %v2685 = vmul.f32 %v2579, %v2683
      %v2686 = vmul.f32 %v2580, %v2683
      %v2687 = vmul.f32 %v2581, %v2683
      %v2688 = vmul.f32 %v2582, %v2683
      %v2689 = vmul.f32 %v2583, %v2683
      %v2690 = vmul.f32 %v2584, %v2683
      %v2691 = vmul.f32 %v2585, %v2683
      %v2692 = vadd.f32 %v2675, %v2684
      %v2693 = vadd.f32 %v2676, %v2685
      %v2694 = vadd.f32 %v2677, %v2686
      %v2695 = vadd.f32 %v2678, %v2687
      %v2696 = vadd.f32 %v2679, %v2688
      %v2697 = vadd.f32 %v2680, %v2689
      %v2698 = vadd.f32 %v2681, %v2690
      %v2699 = vadd.f32 %v2682, %v2691
      %v2700 = vperm.slane %v2619, 5
      %v2701 = vmul.f32 %v2586, %v2700
      %v2702 = vmul.f32 %v2587, %v2700
      %v2703 = vmul.f32 %v2588, %v2700
      %v2704 = vmul.f32 %v2589, %v2700
      %v2705 = vmul.f32 %v2590, %v2700
      %v2706 = vmul.f32 %v2591, %v2700
      %v2707 = vmul.f32 %v2592, %v2700
      %v2708 = vmul.f32 %v2593, %v2700
      %v2709 = vadd.f32 %v2692, %v2701
      %v2710 = vadd.f32 %v2693, %v2702
      %v2711 = vadd.f32 %v2694, %v2703
      %v2712 = vadd.f32 %v2695, %v2704
      %v2713 = vadd.f32 %v2696, %v2705
      %v2714 = vadd.f32 %v2697, %v2706
      %v2715 = vadd.f32 %v2698, %v2707
      %v2716 = vadd.f32 %v2699, %v2708
      %v2717 = vperm.slane %v2619, 6
      %v2718 = vmul.f32 %v2594, %v2717
      %v2719 = vmul.f32 %v2595, %v2717
      %v2720 = vmul.f32 %v2596, %v2717
      %v2721 = vmul.f32 %v2597, %v2717
      %v2722 = vmul.f32 %v2598, %v2717
      %v2723 = vmul.f32 %v2599, %v2717
      %v2724 = vmul.f32 %v2600, %v2717
      %v2725 = vmul.f32 %v2601, %v2717
      %v2726 = vadd.f32 %v2709, %v2718
      %v2727 = vadd.f32 %v2710, %v2719
      %v2728 = vadd.f32 %v2711, %v2720
      %v2729 = vadd.f32 %v2712, %v2721
      %v2730 = vadd.f32 %v2713, %v2722
      %v2731 = vadd.f32 %v2714, %v2723
      %v2732 = vadd.f32 %v2715, %v2724
      %v2733 = vadd.f32 %v2716, %v2725
      %v2734 = vperm.slane %v2619, 7
      %v2735 = vmul.f32 %v2602, %v2734
      %v2736 = vmul.f32 %v2603, %v2734
      %v2737 = vmul.f32 %v2604, %v2734
      %v2738 = vmul.f32 %v2605, %v2734
      %v2739 = vmul.f32 %v2606, %v2734
      %v2740 = vmul.f32 %v2607, %v2734
      %v2741 = vmul.f32 %v2608, %v2734
      %v2742 = vmul.f32 %v2609, %v2734
      %v2743 = vadd.f32 %v2726, %v2735
      %v2744 = vadd.f32 %v2727, %v2736
      %v2745 = vadd.f32 %v2728, %v2737
      %v2746 = vadd.f32 %v2729, %v2738
      %v2747 = vadd.f32 %v2730, %v2739
      %v2748 = vadd.f32 %v2731, %v2740
      %v2749 = vadd.f32 %v2732, %v2741
      %v2750 = vadd.f32 %v2733, %v2742
      %v2751 = vperm.slane %v2620, 0
      %v2752 = vmul.f32 %v2610, %v2751
      %v2753 = vmul.f32 %v2611, %v2751
      %v2754 = vmul.f32 %v2612, %v2751
      %v2755 = vmul.f32 %v2613, %v2751
      %v2756 = vmul.f32 %v2614, %v2751
      %v2757 = vmul.f32 %v2615, %v2751
      %v2758 = vmul.f32 %v2616, %v2751
      %v2759 = vmul.f32 %v2617, %v2751
      %v2760 = vadd.f32 %v2743, %v2752
      %v2761 = vadd.f32 %v2744, %v2753
      %v2762 = vadd.f32 %v2745, %v2754
      %v2763 = vadd.f32 %v2746, %v2755
      %v2764 = vadd.f32 %v2747, %v2756
      %v2765 = vadd.f32 %v2748, %v2757
      %v2766 = vadd.f32 %v2749, %v2758
      %v2767 = vadd.f32 %v2750, %v2759
      %v2769 = vperm.slane %v2622, 0
      %v2771 = vadd.f32 %v2760, %v2769
      %v2772 = vadd.f32 %v2761, %v2769
      %v2773 = vadd.f32 %v2762, %v2769
      %v2774 = vadd.f32 %v2763, %v2769
      %v2775 = vadd.f32 %v2764, %v2769
      %v2776 = vadd.f32 %v2765, %v2769
      %v2777 = vadd.f32 %v2766, %v2769
      %v2778 = vadd.f32 %v2767, %v2769
      %v2779 = vpack.c.bf16 %v2772, %v2771
      %v2780 = vpack.c.bf16 %v2774, %v2773
      %v2781 = vpack.c.bf16 %v2776, %v2775
      %v2782 = vpack.c.bf16 %v2778, %v2777
      %s2783 = scalar_lea.vmem %s3, 112
      %v2784 = vld [vmem:[%s2783] sm:$0xf]
      %v2785 = vld [vmem:[%s2783 + $0x4] sm:$0xf]
      %v2786 = vld [vmem:[%s2783 + $0x8] sm:$0xf]
      %v2787 = vld [vmem:[%s2783 + $0xc] sm:$0xf]
      %s2788 = scalar_lea.vmem %s4, 7
      %v2789 = vld [vmem:[%s2788] sm:$0x1]
      %v2791 = vperm.slane %v2789, 0
      %v2797 = vunpack.c.l.b16 %v2784
      %v2798 = vunpack.c.l.b16 %v2785
      %v2799 = vunpack.c.l.b16 %v2786
      %v2800 = vunpack.c.l.b16 %v2787
      %v2801 = vpack.c.b16 %v2798, %v2797
      %v2802 = vpack.c.b16 %v2800, %v2799
      %v2806 = vsel %vm280, %v2779, 0
      %v2809 = vsel %vm280, %v2780, 0
      %v2812 = vsel %vm280, %v2781, 0
      %v2815 = vsel %vm280, %v2782, 0
      %2817 = vmatpush.bf16.msra.mxu0 0
      %2818 = vmatpush.bf16.msra.mxu0 0
      %2819 = vmatpush.bf16.msra.mxu0 0
      %2820 = vmatpush.bf16.msra.mxu0 0
      %2821 = vmatpush.bf16.msra.mxu0 0
      %2822 = vmatpush.bf16.msra.mxu0 0
      %2823 = vmatpush.bf16.msra.mxu0 %v2802
      %2824 = vmatpush.bf16.msra.mxu0 %v2801
      %2825 = vmatmul.bf16.gmra.mxu0 %v2806
      %v2826 = vpop.f32.mrf.mxu0
      %v2827 = vadd.f32 %v2791, %v2826
      %v2828 = vpop.f32.mrf.mxu0
      %v2829 = vadd.f32 %v2791, %v2828
      %2830 = vmatmul.bf16.gmra.mxu0 %v2809
      %v2831 = vpop.f32.mrf.mxu0
      %v2832 = vadd.f32 %v2791, %v2831
      %v2833 = vpop.f32.mrf.mxu0
      %v2834 = vadd.f32 %v2791, %v2833
      %2835 = vmatmul.bf16.gmra.mxu0 %v2812
      %v2836 = vpop.f32.mrf.mxu0
      %v2837 = vadd.f32 %v2791, %v2836
      %v2838 = vpop.f32.mrf.mxu0
      %v2839 = vadd.f32 %v2791, %v2838
      %2840 = vmatmul.bf16.gmra.mxu0 %v2815
      %v2841 = vpop.f32.mrf.mxu0
      %v2842 = vadd.f32 %v2791, %v2841
      %v2843 = vpop.f32.mrf.mxu0
      %v2844 = vadd.f32 %v2791, %v2843
      %2845 = vdwg.mxu0
      %v2846 = vadd.f32 %v2195, %v2827
      %v2847 = vadd.f32 %v2197, %v2829
      %v2848 = vadd.f32 %v2200, %v2832
      %v2849 = vadd.f32 %v2202, %v2834
      %v2850 = vadd.f32 %v2205, %v2837
      %v2851 = vadd.f32 %v2207, %v2839
      %v2852 = vadd.f32 %v2210, %v2842
      %v2853 = vadd.f32 %v2212, %v2844
      %v2854 = vmul.f32 %v2846, 0.5
      %v2855 = vmul.f32 %v2847, 0.5
      %v2856 = vmul.f32 %v2848, 0.5
      %v2857 = vmul.f32 %v2849, 0.5
      %v2858 = vmul.f32 %v2850, 0.5
      %v2859 = vmul.f32 %v2851, 0.5
      %v2860 = vmul.f32 %v2852, 0.5
      %v2861 = vmul.f32 %v2853, 0.5
      %v2862 = vadd.f32 %v2214, %v2854
      %v2863 = vadd.f32 %v2215, %v2855
      %v2864 = vadd.f32 %v2216, %v2856
      %v2865 = vadd.f32 %v2217, %v2857
      %v2866 = vadd.f32 %v2218, %v2858
      %v2867 = vadd.f32 %v2219, %v2859
      %v2868 = vadd.f32 %v2220, %v2860
      %v2869 = vadd.f32 %v2221, %v2861
      %2870 = vst.msk [vmem:[%s287 + $0x8] sm:$0xff] %vm280, %v2862
      %2871 = vst.msk [vmem:[%s287 + $0x20] sm:$0xff] %vm280, %v2863
      %2872 = vst.msk [vmem:[%s287 + $0x38] sm:$0xff] %vm280, %v2864
      %2873 = vst.msk [vmem:[%s287 + $0x50] sm:$0xff] %vm280, %v2865
      %2874 = vst.msk [vmem:[%s287 + $0x68] sm:$0xff] %vm280, %v2866
      %2875 = vst.msk [vmem:[%s287 + $0x80] sm:$0xff] %vm280, %v2867
      %2876 = vst.msk [vmem:[%s287 + $0x98] sm:$0xff] %vm280, %v2868
      %2877 = vst.msk [vmem:[%s287 + $0xb0] sm:$0xff] %vm280, %v2869
      %v2878 = vld [vmem:[#allocation2 + $0x7] sm:$0xff]
      %v2879 = vld [vmem:[#allocation2 + $0x1f] sm:$0xff]
      %v2880 = vld [vmem:[#allocation2 + $0x37] sm:$0xff]
      %v2881 = vld [vmem:[#allocation2 + $0x4f] sm:$0xff]
      %v2882 = vld [vmem:[#allocation2 + $0x67] sm:$0xff]
      %v2883 = vld [vmem:[#allocation2 + $0x7f] sm:$0xff]
      %v2884 = vld [vmem:[#allocation2 + $0x97] sm:$0xff]
      %v2885 = vld [vmem:[#allocation2 + $0xaf] sm:$0xff]
      %v2886 = vld [vmem:[#allocation2 + $0x8] sm:$0xff]
      %v2887 = vld [vmem:[#allocation2 + $0x20] sm:$0xff]
      %v2888 = vld [vmem:[#allocation2 + $0x38] sm:$0xff]
      %v2889 = vld [vmem:[#allocation2 + $0x50] sm:$0xff]
      %v2890 = vld [vmem:[#allocation2 + $0x68] sm:$0xff]
      %v2891 = vld [vmem:[#allocation2 + $0x80] sm:$0xff]
      %v2892 = vld [vmem:[#allocation2 + $0x98] sm:$0xff]
      %v2893 = vld [vmem:[#allocation2 + $0xb0] sm:$0xff]
      %v2894 = vld [vmem:[#allocation2 + $0x9] sm:$0xff]
      %v2895 = vld [vmem:[#allocation2 + $0x21] sm:$0xff]
      %v2896 = vld [vmem:[#allocation2 + $0x39] sm:$0xff]
      %v2897 = vld [vmem:[#allocation2 + $0x51] sm:$0xff]
      %v2898 = vld [vmem:[#allocation2 + $0x69] sm:$0xff]
      %v2899 = vld [vmem:[#allocation2 + $0x81] sm:$0xff]
      %v2900 = vld [vmem:[#allocation2 + $0x99] sm:$0xff]
      %v2901 = vld [vmem:[#allocation2 + $0xb1] sm:$0xff]
      %v2902 = vld [vmem:[%s287 + $0x7] sm:$0xff]
      %v2903 = vld [vmem:[%s287 + $0x1f] sm:$0xff]
      %v2904 = vld [vmem:[%s287 + $0x37] sm:$0xff]
      %v2905 = vld [vmem:[%s287 + $0x4f] sm:$0xff]
      %v2906 = vld [vmem:[%s287 + $0x67] sm:$0xff]
      %v2907 = vld [vmem:[%s287 + $0x7f] sm:$0xff]
      %v2908 = vld [vmem:[%s287 + $0x97] sm:$0xff]
      %v2909 = vld [vmem:[%s287 + $0xaf] sm:$0xff]
      %v2910 = vld [vmem:[%s287 + $0x8] sm:$0xff]
      %v2911 = vld [vmem:[%s287 + $0x20] sm:$0xff]
      %v2912 = vld [vmem:[%s287 + $0x38] sm:$0xff]
      %v2913 = vld [vmem:[%s287 + $0x50] sm:$0xff]
      %v2914 = vld [vmem:[%s287 + $0x68] sm:$0xff]
      %v2915 = vld [vmem:[%s287 + $0x80] sm:$0xff]
      %v2916 = vld [vmem:[%s287 + $0x98] sm:$0xff]
      %v2917 = vld [vmem:[%s287 + $0xb0] sm:$0xff]
      %v2918 = vld [vmem:[%s287 + $0x9] sm:$0xff]
      %v2919 = vld [vmem:[%s287 + $0x21] sm:$0xff]
      %v2920 = vld [vmem:[%s287 + $0x39] sm:$0xff]
      %v2921 = vld [vmem:[%s287 + $0x51] sm:$0xff]
      %v2922 = vld [vmem:[%s287 + $0x69] sm:$0xff]
      %v2923 = vld [vmem:[%s287 + $0x81] sm:$0xff]
      %v2924 = vld [vmem:[%s287 + $0x99] sm:$0xff]
      %v2925 = vld [vmem:[%s287 + $0xb1] sm:$0xff]
      %v2926 = vld [vmem:[%s369 + $0x7] sm:$0xff]
      %v2927 = vld [vmem:[%s369 + $0x1f] sm:$0xff]
      %v2928 = vld [vmem:[%s369 + $0x37] sm:$0xff]
      %v2929 = vld [vmem:[%s369 + $0x4f] sm:$0xff]
      %v2930 = vld [vmem:[%s369 + $0x67] sm:$0xff]
      %v2931 = vld [vmem:[%s369 + $0x7f] sm:$0xff]
      %v2932 = vld [vmem:[%s369 + $0x97] sm:$0xff]
      %v2933 = vld [vmem:[%s369 + $0xaf] sm:$0xff]
      %v2934 = vld [vmem:[%s369 + $0x8] sm:$0xff]
      %v2935 = vld [vmem:[%s369 + $0x20] sm:$0xff]
      %v2936 = vld [vmem:[%s369 + $0x38] sm:$0xff]
      %v2937 = vld [vmem:[%s369 + $0x50] sm:$0xff]
      %v2938 = vld [vmem:[%s369 + $0x68] sm:$0xff]
      %v2939 = vld [vmem:[%s369 + $0x80] sm:$0xff]
      %v2940 = vld [vmem:[%s369 + $0x98] sm:$0xff]
      %v2941 = vld [vmem:[%s369 + $0xb0] sm:$0xff]
      %v2942 = vld [vmem:[%s369 + $0x9] sm:$0xff]
      %v2943 = vld [vmem:[%s369 + $0x21] sm:$0xff]
      %v2944 = vld [vmem:[%s369 + $0x39] sm:$0xff]
      %v2945 = vld [vmem:[%s369 + $0x51] sm:$0xff]
      %v2946 = vld [vmem:[%s369 + $0x69] sm:$0xff]
      %v2947 = vld [vmem:[%s369 + $0x81] sm:$0xff]
      %v2948 = vld [vmem:[%s369 + $0x99] sm:$0xff]
      %v2949 = vld [vmem:[%s369 + $0xb1] sm:$0xff]
      %v2950 = vpack.c.bf16 %v2878, %v2878
      %v2951 = vpack.c.bf16 %v2879, %v2879
      %v2952 = vpack.c.bf16 %v2880, %v2880
      %v2953 = vpack.c.bf16 %v2881, %v2881
      %v2954 = vpack.c.bf16 %v2882, %v2882
      %v2955 = vpack.c.bf16 %v2883, %v2883
      %v2956 = vpack.c.bf16 %v2884, %v2884
      %v2957 = vpack.c.bf16 %v2885, %v2885
      %v2958 = vpack.c.bf16 %v2886, %v2886
      %v2959 = vpack.c.bf16 %v2887, %v2887
      %v2960 = vpack.c.bf16 %v2888, %v2888
      %v2961 = vpack.c.bf16 %v2889, %v2889
      %v2962 = vpack.c.bf16 %v2890, %v2890
      %v2963 = vpack.c.bf16 %v2891, %v2891
      %v2964 = vpack.c.bf16 %v2892, %v2892
      %v2965 = vpack.c.bf16 %v2893, %v2893
      %v2966 = vpack.c.bf16 %v2894, %v2894
      %v2967 = vpack.c.bf16 %v2895, %v2895
      %v2968 = vpack.c.bf16 %v2896, %v2896
      %v2969 = vpack.c.bf16 %v2897, %v2897
      %v2970 = vpack.c.bf16 %v2898, %v2898
      %v2971 = vpack.c.bf16 %v2899, %v2899
      %v2972 = vpack.c.bf16 %v2900, %v2900
      %v2973 = vpack.c.bf16 %v2901, %v2901
      %v2974 = vpack.c.bf16 %v2902, %v2902
      %v2975 = vpack.c.bf16 %v2903, %v2903
      %v2976 = vpack.c.bf16 %v2904, %v2904
      %v2977 = vpack.c.bf16 %v2905, %v2905
      %v2978 = vpack.c.bf16 %v2906, %v2906
      %v2979 = vpack.c.bf16 %v2907, %v2907
      %v2980 = vpack.c.bf16 %v2908, %v2908
      %v2981 = vpack.c.bf16 %v2909, %v2909
      %v2982 = vpack.c.bf16 %v2910, %v2910
      %v2983 = vpack.c.bf16 %v2911, %v2911
      %v2984 = vpack.c.bf16 %v2912, %v2912
      %v2985 = vpack.c.bf16 %v2913, %v2913
      %v2986 = vpack.c.bf16 %v2914, %v2914
      %v2987 = vpack.c.bf16 %v2915, %v2915
      %v2988 = vpack.c.bf16 %v2916, %v2916
      %v2989 = vpack.c.bf16 %v2917, %v2917
      %v2990 = vpack.c.bf16 %v2918, %v2918
      %v2991 = vpack.c.bf16 %v2919, %v2919
      %v2992 = vpack.c.bf16 %v2920, %v2920
      %v2993 = vpack.c.bf16 %v2921, %v2921
      %v2994 = vpack.c.bf16 %v2922, %v2922
      %v2995 = vpack.c.bf16 %v2923, %v2923
      %v2996 = vpack.c.bf16 %v2924, %v2924
      %v2997 = vpack.c.bf16 %v2925, %v2925
      %v2998 = vpack.c.bf16 %v2926, %v2926
      %v2999 = vpack.c.bf16 %v2927, %v2927
      %v3000 = vpack.c.bf16 %v2928, %v2928
      %v3001 = vpack.c.bf16 %v2929, %v2929
      %v3002 = vpack.c.bf16 %v2930, %v2930
      %v3003 = vpack.c.bf16 %v2931, %v2931
      %v3004 = vpack.c.bf16 %v2932, %v2932
      %v3005 = vpack.c.bf16 %v2933, %v2933
      %v3006 = vpack.c.bf16 %v2934, %v2934
      %v3007 = vpack.c.bf16 %v2935, %v2935
      %v3008 = vpack.c.bf16 %v2936, %v2936
      %v3009 = vpack.c.bf16 %v2937, %v2937
      %v3010 = vpack.c.bf16 %v2938, %v2938
      %v3011 = vpack.c.bf16 %v2939, %v2939
      %v3012 = vpack.c.bf16 %v2940, %v2940
      %v3013 = vpack.c.bf16 %v2941, %v2941
      %v3014 = vpack.c.bf16 %v2942, %v2942
      %v3015 = vpack.c.bf16 %v2943, %v2943
      %v3016 = vpack.c.bf16 %v2944, %v2944
      %v3017 = vpack.c.bf16 %v2945, %v2945
      %v3018 = vpack.c.bf16 %v2946, %v2946
      %v3019 = vpack.c.bf16 %v2947, %v2947
      %v3020 = vpack.c.bf16 %v2948, %v2948
      %v3021 = vpack.c.bf16 %v2949, %v2949
      %v3030 = vunpack.c.l.b16 %v2950
      %v3031 = vunpack.c.l.b16 %v2951
      %v3032 = vunpack.c.l.b16 %v2952
      %v3033 = vunpack.c.l.b16 %v2953
      %v3034 = vunpack.c.l.b16 %v2954
      %v3035 = vunpack.c.l.b16 %v2955
      %v3036 = vunpack.c.l.b16 %v2956
      %v3037 = vunpack.c.l.b16 %v2957
      %v3038 = vpack.c.b16 %v3031, %v3030
      %v3039 = vpack.c.b16 %v3033, %v3032
      %v3040 = vpack.c.b16 %v3035, %v3034
      %v3041 = vpack.c.b16 %v3037, %v3036
      %v3050 = vunpack.c.l.b16 %v2958
      %v3051 = vunpack.c.l.b16 %v2959
      %v3052 = vunpack.c.l.b16 %v2960
      %v3053 = vunpack.c.l.b16 %v2961
      %v3054 = vunpack.c.l.b16 %v2962
      %v3055 = vunpack.c.l.b16 %v2963
      %v3056 = vunpack.c.l.b16 %v2964
      %v3057 = vunpack.c.l.b16 %v2965
      %v3058 = vpack.c.b16 %v3051, %v3050
      %v3059 = vpack.c.b16 %v3053, %v3052
      %v3060 = vpack.c.b16 %v3055, %v3054
      %v3061 = vpack.c.b16 %v3057, %v3056
      %3062 = vrot.lane.b32.xlu0 %v3058, 32
      %v3063 = vpop.permute.xlu0 %3062
      %3064 = vrot.lane.b32.xlu0 %v3059, 32
      %v3065 = vpop.permute.xlu0 %3064
      %3066 = vrot.lane.b32.xlu0 %v3060, 32
      %v3067 = vpop.permute.xlu0 %3066
      %3068 = vrot.lane.b32.xlu0 %v3061, 32
      %v3069 = vpop.permute.xlu0 %3068
      %v3078 = vunpack.c.l.b16 %v2966
      %v3079 = vunpack.c.l.b16 %v2967
      %v3080 = vunpack.c.l.b16 %v2968
      %v3081 = vunpack.c.l.b16 %v2969
      %v3082 = vunpack.c.l.b16 %v2970
      %v3083 = vunpack.c.l.b16 %v2971
      %v3084 = vunpack.c.l.b16 %v2972
      %v3085 = vunpack.c.l.b16 %v2973
      %v3086 = vpack.c.b16 %v3079, %v3078
      %v3087 = vpack.c.b16 %v3081, %v3080
      %v3088 = vpack.c.b16 %v3083, %v3082
      %v3089 = vpack.c.b16 %v3085, %v3084
      %3090 = vrot.lane.b32.xlu0 %v3086, 64
      %v3091 = vpop.permute.xlu0 %3090
      %3092 = vrot.lane.b32.xlu0 %v3087, 64
      %v3093 = vpop.permute.xlu0 %3092
      %3094 = vrot.lane.b32.xlu0 %v3088, 64
      %v3095 = vpop.permute.xlu0 %3094
      %3096 = vrot.lane.b32.xlu0 %v3089, 64
      %v3097 = vpop.permute.xlu0 %3096
      %v3106 = vunpack.c.l.b16 %v2974
      %v3107 = vunpack.c.l.b16 %v2975
      %v3108 = vunpack.c.l.b16 %v2976
      %v3109 = vunpack.c.l.b16 %v2977
      %v3110 = vunpack.c.l.b16 %v2978
      %v3111 = vunpack.c.l.b16 %v2979
      %v3112 = vunpack.c.l.b16 %v2980
      %v3113 = vunpack.c.l.b16 %v2981
      %v3114 = vpack.c.b16 %v3107, %v3106
      %v3115 = vpack.c.b16 %v3109, %v3108
      %v3116 = vpack.c.b16 %v3111, %v3110
      %v3117 = vpack.c.b16 %v3113, %v3112
      %3118 = vrot.lane.b32.xlu0 %v3114, 96
      %v3119 = vpop.permute.xlu0 %3118
      %3120 = vrot.lane.b32.xlu0 %v3115, 96
      %v3121 = vpop.permute.xlu0 %3120
      %3122 = vrot.lane.b32.xlu0 %v3116, 96
      %v3123 = vpop.permute.xlu0 %3122
      %3124 = vrot.lane.b32.xlu0 %v3117, 96
      %v3125 = vpop.permute.xlu0 %3124
      %v3134 = vunpack.c.l.b16 %v2982
      %v3135 = vunpack.c.l.b16 %v2983
      %v3136 = vunpack.c.l.b16 %v2984
      %v3137 = vunpack.c.l.b16 %v2985
      %v3138 = vunpack.c.l.b16 %v2986
      %v3139 = vunpack.c.l.b16 %v2987
      %v3140 = vunpack.c.l.b16 %v2988
      %v3141 = vunpack.c.l.b16 %v2989
      %v3142 = vpack.c.b16 %v3135, %v3134
      %v3143 = vpack.c.b16 %v3137, %v3136
      %v3144 = vpack.c.b16 %v3139, %v3138
      %v3145 = vpack.c.b16 %v3141, %v3140
      %v3154 = vunpack.c.l.b16 %v2990
      %v3155 = vunpack.c.l.b16 %v2991
      %v3156 = vunpack.c.l.b16 %v2992
      %v3157 = vunpack.c.l.b16 %v2993
      %v3158 = vunpack.c.l.b16 %v2994
      %v3159 = vunpack.c.l.b16 %v2995
      %v3160 = vunpack.c.l.b16 %v2996
      %v3161 = vunpack.c.l.b16 %v2997
      %v3162 = vpack.c.b16 %v3155, %v3154
      %v3163 = vpack.c.b16 %v3157, %v3156
      %v3164 = vpack.c.b16 %v3159, %v3158
      %v3165 = vpack.c.b16 %v3161, %v3160
      %3166 = vrot.lane.b32.xlu0 %v3162, 32
      %v3167 = vpop.permute.xlu0 %3166
      %3168 = vrot.lane.b32.xlu0 %v3163, 32
      %v3169 = vpop.permute.xlu0 %3168
      %3170 = vrot.lane.b32.xlu0 %v3164, 32
      %v3171 = vpop.permute.xlu0 %3170
      %3172 = vrot.lane.b32.xlu0 %v3165, 32
      %v3173 = vpop.permute.xlu0 %3172
      %v3182 = vunpack.c.l.b16 %v2998
      %v3183 = vunpack.c.l.b16 %v2999
      %v3184 = vunpack.c.l.b16 %v3000
      %v3185 = vunpack.c.l.b16 %v3001
      %v3186 = vunpack.c.l.b16 %v3002
      %v3187 = vunpack.c.l.b16 %v3003
      %v3188 = vunpack.c.l.b16 %v3004
      %v3189 = vunpack.c.l.b16 %v3005
      %v3190 = vpack.c.b16 %v3183, %v3182
      %v3191 = vpack.c.b16 %v3185, %v3184
      %v3192 = vpack.c.b16 %v3187, %v3186
      %v3193 = vpack.c.b16 %v3189, %v3188
      %3194 = vrot.lane.b32.xlu0 %v3190, 64
      %v3195 = vpop.permute.xlu0 %3194
      %3196 = vrot.lane.b32.xlu0 %v3191, 64
      %v3197 = vpop.permute.xlu0 %3196
      %3198 = vrot.lane.b32.xlu0 %v3192, 64
      %v3199 = vpop.permute.xlu0 %3198
      %3200 = vrot.lane.b32.xlu0 %v3193, 64
      %v3201 = vpop.permute.xlu0 %3200
      %v3210 = vunpack.c.l.b16 %v3006
      %v3211 = vunpack.c.l.b16 %v3007
      %v3212 = vunpack.c.l.b16 %v3008
      %v3213 = vunpack.c.l.b16 %v3009
      %v3214 = vunpack.c.l.b16 %v3010
      %v3215 = vunpack.c.l.b16 %v3011
      %v3216 = vunpack.c.l.b16 %v3012
      %v3217 = vunpack.c.l.b16 %v3013
      %v3218 = vpack.c.b16 %v3211, %v3210
      %v3219 = vpack.c.b16 %v3213, %v3212
      %v3220 = vpack.c.b16 %v3215, %v3214
      %v3221 = vpack.c.b16 %v3217, %v3216
      %3222 = vrot.lane.b32.xlu0 %v3218, 96
      %v3223 = vpop.permute.xlu0 %3222
      %3224 = vrot.lane.b32.xlu0 %v3219, 96
      %v3225 = vpop.permute.xlu0 %3224
      %3226 = vrot.lane.b32.xlu0 %v3220, 96
      %v3227 = vpop.permute.xlu0 %3226
      %3228 = vrot.lane.b32.xlu0 %v3221, 96
      %v3229 = vpop.permute.xlu0 %3228
      %v3238 = vunpack.c.l.b16 %v3014
      %v3239 = vunpack.c.l.b16 %v3015
      %v3240 = vunpack.c.l.b16 %v3016
      %v3241 = vunpack.c.l.b16 %v3017
      %v3242 = vunpack.c.l.b16 %v3018
      %v3243 = vunpack.c.l.b16 %v3019
      %v3244 = vunpack.c.l.b16 %v3020
      %v3245 = vunpack.c.l.b16 %v3021
      %v3246 = vpack.c.b16 %v3239, %v3238
      %v3247 = vpack.c.b16 %v3241, %v3240
      %v3248 = vpack.c.b16 %v3243, %v3242
      %v3249 = vpack.c.b16 %v3245, %v3244
      %v3252 = vsel %vm280, %v3038, %v3063
      %v3255 = vsel %vm280, %v3039, %v3065
      %v3258 = vsel %vm280, %v3040, %v3067
      %v3261 = vsel %vm280, %v3041, %v3069
      %vm3262 = vcmask 523264
      %v3264 = vsel %vm3262, %v3252, %v3091
      %v3266 = vsel %vm3262, %v3255, %v3093
      %v3268 = vsel %vm3262, %v3258, %v3095
      %v3270 = vsel %vm3262, %v3261, %v3097
      %vm3271 = vcmask 785408
      %v3273 = vsel %vm3271, %v3264, %v3119
      %v3276 = vsel %vm3271, %v3266, %v3121
      %v3279 = vsel %vm3271, %v3268, %v3123
      %v3282 = vsel %vm3271, %v3270, %v3125
      %v3286 = vsel %vm280, %v3142, %v3167
      %v3289 = vsel %vm280, %v3143, %v3169
      %v3292 = vsel %vm280, %v3144, %v3171
      %v3295 = vsel %vm280, %v3145, %v3173
      %v3297 = vsel %vm3262, %v3286, %v3195
      %v3299 = vsel %vm3262, %v3289, %v3197
      %v3301 = vsel %vm3262, %v3292, %v3199
      %v3303 = vsel %vm3262, %v3295, %v3201
      %v3305 = vsel %vm3271, %v3297, %v3223
      %v3308 = vsel %vm3271, %v3299, %v3225
      %v3311 = vsel %vm3271, %v3301, %v3227
      %v3314 = vsel %vm3271, %v3303, %v3229
      %v3316 = vld [vmem:[%s5] sm:$0xf]
      %v3317 = vld [vmem:[%s5 + $0x4] sm:$0xf]
      %v3318 = vld [vmem:[%s5 + $0x8] sm:$0xf]
      %v3319 = vld [vmem:[%s5 + $0xc] sm:$0xf]
      %v3320 = vld [vmem:[%s5 + $0x10] sm:$0xf]
      %v3321 = vld [vmem:[%s5 + $0x14] sm:$0xf]
      %v3322 = vld [vmem:[%s5 + $0x18] sm:$0xf]
      %v3323 = vld [vmem:[%s5 + $0x1c] sm:$0xf]
      %v3324 = vld [vmem:[%s5 + $0x20] sm:$0xf]
      %v3325 = vld [vmem:[%s5 + $0x24] sm:$0xf]
      %v3326 = vld [vmem:[%s5 + $0x28] sm:$0xf]
      %v3327 = vld [vmem:[%s5 + $0x2c] sm:$0xf]
      %v3328 = vld [vmem:[%s5 + $0x30] sm:$0xf]
      %v3329 = vld [vmem:[%s5 + $0x34] sm:$0xf]
      %v3330 = vld [vmem:[%s5 + $0x38] sm:$0xf]
      %v3331 = vld [vmem:[%s5 + $0x3c] sm:$0xf]
      %v3332 = vld [vmem:[%s5 + $0x40] sm:$0xf]
      %v3333 = vld [vmem:[%s5 + $0x44] sm:$0xf]
      %v3334 = vld [vmem:[%s5 + $0x48] sm:$0xf]
      %v3335 = vld [vmem:[%s5 + $0x4c] sm:$0xf]
      %v3336 = vld [vmem:[%s5 + $0x50] sm:$0xf]
      %v3337 = vld [vmem:[%s5 + $0x54] sm:$0xf]
      %v3338 = vld [vmem:[%s5 + $0x58] sm:$0xf]
      %v3339 = vld [vmem:[%s5 + $0x5c] sm:$0xf]
      %v3340 = vld [vmem:[%s5 + $0x60] sm:$0xf]
      %v3341 = vld [vmem:[%s5 + $0x64] sm:$0xf]
      %v3342 = vld [vmem:[%s5 + $0x68] sm:$0xf]
      %v3343 = vld [vmem:[%s5 + $0x6c] sm:$0xf]
      %v3344 = vld [vmem:[%s5 + $0x70] sm:$0xf]
      %v3345 = vld [vmem:[%s5 + $0x74] sm:$0xf]
      %v3346 = vld [vmem:[%s5 + $0x78] sm:$0xf]
      %v3347 = vld [vmem:[%s5 + $0x7c] sm:$0xf]
      %v3348 = vld [vmem:[%s5 + $0x80] sm:$0xf]
      %v3349 = vld [vmem:[%s5 + $0x84] sm:$0xf]
      %v3350 = vld [vmem:[%s5 + $0x88] sm:$0xf]
      %v3351 = vld [vmem:[%s5 + $0x8c] sm:$0xf]
      %v3352 = vld [vmem:[%s6] sm:$0x1]
      %v3354 = vperm.slane %v3352, 0
      %v3392 = vunpack.c.l.b16 %v3316
      %v3393 = vunpack.c.l.b16 %v3317
      %v3394 = vunpack.c.l.b16 %v3318
      %v3395 = vunpack.c.l.b16 %v3319
      %v3396 = vunpack.c.l.b16 %v3320
      %v3397 = vunpack.c.l.b16 %v3321
      %v3398 = vunpack.c.l.b16 %v3322
      %v3399 = vunpack.c.l.b16 %v3323
      %v3400 = vunpack.c.l.b16 %v3324
      %v3401 = vunpack.c.l.b16 %v3325
      %v3402 = vunpack.c.l.b16 %v3326
      %v3403 = vunpack.c.l.b16 %v3327
      %v3404 = vunpack.c.l.b16 %v3328
      %v3405 = vunpack.c.l.b16 %v3329
      %v3406 = vunpack.c.l.b16 %v3330
      %v3407 = vunpack.c.l.b16 %v3331
      %v3408 = vunpack.c.l.b16 %v3332
      %v3409 = vunpack.c.l.b16 %v3333
      %v3410 = vunpack.c.l.b16 %v3334
      %v3411 = vunpack.c.l.b16 %v3335
      %v3412 = vunpack.c.l.b16 %v3336
      %v3413 = vunpack.c.l.b16 %v3337
      %v3414 = vunpack.c.l.b16 %v3338
      %v3415 = vunpack.c.l.b16 %v3339
      %v3416 = vunpack.c.l.b16 %v3340
      %v3417 = vunpack.c.l.b16 %v3341
      %v3418 = vunpack.c.l.b16 %v3342
      %v3419 = vunpack.c.l.b16 %v3343
      %v3420 = vunpack.c.l.b16 %v3344
      %v3421 = vunpack.c.l.b16 %v3345
      %v3422 = vunpack.c.l.b16 %v3346
      %v3423 = vunpack.c.l.b16 %v3347
      %v3424 = vunpack.c.l.b16 %v3348
      %v3425 = vunpack.c.l.b16 %v3349
      %v3426 = vunpack.c.l.b16 %v3350
      %v3427 = vunpack.c.l.b16 %v3351
      %v3428 = vpack.c.b16 %v3393, %v3392
      %v3429 = vpack.c.b16 %v3395, %v3394
      %v3430 = vpack.c.b16 %v3397, %v3396
      %v3431 = vpack.c.b16 %v3399, %v3398
      %v3432 = vpack.c.b16 %v3401, %v3400
      %v3433 = vpack.c.b16 %v3403, %v3402
      %v3434 = vpack.c.b16 %v3405, %v3404
      %v3435 = vpack.c.b16 %v3407, %v3406
      %v3436 = vpack.c.b16 %v3409, %v3408
      %v3437 = vpack.c.b16 %v3411, %v3410
      %v3438 = vpack.c.b16 %v3413, %v3412
      %v3439 = vpack.c.b16 %v3415, %v3414
      %v3440 = vpack.c.b16 %v3417, %v3416
      %v3441 = vpack.c.b16 %v3419, %v3418
      %v3442 = vpack.c.b16 %v3421, %v3420
      %v3443 = vpack.c.b16 %v3423, %v3422
      %v3444 = vpack.c.b16 %v3425, %v3424
      %v3445 = vpack.c.b16 %v3427, %v3426
      %v3465 = vsel %vm280, %v3246, 0
      %v3468 = vsel %vm280, %v3247, 0
      %v3471 = vsel %vm280, %v3248, 0
      %v3474 = vsel %vm280, %v3249, 0
      %3476 = vmatpush.bf16.msra.mxu0 %v3435
      %3477 = vmatpush.bf16.msra.mxu0 %v3434
      %3478 = vmatpush.bf16.msra.mxu0 %v3433
      %3479 = vmatpush.bf16.msra.mxu0 %v3432
      %3480 = vmatpush.bf16.msra.mxu0 %v3431
      %3481 = vmatpush.bf16.msra.mxu0 %v3430
      %3482 = vmatpush.bf16.msra.mxu0 %v3429
      %3483 = vmatpush.bf16.msra.mxu0 %v3428
      %3484 = vmatmul.bf16.gmra.mxu0 %v3273
      %v3485 = vpop.f32.mrf.mxu0
      %v3486 = vadd.f32 %v3354, %v3485
      %v3487 = vpop.f32.mrf.mxu0
      %v3488 = vadd.f32 %v3354, %v3487
      %3489 = vmatmul.bf16.gmra.mxu0 %v3276
      %v3490 = vpop.f32.mrf.mxu0
      %v3491 = vadd.f32 %v3354, %v3490
      %v3492 = vpop.f32.mrf.mxu0
      %v3493 = vadd.f32 %v3354, %v3492
      %3494 = vmatmul.bf16.gmra.mxu0 %v3279
      %v3495 = vpop.f32.mrf.mxu0
      %v3496 = vadd.f32 %v3354, %v3495
      %v3497 = vpop.f32.mrf.mxu0
      %v3498 = vadd.f32 %v3354, %v3497
      %3499 = vmatmul.bf16.gmra.mxu0 %v3282
      %v3500 = vpop.f32.mrf.mxu0
      %v3501 = vadd.f32 %v3354, %v3500
      %v3502 = vpop.f32.mrf.mxu0
      %v3503 = vadd.f32 %v3354, %v3502
      %3504 = vdwg.mxu0
      %3505 = vmatpush.bf16.msra.mxu0 %v3443
      %3506 = vmatpush.bf16.msra.mxu0 %v3442
      %3507 = vmatpush.bf16.msra.mxu0 %v3441
      %3508 = vmatpush.bf16.msra.mxu0 %v3440
      %3509 = vmatpush.bf16.msra.mxu0 %v3439
      %3510 = vmatpush.bf16.msra.mxu0 %v3438
      %3511 = vmatpush.bf16.msra.mxu0 %v3437
      %3512 = vmatpush.bf16.msra.mxu0 %v3436
      %3513 = vmatmul.bf16.gmra.mxu0 %v3305
      %v3514 = vpop.f32.mrf.mxu0
      %v3515 = vadd.f32 %v3486, %v3514
      %v3516 = vpop.f32.mrf.mxu0
      %v3517 = vadd.f32 %v3488, %v3516
      %3518 = vmatmul.bf16.gmra.mxu0 %v3308
      %v3519 = vpop.f32.mrf.mxu0
      %v3520 = vadd.f32 %v3491, %v3519
      %v3521 = vpop.f32.mrf.mxu0
      %v3522 = vadd.f32 %v3493, %v3521
      %3523 = vmatmul.bf16.gmra.mxu0 %v3311
      %v3524 = vpop.f32.mrf.mxu0
      %v3525 = vadd.f32 %v3496, %v3524
      %v3526 = vpop.f32.mrf.mxu0
      %v3527 = vadd.f32 %v3498, %v3526
      %3528 = vmatmul.bf16.gmra.mxu0 %v3314
      %v3529 = vpop.f32.mrf.mxu0
      %v3530 = vadd.f32 %v3501, %v3529
      %v3531 = vpop.f32.mrf.mxu0
      %v3532 = vadd.f32 %v3503, %v3531
      %3533 = vdwg.mxu0
      %3534 = vmatpush.bf16.msra.mxu0 0
      %3535 = vmatpush.bf16.msra.mxu0 0
      %3536 = vmatpush.bf16.msra.mxu0 0
      %3537 = vmatpush.bf16.msra.mxu0 0
      %3538 = vmatpush.bf16.msra.mxu0 0
      %3539 = vmatpush.bf16.msra.mxu0 0
      %3540 = vmatpush.bf16.msra.mxu0 %v3445
      %3541 = vmatpush.bf16.msra.mxu0 %v3444
      %3542 = vmatmul.bf16.gmra.mxu0 %v3465
      %v3543 = vpop.f32.mrf.mxu0
      %v3544 = vadd.f32 %v3515, %v3543
      %v3545 = vpop.f32.mrf.mxu0
      %v3546 = vadd.f32 %v3517, %v3545
      %3547 = vmatmul.bf16.gmra.mxu0 %v3468
      %v3548 = vpop.f32.mrf.mxu0
      %v3549 = vadd.f32 %v3520, %v3548
      %v3550 = vpop.f32.mrf.mxu0
      %v3551 = vadd.f32 %v3522, %v3550
      %3552 = vmatmul.bf16.gmra.mxu0 %v3471
      %v3553 = vpop.f32.mrf.mxu0
      %v3554 = vadd.f32 %v3525, %v3553
      %v3555 = vpop.f32.mrf.mxu0
      %v3556 = vadd.f32 %v3527, %v3555
      %3557 = vmatmul.bf16.gmra.mxu0 %v3474
      %v3558 = vpop.f32.mrf.mxu0
      %v3559 = vadd.f32 %v3530, %v3558
      %v3560 = vpop.f32.mrf.mxu0
      %v3561 = vadd.f32 %v3532, %v3560
      %3562 = vdwg.mxu0
      %v3563 = vadd.f32 %v3544, %v305
      %v3564 = vadd.f32 %v3546, %v306
      %v3565 = vadd.f32 %v3549, %v307
      %v3566 = vadd.f32 %v3551, %v308
      %v3567 = vadd.f32 %v3554, %v309
      %v3568 = vadd.f32 %v3556, %v310
      %v3569 = vadd.f32 %v3559, %v311
      %v3570 = vadd.f32 %v3561, %v312
      %3571 = vst.msk [vmem:[%s278] sm:$0xff] %vm280, %v3563
      %3572 = vst.msk [vmem:[%s278 + $0x8] sm:$0xff] %vm280, %v3564
      %3573 = vst.msk [vmem:[%s278 + $0x10] sm:$0xff] %vm280, %v3565
      %3574 = vst.msk [vmem:[%s278 + $0x18] sm:$0xff] %vm280, %v3566
      %3575 = vst.msk [vmem:[%s278 + $0x20] sm:$0xff] %vm280, %v3567
      %3576 = vst.msk [vmem:[%s278 + $0x28] sm:$0xff] %vm280, %v3568
      %3577 = vst.msk [vmem:[%s278 + $0x30] sm:$0xff] %vm280, %v3569
      %3578 = vst.msk [vmem:[%s278 + $0x38] sm:$0xff] %vm280, %v3570
      %p3579 = scmp.lt.s32.totalorder %s18, 1
      %s3580 = scalar_select %p3579, %s18, 1
      %s3581 = smul.addr %s3580, 8
      %s3582 = smul.addr %s3581, 8
      %s3583 = scalar_lea.vmem %s7, %s3582
      // Predicated region
      $region49: #{xyj_forward.7} parent=47 // pred_check
        %p3584 = pneg %p188
      $region50: #{xyj_forward.7} parent=47 // pred_check_branch
        %3586 = sbr.rel (%p3584) target = $region52
      $region51: #{xyj_forward.7} parent=47 // pred_region
        _
      $region52: #{xyj_forward.7} parent=47 // pred_fallthru
        _
    $region48: #{xyj_forward.7} parent=5 // pred_fallthru
      _
    %p3587 = scmp.le.s32.totalorder 2, %s13
    // Predicated region
    $region53: #{xyj_forward.7} parent=5 // pred_check
      %p3588 = pneg %p3587
    $region54: #{xyj_forward.7} parent=5 // pred_check_branch
      %3590 = sbr.rel (%p3588) target = $region56
    $region55: #{xyj_forward.7} parent=5 // pred_region
      %s3591 = ssub.s32 %s13, 2
      // Predicated region
      $region57: #{xyj_forward.7} parent=55 // pred_check
        %p3592 = pneg %p194
      $region58: #{xyj_forward.7} parent=55 // pred_check_branch
        %3594 = sbr.rel (%p3592) target = $region60
      $region59: #{xyj_forward.7} parent=55 // pred_region
        %p3595 = scmp.lt.s32.totalorder %s19, 1
        %s3596 = scalar_select %p3595, %s19, 1
        %s3597 = smul.addr %s3596, 8
        %s3598 = smul.addr %s3597, 8
        %s3599 = scalar_lea.vmem %s7, %s3598
      $region60: #{xyj_forward.7} parent=55 // pred_fallthru
        _
    $region56: #{xyj_forward.7} parent=5 // pred_fallthru
      _
  $region6: #{xyj_forward.7} parent=0 // loop_footer
    %s17 = sadd.s32 1, %s13
  $region7: #{xyj_forward.7} parent=0 // loop_footer_branch
    %12 = sbr.rel target = $region3
  $region8: #{xyj_forward.7} parent=0 // loop_exit
    _

</llo_original>
